<compile_context>
chip_gen: v7x
topology: tpu7x:2x2x1
jax: 0.10.0
libtpu: 0.0.40
codegen_flags: <defaults>
</compile_context>

<pallas_src>
import functools

import numpy as np
import jax
import jax.numpy as jnp
from jax.experimental import pallas as pl
from jax.experimental.pallas import tpu as pltpu

BN_EPS = 1e-5


# ----------------------------------------------------------------------------
# In-kernel building blocks (values are (C, M) matrices: channels x N*H*W).
# ----------------------------------------------------------------------------
def _bn_act(y, g, b, relu):
    """Training-mode BatchNorm (biased variance, exact M denominator) + optional ReLU."""
    inv_m = 1.0 / y.shape[1]
    mean = jnp.sum(y, axis=1, keepdims=True) * inv_m
    d = y - mean
    var = jnp.sum(d * d, axis=1, keepdims=True) * inv_m
    out = d * (g * jax.lax.rsqrt(var + BN_EPS)) + b
    return jnp.maximum(out, 0.0) if relu else out


def _tap_conv(x, w_ref, s_ref):
    """Conv / ConvTranspose as two MXU dots against precomputed tap matrices.

    x: (Cin, M_in) f32; w_ref: (9*Cout, Cin) bf16 (rows tap-major);
    s_ref: (9*M_in, M_out) bf16 0/1 gather/scatter (padding, stride, scatter folded in).
    """
    m_in = x.shape[1]
    k2 = s_ref.shape[0] // m_in
    cout = w_ref.shape[0] // k2
    t = jnp.dot(w_ref[...], x.astype(jnp.bfloat16),
                preferred_element_type=jnp.float32).astype(jnp.bfloat16)   # (9*Cout, M_in)
    p = jnp.concatenate([t[k * cout:(k + 1) * cout, :] for k in range(k2)],
                        axis=1)                                            # (Cout, 9*M_in)
    return jnp.dot(p, s_ref[...], preferred_element_type=jnp.float32)      # (Cout, M_out)


def _stem_kernel(a_ref, w_ref, g_ref, b_ref, o_ref):
    """ReflectionPad(3)+Conv7x7 (im2col A from XLA) + BN + ReLU."""
    y = jnp.dot(w_ref[...], a_ref[...], preferred_element_type=jnp.float32)
    o_ref[...] = _bn_act(y, g_ref[...], b_ref[...], True).astype(o_ref.dtype)


def _final_kernel(a_ref, w_ref, bias_ref, o_ref):
    """ReflectionPad(3)+Conv7x7(bias=True) + Tanh."""
    y = jnp.dot(w_ref[...], a_ref[...], preferred_element_type=jnp.float32)
    o_ref[...] = jnp.tanh(y + bias_ref[...]).astype(o_ref.dtype)


def _middle_kernel(plan, a_ref, wd_ref, gd_ref, bd_ref, *refs):
    """down0 .. down_{n-1} .. resnet blocks .. all ConvTranspose ups, fully fused."""
    o_ref = refs[-1]
    lrefs = refs[:-1]          # per tap-layer: (w_stack, s, gamma, beta)

    # down0 (Conv3x3 s2, zero pad) on the XLA-provided im2col block + BN + ReLU.
    h = _bn_act(jnp.dot(wd_ref[...], a_ref[...], preferred_element_type=jnp.float32),
                gd_ref[...], bd_ref[...], True)

    idx = 0

    def layer(x, relu):
        nonlocal idx
        w, s, g, b = lrefs[4 * idx:4 * idx + 4]
        idx += 1
        return _bn_act(_tap_conv(x, w, s), g[...], b[...], relu)

    for tag in plan:
        if tag == "block":
            # ResnetBlock: x + BN(conv(ReLU(BN(conv(x)))));  dropout -> identity.
            h = h + layer(layer(h, True), False)
        else:
            h = layer(h, True)           # down (stride 2) or ConvTranspose up + BN + ReLU
    o_ref[...] = h.astype(o_ref.dtype)


# ----------------------------------------------------------------------------
# Host-side preparation: tap weight stacks and 0/1 gather/scatter matrices.
# ----------------------------------------------------------------------------
def _reflect(i, n):
    if i < 0:
        return -i
    if i >= n:
        return 2 * n - 2 - i
    return i


def _gather_scatter_matrix(N, H, W, Ho, Wo, k, out_to_in):
    """S (k*k*N*H*W, N*Ho*Wo): S[tap*NHW + in_idx, out_idx] = 1 where tap `tap` of
    output pixel out_idx reads input pixel in_idx (rows stay 0 for zero padding and
    for ConvTranspose taps that contribute nothing)."""
    m_in, m_out = N * H * W, N * Ho * Wo
    s = np.zeros((k * k * m_in, m_out), np.float32)
    for ki in range(k):
        for kj in range(k):
            tap = ki * k + kj
            for a in range(Ho):
                for b in range(Wo):
                    ij = out_to_in(a, b, ki, kj)
                    if ij is None:
                        continue
                    i, j = ij
                    for n in range(N):
                        s[tap * m_in + (n * H + i) * W + j, (n * Ho + a) * Wo + b] = 1.0
    return jnp.asarray(s, jnp.bfloat16)


def _conv_taps(N, H, W, k, stride, pad, mode):
    Ho = (H + 2 * pad - k) // stride + 1
    Wo = (W + 2 * pad - k) // stride + 1

    def out_to_in(a, b, ki, kj):
        i = a * stride + ki - pad
        j = b * stride + kj - pad
        if mode == "reflect":
            return _reflect(i, H), _reflect(j, W)
        if 0 <= i < H and 0 <= j < W:
            return i, j
        return None

    return _gather_scatter_matrix(N, H, W, Ho, Wo, k, out_to_in), Ho, Wo


def _convT_taps(N, H, W):
    """ConvTranspose2d(k=3, s=2, p=1, output_padding=1): out pixel p = 2i + ki - 1."""
    Ho, Wo = 2 * H, 2 * W

    def out_to_in(p, q, ki, kj):
        t, u = p + 1 - ki, q + 1 - kj
        if t % 2 or u % 2:
            return None
        i, j = t // 2, u // 2
        if 0 <= i < H and 0 <= j < W:
            return i, j
        return None

    return _gather_scatter_matrix(N, H, W, Ho, Wo, 3, out_to_in), Ho, Wo


def _conv_w_mat(w):
    """(Cout, Cin, kh, kw) -> (Cout, kh*kw*Cin); columns (tap, cin) match _im2col rows."""
    cout, cin, kh, kw = w.shape
    return jnp.transpose(w, (0, 2, 3, 1)).reshape(cout, kh * kw * cin).astype(jnp.bfloat16)


def _conv_w_stack(w):
    """Conv2d weight (Cout, Cin, 3, 3) -> (9*Cout, Cin), rows ordered (tap, cout)."""
    cout, cin, kh, kw = w.shape
    return jnp.transpose(w, (2, 3, 0, 1)).reshape(kh * kw * cout, cin).astype(jnp.bfloat16)


def _convT_w_stack(w):
    """ConvTranspose2d weight (Cin, Cout, 3, 3) -> (9*Cout, Cin), rows ordered (tap, cout)."""
    cin, cout, kh, kw = w.shape
    return jnp.transpose(w, (2, 3, 1, 0)).reshape(kh * kw * cout, cin).astype(jnp.bfloat16)


# ----------------------------------------------------------------------------
# XLA glue used only at the three HBM boundaries (7x7 im2col / down0 im2col).
# ----------------------------------------------------------------------------
def _pad_hw(x, pad, mode):
    if pad == 0:
        return x
    return jnp.pad(x, ((0, 0), (0, 0), (pad, pad), (pad, pad)), mode=mode)


def _im2col(x, k, stride):
    """x: (C, N, H, W) -> A: (k*k*C, N*Ho*Wo); rows ordered (tap, c)."""
    C, N, H, W = x.shape
    Ho = (H - k) // stride + 1
    Wo = (W - k) // stride + 1
    cols = [x[:, :, i:i + stride * (Ho - 1) + 1:stride,
                    j:j + stride * (Wo - 1) + 1:stride]
            for i in range(k) for j in range(k)]
    return jnp.stack(cols, axis=0).reshape(k * k * C, N * Ho * Wo), Ho, Wo


def _cost_estimate(args, out_shape, flops, transcendentals=0):
    ba = int(sum(int(np.prod(a.shape)) * jnp.dtype(a.dtype).itemsize for a in args))
    ba += int(np.prod(out_shape.shape)) * jnp.dtype(out_shape.dtype).itemsize
    return pl.CostEstimate(flops=int(flops), transcendentals=int(transcendentals),
                           bytes_accessed=ba)


# ----------------------------------------------------------------------------
# Parameters: PyTorch-layout init + one-time matmul/tap-matrix preparation.
# ----------------------------------------------------------------------------
def init_params(key, input_nc, output_nc, ngf, n_blocks, n_down):
    keys = iter(jax.random.split(key, 64))
    w = lambda shape: jax.random.normal(next(keys), shape, jnp.float32) * 0.02
    ones = lambda c: jnp.ones((c,), jnp.float32)
    zeros = lambda c: jnp.zeros((c,), jnp.float32)

    params = {
        "c0_w": w((ngf, input_nc, 7, 7)),          # bias=False (BatchNorm -> use_bias=False)
        "bn0_g": ones(ngf), "bn0_b": zeros(ngf),
    }
    for i in range(n_down):
        cin = ngf * (2 ** i)
        cout = cin * 2
        params[f"down{i}"] = dict(w=w((cout, cin, 3, 3)), g=ones(cout), b=zeros(cout))
    dim = ngf * (2 ** n_down)
    for j in range(n_blocks):
        params[f"block{j}"] = dict(
            w1=w((dim, dim, 3, 3)), g1=ones(dim), b1=zeros(dim),
            w2=w((dim, dim, 3, 3)), g2=ones(dim), b2=zeros(dim))
    for i in range(n_down):
        cin = ngf * (2 ** (n_down - i))
        cout = cin // 2
        params[f"up{i}"] = dict(w=w((cin, cout, 3, 3)), g=ones(cout), b=zeros(cout))
    params["cf_w"] = w((output_nc, ngf, 7, 7))     # final conv keeps its default bias=True
    params["cf_b"] = w((output_nc,))
    return params


def prepare_params(params, *, n_blocks, n_down, batch, height, width):
    """Run ONCE outside jit: bf16 matmul weights, f32 (C,1) BN columns, and the 0/1
    tap gather/scatter matrices for every layer of the fused middle kernel."""
    col = lambda v: v.reshape(-1, 1).astype(jnp.float32)
    prep = {
        "c0_w": _conv_w_mat(params["c0_w"]),
        "c0_g": col(params["bn0_g"]), "c0_b": col(params["bn0_b"]),
        "d0_w": _conv_w_mat(params["down0"]["w"]),
        "d0_g": col(params["down0"]["g"]), "d0_b": col(params["down0"]["b"]),
    }
    # spatial size after down0
    h = (height + 2 - 3) // 2 + 1
    w = (width + 2 - 3) // 2 + 1

    layers, plan = [], []
    for i in range(1, n_down):                                 # remaining downsamplers
        p = params[f"down{i}"]
        s, h, w = _conv_taps(batch, h, w, 3, 2, 1, "zero")
        layers.append(dict(w=_conv_w_stack(p["w"]), s=s, g=col(p["g"]), b=col(p["b"])))
        plan.append("conv")
    for j in range(n_blocks):                                  # resnet blocks (reflect pad 1)
        p = params[f"block{j}"]
        s, _, _ = _conv_taps(batch, h, w, 3, 1, 1, "reflect")
        layers.append(dict(w=_conv_w_stack(p["w1"]), s=s, g=col(p["g1"]), b=col(p["b1"])))
        layers.append(dict(w=_conv_w_stack(p["w2"]), s=s, g=col(p["g2"]), b=col(p["b2"])))
        plan.append("block")
    for i in range(n_down):                                    # ConvTranspose upsamplers
        p = params[f"up{i}"]
        s, h, w = _convT_taps(batch, h, w)
        layers.append(dict(w=_convT_w_stack(p["w"]), s=s, g=col(p["g"]), b=col(p["b"])))
        plan.append("conv")

    prep["mid_layers"] = layers
    prep["mid_plan"] = tuple(plan)                             # static; pop before jit
    prep["cf_w"] = _conv_w_mat(params["cf_w"])
    prep["cf_b"] = col(params["cf_b"])
    return prep


# ----------------------------------------------------------------------------
# Forward pass: 3 pallas_calls total.
# ----------------------------------------------------------------------------
def resnet_generator_forward(prep, x_nchw, *, plan):
    N, _, H, W = x_nchw.shape
    ngf = prep["c0_w"].shape[0]

    # --- Kernel 1: ReflectionPad(3) + Conv7x7 + BN + ReLU -------------------------------
    # (NCHW->CNHW transpose, bf16 cast, pad and im2col fuse into one XLA gather fusion.)
    xc = jnp.transpose(x_nchw, (1, 0, 2, 3)).astype(jnp.bfloat16)
    a1, Ho, Wo = _im2col(_pad_hw(xc, 3, "reflect"), 7, 1)
    stem_out = jax.ShapeDtypeStruct((ngf, a1.shape[1]), jnp.bfloat16)
    stem_args = (a1, prep["c0_w"], prep["c0_g"], prep["c0_b"])
    h0 = pl.pallas_call(
        _stem_kernel, out_shape=stem_out,
        cost_estimate=_cost_estimate(stem_args, stem_out,
                                     2 * ngf * a1.shape[0] * a1.shape[1]),
    )(*stem_args)

    # --- down0 im2col (zero pad, stride 2): crosses the stem/middle kernel boundary -----
    a_d0, _, _ = _im2col(_pad_hw(h0.reshape(ngf, N, Ho, Wo), 1, "constant"), 3, 2)

    # --- Kernel 2: down0 -> down1 -> resnet blocks -> up0 -> up1, fully fused ------------
    layers = prep["mid_layers"]
    mid_args = [a_d0, prep["d0_w"], prep["d0_g"], prep["d0_b"]]
    flops = 2 * prep["d0_w"].shape[0] * prep["d0_w"].shape[1] * a_d0.shape[1]
    for lyr in layers:
        mid_args += [lyr["w"], lyr["s"], lyr["g"], lyr["b"]]
        k2c, cin = lyr["w"].shape
        km, m_out = lyr["s"].shape
        flops += 2 * k2c * cin * (km // 9) + 2 * (k2c // 9) * km * m_out
    c_mid = layers[-1]["w"].shape[0] // 9
    m_mid = layers[-1]["s"].shape[1]
    mid_out = jax.ShapeDtypeStruct((c_mid, m_mid), jnp.bfloat16)
    h_up = pl.pallas_call(
        functools.partial(_middle_kernel, plan),
        out_shape=mid_out,
        cost_estimate=_cost_estimate(mid_args, mid_out, flops),
        compiler_params=pltpu.CompilerParams(vmem_limit_bytes=32 * 1024 * 1024),
    )(*mid_args)

    # --- Kernel 3: ReflectionPad(3) + Conv7x7(bias=True) + Tanh --------------------------
    a_f, _, _ = _im2col(_pad_hw(h_up.reshape(c_mid, N, H, W), 3, "reflect"), 7, 1)
    out_nc = prep["cf_w"].shape[0]
    fin_out = jax.ShapeDtypeStruct((out_nc, a_f.shape[1]), jnp.float32)
    fin_args = (a_f, prep["cf_w"], prep["cf_b"])
    y = pl.pallas_call(
        _final_kernel, out_shape=fin_out,
        cost_estimate=_cost_estimate(fin_args, fin_out,
                                     2 * out_nc * a_f.shape[0] * a_f.shape[1],
                                     transcendentals=out_nc * a_f.shape[1]),
    )(*fin_args)
    return jnp.transpose(y.reshape(out_nc, N, H, W), (1, 0, 2, 3))   # CNHW -> NCHW


if __name__ == "__main__":
    INPUT_NC, OUTPUT_NC, NGF, N_BLOCKS, N_DOWN = 4, 3, 8, 2, 2
    B, H, W = 2, 16, 16

    key = jax.random.PRNGKey(0)
    k_params, k_x = jax.random.split(key)
    params = init_params(k_params, INPUT_NC, OUTPUT_NC, NGF, N_BLOCKS, N_DOWN)
    prep = prepare_params(params, n_blocks=N_BLOCKS, n_down=N_DOWN,
                          batch=B, height=H, width=W)          # one-time, outside jit
    plan = prep.pop("mid_plan")                                # static structure
    x = jax.random.normal(k_x, (B, INPUT_NC, H, W), jnp.float32)   # NCHW like PyTorch

    fwd = jax.jit(functools.partial(resnet_generator_forward, plan=plan))
    y = fwd(prep, x)
    jax.block_until_ready(y)

    assert y.shape == (B, OUTPUT_NC, H, W), y.shape
    assert bool(jnp.all(jnp.isfinite(y)))
    assert bool(jnp.all(jnp.abs(y) <= 1.0 + 1e-6))  # tanh output range
    print("KERNEL_OK")
</pallas_src>

<mosaic_0001>
module attributes {stable_mosaic.version = 11 : i64} {
  func.func @_stem_kernel(%arg0: memref<196x512xbf16, #tpu.memory_space<vmem>>, %arg1: memref<8x196xbf16, #tpu.memory_space<vmem>>, %arg2: memref<8x1xf32, #tpu.memory_space<vmem>>, %arg3: memref<8x1xf32, #tpu.memory_space<vmem>>, %arg4: memref<8x512xbf16, #tpu.memory_space<vmem>>) attributes {dimension_semantics = [], scalar_prefetch = 0 : i64, scratch_operands = 0 : i64, tpu.core_type = #tpu.core_type<tc>} {
    %c0 = arith.constant 0 : index
    %c0_0 = arith.constant 0 : index
    %0 = vector.load %arg1[%c0, %c0_0] : memref<8x196xbf16, #tpu.memory_space<vmem>>, vector<8x196xbf16>
    %c0_1 = arith.constant 0 : index
    %c0_2 = arith.constant 0 : index
    %1 = vector.load %arg0[%c0_1, %c0_2] : memref<196x512xbf16, #tpu.memory_space<vmem>>, vector<196x512xbf16>
    %cst = arith.constant dense<0.000000e+00> : vector<8x512xf32>
    %2 = tpu.matmul %0, %1, %cst {dimension_numbers = #tpu.dot_dimension_numbers<[1], [0], [0], [1], [0, 0, 1, 1], [], []>} : vector<8x196xbf16>, vector<196x512xbf16>, vector<8x512xf32> -> vector<8x512xf32>
    %c0_3 = arith.constant 0 : index
    %c0_4 = arith.constant 0 : index
    %3 = vector.load %arg2[%c0_3, %c0_4] : memref<8x1xf32, #tpu.memory_space<vmem>>, vector<8x1xf32>
    %c0_5 = arith.constant 0 : index
    %c0_6 = arith.constant 0 : index
    %4 = vector.load %arg3[%c0_5, %c0_6] : memref<8x1xf32, #tpu.memory_space<vmem>>, vector<8x1xf32>
    %cst_7 = arith.constant dense<0.000000e+00> : vector<8xf32>
    %5 = vector.multi_reduction <add>, %2, %cst_7 [1] : vector<8x512xf32> to vector<8xf32>
    %6 = vector.shape_cast %5 : vector<8xf32> to vector<8x1xf32>
    %cst_8 = arith.constant 0.001953125 : f32
    %7 = vector.broadcast %cst_8 : f32 to vector<8x1xf32>
    %8 = arith.mulf %6, %7 : vector<8x1xf32>
    %9 = vector.broadcast %8 : vector<8x1xf32> to vector<8x512xf32>
    %10 = arith.subf %2, %9 : vector<8x512xf32>
    %11 = arith.mulf %10, %10 : vector<8x512xf32>
    %cst_9 = arith.constant dense<0.000000e+00> : vector<8xf32>
    %12 = vector.multi_reduction <add>, %11, %cst_9 [1] : vector<8x512xf32> to vector<8xf32>
    %13 = vector.shape_cast %12 : vector<8xf32> to vector<8x1xf32>
    %cst_10 = arith.constant 0.001953125 : f32
    %14 = vector.broadcast %cst_10 : f32 to vector<8x1xf32>
    %15 = arith.mulf %13, %14 : vector<8x1xf32>
    %cst_11 = arith.constant 9.99999974E-6 : f32
    %16 = vector.broadcast %cst_11 : f32 to vector<8x1xf32>
    %17 = arith.addf %15, %16 : vector<8x1xf32>
    %18 = math.rsqrt %17 : vector<8x1xf32>
    %19 = arith.mulf %3, %18 : vector<8x1xf32>
    %20 = vector.broadcast %19 : vector<8x1xf32> to vector<8x512xf32>
    %21 = arith.mulf %10, %20 : vector<8x512xf32>
    %22 = vector.broadcast %4 : vector<8x1xf32> to vector<8x512xf32>
    %23 = arith.addf %21, %22 : vector<8x512xf32>
    %cst_12 = arith.constant 0.000000e+00 : f32
    %24 = vector.broadcast %cst_12 : f32 to vector<8x512xf32>
    %25 = arith.maximumf %23, %24 : vector<8x512xf32>
    %26 = arith.truncf %25 : vector<8x512xf32> to vector<8x512xbf16>
    %c0_13 = arith.constant 0 : index
    %c0_14 = arith.constant 0 : index
    %27 = vector.load %arg4[%c0_13, %c0_14] : memref<8x512xbf16, #tpu.memory_space<vmem>>, vector<8x512xbf16>
    tpu.vector_store %arg4[%c0_13, %c0_14], %26 {strides = array<i32>} : memref<8x512xbf16, #tpu.memory_space<vmem>>, vector<8x512xbf16>,
    return
  }
}

module attributes {stable_mosaic.version = 11 : i64} {
  func.func @_middle_kernel(%arg0: memref<72x128xbf16, #tpu.memory_space<vmem>>, %arg1: memref<16x72xbf16, #tpu.memory_space<vmem>>, %arg2: memref<16x1xf32, #tpu.memory_space<vmem>>, %arg3: memref<16x1xf32, #tpu.memory_space<vmem>>, %arg4: memref<288x16xbf16, #tpu.memory_space<vmem>>, %arg5: memref<1152x32xbf16, #tpu.memory_space<vmem>>, %arg6: memref<32x1xf32, #tpu.memory_space<vmem>>, %arg7: memref<32x1xf32, #tpu.memory_space<vmem>>, %arg8: memref<288x32xbf16, #tpu.memory_space<vmem>>, %arg9: memref<288x32xbf16, #tpu.memory_space<vmem>>, %arg10: memref<32x1xf32, #tpu.memory_space<vmem>>, %arg11: memref<32x1xf32, #tpu.memory_space<vmem>>, %arg12: memref<288x32xbf16, #tpu.memory_space<vmem>>, %arg13: memref<288x32xbf16, #tpu.memory_space<vmem>>, %arg14: memref<32x1xf32, #tpu.memory_space<vmem>>, %arg15: memref<32x1xf32, #tpu.memory_space<vmem>>, %arg16: memref<288x32xbf16, #tpu.memory_space<vmem>>, %arg17: memref<288x32xbf16, #tpu.memory_space<vmem>>, %arg18: memref<32x1xf32, #tpu.memory_space<vmem>>, %arg19: memref<32x1xf32, #tpu.memory_space<vmem>>, %arg20: memref<288x32xbf16, #tpu.memory_space<vmem>>, %arg21: memref<288x32xbf16, #tpu.memory_space<vmem>>, %arg22: memref<32x1xf32, #tpu.memory_space<vmem>>, %arg23: memref<32x1xf32, #tpu.memory_space<vmem>>, %arg24: memref<144x32xbf16, #tpu.memory_space<vmem>>, %arg25: memref<288x128xbf16, #tpu.memory_space<vmem>>, %arg26: memref<16x1xf32, #tpu.memory_space<vmem>>, %arg27: memref<16x1xf32, #tpu.memory_space<vmem>>, %arg28: memref<72x16xbf16, #tpu.memory_space<vmem>>, %arg29: memref<1152x512xbf16, #tpu.memory_space<vmem>>, %arg30: memref<8x1xf32, #tpu.memory_space<vmem>>, %arg31: memref<8x1xf32, #tpu.memory_space<vmem>>, %arg32: memref<8x512xbf16, #tpu.memory_space<vmem>>) attributes {dimension_semantics = [], scalar_prefetch = 0 : i64, scratch_operands = 0 : i64, tpu.core_type = #tpu.core_type<tc>} {
    %c0 = arith.constant 0 : index
    %c0_0 = arith.constant 0 : index
    %0 = vector.load %arg1[%c0, %c0_0] : memref<16x72xbf16, #tpu.memory_space<vmem>>, vector<16x72xbf16>
    %c0_1 = arith.constant 0 : index
    %c0_2 = arith.constant 0 : index
    %1 = vector.load %arg0[%c0_1, %c0_2] : memref<72x128xbf16, #tpu.memory_space<vmem>>, vector<72x128xbf16>
    %cst = arith.constant dense<0.000000e+00> : vector<16x128xf32>
    %2 = tpu.matmul %0, %1, %cst {dimension_numbers = #tpu.dot_dimension_numbers<[1], [0], [0], [1], [0, 0, 1, 1], [], []>} : vector<16x72xbf16>, vector<72x128xbf16>, vector<16x128xf32> -> vector<16x128xf32>
    %c0_3 = arith.constant 0 : index
    %c0_4 = arith.constant 0 : index
    %3 = vector.load %arg2[%c0_3, %c0_4] : memref<16x1xf32, #tpu.memory_space<vmem>>, vector<16x1xf32>
    %c0_5 = arith.constant 0 : index
    %c0_6 = arith.constant 0 : index
    %4 = vector.load %arg3[%c0_5, %c0_6] : memref<16x1xf32, #tpu.memory_space<vmem>>, vector<16x1xf32>
    %cst_7 = arith.constant dense<0.000000e+00> : vector<16xf32>
    %5 = vector.multi_reduction <add>, %2, %cst_7 [1] : vector<16x128xf32> to vector<16xf32>
    %6 = vector.shape_cast %5 : vector<16xf32> to vector<16x1xf32>
    %cst_8 = arith.constant 7.812500e-03 : f32
    %7 = vector.broadcast %cst_8 : f32 to vector<16x1xf32>
    %8 = arith.mulf %6, %7 : vector<16x1xf32>
    %9 = vector.broadcast %8 : vector<16x1xf32> to vector<16x128xf32>
    %10 = arith.subf %2, %9 : vector<16x128xf32>
    %11 = arith.mulf %10, %10 : vector<16x128xf32>
    %cst_9 = arith.constant dense<0.000000e+00> : vector<16xf32>
    %12 = vector.multi_reduction <add>, %11, %cst_9 [1] : vector<16x128xf32> to vector<16xf32>
    %13 = vector.shape_cast %12 : vector<16xf32> to vector<16x1xf32>
    %cst_10 = arith.constant 7.812500e-03 : f32
    %14 = vector.broadcast %cst_10 : f32 to vector<16x1xf32>
    %15 = arith.mulf %13, %14 : vector<16x1xf32>
    %cst_11 = arith.constant 9.99999974E-6 : f32
    %16 = vector.broadcast %cst_11 : f32 to vector<16x1xf32>
    %17 = arith.addf %15, %16 : vector<16x1xf32>
    %18 = math.rsqrt %17 : vector<16x1xf32>
    %19 = arith.mulf %3, %18 : vector<16x1xf32>
    %20 = vector.broadcast %19 : vector<16x1xf32> to vector<16x128xf32>
    %21 = arith.mulf %10, %20 : vector<16x128xf32>
    %22 = vector.broadcast %4 : vector<16x1xf32> to vector<16x128xf32>
    %23 = arith.addf %21, %22 : vector<16x128xf32>
    %cst_12 = arith.constant 0.000000e+00 : f32
    %24 = vector.broadcast %cst_12 : f32 to vector<16x128xf32>
    %25 = arith.maximumf %23, %24 : vector<16x128xf32>
    %c0_13 = arith.constant 0 : index
    %c0_14 = arith.constant 0 : index
    %26 = vector.load %arg4[%c0_13, %c0_14] : memref<288x16xbf16, #tpu.memory_space<vmem>>, vector<288x16xbf16>
    %27 = arith.truncf %25 : vector<16x128xf32> to vector<16x128xbf16>
    %cst_15 = arith.constant dense<0.000000e+00> : vector<288x128xf32>
    %28 = tpu.matmul %26, %27, %cst_15 {dimension_numbers = #tpu.dot_dimension_numbers<[1], [0], [0], [1], [0, 0, 1, 1], [], []>} : vector<288x16xbf16>, vector<16x128xbf16>, vector<288x128xf32> -> vector<288x128xf32>
    %29 = arith.truncf %28 : vector<288x128xf32> to vector<288x128xbf16>
    %30 = vector.extract_strided_slice %29 {offsets = [0, 0], sizes = [32, 128], strides = [1, 1]} : vector<288x128xbf16> to vector<32x128xbf16>
    %31 = vector.extract_strided_slice %29 {offsets = [32, 0], sizes = [32, 128], strides = [1, 1]} : vector<288x128xbf16> to vector<32x128xbf16>
    %32 = vector.extract_strided_slice %29 {offsets = [64, 0], sizes = [32, 128], strides = [1, 1]} : vector<288x128xbf16> to vector<32x128xbf16>
    %33 = vector.extract_strided_slice %29 {offsets = [96, 0], sizes = [32, 128], strides = [1, 1]} : vector<288x128xbf16> to vector<32x128xbf16>
    %34 = vector.extract_strided_slice %29 {offsets = [128, 0], sizes = [32, 128], strides = [1, 1]} : vector<288x128xbf16> to vector<32x128xbf16>
    %35 = vector.extract_strided_slice %29 {offsets = [160, 0], sizes = [32, 128], strides = [1, 1]} : vector<288x128xbf16> to vector<32x128xbf16>
    %36 = vector.extract_strided_slice %29 {offsets = [192, 0], sizes = [32, 128], strides = [1, 1]} : vector<288x128xbf16> to vector<32x128xbf16>
    %37 = vector.extract_strided_slice %29 {offsets = [224, 0], sizes = [32, 128], strides = [1, 1]} : vector<288x128xbf16> to vector<32x128xbf16>
    %38 = vector.extract_strided_slice %29 {offsets = [256, 0], sizes = [32, 128], strides = [1, 1]} : vector<288x128xbf16> to vector<32x128xbf16>
    %39 = tpu.concatenate %30, %31, %32, %33, %34, %35, %36, %37, %38 in 1 : vector<32x128xbf16>, vector<32x128xbf16>, vector<32x128xbf16>, vector<32x128xbf16>, vector<32x128xbf16>, vector<32x128xbf16>, vector<32x128xbf16>, vector<32x128xbf16>, vector<32x128xbf16> -> vector<32x1152xbf16>
    %c0_16 = arith.constant 0 : index
    %c0_17 = arith.constant 0 : index
    %40 = vector.load %arg5[%c0_16, %c0_17] : memref<1152x32xbf16, #tpu.memory_space<vmem>>, vector<1152x32xbf16>
    %cst_18 = arith.constant dense<0.000000e+00> : vector<32x32xf32>
    %41 = tpu.matmul %39, %40, %cst_18 {dimension_numbers = #tpu.dot_dimension_numbers<[1], [0], [0], [1], [0, 0, 1, 1], [], []>} : vector<32x1152xbf16>, vector<1152x32xbf16>, vector<32x32xf32> -> vector<32x32xf32>
    %c0_19 = arith.constant 0 : index
    %c0_20 = arith.constant 0 : index
    %42 = vector.load %arg6[%c0_19, %c0_20] : memref<32x1xf32, #tpu.memory_space<vmem>>, vector<32x1xf32>
    %c0_21 = arith.constant 0 : index
    %c0_22 = arith.constant 0 : index
    %43 = vector.load %arg7[%c0_21, %c0_22] : memref<32x1xf32, #tpu.memory_space<vmem>>, vector<32x1xf32>
    %cst_23 = arith.constant dense<0.000000e+00> : vector<32xf32>
    %44 = vector.multi_reduction <add>, %41, %cst_23 [1] : vector<32x32xf32> to vector<32xf32>
    %45 = vector.shape_cast %44 : vector<32xf32> to vector<32x1xf32>
    %cst_24 = arith.constant 3.125000e-02 : f32
    %46 = vector.broadcast %cst_24 : f32 to vector<32x1xf32>
    %47 = arith.mulf %45, %46 : vector<32x1xf32>
    %48 = vector.broadcast %47 : vector<32x1xf32> to vector<32x32xf32>
    %49 = arith.subf %41, %48 : vector<32x32xf32>
    %50 = arith.mulf %49, %49 : vector<32x32xf32>
    %cst_25 = arith.constant dense<0.000000e+00> : vector<32xf32>
    %51 = vector.multi_reduction <add>, %50, %cst_25 [1] : vector<32x32xf32> to vector<32xf32>
    %52 = vector.shape_cast %51 : vector<32xf32> to vector<32x1xf32>
    %cst_26 = arith.constant 3.125000e-02 : f32
    %53 = vector.broadcast %cst_26 : f32 to vector<32x1xf32>
    %54 = arith.mulf %52, %53 : vector<32x1xf32>
    %cst_27 = arith.constant 9.99999974E-6 : f32
    %55 = vector.broadcast %cst_27 : f32 to vector<32x1xf32>
    %56 = arith.addf %54, %55 : vector<32x1xf32>
    %57 = math.rsqrt %56 : vector<32x1xf32>
    %58 = arith.mulf %42, %57 : vector<32x1xf32>
    %59 = vector.broadcast %58 : vector<32x1xf32> to vector<32x32xf32>
    %60 = arith.mulf %49, %59 : vector<32x32xf32>
    %61 = vector.broadcast %43 : vector<32x1xf32> to vector<32x32xf32>
    %62 = arith.addf %60, %61 : vector<32x32xf32>
    %cst_28 = arith.constant 0.000000e+00 : f32
    %63 = vector.broadcast %cst_28 : f32 to vector<32x32xf32>
    %64 = arith.maximumf %62, %63 : vector<32x32xf32>
    %c0_29 = arith.constant 0 : index
    %c0_30 = arith.constant 0 : index
    %65 = vector.load %arg8[%c0_29, %c0_30] : memref<288x32xbf16, #tpu.memory_space<vmem>>, vector<288x32xbf16>
    %66 = arith.truncf %64 : vector<32x32xf32> to vector<32x32xbf16>
    %cst_31 = arith.constant dense<0.000000e+00> : vector<288x32xf32>
    %67 = tpu.matmul %65, %66, %cst_31 {dimension_numbers = #tpu.dot_dimension_numbers<[1], [0], [0], [1], [0, 0, 1, 1], [], []>} : vector<288x32xbf16>, vector<32x32xbf16>, vector<288x32xf32> -> vector<288x32xf32>
    %68 = arith.truncf %67 : vector<288x32xf32> to vector<288x32xbf16>
    %69 = vector.extract_strided_slice %68 {offsets = [0, 0], sizes = [32, 32], strides = [1, 1]} : vector<288x32xbf16> to vector<32x32xbf16>
    %70 = vector.extract_strided_slice %68 {offsets = [32, 0], sizes = [32, 32], strides = [1, 1]} : vector<288x32xbf16> to vector<32x32xbf16>
    %71 = vector.extract_strided_slice %68 {offsets = [64, 0], sizes = [32, 32], strides = [1, 1]} : vector<288x32xbf16> to vector<32x32xbf16>
    %72 = vector.extract_strided_slice %68 {offsets = [96, 0], sizes = [32, 32], strides = [1, 1]} : vector<288x32xbf16> to vector<32x32xbf16>
    %73 = vector.extract_strided_slice %68 {offsets = [128, 0], sizes = [32, 32], strides = [1, 1]} : vector<288x32xbf16> to vector<32x32xbf16>
    %74 = vector.extract_strided_slice %68 {offsets = [160, 0], sizes = [32, 32], strides = [1, 1]} : vector<288x32xbf16> to vector<32x32xbf16>
    %75 = vector.extract_strided_slice %68 {offsets = [192, 0], sizes = [32, 32], strides = [1, 1]} : vector<288x32xbf16> to vector<32x32xbf16>
    %76 = vector.extract_strided_slice %68 {offsets = [224, 0], sizes = [32, 32], strides = [1, 1]} : vector<288x32xbf16> to vector<32x32xbf16>
    %77 = vector.extract_strided_slice %68 {offsets = [256, 0], sizes = [32, 32], strides = [1, 1]} : vector<288x32xbf16> to vector<32x32xbf16>
    %78 = tpu.concatenate %69, %70, %71, %72, %73, %74, %75, %76, %77 in 1 : vector<32x32xbf16>, vector<32x32xbf16>, vector<32x32xbf16>, vector<32x32xbf16>, vector<32x32xbf16>, vector<32x32xbf16>, vector<32x32xbf16>, vector<32x32xbf16>, vector<32x32xbf16> -> vector<32x288xbf16>
    %c0_32 = arith.constant 0 : index
    %c0_33 = arith.constant 0 : index
    %79 = vector.load %arg9[%c0_32, %c0_33] : memref<288x32xbf16, #tpu.memory_space<vmem>>, vector<288x32xbf16>
    %cst_34 = arith.constant dense<0.000000e+00> : vector<32x32xf32>
    %80 = tpu.matmul %78, %79, %cst_34 {dimension_numbers = #tpu.dot_dimension_numbers<[1], [0], [0], [1], [0, 0, 1, 1], [], []>} : vector<32x288xbf16>, vector<288x32xbf16>, vector<32x32xf32> -> vector<32x32xf32>
    %c0_35 = arith.constant 0 : index
    %c0_36 = arith.constant 0 : index
    %81 = vector.load %arg10[%c0_35, %c0_36] : memref<32x1xf32, #tpu.memory_space<vmem>>, vector<32x1xf32>
    %c0_37 = arith.constant 0 : index
    %c0_38 = arith.constant 0 : index
    %82 = vector.load %arg11[%c0_37, %c0_38] : memref<32x1xf32, #tpu.memory_space<vmem>>, vector<32x1xf32>
    %cst_39 = arith.constant dense<0.000000e+00> : vector<32xf32>
    %83 = vector.multi_reduction <add>, %80, %cst_39 [1] : vector<32x32xf32> to vector<32xf32>
    %84 = vector.shape_cast %83 : vector<32xf32> to vector<32x1xf32>
    %cst_40 = arith.constant 3.125000e-02 : f32
    %85 = vector.broadcast %cst_40 : f32 to vector<32x1xf32>
    %86 = arith.mulf %84, %85 : vector<32x1xf32>
    %87 = vector.broadcast %86 : vector<32x1xf32> to vector<32x32xf32>
    %88 = arith.subf %80, %87 : vector<32x32xf32>
    %89 = arith.mulf %88, %88 : vector<32x32xf32>
    %cst_41 = arith.constant dense<0.000000e+00> : vector<32xf32>
    %90 = vector.multi_reduction <add>, %89, %cst_41 [1] : vector<32x32xf32> to vector<32xf32>
    %91 = vector.shape_cast %90 : vector<32xf32> to vector<32x1xf32>
    %cst_42 = arith.constant 3.125000e-02 : f32
    %92 = vector.broadcast %cst_42 : f32 to vector<32x1xf32>
    %93 = arith.mulf %91, %92 : vector<32x1xf32>
    %cst_43 = arith.constant 9.99999974E-6 : f32
    %94 = vector.broadcast %cst_43 : f32 to vector<32x1xf32>
    %95 = arith.addf %93, %94 : vector<32x1xf32>
    %96 = math.rsqrt %95 : vector<32x1xf32>
    %97 = arith.mulf %81, %96 : vector<32x1xf32>
    %98 = vector.broadcast %97 : vector<32x1xf32> to vector<32x32xf32>
    %99 = arith.mulf %88, %98 : vector<32x32xf32>
    %100 = vector.broadcast %82 : vector<32x1xf32> to vector<32x32xf32>
    %101 = arith.addf %99, %100 : vector<32x32xf32>
    %cst_44 = arith.constant 0.000000e+00 : f32
    %102 = vector.broadcast %cst_44 : f32 to vector<32x32xf32>
    %103 = arith.maximumf %101, %102 : vector<32x32xf32>
    %c0_45 = arith.constant 0 : index
    %c0_46 = arith.constant 0 : index
    %104 = vector.load %arg12[%c0_45, %c0_46] : memref<288x32xbf16, #tpu.memory_space<vmem>>, vector<288x32xbf16>
    %105 = arith.truncf %103 : vector<32x32xf32> to vector<32x32xbf16>
    %cst_47 = arith.constant dense<0.000000e+00> : vector<288x32xf32>
    %106 = tpu.matmul %104, %105, %cst_47 {dimension_numbers = #tpu.dot_dimension_numbers<[1], [0], [0], [1], [0, 0, 1, 1], [], []>} : vector<288x32xbf16>, vector<32x32xbf16>, vector<288x32xf32> -> vector<288x32xf32>
    %107 = arith.truncf %106 : vector<288x32xf32> to vector<288x32xbf16>
    %108 = vector.extract_strided_slice %107 {offsets = [0, 0], sizes = [32, 32], strides = [1, 1]} : vector<288x32xbf16> to vector<32x32xbf16>
    %109 = vector.extract_strided_slice %107 {offsets = [32, 0], sizes = [32, 32], strides = [1, 1]} : vector<288x32xbf16> to vector<32x32xbf16>
    %110 = vector.extract_strided_slice %107 {offsets = [64, 0], sizes = [32, 32], strides = [1, 1]} : vector<288x32xbf16> to vector<32x32xbf16>
    %111 = vector.extract_strided_slice %107 {offsets = [96, 0], sizes = [32, 32], strides = [1, 1]} : vector<288x32xbf16> to vector<32x32xbf16>
    %112 = vector.extract_strided_slice %107 {offsets = [128, 0], sizes = [32, 32], strides = [1, 1]} : vector<288x32xbf16> to vector<32x32xbf16>
    %113 = vector.extract_strided_slice %107 {offsets = [160, 0], sizes = [32, 32], strides = [1, 1]} : vector<288x32xbf16> to vector<32x32xbf16>
    %114 = vector.extract_strided_slice %107 {offsets = [192, 0], sizes = [32, 32], strides = [1, 1]} : vector<288x32xbf16> to vector<32x32xbf16>
    %115 = vector.extract_strided_slice %107 {offsets = [224, 0], sizes = [32, 32], strides = [1, 1]} : vector<288x32xbf16> to vector<32x32xbf16>
    %116 = vector.extract_strided_slice %107 {offsets = [256, 0], sizes = [32, 32], strides = [1, 1]} : vector<288x32xbf16> to vector<32x32xbf16>
    %117 = tpu.concatenate %108, %109, %110, %111, %112, %113, %114, %115, %116 in 1 : vector<32x32xbf16>, vector<32x32xbf16>, vector<32x32xbf16>, vector<32x32xbf16>, vector<32x32xbf16>, vector<32x32xbf16>, vector<32x32xbf16>, vector<32x32xbf16>, vector<32x32xbf16> -> vector<32x288xbf16>
    %c0_48 = arith.constant 0 : index
    %c0_49 = arith.constant 0 : index
    %118 = vector.load %arg13[%c0_48, %c0_49] : memref<288x32xbf16, #tpu.memory_space<vmem>>, vector<288x32xbf16>
    %cst_50 = arith.constant dense<0.000000e+00> : vector<32x32xf32>
    %119 = tpu.matmul %117, %118, %cst_50 {dimension_numbers = #tpu.dot_dimension_numbers<[1], [0], [0], [1], [0, 0, 1, 1], [], []>} : vector<32x288xbf16>, vector<288x32xbf16>, vector<32x32xf32> -> vector<32x32xf32>
    %c0_51 = arith.constant 0 : index
    %c0_52 = arith.constant 0 : index
    %120 = vector.load %arg14[%c0_51, %c0_52] : memref<32x1xf32, #tpu.memory_space<vmem>>, vector<32x1xf32>
    %c0_53 = arith.constant 0 : index
    %c0_54 = arith.constant 0 : index
    %121 = vector.load %arg15[%c0_53, %c0_54] : memref<32x1xf32, #tpu.memory_space<vmem>>, vector<32x1xf32>
    %cst_55 = arith.constant dense<0.000000e+00> : vector<32xf32>
    %122 = vector.multi_reduction <add>, %119, %cst_55 [1] : vector<32x32xf32> to vector<32xf32>
    %123 = vector.shape_cast %122 : vector<32xf32> to vector<32x1xf32>
    %cst_56 = arith.constant 3.125000e-02 : f32
    %124 = vector.broadcast %cst_56 : f32 to vector<32x1xf32>
    %125 = arith.mulf %123, %124 : vector<32x1xf32>
    %126 = vector.broadcast %125 : vector<32x1xf32> to vector<32x32xf32>
    %127 = arith.subf %119, %126 : vector<32x32xf32>
    %128 = arith.mulf %127, %127 : vector<32x32xf32>
    %cst_57 = arith.constant dense<0.000000e+00> : vector<32xf32>
    %129 = vector.multi_reduction <add>, %128, %cst_57 [1] : vector<32x32xf32> to vector<32xf32>
    %130 = vector.shape_cast %129 : vector<32xf32> to vector<32x1xf32>
    %cst_58 = arith.constant 3.125000e-02 : f32
    %131 = vector.broadcast %cst_58 : f32 to vector<32x1xf32>
    %132 = arith.mulf %130, %131 : vector<32x1xf32>
    %cst_59 = arith.constant 9.99999974E-6 : f32
    %133 = vector.broadcast %cst_59 : f32 to vector<32x1xf32>
    %134 = arith.addf %132, %133 : vector<32x1xf32>
    %135 = math.rsqrt %134 : vector<32x1xf32>
    %136 = arith.mulf %120, %135 : vector<32x1xf32>
    %137 = vector.broadcast %136 : vector<32x1xf32> to vector<32x32xf32>
    %138 = arith.mulf %127, %137 : vector<32x32xf32>
    %139 = vector.broadcast %121 : vector<32x1xf32> to vector<32x32xf32>
    %140 = arith.addf %138, %139 : vector<32x32xf32>
    %141 = arith.addf %64, %140 : vector<32x32xf32>
    %c0_60 = arith.constant 0 : index
    %c0_61 = arith.constant 0 : index
    %142 = vector.load %arg16[%c0_60, %c0_61] : memref<288x32xbf16, #tpu.memory_space<vmem>>, vector<288x32xbf16>
    %143 = arith.truncf %141 : vector<32x32xf32> to vector<32x32xbf16>
    %cst_62 = arith.constant dense<0.000000e+00> : vector<288x32xf32>
    %144 = tpu.matmul %142, %143, %cst_62 {dimension_numbers = #tpu.dot_dimension_numbers<[1], [0], [0], [1], [0, 0, 1, 1], [], []>} : vector<288x32xbf16>, vector<32x32xbf16>, vector<288x32xf32> -> vector<288x32xf32>
    %145 = arith.truncf %144 : vector<288x32xf32> to vector<288x32xbf16>
    %146 = vector.extract_strided_slice %145 {offsets = [0, 0], sizes = [32, 32], strides = [1, 1]} : vector<288x32xbf16> to vector<32x32xbf16>
    %147 = vector.extract_strided_slice %145 {offsets = [32, 0], sizes = [32, 32], strides = [1, 1]} : vector<288x32xbf16> to vector<32x32xbf16>
    %148 = vector.extract_strided_slice %145 {offsets = [64, 0], sizes = [32, 32], strides = [1, 1]} : vector<288x32xbf16> to vector<32x32xbf16>
    %149 = vector.extract_strided_slice %145 {offsets = [96, 0], sizes = [32, 32], strides = [1, 1]} : vector<288x32xbf16> to vector<32x32xbf16>
    %150 = vector.extract_strided_slice %145 {offsets = [128, 0], sizes = [32, 32], strides = [1, 1]} : vector<288x32xbf16> to vector<32x32xbf16>
    %151 = vector.extract_strided_slice %145 {offsets = [160, 0], sizes = [32, 32], strides = [1, 1]} : vector<288x32xbf16> to vector<32x32xbf16>
    %152 = vector.extract_strided_slice %145 {offsets = [192, 0], sizes = [32, 32], strides = [1, 1]} : vector<288x32xbf16> to vector<32x32xbf16>
    %153 = vector.extract_strided_slice %145 {offsets = [224, 0], sizes = [32, 32], strides = [1, 1]} : vector<288x32xbf16> to vector<32x32xbf16>
    %154 = vector.extract_strided_slice %145 {offsets = [256, 0], sizes = [32, 32], strides = [1, 1]} : vector<288x32xbf16> to vector<32x32xbf16>
    %155 = tpu.concatenate %146, %147, %148, %149, %150, %151, %152, %153, %154 in 1 : vector<32x32xbf16>, vector<32x32xbf16>, vector<32x32xbf16>, vector<32x32xbf16>, vector<32x32xbf16>, vector<32x32xbf16>, vector<32x32xbf16>, vector<32x32xbf16>, vector<32x32xbf16> -> vector<32x288xbf16>
    %c0_63 = arith.constant 0 : index
    %c0_64 = arith.constant 0 : index
    %156 = vector.load %arg17[%c0_63, %c0_64] : memref<288x32xbf16, #tpu.memory_space<vmem>>, vector<288x32xbf16>
    %cst_65 = arith.constant dense<0.000000e+00> : vector<32x32xf32>
    %157 = tpu.matmul %155, %156, %cst_65 {dimension_numbers = #tpu.dot_dimension_numbers<[1], [0], [0], [1], [0, 0, 1, 1], [], []>} : vector<32x288xbf16>, vector<288x32xbf16>, vector<32x32xf32> -> vector<32x32xf32>
    %c0_66 = arith.constant 0 : index
    %c0_67 = arith.constant 0 : index
    %158 = vector.load %arg18[%c0_66, %c0_67] : memref<32x1xf32, #tpu.memory_space<vmem>>, vector<32x1xf32>
    %c0_68 = arith.constant 0 : index
    %c0_69 = arith.constant 0 : index
    %159 = vector.load %arg19[%c0_68, %c0_69] : memref<32x1xf32, #tpu.memory_space<vmem>>, vector<32x1xf32>
    %cst_70 = arith.constant dense<0.000000e+00> : vector<32xf32>
    %160 = vector.multi_reduction <add>, %157, %cst_70 [1] : vector<32x32xf32> to vector<32xf32>
    %161 = vector.shape_cast %160 : vector<32xf32> to vector<32x1xf32>
    %cst_71 = arith.constant 3.125000e-02 : f32
    %162 = vector.broadcast %cst_71 : f32 to vector<32x1xf32>
    %163 = arith.mulf %161, %162 : vector<32x1xf32>
    %164 = vector.broadcast %163 : vector<32x1xf32> to vector<32x32xf32>
    %165 = arith.subf %157, %164 : vector<32x32xf32>
    %166 = arith.mulf %165, %165 : vector<32x32xf32>
    %cst_72 = arith.constant dense<0.000000e+00> : vector<32xf32>
    %167 = vector.multi_reduction <add>, %166, %cst_72 [1] : vector<32x32xf32> to vector<32xf32>
    %168 = vector.shape_cast %167 : vector<32xf32> to vector<32x1xf32>
    %cst_73 = arith.constant 3.125000e-02 : f32
    %169 = vector.broadcast %cst_73 : f32 to vector<32x1xf32>
    %170 = arith.mulf %168, %169 : vector<32x1xf32>
    %cst_74 = arith.constant 9.99999974E-6 : f32
    %171 = vector.broadcast %cst_74 : f32 to vector<32x1xf32>
    %172 = arith.addf %170, %171 : vector<32x1xf32>
    %173 = math.rsqrt %172 : vector<32x1xf32>
    %174 = arith.mulf %158, %173 : vector<32x1xf32>
    %175 = vector.broadcast %174 : vector<32x1xf32> to vector<32x32xf32>
    %176 = arith.mulf %165, %175 : vector<32x32xf32>
    %177 = vector.broadcast %159 : vector<32x1xf32> to vector<32x32xf32>
    %178 = arith.addf %176, %177 : vector<32x32xf32>
    %cst_75 = arith.constant 0.000000e+00 : f32
    %179 = vector.broadcast %cst_75 : f32 to vector<32x32xf32>
    %180 = arith.maximumf %178, %179 : vector<32x32xf32>
    %c0_76 = arith.constant 0 : index
    %c0_77 = arith.constant 0 : index
    %181 = vector.load %arg20[%c0_76, %c0_77] : memref<288x32xbf16, #tpu.memory_space<vmem>>, vector<288x32xbf16>
    %182 = arith.truncf %180 : vector<32x32xf32> to vector<32x32xbf16>
    %cst_78 = arith.constant dense<0.000000e+00> : vector<288x32xf32>
    %183 = tpu.matmul %181, %182, %cst_78 {dimension_numbers = #tpu.dot_dimension_numbers<[1], [0], [0], [1], [0, 0, 1, 1], [], []>} : vector<288x32xbf16>, vector<32x32xbf16>, vector<288x32xf32> -> vector<288x32xf32>
    %184 = arith.truncf %183 : vector<288x32xf32> to vector<288x32xbf16>
    %185 = vector.extract_strided_slice %184 {offsets = [0, 0], sizes = [32, 32], strides = [1, 1]} : vector<288x32xbf16> to vector<32x32xbf16>
    %186 = vector.extract_strided_slice %184 {offsets = [32, 0], sizes = [32, 32], strides = [1, 1]} : vector<288x32xbf16> to vector<32x32xbf16>
    %187 = vector.extract_strided_slice %184 {offsets = [64, 0], sizes = [32, 32], strides = [1, 1]} : vector<288x32xbf16> to vector<32x32xbf16>
    %188 = vector.extract_strided_slice %184 {offsets = [96, 0], sizes = [32, 32], strides = [1, 1]} : vector<288x32xbf16> to vector<32x32xbf16>
    %189 = vector.extract_strided_slice %184 {offsets = [128, 0], sizes = [32, 32], strides = [1, 1]} : vector<288x32xbf16> to vector<32x32xbf16>
    %190 = vector.extract_strided_slice %184 {offsets = [160, 0], sizes = [32, 32], strides = [1, 1]} : vector<288x32xbf16> to vector<32x32xbf16>
    %191 = vector.extract_strided_slice %184 {offsets = [192, 0], sizes = [32, 32], strides = [1, 1]} : vector<288x32xbf16> to vector<32x32xbf16>
    %192 = vector.extract_strided_slice %184 {offsets = [224, 0], sizes = [32, 32], strides = [1, 1]} : vector<288x32xbf16> to vector<32x32xbf16>
    %193 = vector.extract_strided_slice %184 {offsets = [256, 0], sizes = [32, 32], strides = [1, 1]} : vector<288x32xbf16> to vector<32x32xbf16>
    %194 = tpu.concatenate %185, %186, %187, %188, %189, %190, %191, %192, %193 in 1 : vector<32x32xbf16>, vector<32x32xbf16>, vector<32x32xbf16>, vector<32x32xbf16>, vector<32x32xbf16>, vector<32x32xbf16>, vector<32x32xbf16>, vector<32x32xbf16>, vector<32x32xbf16> -> vector<32x288xbf16>
    %c0_79 = arith.constant 0 : index
    %c0_80 = arith.constant 0 : index
    %195 = vector.load %arg21[%c0_79, %c0_80] : memref<288x32xbf16, #tpu.memory_space<vmem>>, vector<288x32xbf16>
    %cst_81 = arith.constant dense<0.000000e+00> : vector<32x32xf32>
    %196 = tpu.matmul %194, %195, %cst_81 {dimension_numbers = #tpu.dot_dimension_numbers<[1], [0], [0], [1], [0, 0, 1, 1], [], []>} : vector<32x288xbf16>, vector<288x32xbf16>, vector<32x32xf32> -> vector<32x32xf32>
    %c0_82 = arith.constant 0 : index
    %c0_83 = arith.constant 0 : index
    %197 = vector.load %arg22[%c0_82, %c0_83] : memref<32x1xf32, #tpu.memory_space<vmem>>, vector<32x1xf32>
    %c0_84 = arith.constant 0 : index
    %c0_85 = arith.constant 0 : index
    %198 = vector.load %arg23[%c0_84, %c0_85] : memref<32x1xf32, #tpu.memory_space<vmem>>, vector<32x1xf32>
    %cst_86 = arith.constant dense<0.000000e+00> : vector<32xf32>
    %199 = vector.multi_reduction <add>, %196, %cst_86 [1] : vector<32x32xf32> to vector<32xf32>
    %200 = vector.shape_cast %199 : vector<32xf32> to vector<32x1xf32>
    %cst_87 = arith.constant 3.125000e-02 : f32
    %201 = vector.broadcast %cst_87 : f32 to vector<32x1xf32>
    %202 = arith.mulf %200, %201 : vector<32x1xf32>
    %203 = vector.broadcast %202 : vector<32x1xf32> to vector<32x32xf32>
    %204 = arith.subf %196, %203 : vector<32x32xf32>
    %205 = arith.mulf %204, %204 : vector<32x32xf32>
    %cst_88 = arith.constant dense<0.000000e+00> : vector<32xf32>
    %206 = vector.multi_reduction <add>, %205, %cst_88 [1] : vector<32x32xf32> to vector<32xf32>
    %207 = vector.shape_cast %206 : vector<32xf32> to vector<32x1xf32>
    %cst_89 = arith.constant 3.125000e-02 : f32
    %208 = vector.broadcast %cst_89 : f32 to vector<32x1xf32>
    %209 = arith.mulf %207, %208 : vector<32x1xf32>
    %cst_90 = arith.constant 9.99999974E-6 : f32
    %210 = vector.broadcast %cst_90 : f32 to vector<32x1xf32>
    %211 = arith.addf %209, %210 : vector<32x1xf32>
    %212 = math.rsqrt %211 : vector<32x1xf32>
    %213 = arith.mulf %197, %212 : vector<32x1xf32>
    %214 = vector.broadcast %213 : vector<32x1xf32> to vector<32x32xf32>
    %215 = arith.mulf %204, %214 : vector<32x32xf32>
    %216 = vector.broadcast %198 : vector<32x1xf32> to vector<32x32xf32>
    %217 = arith.addf %215, %216 : vector<32x32xf32>
    %218 = arith.addf %141, %217 : vector<32x32xf32>
    %c0_91 = arith.constant 0 : index
    %c0_92 = arith.constant 0 : index
    %219 = vector.load %arg24[%c0_91, %c0_92] : memref<144x32xbf16, #tpu.memory_space<vmem>>, vector<144x32xbf16>
    %220 = arith.truncf %218 : vector<32x32xf32> to vector<32x32xbf16>
    %cst_93 = arith.constant dense<0.000000e+00> : vector<144x32xf32>
    %221 = tpu.matmul %219, %220, %cst_93 {dimension_numbers = #tpu.dot_dimension_numbers<[1], [0], [0], [1], [0, 0, 1, 1], [], []>} : vector<144x32xbf16>, vector<32x32xbf16>, vector<144x32xf32> -> vector<144x32xf32>
    %222 = arith.truncf %221 : vector<144x32xf32> to vector<144x32xbf16>
    %223 = vector.extract_strided_slice %222 {offsets = [0, 0], sizes = [16, 32], strides = [1, 1]} : vector<144x32xbf16> to vector<16x32xbf16>
    %224 = vector.extract_strided_slice %222 {offsets = [16, 0], sizes = [16, 32], strides = [1, 1]} : vector<144x32xbf16> to vector<16x32xbf16>
    %225 = vector.extract_strided_slice %222 {offsets = [32, 0], sizes = [16, 32], strides = [1, 1]} : vector<144x32xbf16> to vector<16x32xbf16>
    %226 = vector.extract_strided_slice %222 {offsets = [48, 0], sizes = [16, 32], strides = [1, 1]} : vector<144x32xbf16> to vector<16x32xbf16>
    %227 = vector.extract_strided_slice %222 {offsets = [64, 0], sizes = [16, 32], strides = [1, 1]} : vector<144x32xbf16> to vector<16x32xbf16>
    %228 = vector.extract_strided_slice %222 {offsets = [80, 0], sizes = [16, 32], strides = [1, 1]} : vector<144x32xbf16> to vector<16x32xbf16>
    %229 = vector.extract_strided_slice %222 {offsets = [96, 0], sizes = [16, 32], strides = [1, 1]} : vector<144x32xbf16> to vector<16x32xbf16>
    %230 = vector.extract_strided_slice %222 {offsets = [112, 0], sizes = [16, 32], strides = [1, 1]} : vector<144x32xbf16> to vector<16x32xbf16>
    %231 = vector.extract_strided_slice %222 {offsets = [128, 0], sizes = [16, 32], strides = [1, 1]} : vector<144x32xbf16> to vector<16x32xbf16>
    %232 = tpu.concatenate %223, %224, %225, %226, %227, %228, %229, %230, %231 in 1 : vector<16x32xbf16>, vector<16x32xbf16>, vector<16x32xbf16>, vector<16x32xbf16>, vector<16x32xbf16>, vector<16x32xbf16>, vector<16x32xbf16>, vector<16x32xbf16>, vector<16x32xbf16> -> vector<16x288xbf16>
    %c0_94 = arith.constant 0 : index
    %c0_95 = arith.constant 0 : index
    %233 = vector.load %arg25[%c0_94, %c0_95] : memref<288x128xbf16, #tpu.memory_space<vmem>>, vector<288x128xbf16>
    %cst_96 = arith.constant dense<0.000000e+00> : vector<16x128xf32>
    %234 = tpu.matmul %232, %233, %cst_96 {dimension_numbers = #tpu.dot_dimension_numbers<[1], [0], [0], [1], [0, 0, 1, 1], [], []>} : vector<16x288xbf16>, vector<288x128xbf16>, vector<16x128xf32> -> vector<16x128xf32>
    %c0_97 = arith.constant 0 : index
    %c0_98 = arith.constant 0 : index
    %235 = vector.load %arg26[%c0_97, %c0_98] : memref<16x1xf32, #tpu.memory_space<vmem>>, vector<16x1xf32>
    %c0_99 = arith.constant 0 : index
    %c0_100 = arith.constant 0 : index
    %236 = vector.load %arg27[%c0_99, %c0_100] : memref<16x1xf32, #tpu.memory_space<vmem>>, vector<16x1xf32>
    %cst_101 = arith.constant dense<0.000000e+00> : vector<16xf32>
    %237 = vector.multi_reduction <add>, %234, %cst_101 [1] : vector<16x128xf32> to vector<16xf32>
    %238 = vector.shape_cast %237 : vector<16xf32> to vector<16x1xf32>
    %cst_102 = arith.constant 7.812500e-03 : f32
    %239 = vector.broadcast %cst_102 : f32 to vector<16x1xf32>
    %240 = arith.mulf %238, %239 : vector<16x1xf32>
    %241 = vector.broadcast %240 : vector<16x1xf32> to vector<16x128xf32>
    %242 = arith.subf %234, %241 : vector<16x128xf32>
    %243 = arith.mulf %242, %242 : vector<16x128xf32>
    %cst_103 = arith.constant dense<0.000000e+00> : vector<16xf32>
    %244 = vector.multi_reduction <add>, %243, %cst_103 [1] : vector<16x128xf32> to vector<16xf32>
    %245 = vector.shape_cast %244 : vector<16xf32> to vector<16x1xf32>
    %cst_104 = arith.constant 7.812500e-03 : f32
    %246 = vector.broadcast %cst_104 : f32 to vector<16x1xf32>
    %247 = arith.mulf %245, %246 : vector<16x1xf32>
    %cst_105 = arith.constant 9.99999974E-6 : f32
    %248 = vector.broadcast %cst_105 : f32 to vector<16x1xf32>
    %249 = arith.addf %247, %248 : vector<16x1xf32>
    %250 = math.rsqrt %249 : vector<16x1xf32>
    %251 = arith.mulf %235, %250 : vector<16x1xf32>
    %252 = vector.broadcast %251 : vector<16x1xf32> to vector<16x128xf32>
    %253 = arith.mulf %242, %252 : vector<16x128xf32>
    %254 = vector.broadcast %236 : vector<16x1xf32> to vector<16x128xf32>
    %255 = arith.addf %253, %254 : vector<16x128xf32>
    %cst_106 = arith.constant 0.000000e+00 : f32
    %256 = vector.broadcast %cst_106 : f32 to vector<16x128xf32>
    %257 = arith.maximumf %255, %256 : vector<16x128xf32>
    %c0_107 = arith.constant 0 : index
    %c0_108 = arith.constant 0 : index
    %258 = vector.load %arg28[%c0_107, %c0_108] : memref<72x16xbf16, #tpu.memory_space<vmem>>, vector<72x16xbf16>
    %259 = arith.truncf %257 : vector<16x128xf32> to vector<16x128xbf16>
    %cst_109 = arith.constant dense<0.000000e+00> : vector<72x128xf32>
    %260 = tpu.matmul %258, %259, %cst_109 {dimension_numbers = #tpu.dot_dimension_numbers<[1], [0], [0], [1], [0, 0, 1, 1], [], []>} : vector<72x16xbf16>, vector<16x128xbf16>, vector<72x128xf32> -> vector<72x128xf32>
    %261 = arith.truncf %260 : vector<72x128xf32> to vector<72x128xbf16>
    %262 = vector.extract_strided_slice %261 {offsets = [0, 0], sizes = [8, 128], strides = [1, 1]} : vector<72x128xbf16> to vector<8x128xbf16>
    %263 = vector.extract_strided_slice %261 {offsets = [8, 0], sizes = [8, 128], strides = [1, 1]} : vector<72x128xbf16> to vector<8x128xbf16>
    %264 = vector.extract_strided_slice %261 {offsets = [16, 0], sizes = [8, 128], strides = [1, 1]} : vector<72x128xbf16> to vector<8x128xbf16>
    %265 = vector.extract_strided_slice %261 {offsets = [24, 0], sizes = [8, 128], strides = [1, 1]} : vector<72x128xbf16> to vector<8x128xbf16>
    %266 = vector.extract_strided_slice %261 {offsets = [32, 0], sizes = [8, 128], strides = [1, 1]} : vector<72x128xbf16> to vector<8x128xbf16>
    %267 = vector.extract_strided_slice %261 {offsets = [40, 0], sizes = [8, 128], strides = [1, 1]} : vector<72x128xbf16> to vector<8x128xbf16>
    %268 = vector.extract_strided_slice %261 {offsets = [48, 0], sizes = [8, 128], strides = [1, 1]} : vector<72x128xbf16> to vector<8x128xbf16>
    %269 = vector.extract_strided_slice %261 {offsets = [56, 0], sizes = [8, 128], strides = [1, 1]} : vector<72x128xbf16> to vector<8x128xbf16>
    %270 = vector.extract_strided_slice %261 {offsets = [64, 0], sizes = [8, 128], strides = [1, 1]} : vector<72x128xbf16> to vector<8x128xbf16>
    %271 = tpu.concatenate %262, %263, %264, %265, %266, %267, %268, %269, %270 in 1 : vector<8x128xbf16>, vector<8x128xbf16>, vector<8x128xbf16>, vector<8x128xbf16>, vector<8x128xbf16>, vector<8x128xbf16>, vector<8x128xbf16>, vector<8x128xbf16>, vector<8x128xbf16> -> vector<8x1152xbf16>
    %c0_110 = arith.constant 0 : index
    %c0_111 = arith.constant 0 : index
    %272 = vector.load %arg29[%c0_110, %c0_111] : memref<1152x512xbf16, #tpu.memory_space<vmem>>, vector<1152x512xbf16>
    %cst_112 = arith.constant dense<0.000000e+00> : vector<8x512xf32>
    %273 = tpu.matmul %271, %272, %cst_112 {dimension_numbers = #tpu.dot_dimension_numbers<[1], [0], [0], [1], [0, 0, 1, 1], [], []>} : vector<8x1152xbf16>, vector<1152x512xbf16>, vector<8x512xf32> -> vector<8x512xf32>
    %c0_113 = arith.constant 0 : index
    %c0_114 = arith.constant 0 : index
    %274 = vector.load %arg30[%c0_113, %c0_114] : memref<8x1xf32, #tpu.memory_space<vmem>>, vector<8x1xf32>
    %c0_115 = arith.constant 0 : index
    %c0_116 = arith.constant 0 : index
    %275 = vector.load %arg31[%c0_115, %c0_116] : memref<8x1xf32, #tpu.memory_space<vmem>>, vector<8x1xf32>
    %cst_117 = arith.constant dense<0.000000e+00> : vector<8xf32>
    %276 = vector.multi_reduction <add>, %273, %cst_117 [1] : vector<8x512xf32> to vector<8xf32>
    %277 = vector.shape_cast %276 : vector<8xf32> to vector<8x1xf32>
    %cst_118 = arith.constant 0.001953125 : f32
    %278 = vector.broadcast %cst_118 : f32 to vector<8x1xf32>
    %279 = arith.mulf %277, %278 : vector<8x1xf32>
    %280 = vector.broadcast %279 : vector<8x1xf32> to vector<8x512xf32>
    %281 = arith.subf %273, %280 : vector<8x512xf32>
    %282 = arith.mulf %281, %281 : vector<8x512xf32>
    %cst_119 = arith.constant dense<0.000000e+00> : vector<8xf32>
    %283 = vector.multi_reduction <add>, %282, %cst_119 [1] : vector<8x512xf32> to vector<8xf32>
    %284 = vector.shape_cast %283 : vector<8xf32> to vector<8x1xf32>
    %cst_120 = arith.constant 0.001953125 : f32
    %285 = vector.broadcast %cst_120 : f32 to vector<8x1xf32>
    %286 = arith.mulf %284, %285 : vector<8x1xf32>
    %cst_121 = arith.constant 9.99999974E-6 : f32
    %287 = vector.broadcast %cst_121 : f32 to vector<8x1xf32>
    %288 = arith.addf %286, %287 : vector<8x1xf32>
    %289 = math.rsqrt %288 : vector<8x1xf32>
    %290 = arith.mulf %274, %289 : vector<8x1xf32>
    %291 = vector.broadcast %290 : vector<8x1xf32> to vector<8x512xf32>
    %292 = arith.mulf %281, %291 : vector<8x512xf32>
    %293 = vector.broadcast %275 : vector<8x1xf32> to vector<8x512xf32>
    %294 = arith.addf %292, %293 : vector<8x512xf32>
    %cst_122 = arith.constant 0.000000e+00 : f32
    %295 = vector.broadcast %cst_122 : f32 to vector<8x512xf32>
    %296 = arith.maximumf %294, %295 : vector<8x512xf32>
    %297 = arith.truncf %296 : vector<8x512xf32> to vector<8x512xbf16>
    %c0_123 = arith.constant 0 : index
    %c0_124 = arith.constant 0 : index
    %298 = vector.load %arg32[%c0_123, %c0_124] : memref<8x512xbf16, #tpu.memory_space<vmem>>, vector<8x512xbf16>
    tpu.vector_store %arg32[%c0_123, %c0_124], %297 {strides = array<i32>} : memref<8x512xbf16, #tpu.memory_space<vmem>>, vector<8x512xbf16>,
    return
  }
}

module attributes {stable_mosaic.version = 11 : i64} {
  func.func @_final_kernel(%arg0: memref<392x512xbf16, #tpu.memory_space<vmem>>, %arg1: memref<3x392xbf16, #tpu.memory_space<vmem>>, %arg2: memref<3x1xf32, #tpu.memory_space<vmem>>, %arg3: memref<3x512xf32, #tpu.memory_space<vmem>>) attributes {dimension_semantics = [], scalar_prefetch = 0 : i64, scratch_operands = 0 : i64, tpu.core_type = #tpu.core_type<tc>} {
    %c0 = arith.constant 0 : index
    %c0_0 = arith.constant 0 : index
    %0 = vector.load %arg1[%c0, %c0_0] : memref<3x392xbf16, #tpu.memory_space<vmem>>, vector<3x392xbf16>
    %c0_1 = arith.constant 0 : index
    %c0_2 = arith.constant 0 : index
    %1 = vector.load %arg0[%c0_1, %c0_2] : memref<392x512xbf16, #tpu.memory_space<vmem>>, vector<392x512xbf16>
    %cst = arith.constant dense<0.000000e+00> : vector<3x512xf32>
    %2 = tpu.matmul %0, %1, %cst {dimension_numbers = #tpu.dot_dimension_numbers<[1], [0], [0], [1], [0, 0, 1, 1], [], []>} : vector<3x392xbf16>, vector<392x512xbf16>, vector<3x512xf32> -> vector<3x512xf32>
    %c0_3 = arith.constant 0 : index
    %c0_4 = arith.constant 0 : index
    %3 = vector.load %arg2[%c0_3, %c0_4] : memref<3x1xf32, #tpu.memory_space<vmem>>, vector<3x1xf32>
    %4 = vector.broadcast %3 : vector<3x1xf32> to vector<3x512xf32>
    %5 = arith.addf %2, %4 : vector<3x512xf32>
    %6 = math.tanh %5 : vector<3x512xf32>
    %c0_5 = arith.constant 0 : index
    %c0_6 = arith.constant 0 : index
    %7 = vector.load %arg3[%c0_5, %c0_6] : memref<3x512xf32, #tpu.memory_space<vmem>>, vector<3x512xf32>
    tpu.vector_store %arg3[%c0_5, %c0_6], %6 {strides = array<i32>} : memref<3x512xf32, #tpu.memory_space<vmem>>, vector<3x512xf32>,
    return
  }
}

</mosaic_0001>

<llo_original>
// kernel: resnet_generator_forward.3
$region0: #{resnet_generator_forward.3}
  #allocation0 [shape = 'u32[]', space=smem, size = 0x4, offset = 0x4, fixed_abs, tag = 'smem constant byte address 0x4 - core index']
  #allocation1 [shape = 'u32[144,128]{1,0:T(1,128)}', space=vmem, size = 0x12000, scoped, tag = 'internal scratch']
  %s0 = inlined_call_operand.vmem [shape: bf16[196,512], index: 0, kind: input, shape index: {}]
  %s1 = inlined_call_operand.vmem [shape: bf16[8,196], index: 1, kind: input, shape index: {}]
  %s2 = inlined_call_operand.vmem [shape: f32[8,1], index: 2, kind: input, shape index: {}]
  %s3 = inlined_call_operand.vmem [shape: f32[8,1], index: 3, kind: input, shape index: {}]
  %s4 = inlined_call_operand.vmem [shape: bf16[8,512], index: 4, kind: output, shape index: {}]
  %s5 = sld [smem:[#allocation0]]
  $region26: #{resnet_generator_forward.3} parent=0
    _
  %s7 = ssub.s32 1, %s5
  %s8 = scalar_select 0, %s7, %s5
  // Predicated region
  $region2: #{resnet_generator_forward.3} parent=0 // pred_check
    _
  $region3: #{resnet_generator_forward.3} parent=0 // pred_check_branch
    %10 = sbr.rel (0) target = $region5
  $region4: #{resnet_generator_forward.3} parent=0 // pred_region
    _
  $region5: #{resnet_generator_forward.3} parent=0 // pred_fallthru
    _
  // Predicated region
  $region6: #{resnet_generator_forward.3} parent=0 // pred_check
    _
  $region7: #{resnet_generator_forward.3} parent=0 // pred_check_branch
    %12 = sbr.rel (0) target = $region9
  $region8: #{resnet_generator_forward.3} parent=0 // pred_region
    _
  $region9: #{resnet_generator_forward.3} parent=0 // pred_fallthru
    _
  // Predicated region
  $region10: #{resnet_generator_forward.3} parent=0 // pred_check
    _
  $region11: #{resnet_generator_forward.3} parent=0 // pred_check_branch
    %14 = sbr.rel (0) target = $region13
  $region12: #{resnet_generator_forward.3} parent=0 // pred_region
    _
  $region13: #{resnet_generator_forward.3} parent=0 // pred_fallthru
    _
  // Predicated region
  $region14: #{resnet_generator_forward.3} parent=0 // pred_check
    _
  $region15: #{resnet_generator_forward.3} parent=0 // pred_check_branch
    %16 = sbr.rel (0) target = $region17
  $region16: #{resnet_generator_forward.3} parent=0 // pred_region
    _
  $region17: #{resnet_generator_forward.3} parent=0 // pred_fallthru
    _
  %v18 = vld [vmem:[%s1] sm:$0xff]
  %v19 = vld [vmem:[%s0] sm:$0xff]
  %v20 = vld [vmem:[%s0 + $0x8] sm:$0xff]
  %v21 = vld [vmem:[%s0 + $0x10] sm:$0xff]
  %v22 = vld [vmem:[%s0 + $0x18] sm:$0xff]
  %v23 = vld [vmem:[%s0 + $0x20] sm:$0xff]
  %v24 = vld [vmem:[%s0 + $0x28] sm:$0xff]
  %v25 = vld [vmem:[%s0 + $0x30] sm:$0xff]
  %v26 = vld [vmem:[%s0 + $0x38] sm:$0xff]
  %v27 = vld [vmem:[%s0 + $0x40] sm:$0xff]
  %v28 = vld [vmem:[%s0 + $0x48] sm:$0xff]
  %v29 = vld [vmem:[%s0 + $0x50] sm:$0xff]
  %v30 = vld [vmem:[%s0 + $0x58] sm:$0xff]
  %v31 = vld [vmem:[%s0 + $0x60] sm:$0xff]
  %v32 = vld [vmem:[%s0 + $0x68] sm:$0xff]
  %v33 = vld [vmem:[%s0 + $0x70] sm:$0xff]
  %v34 = vld [vmem:[%s0 + $0x78] sm:$0xff]
  %v35 = vld [vmem:[%s0 + $0x80] sm:$0xff]
  %v36 = vld [vmem:[%s0 + $0x88] sm:$0xff]
  %v37 = vld [vmem:[%s0 + $0x90] sm:$0xff]
  %v38 = vld [vmem:[%s0 + $0x98] sm:$0xff]
  %v39 = vld [vmem:[%s0 + $0xa0] sm:$0xff]
  %v40 = vld [vmem:[%s0 + $0xa8] sm:$0xff]
  %v41 = vld [vmem:[%s0 + $0xb0] sm:$0xff]
  %v42 = vld [vmem:[%s0 + $0xb8] sm:$0xff]
  %v43 = vld [vmem:[%s0 + $0xc0] sm:$0xff]
  %v44 = vld [vmem:[%s0 + $0xc8] sm:$0xff]
  %v45 = vld [vmem:[%s0 + $0xd0] sm:$0xff]
  %v46 = vld [vmem:[%s0 + $0xd8] sm:$0xff]
  %v47 = vld [vmem:[%s0 + $0xe0] sm:$0xff]
  %v48 = vld [vmem:[%s0 + $0xe8] sm:$0xff]
  %v49 = vld [vmem:[%s0 + $0xf0] sm:$0xff]
  %v50 = vld [vmem:[%s0 + $0xf8] sm:$0xff]
  %v51 = vld [vmem:[%s0 + $0x100] sm:$0xff]
  %v52 = vld [vmem:[%s0 + $0x108] sm:$0xff]
  %v53 = vld [vmem:[%s0 + $0x110] sm:$0xff]
  %v54 = vld [vmem:[%s0 + $0x118] sm:$0xff]
  %v55 = vld [vmem:[%s0 + $0x120] sm:$0xff]
  %v56 = vld [vmem:[%s0 + $0x128] sm:$0xff]
  %v57 = vld [vmem:[%s0 + $0x130] sm:$0xff]
  %v58 = vld [vmem:[%s0 + $0x138] sm:$0xff]
  %v59 = vld [vmem:[%s0 + $0x140] sm:$0xff]
  %v60 = vld [vmem:[%s0 + $0x148] sm:$0xff]
  %v61 = vld [vmem:[%s0 + $0x150] sm:$0xff]
  %v62 = vld [vmem:[%s0 + $0x158] sm:$0xff]
  %v63 = vld [vmem:[%s0 + $0x160] sm:$0xff]
  %v64 = vld [vmem:[%s0 + $0x168] sm:$0xff]
  %v65 = vld [vmem:[%s0 + $0x170] sm:$0xff]
  %v66 = vld [vmem:[%s0 + $0x178] sm:$0xff]
  %v67 = vld [vmem:[%s0 + $0x180] sm:$0x33]
  %v68 = vld [vmem:[%s0 + $0x188] sm:$0x33]
  %v70 = vunpack.c.l.b16 %v18
  %v71 = vunpack.c.h.b16 %v18
  %v72 = vpack.c.b16 %v70, %v70
  %v73 = vpack.c.b16 %v71, %v71
  %v125 = vunpack.c.l.b16 %v19
  %v126 = vunpack.c.h.b16 %v19
  %v127 = vunpack.c.l.b16 %v20
  %v128 = vunpack.c.h.b16 %v20
  %v129 = vunpack.c.l.b16 %v21
  %v130 = vunpack.c.h.b16 %v21
  %v131 = vunpack.c.l.b16 %v22
  %v132 = vunpack.c.h.b16 %v22
  %v133 = vunpack.c.l.b16 %v23
  %v134 = vunpack.c.h.b16 %v23
  %v135 = vunpack.c.l.b16 %v24
  %v136 = vunpack.c.h.b16 %v24
  %v137 = vunpack.c.l.b16 %v25
  %v138 = vunpack.c.h.b16 %v25
  %v139 = vunpack.c.l.b16 %v26
  %v140 = vunpack.c.h.b16 %v26
  %v141 = vunpack.c.l.b16 %v27
  %v142 = vunpack.c.h.b16 %v27
  %v143 = vunpack.c.l.b16 %v28
  %v144 = vunpack.c.h.b16 %v28
  %v145 = vunpack.c.l.b16 %v29
  %v146 = vunpack.c.h.b16 %v29
  %v147 = vunpack.c.l.b16 %v30
  %v148 = vunpack.c.h.b16 %v30
  %v149 = vunpack.c.l.b16 %v31
  %v150 = vunpack.c.h.b16 %v31
  %v151 = vunpack.c.l.b16 %v32
  %v152 = vunpack.c.h.b16 %v32
  %v153 = vunpack.c.l.b16 %v33
  %v154 = vunpack.c.h.b16 %v33
  %v155 = vunpack.c.l.b16 %v34
  %v156 = vunpack.c.h.b16 %v34
  %v157 = vunpack.c.l.b16 %v35
  %v158 = vunpack.c.h.b16 %v35
  %v159 = vunpack.c.l.b16 %v36
  %v160 = vunpack.c.h.b16 %v36
  %v161 = vunpack.c.l.b16 %v37
  %v162 = vunpack.c.h.b16 %v37
  %v163 = vunpack.c.l.b16 %v38
  %v164 = vunpack.c.h.b16 %v38
  %v165 = vunpack.c.l.b16 %v39
  %v166 = vunpack.c.h.b16 %v39
  %v167 = vunpack.c.l.b16 %v40
  %v168 = vunpack.c.h.b16 %v40
  %v169 = vunpack.c.l.b16 %v41
  %v170 = vunpack.c.h.b16 %v41
  %v171 = vunpack.c.l.b16 %v42
  %v172 = vunpack.c.h.b16 %v42
  %v173 = vunpack.c.l.b16 %v43
  %v174 = vunpack.c.h.b16 %v43
  %v175 = vunpack.c.l.b16 %v44
  %v176 = vunpack.c.h.b16 %v44
  %v177 = vunpack.c.l.b16 %v45
  %v178 = vunpack.c.h.b16 %v45
  %v179 = vunpack.c.l.b16 %v46
  %v180 = vunpack.c.h.b16 %v46
  %v181 = vunpack.c.l.b16 %v47
  %v182 = vunpack.c.h.b16 %v47
  %v183 = vunpack.c.l.b16 %v48
  %v184 = vunpack.c.h.b16 %v48
  %v185 = vunpack.c.l.b16 %v49
  %v186 = vunpack.c.h.b16 %v49
  %v187 = vunpack.c.l.b16 %v50
  %v188 = vunpack.c.h.b16 %v50
  %v189 = vunpack.c.l.b16 %v51
  %v190 = vunpack.c.h.b16 %v51
  %v191 = vunpack.c.l.b16 %v52
  %v192 = vunpack.c.h.b16 %v52
  %v193 = vunpack.c.l.b16 %v53
  %v194 = vunpack.c.h.b16 %v53
  %v195 = vunpack.c.l.b16 %v54
  %v196 = vunpack.c.h.b16 %v54
  %v197 = vunpack.c.l.b16 %v55
  %v198 = vunpack.c.h.b16 %v55
  %v199 = vunpack.c.l.b16 %v56
  %v200 = vunpack.c.h.b16 %v56
  %v201 = vunpack.c.l.b16 %v57
  %v202 = vunpack.c.h.b16 %v57
  %v203 = vunpack.c.l.b16 %v58
  %v204 = vunpack.c.h.b16 %v58
  %v205 = vunpack.c.l.b16 %v59
  %v206 = vunpack.c.h.b16 %v59
  %v207 = vunpack.c.l.b16 %v60
  %v208 = vunpack.c.h.b16 %v60
  %v209 = vunpack.c.l.b16 %v61
  %v210 = vunpack.c.h.b16 %v61
  %v211 = vunpack.c.l.b16 %v62
  %v212 = vunpack.c.h.b16 %v62
  %v213 = vunpack.c.l.b16 %v63
  %v214 = vunpack.c.h.b16 %v63
  %v215 = vunpack.c.l.b16 %v64
  %v216 = vunpack.c.h.b16 %v64
  %v217 = vunpack.c.l.b16 %v65
  %v218 = vunpack.c.h.b16 %v65
  %v219 = vunpack.c.l.b16 %v66
  %v220 = vunpack.c.h.b16 %v66
  %v221 = vunpack.c.l.b16 %v67
  %v222 = vunpack.c.h.b16 %v67
  %v223 = vunpack.c.l.b16 %v68
  %v224 = vunpack.c.h.b16 %v68
  %v225 = vpack.c.b16 %v129, %v125
  %v226 = vpack.c.b16 %v130, %v126
  %v227 = vpack.c.b16 %v131, %v127
  %v228 = vpack.c.b16 %v132, %v128
  %v229 = vpack.c.b16 %v137, %v133
  %v230 = vpack.c.b16 %v138, %v134
  %v231 = vpack.c.b16 %v139, %v135
  %v232 = vpack.c.b16 %v140, %v136
  %v233 = vpack.c.b16 %v145, %v141
  %v234 = vpack.c.b16 %v146, %v142
  %v235 = vpack.c.b16 %v147, %v143
  %v236 = vpack.c.b16 %v148, %v144
  %v237 = vpack.c.b16 %v153, %v149
  %v238 = vpack.c.b16 %v154, %v150
  %v239 = vpack.c.b16 %v155, %v151
  %v240 = vpack.c.b16 %v156, %v152
  %v241 = vpack.c.b16 %v161, %v157
  %v242 = vpack.c.b16 %v162, %v158
  %v243 = vpack.c.b16 %v163, %v159
  %v244 = vpack.c.b16 %v164, %v160
  %v245 = vpack.c.b16 %v169, %v165
  %v246 = vpack.c.b16 %v170, %v166
  %v247 = vpack.c.b16 %v171, %v167
  %v248 = vpack.c.b16 %v172, %v168
  %v249 = vpack.c.b16 %v177, %v173
  %v250 = vpack.c.b16 %v178, %v174
  %v251 = vpack.c.b16 %v179, %v175
  %v252 = vpack.c.b16 %v180, %v176
  %v253 = vpack.c.b16 %v185, %v181
  %v254 = vpack.c.b16 %v186, %v182
  %v255 = vpack.c.b16 %v187, %v183
  %v256 = vpack.c.b16 %v188, %v184
  %v257 = vpack.c.b16 %v193, %v189
  %v258 = vpack.c.b16 %v194, %v190
  %v259 = vpack.c.b16 %v195, %v191
  %v260 = vpack.c.b16 %v196, %v192
  %v261 = vpack.c.b16 %v201, %v197
  %v262 = vpack.c.b16 %v202, %v198
  %v263 = vpack.c.b16 %v203, %v199
  %v264 = vpack.c.b16 %v204, %v200
  %v265 = vpack.c.b16 %v209, %v205
  %v266 = vpack.c.b16 %v210, %v206
  %v267 = vpack.c.b16 %v211, %v207
  %v268 = vpack.c.b16 %v212, %v208
  %v269 = vpack.c.b16 %v217, %v213
  %v270 = vpack.c.b16 %v218, %v214
  %v271 = vpack.c.b16 %v219, %v215
  %v272 = vpack.c.b16 %v220, %v216
  %v273 = vpack.c.b16 %v221, %v221
  %v274 = vpack.c.b16 %v222, %v222
  %v275 = vpack.c.b16 %v223, %v223
  %v276 = vpack.c.b16 %v224, %v224
  %vm325 = vcmask 556032
  %v327 = vsel %vm325, %v73, 0
  %vm329 = vcmask 1041408
  %v331 = vsel %vm329, %v273, 0
  %v334 = vsel %vm329, %v274, 0
  %v337 = vsel %vm329, %v275, 0
  %v340 = vsel %vm329, %v276, 0
  %342 = vmatprep.subr.bf16.mxu0 %v226
  %343 = vmatpush1.bf16.msra.mxu0 %v225
  %344 = vmatprep.subr.bf16.mxu0 %v230
  %345 = vmatpush1.bf16.msra.mxu0 %v229
  %346 = vmatprep.subr.bf16.mxu0 %v234
  %347 = vmatpush1.bf16.msra.mxu0 %v233
  %348 = vmatprep.subr.bf16.mxu0 %v238
  %349 = vmatpush1.bf16.msra.mxu0 %v237
  %350 = vmatprep.subr.bf16.mxu0 %v242
  %351 = vmatpush1.bf16.msra.mxu0 %v241
  %352 = vmatprep.subr.bf16.mxu0 %v246
  %353 = vmatpush1.bf16.msra.mxu0 %v245
  %354 = vmatprep.subr.bf16.mxu0 %v250
  %355 = vmatpush1.bf16.msra.mxu0 %v249
  %356 = vmatprep.subr.bf16.mxu0 %v254
  %357 = vmatpush1.bf16.msra.mxu0 %v253
  %358 = vmatprep.subr.bf16.mxu0 %v258
  %359 = vmatpush1.bf16.msra.mxu0 %v257
  %360 = vmatprep.subr.bf16.mxu0 %v262
  %361 = vmatpush1.bf16.msra.mxu0 %v261
  %362 = vmatprep.subr.bf16.mxu0 %v266
  %363 = vmatpush1.bf16.msra.mxu0 %v265
  %364 = vmatprep.subr.bf16.mxu0 %v270
  %365 = vmatpush1.bf16.msra.mxu0 %v269
  %366 = vmatprep.subr.bf16.mxu0 %v334
  %367 = vmatpush1.bf16.msra.mxu0 %v331
  %368 = vmatprep.subr.bf16.mxu0 0
  %369 = vmatpush1.bf16.msra.mxu0 0
  %370 = vmatprep.subr.bf16.mxu0 0
  %371 = vmatpush1.bf16.msra.mxu0 0
  %372 = vmatprep.subr.bf16.mxu0 0
  %373 = vmatpush1.bf16.msra.mxu0 0
  %374 = vmatprep.mubr.bf16.mxu0 %v327
  %375 = vmatmul.mubr.bf16.gmra.mrb[0].mxu0 %v72
  %v376 = vpop.f32.mrb[0].mxu0
  %v377 = vadd.f32 0.0, %v376
  %v378 = vpop.f32.mrb[0].mxu0
  %v379 = vadd.f32 0.0, %v378
  %v380 = vpop.f32.mrb[0].mxu0
  %v381 = vpop.f32.mrb[0].mxu0
  %382 = vdwg.mxu0
  %383 = vmatprep.subr.bf16.mxu0 %v228
  %384 = vmatpush1.bf16.msra.mxu0 %v227
  %385 = vmatprep.subr.bf16.mxu0 %v232
  %386 = vmatpush1.bf16.msra.mxu0 %v231
  %387 = vmatprep.subr.bf16.mxu0 %v236
  %388 = vmatpush1.bf16.msra.mxu0 %v235
  %389 = vmatprep.subr.bf16.mxu0 %v240
  %390 = vmatpush1.bf16.msra.mxu0 %v239
  %391 = vmatprep.subr.bf16.mxu0 %v244
  %392 = vmatpush1.bf16.msra.mxu0 %v243
  %393 = vmatprep.subr.bf16.mxu0 %v248
  %394 = vmatpush1.bf16.msra.mxu0 %v247
  %395 = vmatprep.subr.bf16.mxu0 %v252
  %396 = vmatpush1.bf16.msra.mxu0 %v251
  %397 = vmatprep.subr.bf16.mxu0 %v256
  %398 = vmatpush1.bf16.msra.mxu0 %v255
  %399 = vmatprep.subr.bf16.mxu0 %v260
  %400 = vmatpush1.bf16.msra.mxu0 %v259
  %401 = vmatprep.subr.bf16.mxu0 %v264
  %402 = vmatpush1.bf16.msra.mxu0 %v263
  %403 = vmatprep.subr.bf16.mxu0 %v268
  %404 = vmatpush1.bf16.msra.mxu0 %v267
  %405 = vmatprep.subr.bf16.mxu0 %v272
  %406 = vmatpush1.bf16.msra.mxu0 %v271
  %407 = vmatprep.subr.bf16.mxu0 %v340
  %408 = vmatpush1.bf16.msra.mxu0 %v337
  %409 = vmatprep.subr.bf16.mxu0 0
  %410 = vmatpush1.bf16.msra.mxu0 0
  %411 = vmatprep.subr.bf16.mxu0 0
  %412 = vmatpush1.bf16.msra.mxu0 0
  %413 = vmatprep.subr.bf16.mxu0 0
  %414 = vmatpush1.bf16.msra.mxu0 0
  %415 = vmatprep.mubr.bf16.mxu0 %v327
  %416 = vmatmul.mubr.bf16.gmra.mrb[0].mxu0 %v72
  %v417 = vpop.f32.mrb[0].mxu0
  %v418 = vadd.f32 0.0, %v417
  %v419 = vpop.f32.mrb[0].mxu0
  %v420 = vadd.f32 0.0, %v419
  %v421 = vpop.f32.mrb[0].mxu0
  %v422 = vpop.f32.mrb[0].mxu0
  %423 = vdwg.mxu0
  %v424 = vld [vmem:[%s2] sm:$0xff]
  %v425 = vld [vmem:[%s3] sm:$0xff]
  %v426 = vadd.f32 %v377, %v379
  %v427 = vadd.f32 %v426, %v418
  %v428 = vadd.f32 %v427, %v420
  %429 = vadd.xlane.f32.xlu0 %v428
  %v430 = vpop.xlane.xlu0 %429
  %v431 = vmul.f32 %v430, 0.001953125
  %v432 = vsub.f32 %v377, %v431
  %v433 = vsub.f32 %v379, %v431
  %v434 = vsub.f32 %v418, %v431
  %v435 = vsub.f32 %v420, %v431
  %v436 = vmul.f32 %v432, %v432
  %v437 = vmul.f32 %v433, %v433
  %v438 = vmul.f32 %v434, %v434
  %v439 = vmul.f32 %v435, %v435
  %v440 = vadd.f32 %v436, %v437
  %v441 = vadd.f32 %v440, %v438
  %v442 = vadd.f32 %v441, %v439
  %443 = vadd.xlane.f32.xlu0 %v442
  %v444 = vpop.xlane.xlu0 %443
  %v445 = vmul.f32 %v444, 0.001953125
  %v446 = vadd.f32 %v445, 1e-05
  %v447 = vrsqrt.pop %v446
  %v448 = vmul.f32 %v424, %v447
  %450 = vset.pattern.permute.xlu0 0
  %451 = vperm.xlu0 %450, %v448
  %v452 = vpop.permute.xlu0 %451
  %v454 = vmul.f32 %v432, %v452
  %v455 = vmul.f32 %v433, %v452
  %v456 = vmul.f32 %v434, %v452
  %v457 = vmul.f32 %v435, %v452
  %459 = vset.pattern.permute.xlu0 0
  %460 = vperm.xlu0 %459, %v425
  %v461 = vpop.permute.xlu0 %460
  %v463 = vadd.f32 %v454, %v461
  %v464 = vadd.f32 %v455, %v461
  %v465 = vadd.f32 %v456, %v461
  %v466 = vadd.f32 %v457, %v461
  %v467 = vmax.f32 %v463, 0.0
  %v468 = vmax.f32 %v464, 0.0
  %v469 = vmax.f32 %v465, 0.0
  %v470 = vmax.f32 %v466, 0.0
  %v471 = vpack.c.bf16 %v467, %v467
  %v472 = vpack.c.bf16 %v468, %v468
  %v473 = vpack.c.bf16 %v469, %v469
  %v474 = vpack.c.bf16 %v470, %v470
  %v479 = vunpack.c.l.b16 %v471
  %v480 = vunpack.c.l.b16 %v472
  %v481 = vunpack.c.l.b16 %v473
  %v482 = vunpack.c.l.b16 %v474
  %v483 = vpack.c.b16 %v480, %v479
  %v484 = vpack.c.b16 %v482, %v481
  %487 = vst [vmem:[%s4] sm:$0xff] %v483
  %488 = vst [vmem:[%s4 + $0x8] sm:$0xff] %v484
  // Predicated region
  $region18: #{resnet_generator_forward.3} parent=0 // pred_check
    _
  $region19: #{resnet_generator_forward.3} parent=0 // pred_check_branch
    %490 = sbr.rel (0) target = $region21
  $region20: #{resnet_generator_forward.3} parent=0 // pred_region
    _
  $region21: #{resnet_generator_forward.3} parent=0 // pred_fallthru
    _
  // Predicated region
  $region22: #{resnet_generator_forward.3} parent=0 // pred_check
    _
  $region23: #{resnet_generator_forward.3} parent=0 // pred_check_branch
    %492 = sbr.rel (0) target = $region25
  $region24: #{resnet_generator_forward.3} parent=0 // pred_region
    _
  $region25: #{resnet_generator_forward.3} parent=0 // pred_fallthru
    _

// kernel: resnet_generator_forward.4
$region0: #{resnet_generator_forward.4}
  #allocation0 [shape = 'u32[]', space=smem, size = 0x4, offset = 0x4, fixed_abs, tag = 'smem constant byte address 0x4 - core index']
  #allocation1 [shape = 'u32[144,128]{1,0:T(1,128)}', space=vmem, size = 0x12000, scoped, tag = 'internal scratch']
  %s0 = inlined_call_operand.smem [shape: u32[33], index: -1, kind: input, shape index: {}]
  %s1 = sld [smem:[%s0]]
  %s2 = scalar_lea.smem %s0, 1
  %s3 = sld [smem:[%s2]]
  %s4 = scalar_lea.smem %s0, 2
  %s5 = sld [smem:[%s4]]
  %s6 = scalar_lea.smem %s0, 3
  %s7 = sld [smem:[%s6]]
  %s8 = scalar_lea.smem %s0, 4
  %s9 = sld [smem:[%s8]]
  %s10 = scalar_lea.smem %s0, 5
  %s11 = sld [smem:[%s10]]
  %s12 = scalar_lea.smem %s0, 6
  %s13 = sld [smem:[%s12]]
  %s14 = scalar_lea.smem %s0, 7
  %s15 = sld [smem:[%s14]]
  %s16 = scalar_lea.smem %s0, 8
  %s17 = sld [smem:[%s16]]
  %s18 = scalar_lea.smem %s0, 9
  %s19 = sld [smem:[%s18]]
  %s20 = scalar_lea.smem %s0, 10
  %s21 = sld [smem:[%s20]]
  %s22 = scalar_lea.smem %s0, 11
  %s23 = sld [smem:[%s22]]
  %s24 = scalar_lea.smem %s0, 12
  %s25 = sld [smem:[%s24]]
  %s26 = scalar_lea.smem %s0, 13
  %s27 = sld [smem:[%s26]]
  %s28 = scalar_lea.smem %s0, 14
  %s29 = sld [smem:[%s28]]
  %s30 = scalar_lea.smem %s0, 15
  %s31 = sld [smem:[%s30]]
  %s32 = scalar_lea.smem %s0, 16
  %s33 = sld [smem:[%s32]]
  %s34 = scalar_lea.smem %s0, 17
  %s35 = sld [smem:[%s34]]
  %s36 = scalar_lea.smem %s0, 18
  %s37 = sld [smem:[%s36]]
  %s38 = scalar_lea.smem %s0, 19
  %s39 = sld [smem:[%s38]]
  %s40 = scalar_lea.smem %s0, 20
  %s41 = sld [smem:[%s40]]
  %s42 = scalar_lea.smem %s0, 21
  %s43 = sld [smem:[%s42]]
  %s44 = scalar_lea.smem %s0, 22
  %s45 = sld [smem:[%s44]]
  %s46 = scalar_lea.smem %s0, 23
  %s47 = sld [smem:[%s46]]
  %s48 = scalar_lea.smem %s0, 24
  %s49 = sld [smem:[%s48]]
  %s50 = scalar_lea.smem %s0, 25
  %s51 = sld [smem:[%s50]]
  %s52 = scalar_lea.smem %s0, 26
  %s53 = sld [smem:[%s52]]
  %s54 = scalar_lea.smem %s0, 27
  %s55 = sld [smem:[%s54]]
  %s56 = scalar_lea.smem %s0, 28
  %s57 = sld [smem:[%s56]]
  %s58 = scalar_lea.smem %s0, 29
  %s59 = sld [smem:[%s58]]
  %s60 = scalar_lea.smem %s0, 30
  %s61 = sld [smem:[%s60]]
  %s62 = scalar_lea.smem %s0, 31
  %s63 = sld [smem:[%s62]]
  %s64 = scalar_lea.smem %s0, 32
  %s65 = sld [smem:[%s64]]
  %s66 = sld [smem:[#allocation0]]
  $region138: #{resnet_generator_forward.4} parent=0
    _
  %s68 = ssub.s32 1, %s66
  %s69 = scalar_select 0, %s68, %s66
  // Predicated region
  $region2: #{resnet_generator_forward.4} parent=0 // pred_check
    _
  $region3: #{resnet_generator_forward.4} parent=0 // pred_check_branch
    %71 = sbr.rel (0) target = $region5
  $region4: #{resnet_generator_forward.4} parent=0 // pred_region
    _
  $region5: #{resnet_generator_forward.4} parent=0 // pred_fallthru
    _
  // Predicated region
  $region6: #{resnet_generator_forward.4} parent=0 // pred_check
    _
  $region7: #{resnet_generator_forward.4} parent=0 // pred_check_branch
    %73 = sbr.rel (0) target = $region9
  $region8: #{resnet_generator_forward.4} parent=0 // pred_region
    _
  $region9: #{resnet_generator_forward.4} parent=0 // pred_fallthru
    _
  // Predicated region
  $region10: #{resnet_generator_forward.4} parent=0 // pred_check
    _
  $region11: #{resnet_generator_forward.4} parent=0 // pred_check_branch
    %75 = sbr.rel (0) target = $region13
  $region12: #{resnet_generator_forward.4} parent=0 // pred_region
    _
  $region13: #{resnet_generator_forward.4} parent=0 // pred_fallthru
    _
  // Predicated region
  $region14: #{resnet_generator_forward.4} parent=0 // pred_check
    _
  $region15: #{resnet_generator_forward.4} parent=0 // pred_check_branch
    %77 = sbr.rel (0) target = $region17
  $region16: #{resnet_generator_forward.4} parent=0 // pred_region
    _
  $region17: #{resnet_generator_forward.4} parent=0 // pred_fallthru
    _
  // Predicated region
  $region18: #{resnet_generator_forward.4} parent=0 // pred_check
    _
  $region19: #{resnet_generator_forward.4} parent=0 // pred_check_branch
    %79 = sbr.rel (0) target = $region21
  $region20: #{resnet_generator_forward.4} parent=0 // pred_region
    _
  $region21: #{resnet_generator_forward.4} parent=0 // pred_fallthru
    _
  // Predicated region
  $region22: #{resnet_generator_forward.4} parent=0 // pred_check
    _
  $region23: #{resnet_generator_forward.4} parent=0 // pred_check_branch
    %81 = sbr.rel (0) target = $region25
  $region24: #{resnet_generator_forward.4} parent=0 // pred_region
    _
  $region25: #{resnet_generator_forward.4} parent=0 // pred_fallthru
    _
  // Predicated region
  $region26: #{resnet_generator_forward.4} parent=0 // pred_check
    _
  $region27: #{resnet_generator_forward.4} parent=0 // pred_check_branch
    %83 = sbr.rel (0) target = $region29
  $region28: #{resnet_generator_forward.4} parent=0 // pred_region
    _
  $region29: #{resnet_generator_forward.4} parent=0 // pred_fallthru
    _
  // Predicated region
  $region30: #{resnet_generator_forward.4} parent=0 // pred_check
    _
  $region31: #{resnet_generator_forward.4} parent=0 // pred_check_branch
    %85 = sbr.rel (0) target = $region33
  $region32: #{resnet_generator_forward.4} parent=0 // pred_region
    _
  $region33: #{resnet_generator_forward.4} parent=0 // pred_fallthru
    _
  // Predicated region
  $region34: #{resnet_generator_forward.4} parent=0 // pred_check
    _
  $region35: #{resnet_generator_forward.4} parent=0 // pred_check_branch
    %87 = sbr.rel (0) target = $region37
  $region36: #{resnet_generator_forward.4} parent=0 // pred_region
    _
  $region37: #{resnet_generator_forward.4} parent=0 // pred_fallthru
    _
  // Predicated region
  $region38: #{resnet_generator_forward.4} parent=0 // pred_check
    _
  $region39: #{resnet_generator_forward.4} parent=0 // pred_check_branch
    %89 = sbr.rel (0) target = $region41
  $region40: #{resnet_generator_forward.4} parent=0 // pred_region
    _
  $region41: #{resnet_generator_forward.4} parent=0 // pred_fallthru
    _
  // Predicated region
  $region42: #{resnet_generator_forward.4} parent=0 // pred_check
    _
  $region43: #{resnet_generator_forward.4} parent=0 // pred_check_branch
    %91 = sbr.rel (0) target = $region45
  $region44: #{resnet_generator_forward.4} parent=0 // pred_region
    _
  $region45: #{resnet_generator_forward.4} parent=0 // pred_fallthru
    _
  // Predicated region
  $region46: #{resnet_generator_forward.4} parent=0 // pred_check
    _
  $region47: #{resnet_generator_forward.4} parent=0 // pred_check_branch
    %93 = sbr.rel (0) target = $region49
  $region48: #{resnet_generator_forward.4} parent=0 // pred_region
    _
  $region49: #{resnet_generator_forward.4} parent=0 // pred_fallthru
    _
  // Predicated region
  $region50: #{resnet_generator_forward.4} parent=0 // pred_check
    _
  $region51: #{resnet_generator_forward.4} parent=0 // pred_check_branch
    %95 = sbr.rel (0) target = $region53
  $region52: #{resnet_generator_forward.4} parent=0 // pred_region
    _
  $region53: #{resnet_generator_forward.4} parent=0 // pred_fallthru
    _
  // Predicated region
  $region54: #{resnet_generator_forward.4} parent=0 // pred_check
    _
  $region55: #{resnet_generator_forward.4} parent=0 // pred_check_branch
    %97 = sbr.rel (0) target = $region57
  $region56: #{resnet_generator_forward.4} parent=0 // pred_region
    _
  $region57: #{resnet_generator_forward.4} parent=0 // pred_fallthru
    _
  // Predicated region
  $region58: #{resnet_generator_forward.4} parent=0 // pred_check
    _
  $region59: #{resnet_generator_forward.4} parent=0 // pred_check_branch
    %99 = sbr.rel (0) target = $region61
  $region60: #{resnet_generator_forward.4} parent=0 // pred_region
    _
  $region61: #{resnet_generator_forward.4} parent=0 // pred_fallthru
    _
  // Predicated region
  $region62: #{resnet_generator_forward.4} parent=0 // pred_check
    _
  $region63: #{resnet_generator_forward.4} parent=0 // pred_check_branch
    %101 = sbr.rel (0) target = $region65
  $region64: #{resnet_generator_forward.4} parent=0 // pred_region
    _
  $region65: #{resnet_generator_forward.4} parent=0 // pred_fallthru
    _
  // Predicated region
  $region66: #{resnet_generator_forward.4} parent=0 // pred_check
    _
  $region67: #{resnet_generator_forward.4} parent=0 // pred_check_branch
    %103 = sbr.rel (0) target = $region69
  $region68: #{resnet_generator_forward.4} parent=0 // pred_region
    _
  $region69: #{resnet_generator_forward.4} parent=0 // pred_fallthru
    _
  // Predicated region
  $region70: #{resnet_generator_forward.4} parent=0 // pred_check
    _
  $region71: #{resnet_generator_forward.4} parent=0 // pred_check_branch
    %105 = sbr.rel (0) target = $region73
  $region72: #{resnet_generator_forward.4} parent=0 // pred_region
    _
  $region73: #{resnet_generator_forward.4} parent=0 // pred_fallthru
    _
  // Predicated region
  $region74: #{resnet_generator_forward.4} parent=0 // pred_check
    _
  $region75: #{resnet_generator_forward.4} parent=0 // pred_check_branch
    %107 = sbr.rel (0) target = $region77
  $region76: #{resnet_generator_forward.4} parent=0 // pred_region
    _
  $region77: #{resnet_generator_forward.4} parent=0 // pred_fallthru
    _
  // Predicated region
  $region78: #{resnet_generator_forward.4} parent=0 // pred_check
    _
  $region79: #{resnet_generator_forward.4} parent=0 // pred_check_branch
    %109 = sbr.rel (0) target = $region81
  $region80: #{resnet_generator_forward.4} parent=0 // pred_region
    _
  $region81: #{resnet_generator_forward.4} parent=0 // pred_fallthru
    _
  // Predicated region
  $region82: #{resnet_generator_forward.4} parent=0 // pred_check
    _
  $region83: #{resnet_generator_forward.4} parent=0 // pred_check_branch
    %111 = sbr.rel (0) target = $region85
  $region84: #{resnet_generator_forward.4} parent=0 // pred_region
    _
  $region85: #{resnet_generator_forward.4} parent=0 // pred_fallthru
    _
  // Predicated region
  $region86: #{resnet_generator_forward.4} parent=0 // pred_check
    _
  $region87: #{resnet_generator_forward.4} parent=0 // pred_check_branch
    %113 = sbr.rel (0) target = $region89
  $region88: #{resnet_generator_forward.4} parent=0 // pred_region
    _
  $region89: #{resnet_generator_forward.4} parent=0 // pred_fallthru
    _
  // Predicated region
  $region90: #{resnet_generator_forward.4} parent=0 // pred_check
    _
  $region91: #{resnet_generator_forward.4} parent=0 // pred_check_branch
    %115 = sbr.rel (0) target = $region93
  $region92: #{resnet_generator_forward.4} parent=0 // pred_region
    _
  $region93: #{resnet_generator_forward.4} parent=0 // pred_fallthru
    _
  // Predicated region
  $region94: #{resnet_generator_forward.4} parent=0 // pred_check
    _
  $region95: #{resnet_generator_forward.4} parent=0 // pred_check_branch
    %117 = sbr.rel (0) target = $region97
  $region96: #{resnet_generator_forward.4} parent=0 // pred_region
    _
  $region97: #{resnet_generator_forward.4} parent=0 // pred_fallthru
    _
  // Predicated region
  $region98: #{resnet_generator_forward.4} parent=0 // pred_check
    _
  $region99: #{resnet_generator_forward.4} parent=0 // pred_check_branch
    %119 = sbr.rel (0) target = $region101
  $region100: #{resnet_generator_forward.4} parent=0 // pred_region
    _
  $region101: #{resnet_generator_forward.4} parent=0 // pred_fallthru
    _
  // Predicated region
  $region102: #{resnet_generator_forward.4} parent=0 // pred_check
    _
  $region103: #{resnet_generator_forward.4} parent=0 // pred_check_branch
    %121 = sbr.rel (0) target = $region105
  $region104: #{resnet_generator_forward.4} parent=0 // pred_region
    _
  $region105: #{resnet_generator_forward.4} parent=0 // pred_fallthru
    _
  // Predicated region
  $region106: #{resnet_generator_forward.4} parent=0 // pred_check
    _
  $region107: #{resnet_generator_forward.4} parent=0 // pred_check_branch
    %123 = sbr.rel (0) target = $region109
  $region108: #{resnet_generator_forward.4} parent=0 // pred_region
    _
  $region109: #{resnet_generator_forward.4} parent=0 // pred_fallthru
    _
  // Predicated region
  $region110: #{resnet_generator_forward.4} parent=0 // pred_check
    _
  $region111: #{resnet_generator_forward.4} parent=0 // pred_check_branch
    %125 = sbr.rel (0) target = $region113
  $region112: #{resnet_generator_forward.4} parent=0 // pred_region
    _
  $region113: #{resnet_generator_forward.4} parent=0 // pred_fallthru
    _
  // Predicated region
  $region114: #{resnet_generator_forward.4} parent=0 // pred_check
    _
  $region115: #{resnet_generator_forward.4} parent=0 // pred_check_branch
    %127 = sbr.rel (0) target = $region117
  $region116: #{resnet_generator_forward.4} parent=0 // pred_region
    _
  $region117: #{resnet_generator_forward.4} parent=0 // pred_fallthru
    _
  // Predicated region
  $region118: #{resnet_generator_forward.4} parent=0 // pred_check
    _
  $region119: #{resnet_generator_forward.4} parent=0 // pred_check_branch
    %129 = sbr.rel (0) target = $region121
  $region120: #{resnet_generator_forward.4} parent=0 // pred_region
    _
  $region121: #{resnet_generator_forward.4} parent=0 // pred_fallthru
    _
  // Predicated region
  $region122: #{resnet_generator_forward.4} parent=0 // pred_check
    _
  $region123: #{resnet_generator_forward.4} parent=0 // pred_check_branch
    %131 = sbr.rel (0) target = $region125
  $region124: #{resnet_generator_forward.4} parent=0 // pred_region
    _
  $region125: #{resnet_generator_forward.4} parent=0 // pred_fallthru
    _
  // Predicated region
  $region126: #{resnet_generator_forward.4} parent=0 // pred_check
    _
  $region127: #{resnet_generator_forward.4} parent=0 // pred_check_branch
    %133 = sbr.rel (0) target = $region129
  $region128: #{resnet_generator_forward.4} parent=0 // pred_region
    _
  $region129: #{resnet_generator_forward.4} parent=0 // pred_fallthru
    _
  %v135 = vld [vmem:[%s3] sm:$0xf]
  %v136 = vld [vmem:[%s3 + $0x4] sm:$0xf]
  %v137 = vld [vmem:[%s1] sm:$0xf]
  %v138 = vld [vmem:[%s1 + $0x4] sm:$0xf]
  %v139 = vld [vmem:[%s1 + $0x8] sm:$0xf]
  %v140 = vld [vmem:[%s1 + $0xc] sm:$0xf]
  %v141 = vld [vmem:[%s1 + $0x10] sm:$0xf]
  %v142 = vld [vmem:[%s1 + $0x14] sm:$0xf]
  %v143 = vld [vmem:[%s1 + $0x18] sm:$0xf]
  %v144 = vld [vmem:[%s1 + $0x1c] sm:$0xf]
  %v145 = vld [vmem:[%s1 + $0x20] sm:$0xf]
  %v148 = vunpack.c.l.b16 %v135
  %v149 = vunpack.c.l.b16 %v136
  %v150 = vpack.c.b16 %v149, %v148
  %v160 = vunpack.c.l.b16 %v137
  %v161 = vunpack.c.l.b16 %v138
  %v162 = vunpack.c.l.b16 %v139
  %v163 = vunpack.c.l.b16 %v140
  %v164 = vunpack.c.l.b16 %v141
  %v165 = vunpack.c.l.b16 %v142
  %v166 = vunpack.c.l.b16 %v143
  %v167 = vunpack.c.l.b16 %v144
  %v168 = vunpack.c.l.b16 %v145
  %v169 = vpack.c.b16 %v161, %v160
  %v170 = vpack.c.b16 %v163, %v162
  %v171 = vpack.c.b16 %v165, %v164
  %v172 = vpack.c.b16 %v167, %v166
  %v173 = vpack.c.b16 %v168, %v168
  %vm178 = vcmask 588800
  %v180 = vsel %vm178, %v150, 0
  %vm182 = vcmask 1043456
  %v184 = vsel %vm182, %v173, 0
  %186 = vmatprep.subr.bf16.mxu0 0
  %187 = vmatpush1.bf16.msra.mxu0 %v169
  %188 = vmatprep.subr.bf16.mxu0 0
  %189 = vmatpush1.bf16.msra.mxu0 %v170
  %190 = vmatprep.subr.bf16.mxu0 0
  %191 = vmatpush1.bf16.msra.mxu0 %v171
  %192 = vmatprep.subr.bf16.mxu0 0
  %193 = vmatpush1.bf16.msra.mxu0 %v172
  %194 = vmatprep.subr.bf16.mxu0 0
  %195 = vmatpush1.bf16.msra.mxu0 %v184
  %196 = vmatprep.subr.bf16.mxu0 0
  %197 = vmatpush1.bf16.msra.mxu0 0
  %198 = vmatprep.subr.bf16.mxu0 0
  %199 = vmatpush1.bf16.msra.mxu0 0
  %200 = vmatprep.subr.bf16.mxu0 0
  %201 = vmatpush1.bf16.msra.mxu0 0
  %202 = vmatprep.subr.bf16.mxu0 0
  %203 = vmatpush1.bf16.msra.mxu0 0
  %204 = vmatprep.subr.bf16.mxu0 0
  %205 = vmatpush1.bf16.msra.mxu0 0
  %206 = vmatprep.subr.bf16.mxu0 0
  %207 = vmatpush1.bf16.msra.mxu0 0
  %208 = vmatprep.subr.bf16.mxu0 0
  %209 = vmatpush1.bf16.msra.mxu0 0
  %210 = vmatprep.subr.bf16.mxu0 0
  %211 = vmatpush1.bf16.msra.mxu0 0
  %212 = vmatprep.subr.bf16.mxu0 0
  %213 = vmatpush1.bf16.msra.mxu0 0
  %214 = vmatprep.subr.bf16.mxu0 0
  %215 = vmatpush1.bf16.msra.mxu0 0
  %216 = vmatprep.subr.bf16.mxu0 0
  %217 = vmatpush1.bf16.msra.mxu0 0
  %218 = vmatprep.mubr.bf16.mxu0 0
  %219 = vmatmul.mubr.bf16.gmra.mrb[0].mxu0 %v180
  %v220 = vpop.f32.mrb[0].mxu0
  %v221 = vadd.f32 0.0, %v220
  %v222 = vpop.f32.mrb[0].mxu0
  %v223 = vpop.f32.mrb[0].mxu0
  %v224 = vadd.f32 0.0, %v223
  %v225 = vpop.f32.mrb[0].mxu0
  %226 = vdwg.mxu0
  %v227 = vld [vmem:[%s5] sm:$0xff]
  %v228 = vld [vmem:[%s5 + $0x8] sm:$0xff]
  %v229 = vld [vmem:[%s7] sm:$0xff]
  %v230 = vld [vmem:[%s7 + $0x8] sm:$0xff]
  %231 = vadd.xlane.f32.xlu0 %v221
  %v232 = vpop.xlane.xlu0 %231
  %233 = vadd.xlane.f32.xlu0 %v224
  %v234 = vpop.xlane.xlu0 %233
  %v235 = vmul.f32 %v232, 0.0078125
  %v236 = vmul.f32 %v234, 0.0078125
  %v237 = vsub.f32 %v221, %v235
  %v238 = vsub.f32 %v224, %v236
  %v239 = vmul.f32 %v237, %v237
  %v240 = vmul.f32 %v238, %v238
  %241 = vadd.xlane.f32.xlu0 %v239
  %v242 = vpop.xlane.xlu0 %241
  %243 = vadd.xlane.f32.xlu0 %v240
  %v244 = vpop.xlane.xlu0 %243
  %v245 = vmul.f32 %v242, 0.0078125
  %v246 = vmul.f32 %v244, 0.0078125
  %v247 = vadd.f32 %v245, 1e-05
  %v248 = vadd.f32 %v246, 1e-05
  %v249 = vrsqrt.pop %v247
  %v250 = vrsqrt.pop %v248
  %v251 = vmul.f32 %v227, %v249
  %v252 = vmul.f32 %v228, %v250
  %254 = vset.pattern.permute.xlu0 0
  %255 = vperm.xlu0 %254, %v251
  %v256 = vpop.permute.xlu0 %255
  %259 = vset.pattern.permute.xlu0 0
  %260 = vperm.xlu0 %259, %v252
  %v261 = vpop.permute.xlu0 %260
  %v263 = vmul.f32 %v237, %v256
  %v264 = vmul.f32 %v238, %v261
  %266 = vset.pattern.permute.xlu0 0
  %267 = vperm.xlu0 %266, %v229
  %v268 = vpop.permute.xlu0 %267
  %271 = vset.pattern.permute.xlu0 0
  %272 = vperm.xlu0 %271, %v230
  %v273 = vpop.permute.xlu0 %272
  %v275 = vadd.f32 %v263, %v268
  %v276 = vadd.f32 %v264, %v273
  %v277 = vmax.f32 %v275, 0.0
  %v278 = vmax.f32 %v276, 0.0
  %v279 = vld [vmem:[%s9] sm:$0xf]
  %v280 = vld [vmem:[%s9 + $0x4] sm:$0xf]
  %v281 = vld [vmem:[%s9 + $0x8] sm:$0xf]
  %v282 = vld [vmem:[%s9 + $0xc] sm:$0xf]
  %v283 = vld [vmem:[%s9 + $0x10] sm:$0xf]
  %v284 = vld [vmem:[%s9 + $0x14] sm:$0xf]
  %v285 = vld [vmem:[%s9 + $0x18] sm:$0xf]
  %v286 = vld [vmem:[%s9 + $0x1c] sm:$0xf]
  %v287 = vld [vmem:[%s9 + $0x20] sm:$0xf]
  %v288 = vld [vmem:[%s9 + $0x24] sm:$0xf]
  %v289 = vld [vmem:[%s9 + $0x28] sm:$0xf]
  %v290 = vld [vmem:[%s9 + $0x2c] sm:$0xf]
  %v291 = vld [vmem:[%s9 + $0x30] sm:$0xf]
  %v292 = vld [vmem:[%s9 + $0x34] sm:$0xf]
  %v293 = vld [vmem:[%s9 + $0x38] sm:$0xf]
  %v294 = vld [vmem:[%s9 + $0x3c] sm:$0xf]
  %v295 = vld [vmem:[%s9 + $0x40] sm:$0xf]
  %v296 = vld [vmem:[%s9 + $0x44] sm:$0xf]
  %v297 = vld [vmem:[%s9 + $0x48] sm:$0xf]
  %v298 = vld [vmem:[%s9 + $0x4c] sm:$0xf]
  %v299 = vld [vmem:[%s9 + $0x50] sm:$0xf]
  %v300 = vld [vmem:[%s9 + $0x54] sm:$0xf]
  %v301 = vld [vmem:[%s9 + $0x58] sm:$0xf]
  %v302 = vld [vmem:[%s9 + $0x5c] sm:$0xf]
  %v303 = vld [vmem:[%s9 + $0x60] sm:$0xf]
  %v304 = vld [vmem:[%s9 + $0x64] sm:$0xf]
  %v305 = vld [vmem:[%s9 + $0x68] sm:$0xf]
  %v306 = vld [vmem:[%s9 + $0x6c] sm:$0xf]
  %v307 = vld [vmem:[%s9 + $0x70] sm:$0xf]
  %v308 = vld [vmem:[%s9 + $0x74] sm:$0xf]
  %v309 = vld [vmem:[%s9 + $0x78] sm:$0xf]
  %v310 = vld [vmem:[%s9 + $0x7c] sm:$0xf]
  %v311 = vld [vmem:[%s9 + $0x80] sm:$0xf]
  %v312 = vld [vmem:[%s9 + $0x84] sm:$0xf]
  %v313 = vld [vmem:[%s9 + $0x88] sm:$0xf]
  %v314 = vld [vmem:[%s9 + $0x8c] sm:$0xf]
  %v315 = vpack.c.bf16 %v278, %v277
  %v352 = vunpack.c.l.b16 %v279
  %v353 = vunpack.c.l.b16 %v280
  %v354 = vunpack.c.l.b16 %v281
  %v355 = vunpack.c.l.b16 %v282
  %v356 = vunpack.c.l.b16 %v283
  %v357 = vunpack.c.l.b16 %v284
  %v358 = vunpack.c.l.b16 %v285
  %v359 = vunpack.c.l.b16 %v286
  %v360 = vunpack.c.l.b16 %v287
  %v361 = vunpack.c.l.b16 %v288
  %v362 = vunpack.c.l.b16 %v289
  %v363 = vunpack.c.l.b16 %v290
  %v364 = vunpack.c.l.b16 %v291
  %v365 = vunpack.c.l.b16 %v292
  %v366 = vunpack.c.l.b16 %v293
  %v367 = vunpack.c.l.b16 %v294
  %v368 = vunpack.c.l.b16 %v295
  %v369 = vunpack.c.l.b16 %v296
  %v370 = vunpack.c.l.b16 %v297
  %v371 = vunpack.c.l.b16 %v298
  %v372 = vunpack.c.l.b16 %v299
  %v373 = vunpack.c.l.b16 %v300
  %v374 = vunpack.c.l.b16 %v301
  %v375 = vunpack.c.l.b16 %v302
  %v376 = vunpack.c.l.b16 %v303
  %v377 = vunpack.c.l.b16 %v304
  %v378 = vunpack.c.l.b16 %v305
  %v379 = vunpack.c.l.b16 %v306
  %v380 = vunpack.c.l.b16 %v307
  %v381 = vunpack.c.l.b16 %v308
  %v382 = vunpack.c.l.b16 %v309
  %v383 = vunpack.c.l.b16 %v310
  %v384 = vunpack.c.l.b16 %v311
  %v385 = vunpack.c.l.b16 %v312
  %v386 = vunpack.c.l.b16 %v313
  %v387 = vunpack.c.l.b16 %v314
  %v388 = vpack.c.b16 %v353, %v352
  %v389 = vpack.c.b16 %v355, %v354
  %v390 = vpack.c.b16 %v357, %v356
  %v391 = vpack.c.b16 %v359, %v358
  %v392 = vpack.c.b16 %v361, %v360
  %v393 = vpack.c.b16 %v363, %v362
  %v394 = vpack.c.b16 %v365, %v364
  %v395 = vpack.c.b16 %v367, %v366
  %v396 = vpack.c.b16 %v369, %v368
  %v397 = vpack.c.b16 %v371, %v370
  %v398 = vpack.c.b16 %v373, %v372
  %v399 = vpack.c.b16 %v375, %v374
  %v400 = vpack.c.b16 %v377, %v376
  %v401 = vpack.c.b16 %v379, %v378
  %v402 = vpack.c.b16 %v381, %v380
  %v403 = vpack.c.b16 %v383, %v382
  %v404 = vpack.c.b16 %v385, %v384
  %v405 = vpack.c.b16 %v387, %v386
  %vm406 = vcmask 130048
  %v408 = vsel %vm406, %v388, 0
  %v411 = vsel %vm406, %v389, 0
  %v414 = vsel %vm406, %v390, 0
  %v417 = vsel %vm406, %v391, 0
  %v420 = vsel %vm406, %v392, 0
  %v423 = vsel %vm406, %v393, 0
  %v426 = vsel %vm406, %v394, 0
  %v429 = vsel %vm406, %v395, 0
  %v432 = vsel %vm406, %v396, 0
  %v435 = vsel %vm406, %v397, 0
  %v438 = vsel %vm406, %v398, 0
  %v441 = vsel %vm406, %v399, 0
  %v444 = vsel %vm406, %v400, 0
  %v447 = vsel %vm406, %v401, 0
  %v450 = vsel %vm406, %v402, 0
  %v453 = vsel %vm406, %v403, 0
  %v456 = vsel %vm406, %v404, 0
  %v459 = vsel %vm406, %v405, 0
  %461 = vmatprep.subr.bf16.mxu0 0
  %462 = vmatpush1.bf16.msra.mxu0 %v315
  %463 = vmatprep.subr.bf16.mxu0 0
  %464 = vmatpush1.bf16.msra.mxu0 0
  %465 = vmatprep.subr.bf16.mxu0 0
  %466 = vmatpush1.bf16.msra.mxu0 0
  %467 = vmatprep.subr.bf16.mxu0 0
  %468 = vmatpush1.bf16.msra.mxu0 0
  %469 = vmatprep.subr.bf16.mxu0 0
  %470 = vmatpush1.bf16.msra.mxu0 0
  %471 = vmatprep.subr.bf16.mxu0 0
  %472 = vmatpush1.bf16.msra.mxu0 0
  %473 = vmatprep.subr.bf16.mxu0 0
  %474 = vmatpush1.bf16.msra.mxu0 0
  %475 = vmatprep.subr.bf16.mxu0 0
  %476 = vmatpush1.bf16.msra.mxu0 0
  %477 = vmatprep.subr.bf16.mxu0 0
  %478 = vmatpush1.bf16.msra.mxu0 0
  %479 = vmatprep.subr.bf16.mxu0 0
  %480 = vmatpush1.bf16.msra.mxu0 0
  %481 = vmatprep.subr.bf16.mxu0 0
  %482 = vmatpush1.bf16.msra.mxu0 0
  %483 = vmatprep.subr.bf16.mxu0 0
  %484 = vmatpush1.bf16.msra.mxu0 0
  %485 = vmatprep.subr.bf16.mxu0 0
  %486 = vmatpush1.bf16.msra.mxu0 0
  %487 = vmatprep.subr.bf16.mxu0 0
  %488 = vmatpush1.bf16.msra.mxu0 0
  %489 = vmatprep.subr.bf16.mxu0 0
  %490 = vmatpush1.bf16.msra.mxu0 0
  %491 = vmatprep.subr.bf16.mxu0 0
  %492 = vmatpush1.bf16.msra.mxu0 0
  %493 = vmatprep.mubr.bf16.mxu0 0
  %494 = vmatmul.mubr.bf16.gmra.mrb[0].mxu0 %v408
  %v495 = vpop.f32.mrb[0].mxu0
  %v496 = vadd.f32 0.0, %v495
  %v497 = vpop.f32.mrb[0].mxu0
  %v498 = vpop.f32.mrb[0].mxu0
  %v499 = vadd.f32 0.0, %v498
  %v500 = vpop.f32.mrb[0].mxu0
  %501 = vmatprep.mubr.bf16.mxu0 0
  %502 = vmatmul.mubr.bf16.gmra.mrb[0].mxu0 %v411
  %v503 = vpop.f32.mrb[0].mxu0
  %v504 = vadd.f32 0.0, %v503
  %v505 = vpop.f32.mrb[0].mxu0
  %v506 = vpop.f32.mrb[0].mxu0
  %v507 = vadd.f32 0.0, %v506
  %v508 = vpop.f32.mrb[0].mxu0
  %509 = vmatprep.mubr.bf16.mxu0 0
  %510 = vmatmul.mubr.bf16.gmra.mrb[0].mxu0 %v414
  %v511 = vpop.f32.mrb[0].mxu0
  %v512 = vadd.f32 0.0, %v511
  %v513 = vpop.f32.mrb[0].mxu0
  %v514 = vpop.f32.mrb[0].mxu0
  %v515 = vadd.f32 0.0, %v514
  %v516 = vpop.f32.mrb[0].mxu0
  %517 = vmatprep.mubr.bf16.mxu0 0
  %518 = vmatmul.mubr.bf16.gmra.mrb[0].mxu0 %v417
  %v519 = vpop.f32.mrb[0].mxu0
  %v520 = vadd.f32 0.0, %v519
  %v521 = vpop.f32.mrb[0].mxu0
  %v522 = vpop.f32.mrb[0].mxu0
  %v523 = vadd.f32 0.0, %v522
  %v524 = vpop.f32.mrb[0].mxu0
  %525 = vmatprep.mubr.bf16.mxu0 0
  %526 = vmatmul.mubr.bf16.gmra.mrb[0].mxu0 %v420
  %v527 = vpop.f32.mrb[0].mxu0
  %v528 = vadd.f32 0.0, %v527
  %v529 = vpop.f32.mrb[0].mxu0
  %v530 = vpop.f32.mrb[0].mxu0
  %v531 = vadd.f32 0.0, %v530
  %v532 = vpop.f32.mrb[0].mxu0
  %533 = vmatprep.mubr.bf16.mxu0 0
  %534 = vmatmul.mubr.bf16.gmra.mrb[0].mxu0 %v423
  %v535 = vpop.f32.mrb[0].mxu0
  %v536 = vadd.f32 0.0, %v535
  %v537 = vpop.f32.mrb[0].mxu0
  %v538 = vpop.f32.mrb[0].mxu0
  %v539 = vadd.f32 0.0, %v538
  %v540 = vpop.f32.mrb[0].mxu0
  %541 = vmatprep.mubr.bf16.mxu0 0
  %542 = vmatmul.mubr.bf16.gmra.mrb[0].mxu0 %v426
  %v543 = vpop.f32.mrb[0].mxu0
  %v544 = vadd.f32 0.0, %v543
  %v545 = vpop.f32.mrb[0].mxu0
  %v546 = vpop.f32.mrb[0].mxu0
  %v547 = vadd.f32 0.0, %v546
  %v548 = vpop.f32.mrb[0].mxu0
  %549 = vmatprep.mubr.bf16.mxu0 0
  %550 = vmatmul.mubr.bf16.gmra.mrb[0].mxu0 %v429
  %v551 = vpop.f32.mrb[0].mxu0
  %v552 = vadd.f32 0.0, %v551
  %v553 = vpop.f32.mrb[0].mxu0
  %v554 = vpop.f32.mrb[0].mxu0
  %v555 = vadd.f32 0.0, %v554
  %v556 = vpop.f32.mrb[0].mxu0
  %557 = vmatprep.mubr.bf16.mxu0 0
  %558 = vmatmul.mubr.bf16.gmra.mrb[0].mxu0 %v432
  %v559 = vpop.f32.mrb[0].mxu0
  %v560 = vadd.f32 0.0, %v559
  %v561 = vpop.f32.mrb[0].mxu0
  %v562 = vpop.f32.mrb[0].mxu0
  %v563 = vadd.f32 0.0, %v562
  %v564 = vpop.f32.mrb[0].mxu0
  %565 = vmatprep.mubr.bf16.mxu0 0
  %566 = vmatmul.mubr.bf16.gmra.mrb[0].mxu0 %v435
  %v567 = vpop.f32.mrb[0].mxu0
  %v568 = vadd.f32 0.0, %v567
  %v569 = vpop.f32.mrb[0].mxu0
  %v570 = vpop.f32.mrb[0].mxu0
  %v571 = vadd.f32 0.0, %v570
  %v572 = vpop.f32.mrb[0].mxu0
  %573 = vmatprep.mubr.bf16.mxu0 0
  %574 = vmatmul.mubr.bf16.gmra.mrb[0].mxu0 %v438
  %v575 = vpop.f32.mrb[0].mxu0
  %v576 = vadd.f32 0.0, %v575
  %v577 = vpop.f32.mrb[0].mxu0
  %v578 = vpop.f32.mrb[0].mxu0
  %v579 = vadd.f32 0.0, %v578
  %v580 = vpop.f32.mrb[0].mxu0
  %581 = vmatprep.mubr.bf16.mxu0 0
  %582 = vmatmul.mubr.bf16.gmra.mrb[0].mxu0 %v441
  %v583 = vpop.f32.mrb[0].mxu0
  %v584 = vadd.f32 0.0, %v583
  %v585 = vpop.f32.mrb[0].mxu0
  %v586 = vpop.f32.mrb[0].mxu0
  %v587 = vadd.f32 0.0, %v586
  %v588 = vpop.f32.mrb[0].mxu0
  %589 = vmatprep.mubr.bf16.mxu0 0
  %590 = vmatmul.mubr.bf16.gmra.mrb[0].mxu0 %v444
  %v591 = vpop.f32.mrb[0].mxu0
  %v592 = vadd.f32 0.0, %v591
  %v593 = vpop.f32.mrb[0].mxu0
  %v594 = vpop.f32.mrb[0].mxu0
  %v595 = vadd.f32 0.0, %v594
  %v596 = vpop.f32.mrb[0].mxu0
  %597 = vmatprep.mubr.bf16.mxu0 0
  %598 = vmatmul.mubr.bf16.gmra.mrb[0].mxu0 %v447
  %v599 = vpop.f32.mrb[0].mxu0
  %v600 = vadd.f32 0.0, %v599
  %v601 = vpop.f32.mrb[0].mxu0
  %v602 = vpop.f32.mrb[0].mxu0
  %v603 = vadd.f32 0.0, %v602
  %v604 = vpop.f32.mrb[0].mxu0
  %605 = vmatprep.mubr.bf16.mxu0 0
  %606 = vmatmul.mubr.bf16.gmra.mrb[0].mxu0 %v450
  %v607 = vpop.f32.mrb[0].mxu0
  %v608 = vadd.f32 0.0, %v607
  %v609 = vpop.f32.mrb[0].mxu0
  %v610 = vpop.f32.mrb[0].mxu0
  %v611 = vadd.f32 0.0, %v610
  %v612 = vpop.f32.mrb[0].mxu0
  %613 = vmatprep.mubr.bf16.mxu0 0
  %614 = vmatmul.mubr.bf16.gmra.mrb[0].mxu0 %v453
  %v615 = vpop.f32.mrb[0].mxu0
  %v616 = vadd.f32 0.0, %v615
  %v617 = vpop.f32.mrb[0].mxu0
  %v618 = vpop.f32.mrb[0].mxu0
  %v619 = vadd.f32 0.0, %v618
  %v620 = vpop.f32.mrb[0].mxu0
  %621 = vmatprep.mubr.bf16.mxu0 0
  %622 = vmatmul.mubr.bf16.gmra.mrb[0].mxu0 %v456
  %v623 = vpop.f32.mrb[0].mxu0
  %v624 = vadd.f32 0.0, %v623
  %v625 = vpop.f32.mrb[0].mxu0
  %v626 = vpop.f32.mrb[0].mxu0
  %v627 = vadd.f32 0.0, %v626
  %v628 = vpop.f32.mrb[0].mxu0
  %629 = vmatprep.mubr.bf16.mxu0 0
  %630 = vmatmul.mubr.bf16.gmra.mrb[0].mxu0 %v459
  %v631 = vpop.f32.mrb[0].mxu0
  %v632 = vadd.f32 0.0, %v631
  %v633 = vpop.f32.mrb[0].mxu0
  %v634 = vpop.f32.mrb[0].mxu0
  %v635 = vadd.f32 0.0, %v634
  %v636 = vpop.f32.mrb[0].mxu0
  %637 = vdwg.mxu0
  %v638 = vpack.c.bf16 %v499, %v496
  %v639 = vpack.c.bf16 %v507, %v504
  %v640 = vpack.c.bf16 %v515, %v512
  %v641 = vpack.c.bf16 %v523, %v520
  %v642 = vpack.c.bf16 %v531, %v528
  %v643 = vpack.c.bf16 %v539, %v536
  %v644 = vpack.c.bf16 %v547, %v544
  %v645 = vpack.c.bf16 %v555, %v552
  %v646 = vpack.c.bf16 %v563, %v560
  %v647 = vpack.c.bf16 %v571, %v568
  %v648 = vpack.c.bf16 %v579, %v576
  %v649 = vpack.c.bf16 %v587, %v584
  %v650 = vpack.c.bf16 %v595, %v592
  %v651 = vpack.c.bf16 %v603, %v600
  %v652 = vpack.c.bf16 %v611, %v608
  %v653 = vpack.c.bf16 %v619, %v616
  %v654 = vpack.c.bf16 %v627, %v624
  %v655 = vpack.c.bf16 %v635, %v632
  %v656 = vld [vmem:[%s11] sm:$0xf]
  %v657 = vld [vmem:[%s11 + $0x4] sm:$0xf]
  %v658 = vld [vmem:[%s11 + $0x8] sm:$0xf]
  %v659 = vld [vmem:[%s11 + $0xc] sm:$0xf]
  %v660 = vld [vmem:[%s11 + $0x10] sm:$0xf]
  %v661 = vld [vmem:[%s11 + $0x14] sm:$0xf]
  %v662 = vld [vmem:[%s11 + $0x18] sm:$0xf]
  %v663 = vld [vmem:[%s11 + $0x1c] sm:$0xf]
  %v664 = vld [vmem:[%s11 + $0x20] sm:$0xf]
  %v665 = vld [vmem:[%s11 + $0x24] sm:$0xf]
  %v666 = vld [vmem:[%s11 + $0x28] sm:$0xf]
  %v667 = vld [vmem:[%s11 + $0x2c] sm:$0xf]
  %v668 = vld [vmem:[%s11 + $0x30] sm:$0xf]
  %v669 = vld [vmem:[%s11 + $0x34] sm:$0xf]
  %v670 = vld [vmem:[%s11 + $0x38] sm:$0xf]
  %v671 = vld [vmem:[%s11 + $0x3c] sm:$0xf]
  %v672 = vld [vmem:[%s11 + $0x40] sm:$0xf]
  %v673 = vld [vmem:[%s11 + $0x44] sm:$0xf]
  %v674 = vld [vmem:[%s11 + $0x48] sm:$0xf]
  %v675 = vld [vmem:[%s11 + $0x4c] sm:$0xf]
  %v676 = vld [vmem:[%s11 + $0x50] sm:$0xf]
  %v677 = vld [vmem:[%s11 + $0x54] sm:$0xf]
  %v678 = vld [vmem:[%s11 + $0x58] sm:$0xf]
  %v679 = vld [vmem:[%s11 + $0x5c] sm:$0xf]
  %v680 = vld [vmem:[%s11 + $0x60] sm:$0xf]
  %v681 = vld [vmem:[%s11 + $0x64] sm:$0xf]
  %v682 = vld [vmem:[%s11 + $0x68] sm:$0xf]
  %v683 = vld [vmem:[%s11 + $0x6c] sm:$0xf]
  %v684 = vld [vmem:[%s11 + $0x70] sm:$0xf]
  %v685 = vld [vmem:[%s11 + $0x74] sm:$0xf]
  %v686 = vld [vmem:[%s11 + $0x78] sm:$0xf]
  %v687 = vld [vmem:[%s11 + $0x7c] sm:$0xf]
  %v688 = vld [vmem:[%s11 + $0x80] sm:$0xf]
  %v689 = vld [vmem:[%s11 + $0x84] sm:$0xf]
  %v690 = vld [vmem:[%s11 + $0x88] sm:$0xf]
  %v691 = vld [vmem:[%s11 + $0x8c] sm:$0xf]
  %v692 = vld [vmem:[%s11 + $0x90] sm:$0xf]
  %v693 = vld [vmem:[%s11 + $0x94] sm:$0xf]
  %v694 = vld [vmem:[%s11 + $0x98] sm:$0xf]
  %v695 = vld [vmem:[%s11 + $0x9c] sm:$0xf]
  %v696 = vld [vmem:[%s11 + $0xa0] sm:$0xf]
  %v697 = vld [vmem:[%s11 + $0xa4] sm:$0xf]
  %v698 = vld [vmem:[%s11 + $0xa8] sm:$0xf]
  %v699 = vld [vmem:[%s11 + $0xac] sm:$0xf]
  %v700 = vld [vmem:[%s11 + $0xb0] sm:$0xf]
  %v701 = vld [vmem:[%s11 + $0xb4] sm:$0xf]
  %v702 = vld [vmem:[%s11 + $0xb8] sm:$0xf]
  %v703 = vld [vmem:[%s11 + $0xbc] sm:$0xf]
  %v704 = vld [vmem:[%s11 + $0xc0] sm:$0xf]
  %v705 = vld [vmem:[%s11 + $0xc4] sm:$0xf]
  %v706 = vld [vmem:[%s11 + $0xc8] sm:$0xf]
  %v707 = vld [vmem:[%s11 + $0xcc] sm:$0xf]
  %v708 = vld [vmem:[%s11 + $0xd0] sm:$0xf]
  %v709 = vld [vmem:[%s11 + $0xd4] sm:$0xf]
  %v710 = vld [vmem:[%s11 + $0xd8] sm:$0xf]
  %v711 = vld [vmem:[%s11 + $0xdc] sm:$0xf]
  %v712 = vld [vmem:[%s11 + $0xe0] sm:$0xf]
  %v713 = vld [vmem:[%s11 + $0xe4] sm:$0xf]
  %v714 = vld [vmem:[%s11 + $0xe8] sm:$0xf]
  %v715 = vld [vmem:[%s11 + $0xec] sm:$0xf]
  %v716 = vld [vmem:[%s11 + $0xf0] sm:$0xf]
  %v717 = vld [vmem:[%s11 + $0xf4] sm:$0xf]
  %v718 = vld [vmem:[%s11 + $0xf8] sm:$0xf]
  %v719 = vld [vmem:[%s11 + $0xfc] sm:$0xf]
  %v720 = vld [vmem:[%s11 + $0x100] sm:$0xf]
  %v721 = vld [vmem:[%s11 + $0x104] sm:$0xf]
  %v722 = vld [vmem:[%s11 + $0x108] sm:$0xf]
  %v723 = vld [vmem:[%s11 + $0x10c] sm:$0xf]
  %v724 = vld [vmem:[%s11 + $0x110] sm:$0xf]
  %v725 = vld [vmem:[%s11 + $0x114] sm:$0xf]
  %v726 = vld [vmem:[%s11 + $0x118] sm:$0xf]
  %v727 = vld [vmem:[%s11 + $0x11c] sm:$0xf]
  %v728 = vld [vmem:[%s11 + $0x120] sm:$0xf]
  %v729 = vld [vmem:[%s11 + $0x124] sm:$0xf]
  %v730 = vld [vmem:[%s11 + $0x128] sm:$0xf]
  %v731 = vld [vmem:[%s11 + $0x12c] sm:$0xf]
  %v732 = vld [vmem:[%s11 + $0x130] sm:$0xf]
  %v733 = vld [vmem:[%s11 + $0x134] sm:$0xf]
  %v734 = vld [vmem:[%s11 + $0x138] sm:$0xf]
  %v735 = vld [vmem:[%s11 + $0x13c] sm:$0xf]
  %v736 = vld [vmem:[%s11 + $0x140] sm:$0xf]
  %v737 = vld [vmem:[%s11 + $0x144] sm:$0xf]
  %v738 = vld [vmem:[%s11 + $0x148] sm:$0xf]
  %v739 = vld [vmem:[%s11 + $0x14c] sm:$0xf]
  %v740 = vld [vmem:[%s11 + $0x150] sm:$0xf]
  %v741 = vld [vmem:[%s11 + $0x154] sm:$0xf]
  %v742 = vld [vmem:[%s11 + $0x158] sm:$0xf]
  %v743 = vld [vmem:[%s11 + $0x15c] sm:$0xf]
  %v744 = vld [vmem:[%s11 + $0x160] sm:$0xf]
  %v745 = vld [vmem:[%s11 + $0x164] sm:$0xf]
  %v746 = vld [vmem:[%s11 + $0x168] sm:$0xf]
  %v747 = vld [vmem:[%s11 + $0x16c] sm:$0xf]
  %v748 = vld [vmem:[%s11 + $0x170] sm:$0xf]
  %v749 = vld [vmem:[%s11 + $0x174] sm:$0xf]
  %v750 = vld [vmem:[%s11 + $0x178] sm:$0xf]
  %v751 = vld [vmem:[%s11 + $0x17c] sm:$0xf]
  %v752 = vld [vmem:[%s11 + $0x180] sm:$0xf]
  %v753 = vld [vmem:[%s11 + $0x184] sm:$0xf]
  %v754 = vld [vmem:[%s11 + $0x188] sm:$0xf]
  %v755 = vld [vmem:[%s11 + $0x18c] sm:$0xf]
  %v756 = vld [vmem:[%s11 + $0x190] sm:$0xf]
  %v757 = vld [vmem:[%s11 + $0x194] sm:$0xf]
  %v758 = vld [vmem:[%s11 + $0x198] sm:$0xf]
  %v759 = vld [vmem:[%s11 + $0x19c] sm:$0xf]
  %v760 = vld [vmem:[%s11 + $0x1a0] sm:$0xf]
  %v761 = vld [vmem:[%s11 + $0x1a4] sm:$0xf]
  %v762 = vld [vmem:[%s11 + $0x1a8] sm:$0xf]
  %v763 = vld [vmem:[%s11 + $0x1ac] sm:$0xf]
  %v764 = vld [vmem:[%s11 + $0x1b0] sm:$0xf]
  %v765 = vld [vmem:[%s11 + $0x1b4] sm:$0xf]
  %v766 = vld [vmem:[%s11 + $0x1b8] sm:$0xf]
  %v767 = vld [vmem:[%s11 + $0x1bc] sm:$0xf]
  %v768 = vld [vmem:[%s11 + $0x1c0] sm:$0xf]
  %v769 = vld [vmem:[%s11 + $0x1c4] sm:$0xf]
  %v770 = vld [vmem:[%s11 + $0x1c8] sm:$0xf]
  %v771 = vld [vmem:[%s11 + $0x1cc] sm:$0xf]
  %v772 = vld [vmem:[%s11 + $0x1d0] sm:$0xf]
  %v773 = vld [vmem:[%s11 + $0x1d4] sm:$0xf]
  %v774 = vld [vmem:[%s11 + $0x1d8] sm:$0xf]
  %v775 = vld [vmem:[%s11 + $0x1dc] sm:$0xf]
  %v776 = vld [vmem:[%s11 + $0x1e0] sm:$0xf]
  %v777 = vld [vmem:[%s11 + $0x1e4] sm:$0xf]
  %v778 = vld [vmem:[%s11 + $0x1e8] sm:$0xf]
  %v779 = vld [vmem:[%s11 + $0x1ec] sm:$0xf]
  %v780 = vld [vmem:[%s11 + $0x1f0] sm:$0xf]
  %v781 = vld [vmem:[%s11 + $0x1f4] sm:$0xf]
  %v782 = vld [vmem:[%s11 + $0x1f8] sm:$0xf]
  %v783 = vld [vmem:[%s11 + $0x1fc] sm:$0xf]
  %v784 = vld [vmem:[%s11 + $0x200] sm:$0xf]
  %v785 = vld [vmem:[%s11 + $0x204] sm:$0xf]
  %v786 = vld [vmem:[%s11 + $0x208] sm:$0xf]
  %v787 = vld [vmem:[%s11 + $0x20c] sm:$0xf]
  %v788 = vld [vmem:[%s11 + $0x210] sm:$0xf]
  %v789 = vld [vmem:[%s11 + $0x214] sm:$0xf]
  %v790 = vld [vmem:[%s11 + $0x218] sm:$0xf]
  %v791 = vld [vmem:[%s11 + $0x21c] sm:$0xf]
  %v792 = vld [vmem:[%s11 + $0x220] sm:$0xf]
  %v793 = vld [vmem:[%s11 + $0x224] sm:$0xf]
  %v794 = vld [vmem:[%s11 + $0x228] sm:$0xf]
  %v795 = vld [vmem:[%s11 + $0x22c] sm:$0xf]
  %v796 = vld [vmem:[%s11 + $0x230] sm:$0xf]
  %v797 = vld [vmem:[%s11 + $0x234] sm:$0xf]
  %v798 = vld [vmem:[%s11 + $0x238] sm:$0xf]
  %v799 = vld [vmem:[%s11 + $0x23c] sm:$0xf]
  %v944 = vunpack.c.l.b16 %v656
  %v945 = vunpack.c.l.b16 %v657
  %v946 = vunpack.c.l.b16 %v658
  %v947 = vunpack.c.l.b16 %v659
  %v948 = vunpack.c.l.b16 %v660
  %v949 = vunpack.c.l.b16 %v661
  %v950 = vunpack.c.l.b16 %v662
  %v951 = vunpack.c.l.b16 %v663
  %v952 = vunpack.c.l.b16 %v664
  %v953 = vunpack.c.l.b16 %v665
  %v954 = vunpack.c.l.b16 %v666
  %v955 = vunpack.c.l.b16 %v667
  %v956 = vunpack.c.l.b16 %v668
  %v957 = vunpack.c.l.b16 %v669
  %v958 = vunpack.c.l.b16 %v670
  %v959 = vunpack.c.l.b16 %v671
  %v960 = vunpack.c.l.b16 %v672
  %v961 = vunpack.c.l.b16 %v673
  %v962 = vunpack.c.l.b16 %v674
  %v963 = vunpack.c.l.b16 %v675
  %v964 = vunpack.c.l.b16 %v676
  %v965 = vunpack.c.l.b16 %v677
  %v966 = vunpack.c.l.b16 %v678
  %v967 = vunpack.c.l.b16 %v679
  %v968 = vunpack.c.l.b16 %v680
  %v969 = vunpack.c.l.b16 %v681
  %v970 = vunpack.c.l.b16 %v682
  %v971 = vunpack.c.l.b16 %v683
  %v972 = vunpack.c.l.b16 %v684
  %v973 = vunpack.c.l.b16 %v685
  %v974 = vunpack.c.l.b16 %v686
  %v975 = vunpack.c.l.b16 %v687
  %v976 = vunpack.c.l.b16 %v688
  %v977 = vunpack.c.l.b16 %v689
  %v978 = vunpack.c.l.b16 %v690
  %v979 = vunpack.c.l.b16 %v691
  %v980 = vunpack.c.l.b16 %v692
  %v981 = vunpack.c.l.b16 %v693
  %v982 = vunpack.c.l.b16 %v694
  %v983 = vunpack.c.l.b16 %v695
  %v984 = vunpack.c.l.b16 %v696
  %v985 = vunpack.c.l.b16 %v697
  %v986 = vunpack.c.l.b16 %v698
  %v987 = vunpack.c.l.b16 %v699
  %v988 = vunpack.c.l.b16 %v700
  %v989 = vunpack.c.l.b16 %v701
  %v990 = vunpack.c.l.b16 %v702
  %v991 = vunpack.c.l.b16 %v703
  %v992 = vunpack.c.l.b16 %v704
  %v993 = vunpack.c.l.b16 %v705
  %v994 = vunpack.c.l.b16 %v706
  %v995 = vunpack.c.l.b16 %v707
  %v996 = vunpack.c.l.b16 %v708
  %v997 = vunpack.c.l.b16 %v709
  %v998 = vunpack.c.l.b16 %v710
  %v999 = vunpack.c.l.b16 %v711
  %v1000 = vunpack.c.l.b16 %v712
  %v1001 = vunpack.c.l.b16 %v713
  %v1002 = vunpack.c.l.b16 %v714
  %v1003 = vunpack.c.l.b16 %v715
  %v1004 = vunpack.c.l.b16 %v716
  %v1005 = vunpack.c.l.b16 %v717
  %v1006 = vunpack.c.l.b16 %v718
  %v1007 = vunpack.c.l.b16 %v719
  %v1008 = vunpack.c.l.b16 %v720
  %v1009 = vunpack.c.l.b16 %v721
  %v1010 = vunpack.c.l.b16 %v722
  %v1011 = vunpack.c.l.b16 %v723
  %v1012 = vunpack.c.l.b16 %v724
  %v1013 = vunpack.c.l.b16 %v725
  %v1014 = vunpack.c.l.b16 %v726
  %v1015 = vunpack.c.l.b16 %v727
  %v1016 = vunpack.c.l.b16 %v728
  %v1017 = vunpack.c.l.b16 %v729
  %v1018 = vunpack.c.l.b16 %v730
  %v1019 = vunpack.c.l.b16 %v731
  %v1020 = vunpack.c.l.b16 %v732
  %v1021 = vunpack.c.l.b16 %v733
  %v1022 = vunpack.c.l.b16 %v734
  %v1023 = vunpack.c.l.b16 %v735
  %v1024 = vunpack.c.l.b16 %v736
  %v1025 = vunpack.c.l.b16 %v737
  %v1026 = vunpack.c.l.b16 %v738
  %v1027 = vunpack.c.l.b16 %v739
  %v1028 = vunpack.c.l.b16 %v740
  %v1029 = vunpack.c.l.b16 %v741
  %v1030 = vunpack.c.l.b16 %v742
  %v1031 = vunpack.c.l.b16 %v743
  %v1032 = vunpack.c.l.b16 %v744
  %v1033 = vunpack.c.l.b16 %v745
  %v1034 = vunpack.c.l.b16 %v746
  %v1035 = vunpack.c.l.b16 %v747
  %v1036 = vunpack.c.l.b16 %v748
  %v1037 = vunpack.c.l.b16 %v749
  %v1038 = vunpack.c.l.b16 %v750
  %v1039 = vunpack.c.l.b16 %v751
  %v1040 = vunpack.c.l.b16 %v752
  %v1041 = vunpack.c.l.b16 %v753
  %v1042 = vunpack.c.l.b16 %v754
  %v1043 = vunpack.c.l.b16 %v755
  %v1044 = vunpack.c.l.b16 %v756
  %v1045 = vunpack.c.l.b16 %v757
  %v1046 = vunpack.c.l.b16 %v758
  %v1047 = vunpack.c.l.b16 %v759
  %v1048 = vunpack.c.l.b16 %v760
  %v1049 = vunpack.c.l.b16 %v761
  %v1050 = vunpack.c.l.b16 %v762
  %v1051 = vunpack.c.l.b16 %v763
  %v1052 = vunpack.c.l.b16 %v764
  %v1053 = vunpack.c.l.b16 %v765
  %v1054 = vunpack.c.l.b16 %v766
  %v1055 = vunpack.c.l.b16 %v767
  %v1056 = vunpack.c.l.b16 %v768
  %v1057 = vunpack.c.l.b16 %v769
  %v1058 = vunpack.c.l.b16 %v770
  %v1059 = vunpack.c.l.b16 %v771
  %v1060 = vunpack.c.l.b16 %v772
  %v1061 = vunpack.c.l.b16 %v773
  %v1062 = vunpack.c.l.b16 %v774
  %v1063 = vunpack.c.l.b16 %v775
  %v1064 = vunpack.c.l.b16 %v776
  %v1065 = vunpack.c.l.b16 %v777
  %v1066 = vunpack.c.l.b16 %v778
  %v1067 = vunpack.c.l.b16 %v779
  %v1068 = vunpack.c.l.b16 %v780
  %v1069 = vunpack.c.l.b16 %v781
  %v1070 = vunpack.c.l.b16 %v782
  %v1071 = vunpack.c.l.b16 %v783
  %v1072 = vunpack.c.l.b16 %v784
  %v1073 = vunpack.c.l.b16 %v785
  %v1074 = vunpack.c.l.b16 %v786
  %v1075 = vunpack.c.l.b16 %v787
  %v1076 = vunpack.c.l.b16 %v788
  %v1077 = vunpack.c.l.b16 %v789
  %v1078 = vunpack.c.l.b16 %v790
  %v1079 = vunpack.c.l.b16 %v791
  %v1080 = vunpack.c.l.b16 %v792
  %v1081 = vunpack.c.l.b16 %v793
  %v1082 = vunpack.c.l.b16 %v794
  %v1083 = vunpack.c.l.b16 %v795
  %v1084 = vunpack.c.l.b16 %v796
  %v1085 = vunpack.c.l.b16 %v797
  %v1086 = vunpack.c.l.b16 %v798
  %v1087 = vunpack.c.l.b16 %v799
  %v1088 = vpack.c.b16 %v945, %v944
  %v1089 = vpack.c.b16 %v947, %v946
  %v1090 = vpack.c.b16 %v949, %v948
  %v1091 = vpack.c.b16 %v951, %v950
  %v1092 = vpack.c.b16 %v953, %v952
  %v1093 = vpack.c.b16 %v955, %v954
  %v1094 = vpack.c.b16 %v957, %v956
  %v1095 = vpack.c.b16 %v959, %v958
  %v1096 = vpack.c.b16 %v961, %v960
  %v1097 = vpack.c.b16 %v963, %v962
  %v1098 = vpack.c.b16 %v965, %v964
  %v1099 = vpack.c.b16 %v967, %v966
  %v1100 = vpack.c.b16 %v969, %v968
  %v1101 = vpack.c.b16 %v971, %v970
  %v1102 = vpack.c.b16 %v973, %v972
  %v1103 = vpack.c.b16 %v975, %v974
  %v1104 = vpack.c.b16 %v977, %v976
  %v1105 = vpack.c.b16 %v979, %v978
  %v1106 = vpack.c.b16 %v981, %v980
  %v1107 = vpack.c.b16 %v983, %v982
  %v1108 = vpack.c.b16 %v985, %v984
  %v1109 = vpack.c.b16 %v987, %v986
  %v1110 = vpack.c.b16 %v989, %v988
  %v1111 = vpack.c.b16 %v991, %v990
  %v1112 = vpack.c.b16 %v993, %v992
  %v1113 = vpack.c.b16 %v995, %v994
  %v1114 = vpack.c.b16 %v997, %v996
  %v1115 = vpack.c.b16 %v999, %v998
  %v1116 = vpack.c.b16 %v1001, %v1000
  %v1117 = vpack.c.b16 %v1003, %v1002
  %v1118 = vpack.c.b16 %v1005, %v1004
  %v1119 = vpack.c.b16 %v1007, %v1006
  %v1120 = vpack.c.b16 %v1009, %v1008
  %v1121 = vpack.c.b16 %v1011, %v1010
  %v1122 = vpack.c.b16 %v1013, %v1012
  %v1123 = vpack.c.b16 %v1015, %v1014
  %v1124 = vpack.c.b16 %v1017, %v1016
  %v1125 = vpack.c.b16 %v1019, %v1018
  %v1126 = vpack.c.b16 %v1021, %v1020
  %v1127 = vpack.c.b16 %v1023, %v1022
  %v1128 = vpack.c.b16 %v1025, %v1024
  %v1129 = vpack.c.b16 %v1027, %v1026
  %v1130 = vpack.c.b16 %v1029, %v1028
  %v1131 = vpack.c.b16 %v1031, %v1030
  %v1132 = vpack.c.b16 %v1033, %v1032
  %v1133 = vpack.c.b16 %v1035, %v1034
  %v1134 = vpack.c.b16 %v1037, %v1036
  %v1135 = vpack.c.b16 %v1039, %v1038
  %v1136 = vpack.c.b16 %v1041, %v1040
  %v1137 = vpack.c.b16 %v1043, %v1042
  %v1138 = vpack.c.b16 %v1045, %v1044
  %v1139 = vpack.c.b16 %v1047, %v1046
  %v1140 = vpack.c.b16 %v1049, %v1048
  %v1141 = vpack.c.b16 %v1051, %v1050
  %v1142 = vpack.c.b16 %v1053, %v1052
  %v1143 = vpack.c.b16 %v1055, %v1054
  %v1144 = vpack.c.b16 %v1057, %v1056
  %v1145 = vpack.c.b16 %v1059, %v1058
  %v1146 = vpack.c.b16 %v1061, %v1060
  %v1147 = vpack.c.b16 %v1063, %v1062
  %v1148 = vpack.c.b16 %v1065, %v1064
  %v1149 = vpack.c.b16 %v1067, %v1066
  %v1150 = vpack.c.b16 %v1069, %v1068
  %v1151 = vpack.c.b16 %v1071, %v1070
  %v1152 = vpack.c.b16 %v1073, %v1072
  %v1153 = vpack.c.b16 %v1075, %v1074
  %v1154 = vpack.c.b16 %v1077, %v1076
  %v1155 = vpack.c.b16 %v1079, %v1078
  %v1156 = vpack.c.b16 %v1081, %v1080
  %v1157 = vpack.c.b16 %v1083, %v1082
  %v1158 = vpack.c.b16 %v1085, %v1084
  %v1159 = vpack.c.b16 %v1087, %v1086
  %1232 = vmatprep.subr.bf16.mxu0 0
  %1233 = vmatpush1.bf16.msra.mxu0 %v1088
  %1234 = vmatprep.subr.bf16.mxu0 0
  %1235 = vmatpush1.bf16.msra.mxu0 %v1089
  %1236 = vmatprep.subr.bf16.mxu0 0
  %1237 = vmatpush1.bf16.msra.mxu0 %v1090
  %1238 = vmatprep.subr.bf16.mxu0 0
  %1239 = vmatpush1.bf16.msra.mxu0 %v1091
  %1240 = vmatprep.subr.bf16.mxu0 0
  %1241 = vmatpush1.bf16.msra.mxu0 %v1092
  %1242 = vmatprep.subr.bf16.mxu0 0
  %1243 = vmatpush1.bf16.msra.mxu0 %v1093
  %1244 = vmatprep.subr.bf16.mxu0 0
  %1245 = vmatpush1.bf16.msra.mxu0 %v1094
  %1246 = vmatprep.subr.bf16.mxu0 0
  %1247 = vmatpush1.bf16.msra.mxu0 %v1095
  %1248 = vmatprep.subr.bf16.mxu0 0
  %1249 = vmatpush1.bf16.msra.mxu0 %v1096
  %1250 = vmatprep.subr.bf16.mxu0 0
  %1251 = vmatpush1.bf16.msra.mxu0 %v1097
  %1252 = vmatprep.subr.bf16.mxu0 0
  %1253 = vmatpush1.bf16.msra.mxu0 %v1098
  %1254 = vmatprep.subr.bf16.mxu0 0
  %1255 = vmatpush1.bf16.msra.mxu0 %v1099
  %1256 = vmatprep.subr.bf16.mxu0 0
  %1257 = vmatpush1.bf16.msra.mxu0 %v1100
  %1258 = vmatprep.subr.bf16.mxu0 0
  %1259 = vmatpush1.bf16.msra.mxu0 %v1101
  %1260 = vmatprep.subr.bf16.mxu0 0
  %1261 = vmatpush1.bf16.msra.mxu0 %v1102
  %1262 = vmatprep.subr.bf16.mxu0 0
  %1263 = vmatpush1.bf16.msra.mxu0 %v1103
  %1264 = vmatprep.mubr.bf16.mxu0 %v640
  %1265 = vmatmul.mubr.bf16.gmra.mrb[0].mxu0 %v638
  %v1266 = vpop.f32.mrb[0].mxu0
  %v1267 = vadd.f32 0.0, %v1266
  %v1268 = vpop.f32.mrb[0].mxu0
  %v1269 = vpop.f32.mrb[0].mxu0
  %v1270 = vadd.f32 0.0, %v1269
  %v1271 = vpop.f32.mrb[0].mxu0
  %1272 = vmatprep.mubr.bf16.mxu0 %v641
  %1273 = vmatmul.mubr.bf16.gmra.mrb[0].mxu0 %v639
  %v1274 = vpop.f32.mrb[0].mxu0
  %v1275 = vadd.f32 0.0, %v1274
  %v1276 = vpop.f32.mrb[0].mxu0
  %v1277 = vpop.f32.mrb[0].mxu0
  %v1278 = vadd.f32 0.0, %v1277
  %v1279 = vpop.f32.mrb[0].mxu0
  %1280 = vdwg.mxu0
  %1281 = vmatprep.subr.bf16.mxu0 0
  %1282 = vmatpush1.bf16.msra.mxu0 %v1104
  %1283 = vmatprep.subr.bf16.mxu0 0
  %1284 = vmatpush1.bf16.msra.mxu0 %v1105
  %1285 = vmatprep.subr.bf16.mxu0 0
  %1286 = vmatpush1.bf16.msra.mxu0 %v1106
  %1287 = vmatprep.subr.bf16.mxu0 0
  %1288 = vmatpush1.bf16.msra.mxu0 %v1107
  %1289 = vmatprep.subr.bf16.mxu0 0
  %1290 = vmatpush1.bf16.msra.mxu0 %v1108
  %1291 = vmatprep.subr.bf16.mxu0 0
  %1292 = vmatpush1.bf16.msra.mxu0 %v1109
  %1293 = vmatprep.subr.bf16.mxu0 0
  %1294 = vmatpush1.bf16.msra.mxu0 %v1110
  %1295 = vmatprep.subr.bf16.mxu0 0
  %1296 = vmatpush1.bf16.msra.mxu0 %v1111
  %1297 = vmatprep.subr.bf16.mxu0 0
  %1298 = vmatpush1.bf16.msra.mxu0 %v1112
  %1299 = vmatprep.subr.bf16.mxu0 0
  %1300 = vmatpush1.bf16.msra.mxu0 %v1113
  %1301 = vmatprep.subr.bf16.mxu0 0
  %1302 = vmatpush1.bf16.msra.mxu0 %v1114
  %1303 = vmatprep.subr.bf16.mxu0 0
  %1304 = vmatpush1.bf16.msra.mxu0 %v1115
  %1305 = vmatprep.subr.bf16.mxu0 0
  %1306 = vmatpush1.bf16.msra.mxu0 %v1116
  %1307 = vmatprep.subr.bf16.mxu0 0
  %1308 = vmatpush1.bf16.msra.mxu0 %v1117
  %1309 = vmatprep.subr.bf16.mxu0 0
  %1310 = vmatpush1.bf16.msra.mxu0 %v1118
  %1311 = vmatprep.subr.bf16.mxu0 0
  %1312 = vmatpush1.bf16.msra.mxu0 %v1119
  %1313 = vmatprep.mubr.bf16.mxu0 %v644
  %1314 = vmatmul.mubr.bf16.gmra.mrb[0].mxu0 %v642
  %v1315 = vpop.f32.mrb[0].mxu0
  %v1316 = vadd.f32 %v1267, %v1315
  %v1317 = vpop.f32.mrb[0].mxu0
  %v1318 = vpop.f32.mrb[0].mxu0
  %v1319 = vadd.f32 %v1270, %v1318
  %v1320 = vpop.f32.mrb[0].mxu0
  %1321 = vmatprep.mubr.bf16.mxu0 %v645
  %1322 = vmatmul.mubr.bf16.gmra.mrb[0].mxu0 %v643
  %v1323 = vpop.f32.mrb[0].mxu0
  %v1324 = vadd.f32 %v1275, %v1323
  %v1325 = vpop.f32.mrb[0].mxu0
  %v1326 = vpop.f32.mrb[0].mxu0
  %v1327 = vadd.f32 %v1278, %v1326
  %v1328 = vpop.f32.mrb[0].mxu0
  %1329 = vdwg.mxu0
  %1330 = vmatprep.subr.bf16.mxu0 0
  %1331 = vmatpush1.bf16.msra.mxu0 %v1120
  %1332 = vmatprep.subr.bf16.mxu0 0
  %1333 = vmatpush1.bf16.msra.mxu0 %v1121
  %1334 = vmatprep.subr.bf16.mxu0 0
  %1335 = vmatpush1.bf16.msra.mxu0 %v1122
  %1336 = vmatprep.subr.bf16.mxu0 0
  %1337 = vmatpush1.bf16.msra.mxu0 %v1123
  %1338 = vmatprep.subr.bf16.mxu0 0
  %1339 = vmatpush1.bf16.msra.mxu0 %v1124
  %1340 = vmatprep.subr.bf16.mxu0 0
  %1341 = vmatpush1.bf16.msra.mxu0 %v1125
  %1342 = vmatprep.subr.bf16.mxu0 0
  %1343 = vmatpush1.bf16.msra.mxu0 %v1126
  %1344 = vmatprep.subr.bf16.mxu0 0
  %1345 = vmatpush1.bf16.msra.mxu0 %v1127
  %1346 = vmatprep.subr.bf16.mxu0 0
  %1347 = vmatpush1.bf16.msra.mxu0 %v1128
  %1348 = vmatprep.subr.bf16.mxu0 0
  %1349 = vmatpush1.bf16.msra.mxu0 %v1129
  %1350 = vmatprep.subr.bf16.mxu0 0
  %1351 = vmatpush1.bf16.msra.mxu0 %v1130
  %1352 = vmatprep.subr.bf16.mxu0 0
  %1353 = vmatpush1.bf16.msra.mxu0 %v1131
  %1354 = vmatprep.subr.bf16.mxu0 0
  %1355 = vmatpush1.bf16.msra.mxu0 %v1132
  %1356 = vmatprep.subr.bf16.mxu0 0
  %1357 = vmatpush1.bf16.msra.mxu0 %v1133
  %1358 = vmatprep.subr.bf16.mxu0 0
  %1359 = vmatpush1.bf16.msra.mxu0 %v1134
  %1360 = vmatprep.subr.bf16.mxu0 0
  %1361 = vmatpush1.bf16.msra.mxu0 %v1135
  %1362 = vmatprep.mubr.bf16.mxu0 %v648
  %1363 = vmatmul.mubr.bf16.gmra.mrb[0].mxu0 %v646
  %v1364 = vpop.f32.mrb[0].mxu0
  %v1365 = vadd.f32 %v1316, %v1364
  %v1366 = vpop.f32.mrb[0].mxu0
  %v1367 = vpop.f32.mrb[0].mxu0
  %v1368 = vadd.f32 %v1319, %v1367
  %v1369 = vpop.f32.mrb[0].mxu0
  %1370 = vmatprep.mubr.bf16.mxu0 %v649
  %1371 = vmatmul.mubr.bf16.gmra.mrb[0].mxu0 %v647
  %v1372 = vpop.f32.mrb[0].mxu0
  %v1373 = vadd.f32 %v1324, %v1372
  %v1374 = vpop.f32.mrb[0].mxu0
  %v1375 = vpop.f32.mrb[0].mxu0
  %v1376 = vadd.f32 %v1327, %v1375
  %v1377 = vpop.f32.mrb[0].mxu0
  %1378 = vdwg.mxu0
  %1379 = vmatprep.subr.bf16.mxu0 0
  %1380 = vmatpush1.bf16.msra.mxu0 %v1136
  %1381 = vmatprep.subr.bf16.mxu0 0
  %1382 = vmatpush1.bf16.msra.mxu0 %v1137
  %1383 = vmatprep.subr.bf16.mxu0 0
  %1384 = vmatpush1.bf16.msra.mxu0 %v1138
  %1385 = vmatprep.subr.bf16.mxu0 0
  %1386 = vmatpush1.bf16.msra.mxu0 %v1139
  %1387 = vmatprep.subr.bf16.mxu0 0
  %1388 = vmatpush1.bf16.msra.mxu0 %v1140
  %1389 = vmatprep.subr.bf16.mxu0 0
  %1390 = vmatpush1.bf16.msra.mxu0 %v1141
  %1391 = vmatprep.subr.bf16.mxu0 0
  %1392 = vmatpush1.bf16.msra.mxu0 %v1142
  %1393 = vmatprep.subr.bf16.mxu0 0
  %1394 = vmatpush1.bf16.msra.mxu0 %v1143
  %1395 = vmatprep.subr.bf16.mxu0 0
  %1396 = vmatpush1.bf16.msra.mxu0 %v1144
  %1397 = vmatprep.subr.bf16.mxu0 0
  %1398 = vmatpush1.bf16.msra.mxu0 %v1145
  %1399 = vmatprep.subr.bf16.mxu0 0
  %1400 = vmatpush1.bf16.msra.mxu0 %v1146
  %1401 = vmatprep.subr.bf16.mxu0 0
  %1402 = vmatpush1.bf16.msra.mxu0 %v1147
  %1403 = vmatprep.subr.bf16.mxu0 0
  %1404 = vmatpush1.bf16.msra.mxu0 %v1148
  %1405 = vmatprep.subr.bf16.mxu0 0
  %1406 = vmatpush1.bf16.msra.mxu0 %v1149
  %1407 = vmatprep.subr.bf16.mxu0 0
  %1408 = vmatpush1.bf16.msra.mxu0 %v1150
  %1409 = vmatprep.subr.bf16.mxu0 0
  %1410 = vmatpush1.bf16.msra.mxu0 %v1151
  %1411 = vmatprep.mubr.bf16.mxu0 %v652
  %1412 = vmatmul.mubr.bf16.gmra.mrb[0].mxu0 %v650
  %v1413 = vpop.f32.mrb[0].mxu0
  %v1414 = vadd.f32 %v1365, %v1413
  %v1415 = vpop.f32.mrb[0].mxu0
  %v1416 = vpop.f32.mrb[0].mxu0
  %v1417 = vadd.f32 %v1368, %v1416
  %v1418 = vpop.f32.mrb[0].mxu0
  %1419 = vmatprep.mubr.bf16.mxu0 %v653
  %1420 = vmatmul.mubr.bf16.gmra.mrb[0].mxu0 %v651
  %v1421 = vpop.f32.mrb[0].mxu0
  %v1422 = vadd.f32 %v1373, %v1421
  %v1423 = vpop.f32.mrb[0].mxu0
  %v1424 = vpop.f32.mrb[0].mxu0
  %v1425 = vadd.f32 %v1376, %v1424
  %v1426 = vpop.f32.mrb[0].mxu0
  %1427 = vdwg.mxu0
  %1428 = vmatprep.subr.bf16.mxu0 0
  %1429 = vmatpush1.bf16.msra.mxu0 %v1152
  %1430 = vmatprep.subr.bf16.mxu0 0
  %1431 = vmatpush1.bf16.msra.mxu0 %v1153
  %1432 = vmatprep.subr.bf16.mxu0 0
  %1433 = vmatpush1.bf16.msra.mxu0 %v1154
  %1434 = vmatprep.subr.bf16.mxu0 0
  %1435 = vmatpush1.bf16.msra.mxu0 %v1155
  %1436 = vmatprep.subr.bf16.mxu0 0
  %1437 = vmatpush1.bf16.msra.mxu0 %v1156
  %1438 = vmatprep.subr.bf16.mxu0 0
  %1439 = vmatpush1.bf16.msra.mxu0 %v1157
  %1440 = vmatprep.subr.bf16.mxu0 0
  %1441 = vmatpush1.bf16.msra.mxu0 %v1158
  %1442 = vmatprep.subr.bf16.mxu0 0
  %1443 = vmatpush1.bf16.msra.mxu0 %v1159
  %1444 = vmatprep.subr.bf16.mxu0 0
  %1445 = vmatpush1.bf16.msra.mxu0 0
  %1446 = vmatprep.subr.bf16.mxu0 0
  %1447 = vmatpush1.bf16.msra.mxu0 0
  %1448 = vmatprep.subr.bf16.mxu0 0
  %1449 = vmatpush1.bf16.msra.mxu0 0
  %1450 = vmatprep.subr.bf16.mxu0 0
  %1451 = vmatpush1.bf16.msra.mxu0 0
  %1452 = vmatprep.subr.bf16.mxu0 0
  %1453 = vmatpush1.bf16.msra.mxu0 0
  %1454 = vmatprep.subr.bf16.mxu0 0
  %1455 = vmatpush1.bf16.msra.mxu0 0
  %1456 = vmatprep.subr.bf16.mxu0 0
  %1457 = vmatpush1.bf16.msra.mxu0 0
  %1458 = vmatprep.subr.bf16.mxu0 0
  %1459 = vmatpush1.bf16.msra.mxu0 0
  %1460 = vmatprep.mubr.bf16.mxu0 0
  %1461 = vmatmul.mubr.bf16.gmra.mrb[0].mxu0 %v654
  %v1462 = vpop.f32.mrb[0].mxu0
  %v1463 = vadd.f32 %v1414, %v1462
  %v1464 = vpop.f32.mrb[0].mxu0
  %v1465 = vpop.f32.mrb[0].mxu0
  %v1466 = vadd.f32 %v1417, %v1465
  %v1467 = vpop.f32.mrb[0].mxu0
  %1468 = vmatprep.mubr.bf16.mxu0 0
  %1469 = vmatmul.mubr.bf16.gmra.mrb[0].mxu0 %v655
  %v1470 = vpop.f32.mrb[0].mxu0
  %v1471 = vadd.f32 %v1422, %v1470
  %v1472 = vpop.f32.mrb[0].mxu0
  %v1473 = vpop.f32.mrb[0].mxu0
  %v1474 = vadd.f32 %v1425, %v1473
  %v1475 = vpop.f32.mrb[0].mxu0
  %1476 = vdwg.mxu0
  %v1477 = vld [vmem:[%s13] sm:$0xff]
  %v1478 = vld [vmem:[%s13 + $0x8] sm:$0xff]
  %v1479 = vld [vmem:[%s13 + $0x10] sm:$0xff]
  %v1480 = vld [vmem:[%s13 + $0x18] sm:$0xff]
  %v1481 = vld [vmem:[%s15] sm:$0xff]
  %v1482 = vld [vmem:[%s15 + $0x8] sm:$0xff]
  %v1483 = vld [vmem:[%s15 + $0x10] sm:$0xff]
  %v1484 = vld [vmem:[%s15 + $0x18] sm:$0xff]
  %vm1485 = vcmask 261120
  %v1486 = vsel %vm1485, %v1463, 0.0
  %1487 = vadd.xlane.f32.xlu0 %v1486
  %v1488 = vpop.xlane.xlu0 %1487
  %v1489 = vsel %vm1485, %v1466, 0.0
  %1490 = vadd.xlane.f32.xlu0 %v1489
  %v1491 = vpop.xlane.xlu0 %1490
  %v1492 = vsel %vm1485, %v1471, 0.0
  %1493 = vadd.xlane.f32.xlu0 %v1492
  %v1494 = vpop.xlane.xlu0 %1493
  %v1495 = vsel %vm1485, %v1474, 0.0
  %1496 = vadd.xlane.f32.xlu0 %v1495
  %v1497 = vpop.xlane.xlu0 %1496
  %v1498 = vmul.f32 %v1488, 0.03125
  %v1499 = vmul.f32 %v1491, 0.03125
  %v1500 = vmul.f32 %v1494, 0.03125
  %v1501 = vmul.f32 %v1497, 0.03125
  %v1502 = vsub.f32 %v1463, %v1498
  %v1503 = vsub.f32 %v1466, %v1499
  %v1504 = vsub.f32 %v1471, %v1500
  %v1505 = vsub.f32 %v1474, %v1501
  %v1506 = vmul.f32 %v1502, %v1502
  %v1507 = vmul.f32 %v1503, %v1503
  %v1508 = vmul.f32 %v1504, %v1504
  %v1509 = vmul.f32 %v1505, %v1505
  %v1510 = vsel %vm1485, %v1506, 0.0
  %1511 = vadd.xlane.f32.xlu0 %v1510
  %v1512 = vpop.xlane.xlu0 %1511
  %v1513 = vsel %vm1485, %v1507, 0.0
  %1514 = vadd.xlane.f32.xlu0 %v1513
  %v1515 = vpop.xlane.xlu0 %1514
  %v1516 = vsel %vm1485, %v1508, 0.0
  %1517 = vadd.xlane.f32.xlu0 %v1516
  %v1518 = vpop.xlane.xlu0 %1517
  %v1519 = vsel %vm1485, %v1509, 0.0
  %1520 = vadd.xlane.f32.xlu0 %v1519
  %v1521 = vpop.xlane.xlu0 %1520
  %v1522 = vmul.f32 %v1512, 0.03125
  %v1523 = vmul.f32 %v1515, 0.03125
  %v1524 = vmul.f32 %v1518, 0.03125
  %v1525 = vmul.f32 %v1521, 0.03125
  %v1526 = vadd.f32 %v1522, 1e-05
  %v1527 = vadd.f32 %v1523, 1e-05
  %v1528 = vadd.f32 %v1524, 1e-05
  %v1529 = vadd.f32 %v1525, 1e-05
  %v1530 = vrsqrt.pop %v1526
  %v1531 = vrsqrt.pop %v1527
  %v1532 = vrsqrt.pop %v1528
  %v1533 = vrsqrt.pop %v1529
  %v1534 = vmul.f32 %v1477, %v1530
  %v1535 = vmul.f32 %v1478, %v1531
  %v1536 = vmul.f32 %v1479, %v1532
  %v1537 = vmul.f32 %v1480, %v1533
  %1539 = vset.pattern.permute.xlu0 0
  %1540 = vperm.xlu0 %1539, %v1534
  %v1541 = vpop.permute.xlu0 %1540
  %1544 = vset.pattern.permute.xlu0 0
  %1545 = vperm.xlu0 %1544, %v1535
  %v1546 = vpop.permute.xlu0 %1545
  %1549 = vset.pattern.permute.xlu0 0
  %1550 = vperm.xlu0 %1549, %v1536
  %v1551 = vpop.permute.xlu0 %1550
  %1554 = vset.pattern.permute.xlu0 0
  %1555 = vperm.xlu0 %1554, %v1537
  %v1556 = vpop.permute.xlu0 %1555
  %v1558 = vmul.f32 %v1502, %v1541
  %v1559 = vmul.f32 %v1503, %v1546
  %v1560 = vmul.f32 %v1504, %v1551
  %v1561 = vmul.f32 %v1505, %v1556
  %1563 = vset.pattern.permute.xlu0 0
  %1564 = vperm.xlu0 %1563, %v1481
  %v1565 = vpop.permute.xlu0 %1564
  %1568 = vset.pattern.permute.xlu0 0
  %1569 = vperm.xlu0 %1568, %v1482
  %v1570 = vpop.permute.xlu0 %1569
  %1573 = vset.pattern.permute.xlu0 0
  %1574 = vperm.xlu0 %1573, %v1483
  %v1575 = vpop.permute.xlu0 %1574
  %1578 = vset.pattern.permute.xlu0 0
  %1579 = vperm.xlu0 %1578, %v1484
  %v1580 = vpop.permute.xlu0 %1579
  %v1582 = vadd.f32 %v1558, %v1565
  %v1583 = vadd.f32 %v1559, %v1570
  %v1584 = vadd.f32 %v1560, %v1575
  %v1585 = vadd.f32 %v1561, %v1580
  %v1586 = vmax.f32 %v1582, 0.0
  %v1587 = vmax.f32 %v1583, 0.0
  %v1588 = vmax.f32 %v1584, 0.0
  %v1589 = vmax.f32 %v1585, 0.0
  %v1590 = vld [vmem:[%s17] sm:$0xf]
  %v1591 = vld [vmem:[%s17 + $0x4] sm:$0xf]
  %v1592 = vld [vmem:[%s17 + $0x8] sm:$0xf]
  %v1593 = vld [vmem:[%s17 + $0xc] sm:$0xf]
  %v1594 = vld [vmem:[%s17 + $0x10] sm:$0xf]
  %v1595 = vld [vmem:[%s17 + $0x14] sm:$0xf]
  %v1596 = vld [vmem:[%s17 + $0x18] sm:$0xf]
  %v1597 = vld [vmem:[%s17 + $0x1c] sm:$0xf]
  %v1598 = vld [vmem:[%s17 + $0x20] sm:$0xf]
  %v1599 = vld [vmem:[%s17 + $0x24] sm:$0xf]
  %v1600 = vld [vmem:[%s17 + $0x28] sm:$0xf]
  %v1601 = vld [vmem:[%s17 + $0x2c] sm:$0xf]
  %v1602 = vld [vmem:[%s17 + $0x30] sm:$0xf]
  %v1603 = vld [vmem:[%s17 + $0x34] sm:$0xf]
  %v1604 = vld [vmem:[%s17 + $0x38] sm:$0xf]
  %v1605 = vld [vmem:[%s17 + $0x3c] sm:$0xf]
  %v1606 = vld [vmem:[%s17 + $0x40] sm:$0xf]
  %v1607 = vld [vmem:[%s17 + $0x44] sm:$0xf]
  %v1608 = vld [vmem:[%s17 + $0x48] sm:$0xf]
  %v1609 = vld [vmem:[%s17 + $0x4c] sm:$0xf]
  %v1610 = vld [vmem:[%s17 + $0x50] sm:$0xf]
  %v1611 = vld [vmem:[%s17 + $0x54] sm:$0xf]
  %v1612 = vld [vmem:[%s17 + $0x58] sm:$0xf]
  %v1613 = vld [vmem:[%s17 + $0x5c] sm:$0xf]
  %v1614 = vld [vmem:[%s17 + $0x60] sm:$0xf]
  %v1615 = vld [vmem:[%s17 + $0x64] sm:$0xf]
  %v1616 = vld [vmem:[%s17 + $0x68] sm:$0xf]
  %v1617 = vld [vmem:[%s17 + $0x6c] sm:$0xf]
  %v1618 = vld [vmem:[%s17 + $0x70] sm:$0xf]
  %v1619 = vld [vmem:[%s17 + $0x74] sm:$0xf]
  %v1620 = vld [vmem:[%s17 + $0x78] sm:$0xf]
  %v1621 = vld [vmem:[%s17 + $0x7c] sm:$0xf]
  %v1622 = vld [vmem:[%s17 + $0x80] sm:$0xf]
  %v1623 = vld [vmem:[%s17 + $0x84] sm:$0xf]
  %v1624 = vld [vmem:[%s17 + $0x88] sm:$0xf]
  %v1625 = vld [vmem:[%s17 + $0x8c] sm:$0xf]
  %v1626 = vpack.c.bf16 %v1587, %v1586
  %v1627 = vpack.c.bf16 %v1589, %v1588
  %v1664 = vunpack.c.l.b16 %v1590
  %v1665 = vunpack.c.l.b16 %v1591
  %v1666 = vunpack.c.l.b16 %v1592
  %v1667 = vunpack.c.l.b16 %v1593
  %v1668 = vunpack.c.l.b16 %v1594
  %v1669 = vunpack.c.l.b16 %v1595
  %v1670 = vunpack.c.l.b16 %v1596
  %v1671 = vunpack.c.l.b16 %v1597
  %v1672 = vunpack.c.l.b16 %v1598
  %v1673 = vunpack.c.l.b16 %v1599
  %v1674 = vunpack.c.l.b16 %v1600
  %v1675 = vunpack.c.l.b16 %v1601
  %v1676 = vunpack.c.l.b16 %v1602
  %v1677 = vunpack.c.l.b16 %v1603
  %v1678 = vunpack.c.l.b16 %v1604
  %v1679 = vunpack.c.l.b16 %v1605
  %v1680 = vunpack.c.l.b16 %v1606
  %v1681 = vunpack.c.l.b16 %v1607
  %v1682 = vunpack.c.l.b16 %v1608
  %v1683 = vunpack.c.l.b16 %v1609
  %v1684 = vunpack.c.l.b16 %v1610
  %v1685 = vunpack.c.l.b16 %v1611
  %v1686 = vunpack.c.l.b16 %v1612
  %v1687 = vunpack.c.l.b16 %v1613
  %v1688 = vunpack.c.l.b16 %v1614
  %v1689 = vunpack.c.l.b16 %v1615
  %v1690 = vunpack.c.l.b16 %v1616
  %v1691 = vunpack.c.l.b16 %v1617
  %v1692 = vunpack.c.l.b16 %v1618
  %v1693 = vunpack.c.l.b16 %v1619
  %v1694 = vunpack.c.l.b16 %v1620
  %v1695 = vunpack.c.l.b16 %v1621
  %v1696 = vunpack.c.l.b16 %v1622
  %v1697 = vunpack.c.l.b16 %v1623
  %v1698 = vunpack.c.l.b16 %v1624
  %v1699 = vunpack.c.l.b16 %v1625
  %v1700 = vpack.c.b16 %v1665, %v1664
  %v1701 = vpack.c.b16 %v1667, %v1666
  %v1702 = vpack.c.b16 %v1669, %v1668
  %v1703 = vpack.c.b16 %v1671, %v1670
  %v1704 = vpack.c.b16 %v1673, %v1672
  %v1705 = vpack.c.b16 %v1675, %v1674
  %v1706 = vpack.c.b16 %v1677, %v1676
  %v1707 = vpack.c.b16 %v1679, %v1678
  %v1708 = vpack.c.b16 %v1681, %v1680
  %v1709 = vpack.c.b16 %v1683, %v1682
  %v1710 = vpack.c.b16 %v1685, %v1684
  %v1711 = vpack.c.b16 %v1687, %v1686
  %v1712 = vpack.c.b16 %v1689, %v1688
  %v1713 = vpack.c.b16 %v1691, %v1690
  %v1714 = vpack.c.b16 %v1693, %v1692
  %v1715 = vpack.c.b16 %v1695, %v1694
  %v1716 = vpack.c.b16 %v1697, %v1696
  %v1717 = vpack.c.b16 %v1699, %v1698
  %v1719 = vsel %vm1485, %v1700, 0
  %v1722 = vsel %vm1485, %v1701, 0
  %v1725 = vsel %vm1485, %v1702, 0
  %v1728 = vsel %vm1485, %v1703, 0
  %v1731 = vsel %vm1485, %v1704, 0
  %v1734 = vsel %vm1485, %v1705, 0
  %v1737 = vsel %vm1485, %v1706, 0
  %v1740 = vsel %vm1485, %v1707, 0
  %v1743 = vsel %vm1485, %v1708, 0
  %v1746 = vsel %vm1485, %v1709, 0
  %v1749 = vsel %vm1485, %v1710, 0
  %v1752 = vsel %vm1485, %v1711, 0
  %v1755 = vsel %vm1485, %v1712, 0
  %v1758 = vsel %vm1485, %v1713, 0
  %v1761 = vsel %vm1485, %v1714, 0
  %v1764 = vsel %vm1485, %v1715, 0
  %v1767 = vsel %vm1485, %v1716, 0
  %v1770 = vsel %vm1485, %v1717, 0
  %1772 = vmatprep.subr.bf16.mxu0 0
  %1773 = vmatpush1.bf16.msra.mxu0 %v1626
  %1774 = vmatprep.subr.bf16.mxu0 0
  %1775 = vmatpush1.bf16.msra.mxu0 %v1627
  %1776 = vmatprep.subr.bf16.mxu0 0
  %1777 = vmatpush1.bf16.msra.mxu0 0
  %1778 = vmatprep.subr.bf16.mxu0 0
  %1779 = vmatpush1.bf16.msra.mxu0 0
  %1780 = vmatprep.subr.bf16.mxu0 0
  %1781 = vmatpush1.bf16.msra.mxu0 0
  %1782 = vmatprep.subr.bf16.mxu0 0
  %1783 = vmatpush1.bf16.msra.mxu0 0
  %1784 = vmatprep.subr.bf16.mxu0 0
  %1785 = vmatpush1.bf16.msra.mxu0 0
  %1786 = vmatprep.subr.bf16.mxu0 0
  %1787 = vmatpush1.bf16.msra.mxu0 0
  %1788 = vmatprep.subr.bf16.mxu0 0
  %1789 = vmatpush1.bf16.msra.mxu0 0
  %1790 = vmatprep.subr.bf16.mxu0 0
  %1791 = vmatpush1.bf16.msra.mxu0 0
  %1792 = vmatprep.subr.bf16.mxu0 0
  %1793 = vmatpush1.bf16.msra.mxu0 0
  %1794 = vmatprep.subr.bf16.mxu0 0
  %1795 = vmatpush1.bf16.msra.mxu0 0
  %1796 = vmatprep.subr.bf16.mxu0 0
  %1797 = vmatpush1.bf16.msra.mxu0 0
  %1798 = vmatprep.subr.bf16.mxu0 0
  %1799 = vmatpush1.bf16.msra.mxu0 0
  %1800 = vmatprep.subr.bf16.mxu0 0
  %1801 = vmatpush1.bf16.msra.mxu0 0
  %1802 = vmatprep.subr.bf16.mxu0 0
  %1803 = vmatpush1.bf16.msra.mxu0 0
  %1804 = vmatprep.mubr.bf16.mxu0 0
  %1805 = vmatmul.mubr.bf16.gmra.mrb[0].mxu0 %v1719
  %v1806 = vpop.f32.mrb[0].mxu0
  %v1807 = vadd.f32 0.0, %v1806
  %v1808 = vpop.f32.mrb[0].mxu0
  %v1809 = vpop.f32.mrb[0].mxu0
  %v1810 = vadd.f32 0.0, %v1809
  %v1811 = vpop.f32.mrb[0].mxu0
  %1812 = vmatprep.mubr.bf16.mxu0 0
  %1813 = vmatmul.mubr.bf16.gmra.mrb[0].mxu0 %v1722
  %v1814 = vpop.f32.mrb[0].mxu0
  %v1815 = vadd.f32 0.0, %v1814
  %v1816 = vpop.f32.mrb[0].mxu0
  %v1817 = vpop.f32.mrb[0].mxu0
  %v1818 = vadd.f32 0.0, %v1817
  %v1819 = vpop.f32.mrb[0].mxu0
  %1820 = vmatprep.mubr.bf16.mxu0 0
  %1821 = vmatmul.mubr.bf16.gmra.mrb[0].mxu0 %v1725
  %v1822 = vpop.f32.mrb[0].mxu0
  %v1823 = vadd.f32 0.0, %v1822
  %v1824 = vpop.f32.mrb[0].mxu0
  %v1825 = vpop.f32.mrb[0].mxu0
  %v1826 = vadd.f32 0.0, %v1825
  %v1827 = vpop.f32.mrb[0].mxu0
  %1828 = vmatprep.mubr.bf16.mxu0 0
  %1829 = vmatmul.mubr.bf16.gmra.mrb[0].mxu0 %v1728
  %v1830 = vpop.f32.mrb[0].mxu0
  %v1831 = vadd.f32 0.0, %v1830
  %v1832 = vpop.f32.mrb[0].mxu0
  %v1833 = vpop.f32.mrb[0].mxu0
  %v1834 = vadd.f32 0.0, %v1833
  %v1835 = vpop.f32.mrb[0].mxu0
  %1836 = vmatprep.mubr.bf16.mxu0 0
  %1837 = vmatmul.mubr.bf16.gmra.mrb[0].mxu0 %v1731
  %v1838 = vpop.f32.mrb[0].mxu0
  %v1839 = vadd.f32 0.0, %v1838
  %v1840 = vpop.f32.mrb[0].mxu0
  %v1841 = vpop.f32.mrb[0].mxu0
  %v1842 = vadd.f32 0.0, %v1841
  %v1843 = vpop.f32.mrb[0].mxu0
  %1844 = vmatprep.mubr.bf16.mxu0 0
  %1845 = vmatmul.mubr.bf16.gmra.mrb[0].mxu0 %v1734
  %v1846 = vpop.f32.mrb[0].mxu0
  %v1847 = vadd.f32 0.0, %v1846
  %v1848 = vpop.f32.mrb[0].mxu0
  %v1849 = vpop.f32.mrb[0].mxu0
  %v1850 = vadd.f32 0.0, %v1849
  %v1851 = vpop.f32.mrb[0].mxu0
  %1852 = vmatprep.mubr.bf16.mxu0 0
  %1853 = vmatmul.mubr.bf16.gmra.mrb[0].mxu0 %v1737
  %v1854 = vpop.f32.mrb[0].mxu0
  %v1855 = vadd.f32 0.0, %v1854
  %v1856 = vpop.f32.mrb[0].mxu0
  %v1857 = vpop.f32.mrb[0].mxu0
  %v1858 = vadd.f32 0.0, %v1857
  %v1859 = vpop.f32.mrb[0].mxu0
  %1860 = vmatprep.mubr.bf16.mxu0 0
  %1861 = vmatmul.mubr.bf16.gmra.mrb[0].mxu0 %v1740
  %v1862 = vpop.f32.mrb[0].mxu0
  %v1863 = vadd.f32 0.0, %v1862
  %v1864 = vpop.f32.mrb[0].mxu0
  %v1865 = vpop.f32.mrb[0].mxu0
  %v1866 = vadd.f32 0.0, %v1865
  %v1867 = vpop.f32.mrb[0].mxu0
  %1868 = vmatprep.mubr.bf16.mxu0 0
  %1869 = vmatmul.mubr.bf16.gmra.mrb[0].mxu0 %v1743
  %v1870 = vpop.f32.mrb[0].mxu0
  %v1871 = vadd.f32 0.0, %v1870
  %v1872 = vpop.f32.mrb[0].mxu0
  %v1873 = vpop.f32.mrb[0].mxu0
  %v1874 = vadd.f32 0.0, %v1873
  %v1875 = vpop.f32.mrb[0].mxu0
  %1876 = vmatprep.mubr.bf16.mxu0 0
  %1877 = vmatmul.mubr.bf16.gmra.mrb[0].mxu0 %v1746
  %v1878 = vpop.f32.mrb[0].mxu0
  %v1879 = vadd.f32 0.0, %v1878
  %v1880 = vpop.f32.mrb[0].mxu0
  %v1881 = vpop.f32.mrb[0].mxu0
  %v1882 = vadd.f32 0.0, %v1881
  %v1883 = vpop.f32.mrb[0].mxu0
  %1884 = vmatprep.mubr.bf16.mxu0 0
  %1885 = vmatmul.mubr.bf16.gmra.mrb[0].mxu0 %v1749
  %v1886 = vpop.f32.mrb[0].mxu0
  %v1887 = vadd.f32 0.0, %v1886
  %v1888 = vpop.f32.mrb[0].mxu0
  %v1889 = vpop.f32.mrb[0].mxu0
  %v1890 = vadd.f32 0.0, %v1889
  %v1891 = vpop.f32.mrb[0].mxu0
  %1892 = vmatprep.mubr.bf16.mxu0 0
  %1893 = vmatmul.mubr.bf16.gmra.mrb[0].mxu0 %v1752
  %v1894 = vpop.f32.mrb[0].mxu0
  %v1895 = vadd.f32 0.0, %v1894
  %v1896 = vpop.f32.mrb[0].mxu0
  %v1897 = vpop.f32.mrb[0].mxu0
  %v1898 = vadd.f32 0.0, %v1897
  %v1899 = vpop.f32.mrb[0].mxu0
  %1900 = vmatprep.mubr.bf16.mxu0 0
  %1901 = vmatmul.mubr.bf16.gmra.mrb[0].mxu0 %v1755
  %v1902 = vpop.f32.mrb[0].mxu0
  %v1903 = vadd.f32 0.0, %v1902
  %v1904 = vpop.f32.mrb[0].mxu0
  %v1905 = vpop.f32.mrb[0].mxu0
  %v1906 = vadd.f32 0.0, %v1905
  %v1907 = vpop.f32.mrb[0].mxu0
  %1908 = vmatprep.mubr.bf16.mxu0 0
  %1909 = vmatmul.mubr.bf16.gmra.mrb[0].mxu0 %v1758
  %v1910 = vpop.f32.mrb[0].mxu0
  %v1911 = vadd.f32 0.0, %v1910
  %v1912 = vpop.f32.mrb[0].mxu0
  %v1913 = vpop.f32.mrb[0].mxu0
  %v1914 = vadd.f32 0.0, %v1913
  %v1915 = vpop.f32.mrb[0].mxu0
  %1916 = vmatprep.mubr.bf16.mxu0 0
  %1917 = vmatmul.mubr.bf16.gmra.mrb[0].mxu0 %v1761
  %v1918 = vpop.f32.mrb[0].mxu0
  %v1919 = vadd.f32 0.0, %v1918
  %v1920 = vpop.f32.mrb[0].mxu0
  %v1921 = vpop.f32.mrb[0].mxu0
  %v1922 = vadd.f32 0.0, %v1921
  %v1923 = vpop.f32.mrb[0].mxu0
  %1924 = vmatprep.mubr.bf16.mxu0 0
  %1925 = vmatmul.mubr.bf16.gmra.mrb[0].mxu0 %v1764
  %v1926 = vpop.f32.mrb[0].mxu0
  %v1927 = vadd.f32 0.0, %v1926
  %v1928 = vpop.f32.mrb[0].mxu0
  %v1929 = vpop.f32.mrb[0].mxu0
  %v1930 = vadd.f32 0.0, %v1929
  %v1931 = vpop.f32.mrb[0].mxu0
  %1932 = vmatprep.mubr.bf16.mxu0 0
  %1933 = vmatmul.mubr.bf16.gmra.mrb[0].mxu0 %v1767
  %v1934 = vpop.f32.mrb[0].mxu0
  %v1935 = vadd.f32 0.0, %v1934
  %v1936 = vpop.f32.mrb[0].mxu0
  %v1937 = vpop.f32.mrb[0].mxu0
  %v1938 = vadd.f32 0.0, %v1937
  %v1939 = vpop.f32.mrb[0].mxu0
  %1940 = vmatprep.mubr.bf16.mxu0 0
  %1941 = vmatmul.mubr.bf16.gmra.mrb[0].mxu0 %v1770
  %v1942 = vpop.f32.mrb[0].mxu0
  %v1943 = vadd.f32 0.0, %v1942
  %v1944 = vpop.f32.mrb[0].mxu0
  %v1945 = vpop.f32.mrb[0].mxu0
  %v1946 = vadd.f32 0.0, %v1945
  %v1947 = vpop.f32.mrb[0].mxu0
  %1948 = vdwg.mxu0
  %v1949 = vpack.c.bf16 %v1810, %v1807
  %v1950 = vpack.c.bf16 %v1818, %v1815
  %v1951 = vpack.c.bf16 %v1826, %v1823
  %v1952 = vpack.c.bf16 %v1834, %v1831
  %v1953 = vpack.c.bf16 %v1842, %v1839
  %v1954 = vpack.c.bf16 %v1850, %v1847
  %v1955 = vpack.c.bf16 %v1858, %v1855
  %v1956 = vpack.c.bf16 %v1866, %v1863
  %v1957 = vpack.c.bf16 %v1874, %v1871
  %v1958 = vpack.c.bf16 %v1882, %v1879
  %v1959 = vpack.c.bf16 %v1890, %v1887
  %v1960 = vpack.c.bf16 %v1898, %v1895
  %v1961 = vpack.c.bf16 %v1906, %v1903
  %v1962 = vpack.c.bf16 %v1914, %v1911
  %v1963 = vpack.c.bf16 %v1922, %v1919
  %v1964 = vpack.c.bf16 %v1930, %v1927
  %v1965 = vpack.c.bf16 %v1938, %v1935
  %v1966 = vpack.c.bf16 %v1946, %v1943
  %1969 = vrot.lane.b32.xlu0 %v1951, 32
  %v1970 = vpop.permute.xlu0 %1969
  %1971 = vrot.lane.b32.xlu0 %v1952, 32
  %v1972 = vpop.permute.xlu0 %1971
  %1975 = vrot.lane.b32.xlu0 %v1953, 64
  %v1976 = vpop.permute.xlu0 %1975
  %1977 = vrot.lane.b32.xlu0 %v1954, 64
  %v1978 = vpop.permute.xlu0 %1977
  %1981 = vrot.lane.b32.xlu0 %v1955, 96
  %v1982 = vpop.permute.xlu0 %1981
  %1983 = vrot.lane.b32.xlu0 %v1956, 96
  %v1984 = vpop.permute.xlu0 %1983
  %1987 = vrot.lane.b32.xlu0 %v1959, 32
  %v1988 = vpop.permute.xlu0 %1987
  %1989 = vrot.lane.b32.xlu0 %v1960, 32
  %v1990 = vpop.permute.xlu0 %1989
  %1993 = vrot.lane.b32.xlu0 %v1961, 64
  %v1994 = vpop.permute.xlu0 %1993
  %1995 = vrot.lane.b32.xlu0 %v1962, 64
  %v1996 = vpop.permute.xlu0 %1995
  %1999 = vrot.lane.b32.xlu0 %v1963, 96
  %v2000 = vpop.permute.xlu0 %1999
  %2001 = vrot.lane.b32.xlu0 %v1964, 96
  %v2002 = vpop.permute.xlu0 %2001
  %v2005 = vsel %vm1485, %v1949, %v1970
  %v2008 = vsel %vm1485, %v1950, %v1972
  %vm2009 = vcmask 523264
  %v2011 = vsel %vm2009, %v2005, %v1976
  %v2013 = vsel %vm2009, %v2008, %v1978
  %vm2014 = vcmask 785408
  %v2016 = vsel %vm2014, %v2011, %v1982
  %v2019 = vsel %vm2014, %v2013, %v1984
  %v2023 = vsel %vm1485, %v1957, %v1988
  %v2026 = vsel %vm1485, %v1958, %v1990
  %v2028 = vsel %vm2009, %v2023, %v1994
  %v2030 = vsel %vm2009, %v2026, %v1996
  %v2032 = vsel %vm2014, %v2028, %v2000
  %v2035 = vsel %vm2014, %v2030, %v2002
  %v2037 = vld [vmem:[%s19] sm:$0xf]
  %v2038 = vld [vmem:[%s19 + $0x4] sm:$0xf]
  %v2039 = vld [vmem:[%s19 + $0x8] sm:$0xf]
  %v2040 = vld [vmem:[%s19 + $0xc] sm:$0xf]
  %v2041 = vld [vmem:[%s19 + $0x10] sm:$0xf]
  %v2042 = vld [vmem:[%s19 + $0x14] sm:$0xf]
  %v2043 = vld [vmem:[%s19 + $0x18] sm:$0xf]
  %v2044 = vld [vmem:[%s19 + $0x1c] sm:$0xf]
  %v2045 = vld [vmem:[%s19 + $0x20] sm:$0xf]
  %v2046 = vld [vmem:[%s19 + $0x24] sm:$0xf]
  %v2047 = vld [vmem:[%s19 + $0x28] sm:$0xf]
  %v2048 = vld [vmem:[%s19 + $0x2c] sm:$0xf]
  %v2049 = vld [vmem:[%s19 + $0x30] sm:$0xf]
  %v2050 = vld [vmem:[%s19 + $0x34] sm:$0xf]
  %v2051 = vld [vmem:[%s19 + $0x38] sm:$0xf]
  %v2052 = vld [vmem:[%s19 + $0x3c] sm:$0xf]
  %v2053 = vld [vmem:[%s19 + $0x40] sm:$0xf]
  %v2054 = vld [vmem:[%s19 + $0x44] sm:$0xf]
  %v2055 = vld [vmem:[%s19 + $0x48] sm:$0xf]
  %v2056 = vld [vmem:[%s19 + $0x4c] sm:$0xf]
  %v2057 = vld [vmem:[%s19 + $0x50] sm:$0xf]
  %v2058 = vld [vmem:[%s19 + $0x54] sm:$0xf]
  %v2059 = vld [vmem:[%s19 + $0x58] sm:$0xf]
  %v2060 = vld [vmem:[%s19 + $0x5c] sm:$0xf]
  %v2061 = vld [vmem:[%s19 + $0x60] sm:$0xf]
  %v2062 = vld [vmem:[%s19 + $0x64] sm:$0xf]
  %v2063 = vld [vmem:[%s19 + $0x68] sm:$0xf]
  %v2064 = vld [vmem:[%s19 + $0x6c] sm:$0xf]
  %v2065 = vld [vmem:[%s19 + $0x70] sm:$0xf]
  %v2066 = vld [vmem:[%s19 + $0x74] sm:$0xf]
  %v2067 = vld [vmem:[%s19 + $0x78] sm:$0xf]
  %v2068 = vld [vmem:[%s19 + $0x7c] sm:$0xf]
  %v2069 = vld [vmem:[%s19 + $0x80] sm:$0xf]
  %v2070 = vld [vmem:[%s19 + $0x84] sm:$0xf]
  %v2071 = vld [vmem:[%s19 + $0x88] sm:$0xf]
  %v2072 = vld [vmem:[%s19 + $0x8c] sm:$0xf]
  %v2109 = vunpack.c.l.b16 %v2037
  %v2110 = vunpack.c.l.b16 %v2038
  %v2111 = vunpack.c.l.b16 %v2039
  %v2112 = vunpack.c.l.b16 %v2040
  %v2113 = vunpack.c.l.b16 %v2041
  %v2114 = vunpack.c.l.b16 %v2042
  %v2115 = vunpack.c.l.b16 %v2043
  %v2116 = vunpack.c.l.b16 %v2044
  %v2117 = vunpack.c.l.b16 %v2045
  %v2118 = vunpack.c.l.b16 %v2046
  %v2119 = vunpack.c.l.b16 %v2047
  %v2120 = vunpack.c.l.b16 %v2048
  %v2121 = vunpack.c.l.b16 %v2049
  %v2122 = vunpack.c.l.b16 %v2050
  %v2123 = vunpack.c.l.b16 %v2051
  %v2124 = vunpack.c.l.b16 %v2052
  %v2125 = vunpack.c.l.b16 %v2053
  %v2126 = vunpack.c.l.b16 %v2054
  %v2127 = vunpack.c.l.b16 %v2055
  %v2128 = vunpack.c.l.b16 %v2056
  %v2129 = vunpack.c.l.b16 %v2057
  %v2130 = vunpack.c.l.b16 %v2058
  %v2131 = vunpack.c.l.b16 %v2059
  %v2132 = vunpack.c.l.b16 %v2060
  %v2133 = vunpack.c.l.b16 %v2061
  %v2134 = vunpack.c.l.b16 %v2062
  %v2135 = vunpack.c.l.b16 %v2063
  %v2136 = vunpack.c.l.b16 %v2064
  %v2137 = vunpack.c.l.b16 %v2065
  %v2138 = vunpack.c.l.b16 %v2066
  %v2139 = vunpack.c.l.b16 %v2067
  %v2140 = vunpack.c.l.b16 %v2068
  %v2141 = vunpack.c.l.b16 %v2069
  %v2142 = vunpack.c.l.b16 %v2070
  %v2143 = vunpack.c.l.b16 %v2071
  %v2144 = vunpack.c.l.b16 %v2072
  %v2145 = vpack.c.b16 %v2110, %v2109
  %v2146 = vpack.c.b16 %v2112, %v2111
  %v2147 = vpack.c.b16 %v2114, %v2113
  %v2148 = vpack.c.b16 %v2116, %v2115
  %v2149 = vpack.c.b16 %v2118, %v2117
  %v2150 = vpack.c.b16 %v2120, %v2119
  %v2151 = vpack.c.b16 %v2122, %v2121
  %v2152 = vpack.c.b16 %v2124, %v2123
  %v2153 = vpack.c.b16 %v2126, %v2125
  %v2154 = vpack.c.b16 %v2128, %v2127
  %v2155 = vpack.c.b16 %v2130, %v2129
  %v2156 = vpack.c.b16 %v2132, %v2131
  %v2157 = vpack.c.b16 %v2134, %v2133
  %v2158 = vpack.c.b16 %v2136, %v2135
  %v2159 = vpack.c.b16 %v2138, %v2137
  %v2160 = vpack.c.b16 %v2140, %v2139
  %v2161 = vpack.c.b16 %v2142, %v2141
  %v2162 = vpack.c.b16 %v2144, %v2143
  %v2182 = vsel %vm1485, %v1965, 0
  %v2185 = vsel %vm1485, %v1966, 0
  %2187 = vmatprep.subr.bf16.mxu0 0
  %2188 = vmatpush1.bf16.msra.mxu0 %v2145
  %2189 = vmatprep.subr.bf16.mxu0 0
  %2190 = vmatpush1.bf16.msra.mxu0 %v2146
  %2191 = vmatprep.subr.bf16.mxu0 0
  %2192 = vmatpush1.bf16.msra.mxu0 %v2147
  %2193 = vmatprep.subr.bf16.mxu0 0
  %2194 = vmatpush1.bf16.msra.mxu0 %v2148
  %2195 = vmatprep.subr.bf16.mxu0 0
  %2196 = vmatpush1.bf16.msra.mxu0 %v2149
  %2197 = vmatprep.subr.bf16.mxu0 0
  %2198 = vmatpush1.bf16.msra.mxu0 %v2150
  %2199 = vmatprep.subr.bf16.mxu0 0
  %2200 = vmatpush1.bf16.msra.mxu0 %v2151
  %2201 = vmatprep.subr.bf16.mxu0 0
  %2202 = vmatpush1.bf16.msra.mxu0 %v2152
  %2203 = vmatprep.subr.bf16.mxu0 0
  %2204 = vmatpush1.bf16.msra.mxu0 %v2153
  %2205 = vmatprep.subr.bf16.mxu0 0
  %2206 = vmatpush1.bf16.msra.mxu0 %v2154
  %2207 = vmatprep.subr.bf16.mxu0 0
  %2208 = vmatpush1.bf16.msra.mxu0 %v2155
  %2209 = vmatprep.subr.bf16.mxu0 0
  %2210 = vmatpush1.bf16.msra.mxu0 %v2156
  %2211 = vmatprep.subr.bf16.mxu0 0
  %2212 = vmatpush1.bf16.msra.mxu0 %v2157
  %2213 = vmatprep.subr.bf16.mxu0 0
  %2214 = vmatpush1.bf16.msra.mxu0 %v2158
  %2215 = vmatprep.subr.bf16.mxu0 0
  %2216 = vmatpush1.bf16.msra.mxu0 %v2159
  %2217 = vmatprep.subr.bf16.mxu0 0
  %2218 = vmatpush1.bf16.msra.mxu0 %v2160
  %2219 = vmatprep.mubr.bf16.mxu0 %v2032
  %2220 = vmatmul.mubr.bf16.gmra.mrb[0].mxu0 %v2016
  %v2221 = vpop.f32.mrb[0].mxu0
  %v2222 = vadd.f32 0.0, %v2221
  %v2223 = vpop.f32.mrb[0].mxu0
  %v2224 = vpop.f32.mrb[0].mxu0
  %v2225 = vadd.f32 0.0, %v2224
  %v2226 = vpop.f32.mrb[0].mxu0
  %2227 = vmatprep.mubr.bf16.mxu0 %v2035
  %2228 = vmatmul.mubr.bf16.gmra.mrb[0].mxu0 %v2019
  %v2229 = vpop.f32.mrb[0].mxu0
  %v2230 = vadd.f32 0.0, %v2229
  %v2231 = vpop.f32.mrb[0].mxu0
  %v2232 = vpop.f32.mrb[0].mxu0
  %v2233 = vadd.f32 0.0, %v2232
  %v2234 = vpop.f32.mrb[0].mxu0
  %2235 = vdwg.mxu0
  %2236 = vmatprep.subr.bf16.mxu0 0
  %2237 = vmatpush1.bf16.msra.mxu0 %v2161
  %2238 = vmatprep.subr.bf16.mxu0 0
  %2239 = vmatpush1.bf16.msra.mxu0 %v2162
  %2240 = vmatprep.subr.bf16.mxu0 0
  %2241 = vmatpush1.bf16.msra.mxu0 0
  %2242 = vmatprep.subr.bf16.mxu0 0
  %2243 = vmatpush1.bf16.msra.mxu0 0
  %2244 = vmatprep.subr.bf16.mxu0 0
  %2245 = vmatpush1.bf16.msra.mxu0 0
  %2246 = vmatprep.subr.bf16.mxu0 0
  %2247 = vmatpush1.bf16.msra.mxu0 0
  %2248 = vmatprep.subr.bf16.mxu0 0
  %2249 = vmatpush1.bf16.msra.mxu0 0
  %2250 = vmatprep.subr.bf16.mxu0 0
  %2251 = vmatpush1.bf16.msra.mxu0 0
  %2252 = vmatprep.subr.bf16.mxu0 0
  %2253 = vmatpush1.bf16.msra.mxu0 0
  %2254 = vmatprep.subr.bf16.mxu0 0
  %2255 = vmatpush1.bf16.msra.mxu0 0
  %2256 = vmatprep.subr.bf16.mxu0 0
  %2257 = vmatpush1.bf16.msra.mxu0 0
  %2258 = vmatprep.subr.bf16.mxu0 0
  %2259 = vmatpush1.bf16.msra.mxu0 0
  %2260 = vmatprep.subr.bf16.mxu0 0
  %2261 = vmatpush1.bf16.msra.mxu0 0
  %2262 = vmatprep.subr.bf16.mxu0 0
  %2263 = vmatpush1.bf16.msra.mxu0 0
  %2264 = vmatprep.subr.bf16.mxu0 0
  %2265 = vmatpush1.bf16.msra.mxu0 0
  %2266 = vmatprep.subr.bf16.mxu0 0
  %2267 = vmatpush1.bf16.msra.mxu0 0
  %2268 = vmatprep.mubr.bf16.mxu0 0
  %2269 = vmatmul.mubr.bf16.gmra.mrb[0].mxu0 %v2182
  %v2270 = vpop.f32.mrb[0].mxu0
  %v2271 = vadd.f32 %v2222, %v2270
  %v2272 = vpop.f32.mrb[0].mxu0
  %v2273 = vpop.f32.mrb[0].mxu0
  %v2274 = vadd.f32 %v2225, %v2273
  %v2275 = vpop.f32.mrb[0].mxu0
  %2276 = vmatprep.mubr.bf16.mxu0 0
  %2277 = vmatmul.mubr.bf16.gmra.mrb[0].mxu0 %v2185
  %v2278 = vpop.f32.mrb[0].mxu0
  %v2279 = vadd.f32 %v2230, %v2278
  %v2280 = vpop.f32.mrb[0].mxu0
  %v2281 = vpop.f32.mrb[0].mxu0
  %v2282 = vadd.f32 %v2233, %v2281
  %v2283 = vpop.f32.mrb[0].mxu0
  %2284 = vdwg.mxu0
  %v2285 = vld [vmem:[%s21] sm:$0xff]
  %v2286 = vld [vmem:[%s21 + $0x8] sm:$0xff]
  %v2287 = vld [vmem:[%s21 + $0x10] sm:$0xff]
  %v2288 = vld [vmem:[%s21 + $0x18] sm:$0xff]
  %v2289 = vld [vmem:[%s23] sm:$0xff]
  %v2290 = vld [vmem:[%s23 + $0x8] sm:$0xff]
  %v2291 = vld [vmem:[%s23 + $0x10] sm:$0xff]
  %v2292 = vld [vmem:[%s23 + $0x18] sm:$0xff]
  %v2293 = vsel %vm1485, %v2271, 0.0
  %2294 = vadd.xlane.f32.xlu0 %v2293
  %v2295 = vpop.xlane.xlu0 %2294
  %v2296 = vsel %vm1485, %v2274, 0.0
  %2297 = vadd.xlane.f32.xlu0 %v2296
  %v2298 = vpop.xlane.xlu0 %2297
  %v2299 = vsel %vm1485, %v2279, 0.0
  %2300 = vadd.xlane.f32.xlu0 %v2299
  %v2301 = vpop.xlane.xlu0 %2300
  %v2302 = vsel %vm1485, %v2282, 0.0
  %2303 = vadd.xlane.f32.xlu0 %v2302
  %v2304 = vpop.xlane.xlu0 %2303
  %v2305 = vmul.f32 %v2295, 0.03125
  %v2306 = vmul.f32 %v2298, 0.03125
  %v2307 = vmul.f32 %v2301, 0.03125
  %v2308 = vmul.f32 %v2304, 0.03125
  %v2309 = vsub.f32 %v2271, %v2305
  %v2310 = vsub.f32 %v2274, %v2306
  %v2311 = vsub.f32 %v2279, %v2307
  %v2312 = vsub.f32 %v2282, %v2308
  %v2313 = vmul.f32 %v2309, %v2309
  %v2314 = vmul.f32 %v2310, %v2310
  %v2315 = vmul.f32 %v2311, %v2311
  %v2316 = vmul.f32 %v2312, %v2312
  %v2317 = vsel %vm1485, %v2313, 0.0
  %2318 = vadd.xlane.f32.xlu0 %v2317
  %v2319 = vpop.xlane.xlu0 %2318
  %v2320 = vsel %vm1485, %v2314, 0.0
  %2321 = vadd.xlane.f32.xlu0 %v2320
  %v2322 = vpop.xlane.xlu0 %2321
  %v2323 = vsel %vm1485, %v2315, 0.0
  %2324 = vadd.xlane.f32.xlu0 %v2323
  %v2325 = vpop.xlane.xlu0 %2324
  %v2326 = vsel %vm1485, %v2316, 0.0
  %2327 = vadd.xlane.f32.xlu0 %v2326
  %v2328 = vpop.xlane.xlu0 %2327
  %v2329 = vmul.f32 %v2319, 0.03125
  %v2330 = vmul.f32 %v2322, 0.03125
  %v2331 = vmul.f32 %v2325, 0.03125
  %v2332 = vmul.f32 %v2328, 0.03125
  %v2333 = vadd.f32 %v2329, 1e-05
  %v2334 = vadd.f32 %v2330, 1e-05
  %v2335 = vadd.f32 %v2331, 1e-05
  %v2336 = vadd.f32 %v2332, 1e-05
  %v2337 = vrsqrt.pop %v2333
  %v2338 = vrsqrt.pop %v2334
  %v2339 = vrsqrt.pop %v2335
  %v2340 = vrsqrt.pop %v2336
  %v2341 = vmul.f32 %v2285, %v2337
  %v2342 = vmul.f32 %v2286, %v2338
  %v2343 = vmul.f32 %v2287, %v2339
  %v2344 = vmul.f32 %v2288, %v2340
  %2346 = vset.pattern.permute.xlu0 0
  %2347 = vperm.xlu0 %2346, %v2341
  %v2348 = vpop.permute.xlu0 %2347
  %2351 = vset.pattern.permute.xlu0 0
  %2352 = vperm.xlu0 %2351, %v2342
  %v2353 = vpop.permute.xlu0 %2352
  %2356 = vset.pattern.permute.xlu0 0
  %2357 = vperm.xlu0 %2356, %v2343
  %v2358 = vpop.permute.xlu0 %2357
  %2361 = vset.pattern.permute.xlu0 0
  %2362 = vperm.xlu0 %2361, %v2344
  %v2363 = vpop.permute.xlu0 %2362
  %v2365 = vmul.f32 %v2309, %v2348
  %v2366 = vmul.f32 %v2310, %v2353
  %v2367 = vmul.f32 %v2311, %v2358
  %v2368 = vmul.f32 %v2312, %v2363
  %2370 = vset.pattern.permute.xlu0 0
  %2371 = vperm.xlu0 %2370, %v2289
  %v2372 = vpop.permute.xlu0 %2371
  %2375 = vset.pattern.permute.xlu0 0
  %2376 = vperm.xlu0 %2375, %v2290
  %v2377 = vpop.permute.xlu0 %2376
  %2380 = vset.pattern.permute.xlu0 0
  %2381 = vperm.xlu0 %2380, %v2291
  %v2382 = vpop.permute.xlu0 %2381
  %2385 = vset.pattern.permute.xlu0 0
  %2386 = vperm.xlu0 %2385, %v2292
  %v2387 = vpop.permute.xlu0 %2386
  %v2389 = vadd.f32 %v2365, %v2372
  %v2390 = vadd.f32 %v2366, %v2377
  %v2391 = vadd.f32 %v2367, %v2382
  %v2392 = vadd.f32 %v2368, %v2387
  %v2393 = vmax.f32 %v2389, 0.0
  %v2394 = vmax.f32 %v2390, 0.0
  %v2395 = vmax.f32 %v2391, 0.0
  %v2396 = vmax.f32 %v2392, 0.0
  %v2397 = vld [vmem:[%s25] sm:$0xf]
  %v2398 = vld [vmem:[%s25 + $0x4] sm:$0xf]
  %v2399 = vld [vmem:[%s25 + $0x8] sm:$0xf]
  %v2400 = vld [vmem:[%s25 + $0xc] sm:$0xf]
  %v2401 = vld [vmem:[%s25 + $0x10] sm:$0xf]
  %v2402 = vld [vmem:[%s25 + $0x14] sm:$0xf]
  %v2403 = vld [vmem:[%s25 + $0x18] sm:$0xf]
  %v2404 = vld [vmem:[%s25 + $0x1c] sm:$0xf]
  %v2405 = vld [vmem:[%s25 + $0x20] sm:$0xf]
  %v2406 = vld [vmem:[%s25 + $0x24] sm:$0xf]
  %v2407 = vld [vmem:[%s25 + $0x28] sm:$0xf]
  %v2408 = vld [vmem:[%s25 + $0x2c] sm:$0xf]
  %v2409 = vld [vmem:[%s25 + $0x30] sm:$0xf]
  %v2410 = vld [vmem:[%s25 + $0x34] sm:$0xf]
  %v2411 = vld [vmem:[%s25 + $0x38] sm:$0xf]
  %v2412 = vld [vmem:[%s25 + $0x3c] sm:$0xf]
  %v2413 = vld [vmem:[%s25 + $0x40] sm:$0xf]
  %v2414 = vld [vmem:[%s25 + $0x44] sm:$0xf]
  %v2415 = vld [vmem:[%s25 + $0x48] sm:$0xf]
  %v2416 = vld [vmem:[%s25 + $0x4c] sm:$0xf]
  %v2417 = vld [vmem:[%s25 + $0x50] sm:$0xf]
  %v2418 = vld [vmem:[%s25 + $0x54] sm:$0xf]
  %v2419 = vld [vmem:[%s25 + $0x58] sm:$0xf]
  %v2420 = vld [vmem:[%s25 + $0x5c] sm:$0xf]
  %v2421 = vld [vmem:[%s25 + $0x60] sm:$0xf]
  %v2422 = vld [vmem:[%s25 + $0x64] sm:$0xf]
  %v2423 = vld [vmem:[%s25 + $0x68] sm:$0xf]
  %v2424 = vld [vmem:[%s25 + $0x6c] sm:$0xf]
  %v2425 = vld [vmem:[%s25 + $0x70] sm:$0xf]
  %v2426 = vld [vmem:[%s25 + $0x74] sm:$0xf]
  %v2427 = vld [vmem:[%s25 + $0x78] sm:$0xf]
  %v2428 = vld [vmem:[%s25 + $0x7c] sm:$0xf]
  %v2429 = vld [vmem:[%s25 + $0x80] sm:$0xf]
  %v2430 = vld [vmem:[%s25 + $0x84] sm:$0xf]
  %v2431 = vld [vmem:[%s25 + $0x88] sm:$0xf]
  %v2432 = vld [vmem:[%s25 + $0x8c] sm:$0xf]
  %v2433 = vpack.c.bf16 %v2394, %v2393
  %v2434 = vpack.c.bf16 %v2396, %v2395
  %v2471 = vunpack.c.l.b16 %v2397
  %v2472 = vunpack.c.l.b16 %v2398
  %v2473 = vunpack.c.l.b16 %v2399
  %v2474 = vunpack.c.l.b16 %v2400
  %v2475 = vunpack.c.l.b16 %v2401
  %v2476 = vunpack.c.l.b16 %v2402
  %v2477 = vunpack.c.l.b16 %v2403
  %v2478 = vunpack.c.l.b16 %v2404
  %v2479 = vunpack.c.l.b16 %v2405
  %v2480 = vunpack.c.l.b16 %v2406
  %v2481 = vunpack.c.l.b16 %v2407
  %v2482 = vunpack.c.l.b16 %v2408
  %v2483 = vunpack.c.l.b16 %v2409
  %v2484 = vunpack.c.l.b16 %v2410
  %v2485 = vunpack.c.l.b16 %v2411
  %v2486 = vunpack.c.l.b16 %v2412
  %v2487 = vunpack.c.l.b16 %v2413
  %v2488 = vunpack.c.l.b16 %v2414
  %v2489 = vunpack.c.l.b16 %v2415
  %v2490 = vunpack.c.l.b16 %v2416
  %v2491 = vunpack.c.l.b16 %v2417
  %v2492 = vunpack.c.l.b16 %v2418
  %v2493 = vunpack.c.l.b16 %v2419
  %v2494 = vunpack.c.l.b16 %v2420
  %v2495 = vunpack.c.l.b16 %v2421
  %v2496 = vunpack.c.l.b16 %v2422
  %v2497 = vunpack.c.l.b16 %v2423
  %v2498 = vunpack.c.l.b16 %v2424
  %v2499 = vunpack.c.l.b16 %v2425
  %v2500 = vunpack.c.l.b16 %v2426
  %v2501 = vunpack.c.l.b16 %v2427
  %v2502 = vunpack.c.l.b16 %v2428
  %v2503 = vunpack.c.l.b16 %v2429
  %v2504 = vunpack.c.l.b16 %v2430
  %v2505 = vunpack.c.l.b16 %v2431
  %v2506 = vunpack.c.l.b16 %v2432
  %v2507 = vpack.c.b16 %v2472, %v2471
  %v2508 = vpack.c.b16 %v2474, %v2473
  %v2509 = vpack.c.b16 %v2476, %v2475
  %v2510 = vpack.c.b16 %v2478, %v2477
  %v2511 = vpack.c.b16 %v2480, %v2479
  %v2512 = vpack.c.b16 %v2482, %v2481
  %v2513 = vpack.c.b16 %v2484, %v2483
  %v2514 = vpack.c.b16 %v2486, %v2485
  %v2515 = vpack.c.b16 %v2488, %v2487
  %v2516 = vpack.c.b16 %v2490, %v2489
  %v2517 = vpack.c.b16 %v2492, %v2491
  %v2518 = vpack.c.b16 %v2494, %v2493
  %v2519 = vpack.c.b16 %v2496, %v2495
  %v2520 = vpack.c.b16 %v2498, %v2497
  %v2521 = vpack.c.b16 %v2500, %v2499
  %v2522 = vpack.c.b16 %v2502, %v2501
  %v2523 = vpack.c.b16 %v2504, %v2503
  %v2524 = vpack.c.b16 %v2506, %v2505
  %v2526 = vsel %vm1485, %v2507, 0
  %v2529 = vsel %vm1485, %v2508, 0
  %v2532 = vsel %vm1485, %v2509, 0
  %v2535 = vsel %vm1485, %v2510, 0
  %v2538 = vsel %vm1485, %v2511, 0
  %v2541 = vsel %vm1485, %v2512, 0
  %v2544 = vsel %vm1485, %v2513, 0
  %v2547 = vsel %vm1485, %v2514, 0
  %v2550 = vsel %vm1485, %v2515, 0
  %v2553 = vsel %vm1485, %v2516, 0
  %v2556 = vsel %vm1485, %v2517, 0
  %v2559 = vsel %vm1485, %v2518, 0
  %v2562 = vsel %vm1485, %v2519, 0
  %v2565 = vsel %vm1485, %v2520, 0
  %v2568 = vsel %vm1485, %v2521, 0
  %v2571 = vsel %vm1485, %v2522, 0
  %v2574 = vsel %vm1485, %v2523, 0
  %v2577 = vsel %vm1485, %v2524, 0
  %2579 = vmatprep.subr.bf16.mxu0 0
  %2580 = vmatpush1.bf16.msra.mxu0 %v2433
  %2581 = vmatprep.subr.bf16.mxu0 0
  %2582 = vmatpush1.bf16.msra.mxu0 %v2434
  %2583 = vmatprep.subr.bf16.mxu0 0
  %2584 = vmatpush1.bf16.msra.mxu0 0
  %2585 = vmatprep.subr.bf16.mxu0 0
  %2586 = vmatpush1.bf16.msra.mxu0 0
  %2587 = vmatprep.subr.bf16.mxu0 0
  %2588 = vmatpush1.bf16.msra.mxu0 0
  %2589 = vmatprep.subr.bf16.mxu0 0
  %2590 = vmatpush1.bf16.msra.mxu0 0
  %2591 = vmatprep.subr.bf16.mxu0 0
  %2592 = vmatpush1.bf16.msra.mxu0 0
  %2593 = vmatprep.subr.bf16.mxu0 0
  %2594 = vmatpush1.bf16.msra.mxu0 0
  %2595 = vmatprep.subr.bf16.mxu0 0
  %2596 = vmatpush1.bf16.msra.mxu0 0
  %2597 = vmatprep.subr.bf16.mxu0 0
  %2598 = vmatpush1.bf16.msra.mxu0 0
  %2599 = vmatprep.subr.bf16.mxu0 0
  %2600 = vmatpush1.bf16.msra.mxu0 0
  %2601 = vmatprep.subr.bf16.mxu0 0
  %2602 = vmatpush1.bf16.msra.mxu0 0
  %2603 = vmatprep.subr.bf16.mxu0 0
  %2604 = vmatpush1.bf16.msra.mxu0 0
  %2605 = vmatprep.subr.bf16.mxu0 0
  %2606 = vmatpush1.bf16.msra.mxu0 0
  %2607 = vmatprep.subr.bf16.mxu0 0
  %2608 = vmatpush1.bf16.msra.mxu0 0
  %2609 = vmatprep.subr.bf16.mxu0 0
  %2610 = vmatpush1.bf16.msra.mxu0 0
  %2611 = vmatprep.mubr.bf16.mxu0 0
  %2612 = vmatmul.mubr.bf16.gmra.mrb[0].mxu0 %v2526
  %v2613 = vpop.f32.mrb[0].mxu0
  %v2614 = vadd.f32 0.0, %v2613
  %v2615 = vpop.f32.mrb[0].mxu0
  %v2616 = vpop.f32.mrb[0].mxu0
  %v2617 = vadd.f32 0.0, %v2616
  %v2618 = vpop.f32.mrb[0].mxu0
  %2619 = vmatprep.mubr.bf16.mxu0 0
  %2620 = vmatmul.mubr.bf16.gmra.mrb[0].mxu0 %v2529
  %v2621 = vpop.f32.mrb[0].mxu0
  %v2622 = vadd.f32 0.0, %v2621
  %v2623 = vpop.f32.mrb[0].mxu0
  %v2624 = vpop.f32.mrb[0].mxu0
  %v2625 = vadd.f32 0.0, %v2624
  %v2626 = vpop.f32.mrb[0].mxu0
  %2627 = vmatprep.mubr.bf16.mxu0 0
  %2628 = vmatmul.mubr.bf16.gmra.mrb[0].mxu0 %v2532
  %v2629 = vpop.f32.mrb[0].mxu0
  %v2630 = vadd.f32 0.0, %v2629
  %v2631 = vpop.f32.mrb[0].mxu0
  %v2632 = vpop.f32.mrb[0].mxu0
  %v2633 = vadd.f32 0.0, %v2632
  %v2634 = vpop.f32.mrb[0].mxu0
  %2635 = vmatprep.mubr.bf16.mxu0 0
  %2636 = vmatmul.mubr.bf16.gmra.mrb[0].mxu0 %v2535
  %v2637 = vpop.f32.mrb[0].mxu0
  %v2638 = vadd.f32 0.0, %v2637
  %v2639 = vpop.f32.mrb[0].mxu0
  %v2640 = vpop.f32.mrb[0].mxu0
  %v2641 = vadd.f32 0.0, %v2640
  %v2642 = vpop.f32.mrb[0].mxu0
  %2643 = vmatprep.mubr.bf16.mxu0 0
  %2644 = vmatmul.mubr.bf16.gmra.mrb[0].mxu0 %v2538
  %v2645 = vpop.f32.mrb[0].mxu0
  %v2646 = vadd.f32 0.0, %v2645
  %v2647 = vpop.f32.mrb[0].mxu0
  %v2648 = vpop.f32.mrb[0].mxu0
  %v2649 = vadd.f32 0.0, %v2648
  %v2650 = vpop.f32.mrb[0].mxu0
  %2651 = vmatprep.mubr.bf16.mxu0 0
  %2652 = vmatmul.mubr.bf16.gmra.mrb[0].mxu0 %v2541
  %v2653 = vpop.f32.mrb[0].mxu0
  %v2654 = vadd.f32 0.0, %v2653
  %v2655 = vpop.f32.mrb[0].mxu0
  %v2656 = vpop.f32.mrb[0].mxu0
  %v2657 = vadd.f32 0.0, %v2656
  %v2658 = vpop.f32.mrb[0].mxu0
  %2659 = vmatprep.mubr.bf16.mxu0 0
  %2660 = vmatmul.mubr.bf16.gmra.mrb[0].mxu0 %v2544
  %v2661 = vpop.f32.mrb[0].mxu0
  %v2662 = vadd.f32 0.0, %v2661
  %v2663 = vpop.f32.mrb[0].mxu0
  %v2664 = vpop.f32.mrb[0].mxu0
  %v2665 = vadd.f32 0.0, %v2664
  %v2666 = vpop.f32.mrb[0].mxu0
  %2667 = vmatprep.mubr.bf16.mxu0 0
  %2668 = vmatmul.mubr.bf16.gmra.mrb[0].mxu0 %v2547
  %v2669 = vpop.f32.mrb[0].mxu0
  %v2670 = vadd.f32 0.0, %v2669
  %v2671 = vpop.f32.mrb[0].mxu0
  %v2672 = vpop.f32.mrb[0].mxu0
  %v2673 = vadd.f32 0.0, %v2672
  %v2674 = vpop.f32.mrb[0].mxu0
  %2675 = vmatprep.mubr.bf16.mxu0 0
  %2676 = vmatmul.mubr.bf16.gmra.mrb[0].mxu0 %v2550
  %v2677 = vpop.f32.mrb[0].mxu0
  %v2678 = vadd.f32 0.0, %v2677
  %v2679 = vpop.f32.mrb[0].mxu0
  %v2680 = vpop.f32.mrb[0].mxu0
  %v2681 = vadd.f32 0.0, %v2680
  %v2682 = vpop.f32.mrb[0].mxu0
  %2683 = vmatprep.mubr.bf16.mxu0 0
  %2684 = vmatmul.mubr.bf16.gmra.mrb[0].mxu0 %v2553
  %v2685 = vpop.f32.mrb[0].mxu0
  %v2686 = vadd.f32 0.0, %v2685
  %v2687 = vpop.f32.mrb[0].mxu0
  %v2688 = vpop.f32.mrb[0].mxu0
  %v2689 = vadd.f32 0.0, %v2688
  %v2690 = vpop.f32.mrb[0].mxu0
  %2691 = vmatprep.mubr.bf16.mxu0 0
  %2692 = vmatmul.mubr.bf16.gmra.mrb[0].mxu0 %v2556
  %v2693 = vpop.f32.mrb[0].mxu0
  %v2694 = vadd.f32 0.0, %v2693
  %v2695 = vpop.f32.mrb[0].mxu0
  %v2696 = vpop.f32.mrb[0].mxu0
  %v2697 = vadd.f32 0.0, %v2696
  %v2698 = vpop.f32.mrb[0].mxu0
  %2699 = vmatprep.mubr.bf16.mxu0 0
  %2700 = vmatmul.mubr.bf16.gmra.mrb[0].mxu0 %v2559
  %v2701 = vpop.f32.mrb[0].mxu0
  %v2702 = vadd.f32 0.0, %v2701
  %v2703 = vpop.f32.mrb[0].mxu0
  %v2704 = vpop.f32.mrb[0].mxu0
  %v2705 = vadd.f32 0.0, %v2704
  %v2706 = vpop.f32.mrb[0].mxu0
  %2707 = vmatprep.mubr.bf16.mxu0 0
  %2708 = vmatmul.mubr.bf16.gmra.mrb[0].mxu0 %v2562
  %v2709 = vpop.f32.mrb[0].mxu0
  %v2710 = vadd.f32 0.0, %v2709
  %v2711 = vpop.f32.mrb[0].mxu0
  %v2712 = vpop.f32.mrb[0].mxu0
  %v2713 = vadd.f32 0.0, %v2712
  %v2714 = vpop.f32.mrb[0].mxu0
  %2715 = vmatprep.mubr.bf16.mxu0 0
  %2716 = vmatmul.mubr.bf16.gmra.mrb[0].mxu0 %v2565
  %v2717 = vpop.f32.mrb[0].mxu0
  %v2718 = vadd.f32 0.0, %v2717
  %v2719 = vpop.f32.mrb[0].mxu0
  %v2720 = vpop.f32.mrb[0].mxu0
  %v2721 = vadd.f32 0.0, %v2720
  %v2722 = vpop.f32.mrb[0].mxu0
  %2723 = vmatprep.mubr.bf16.mxu0 0
  %2724 = vmatmul.mubr.bf16.gmra.mrb[0].mxu0 %v2568
  %v2725 = vpop.f32.mrb[0].mxu0
  %v2726 = vadd.f32 0.0, %v2725
  %v2727 = vpop.f32.mrb[0].mxu0
  %v2728 = vpop.f32.mrb[0].mxu0
  %v2729 = vadd.f32 0.0, %v2728
  %v2730 = vpop.f32.mrb[0].mxu0
  %2731 = vmatprep.mubr.bf16.mxu0 0
  %2732 = vmatmul.mubr.bf16.gmra.mrb[0].mxu0 %v2571
  %v2733 = vpop.f32.mrb[0].mxu0
  %v2734 = vadd.f32 0.0, %v2733
  %v2735 = vpop.f32.mrb[0].mxu0
  %v2736 = vpop.f32.mrb[0].mxu0
  %v2737 = vadd.f32 0.0, %v2736
  %v2738 = vpop.f32.mrb[0].mxu0
  %2739 = vmatprep.mubr.bf16.mxu0 0
  %2740 = vmatmul.mubr.bf16.gmra.mrb[0].mxu0 %v2574
  %v2741 = vpop.f32.mrb[0].mxu0
  %v2742 = vadd.f32 0.0, %v2741
  %v2743 = vpop.f32.mrb[0].mxu0
  %v2744 = vpop.f32.mrb[0].mxu0
  %v2745 = vadd.f32 0.0, %v2744
  %v2746 = vpop.f32.mrb[0].mxu0
  %2747 = vmatprep.mubr.bf16.mxu0 0
  %2748 = vmatmul.mubr.bf16.gmra.mrb[0].mxu0 %v2577
  %v2749 = vpop.f32.mrb[0].mxu0
  %v2750 = vadd.f32 0.0, %v2749
  %v2751 = vpop.f32.mrb[0].mxu0
  %v2752 = vpop.f32.mrb[0].mxu0
  %v2753 = vadd.f32 0.0, %v2752
  %v2754 = vpop.f32.mrb[0].mxu0
  %2755 = vdwg.mxu0
  %v2756 = vpack.c.bf16 %v2617, %v2614
  %v2757 = vpack.c.bf16 %v2625, %v2622
  %v2758 = vpack.c.bf16 %v2633, %v2630
  %v2759 = vpack.c.bf16 %v2641, %v2638
  %v2760 = vpack.c.bf16 %v2649, %v2646
  %v2761 = vpack.c.bf16 %v2657, %v2654
  %v2762 = vpack.c.bf16 %v2665, %v2662
  %v2763 = vpack.c.bf16 %v2673, %v2670
  %v2764 = vpack.c.bf16 %v2681, %v2678
  %v2765 = vpack.c.bf16 %v2689, %v2686
  %v2766 = vpack.c.bf16 %v2697, %v2694
  %v2767 = vpack.c.bf16 %v2705, %v2702
  %v2768 = vpack.c.bf16 %v2713, %v2710
  %v2769 = vpack.c.bf16 %v2721, %v2718
  %v2770 = vpack.c.bf16 %v2729, %v2726
  %v2771 = vpack.c.bf16 %v2737, %v2734
  %v2772 = vpack.c.bf16 %v2745, %v2742
  %v2773 = vpack.c.bf16 %v2753, %v2750
  %2776 = vrot.lane.b32.xlu0 %v2758, 32
  %v2777 = vpop.permute.xlu0 %2776
  %2778 = vrot.lane.b32.xlu0 %v2759, 32
  %v2779 = vpop.permute.xlu0 %2778
  %2782 = vrot.lane.b32.xlu0 %v2760, 64
  %v2783 = vpop.permute.xlu0 %2782
  %2784 = vrot.lane.b32.xlu0 %v2761, 64
  %v2785 = vpop.permute.xlu0 %2784
  %2788 = vrot.lane.b32.xlu0 %v2762, 96
  %v2789 = vpop.permute.xlu0 %2788
  %2790 = vrot.lane.b32.xlu0 %v2763, 96
  %v2791 = vpop.permute.xlu0 %2790
  %2794 = vrot.lane.b32.xlu0 %v2766, 32
  %v2795 = vpop.permute.xlu0 %2794
  %2796 = vrot.lane.b32.xlu0 %v2767, 32
  %v2797 = vpop.permute.xlu0 %2796
  %2800 = vrot.lane.b32.xlu0 %v2768, 64
  %v2801 = vpop.permute.xlu0 %2800
  %2802 = vrot.lane.b32.xlu0 %v2769, 64
  %v2803 = vpop.permute.xlu0 %2802
  %2806 = vrot.lane.b32.xlu0 %v2770, 96
  %v2807 = vpop.permute.xlu0 %2806
  %2808 = vrot.lane.b32.xlu0 %v2771, 96
  %v2809 = vpop.permute.xlu0 %2808
  %v2812 = vsel %vm1485, %v2756, %v2777
  %v2815 = vsel %vm1485, %v2757, %v2779
  %v2817 = vsel %vm2009, %v2812, %v2783
  %v2819 = vsel %vm2009, %v2815, %v2785
  %v2821 = vsel %vm2014, %v2817, %v2789
  %v2824 = vsel %vm2014, %v2819, %v2791
  %v2828 = vsel %vm1485, %v2764, %v2795
  %v2831 = vsel %vm1485, %v2765, %v2797
  %v2833 = vsel %vm2009, %v2828, %v2801
  %v2835 = vsel %vm2009, %v2831, %v2803
  %v2837 = vsel %vm2014, %v2833, %v2807
  %v2840 = vsel %vm2014, %v2835, %v2809
  %v2842 = vld [vmem:[%s27] sm:$0xf]
  %v2843 = vld [vmem:[%s27 + $0x4] sm:$0xf]
  %v2844 = vld [vmem:[%s27 + $0x8] sm:$0xf]
  %v2845 = vld [vmem:[%s27 + $0xc] sm:$0xf]
  %v2846 = vld [vmem:[%s27 + $0x10] sm:$0xf]
  %v2847 = vld [vmem:[%s27 + $0x14] sm:$0xf]
  %v2848 = vld [vmem:[%s27 + $0x18] sm:$0xf]
  %v2849 = vld [vmem:[%s27 + $0x1c] sm:$0xf]
  %v2850 = vld [vmem:[%s27 + $0x20] sm:$0xf]
  %v2851 = vld [vmem:[%s27 + $0x24] sm:$0xf]
  %v2852 = vld [vmem:[%s27 + $0x28] sm:$0xf]
  %v2853 = vld [vmem:[%s27 + $0x2c] sm:$0xf]
  %v2854 = vld [vmem:[%s27 + $0x30] sm:$0xf]
  %v2855 = vld [vmem:[%s27 + $0x34] sm:$0xf]
  %v2856 = vld [vmem:[%s27 + $0x38] sm:$0xf]
  %v2857 = vld [vmem:[%s27 + $0x3c] sm:$0xf]
  %v2858 = vld [vmem:[%s27 + $0x40] sm:$0xf]
  %v2859 = vld [vmem:[%s27 + $0x44] sm:$0xf]
  %v2860 = vld [vmem:[%s27 + $0x48] sm:$0xf]
  %v2861 = vld [vmem:[%s27 + $0x4c] sm:$0xf]
  %v2862 = vld [vmem:[%s27 + $0x50] sm:$0xf]
  %v2863 = vld [vmem:[%s27 + $0x54] sm:$0xf]
  %v2864 = vld [vmem:[%s27 + $0x58] sm:$0xf]
  %v2865 = vld [vmem:[%s27 + $0x5c] sm:$0xf]
  %v2866 = vld [vmem:[%s27 + $0x60] sm:$0xf]
  %v2867 = vld [vmem:[%s27 + $0x64] sm:$0xf]
  %v2868 = vld [vmem:[%s27 + $0x68] sm:$0xf]
  %v2869 = vld [vmem:[%s27 + $0x6c] sm:$0xf]
  %v2870 = vld [vmem:[%s27 + $0x70] sm:$0xf]
  %v2871 = vld [vmem:[%s27 + $0x74] sm:$0xf]
  %v2872 = vld [vmem:[%s27 + $0x78] sm:$0xf]
  %v2873 = vld [vmem:[%s27 + $0x7c] sm:$0xf]
  %v2874 = vld [vmem:[%s27 + $0x80] sm:$0xf]
  %v2875 = vld [vmem:[%s27 + $0x84] sm:$0xf]
  %v2876 = vld [vmem:[%s27 + $0x88] sm:$0xf]
  %v2877 = vld [vmem:[%s27 + $0x8c] sm:$0xf]
  %v2914 = vunpack.c.l.b16 %v2842
  %v2915 = vunpack.c.l.b16 %v2843
  %v2916 = vunpack.c.l.b16 %v2844
  %v2917 = vunpack.c.l.b16 %v2845
  %v2918 = vunpack.c.l.b16 %v2846
  %v2919 = vunpack.c.l.b16 %v2847
  %v2920 = vunpack.c.l.b16 %v2848
  %v2921 = vunpack.c.l.b16 %v2849
  %v2922 = vunpack.c.l.b16 %v2850
  %v2923 = vunpack.c.l.b16 %v2851
  %v2924 = vunpack.c.l.b16 %v2852
  %v2925 = vunpack.c.l.b16 %v2853
  %v2926 = vunpack.c.l.b16 %v2854
  %v2927 = vunpack.c.l.b16 %v2855
  %v2928 = vunpack.c.l.b16 %v2856
  %v2929 = vunpack.c.l.b16 %v2857
  %v2930 = vunpack.c.l.b16 %v2858
  %v2931 = vunpack.c.l.b16 %v2859
  %v2932 = vunpack.c.l.b16 %v2860
  %v2933 = vunpack.c.l.b16 %v2861
  %v2934 = vunpack.c.l.b16 %v2862
  %v2935 = vunpack.c.l.b16 %v2863
  %v2936 = vunpack.c.l.b16 %v2864
  %v2937 = vunpack.c.l.b16 %v2865
  %v2938 = vunpack.c.l.b16 %v2866
  %v2939 = vunpack.c.l.b16 %v2867
  %v2940 = vunpack.c.l.b16 %v2868
  %v2941 = vunpack.c.l.b16 %v2869
  %v2942 = vunpack.c.l.b16 %v2870
  %v2943 = vunpack.c.l.b16 %v2871
  %v2944 = vunpack.c.l.b16 %v2872
  %v2945 = vunpack.c.l.b16 %v2873
  %v2946 = vunpack.c.l.b16 %v2874
  %v2947 = vunpack.c.l.b16 %v2875
  %v2948 = vunpack.c.l.b16 %v2876
  %v2949 = vunpack.c.l.b16 %v2877
  %v2950 = vpack.c.b16 %v2915, %v2914
  %v2951 = vpack.c.b16 %v2917, %v2916
  %v2952 = vpack.c.b16 %v2919, %v2918
  %v2953 = vpack.c.b16 %v2921, %v2920
  %v2954 = vpack.c.b16 %v2923, %v2922
  %v2955 = vpack.c.b16 %v2925, %v2924
  %v2956 = vpack.c.b16 %v2927, %v2926
  %v2957 = vpack.c.b16 %v2929, %v2928
  %v2958 = vpack.c.b16 %v2931, %v2930
  %v2959 = vpack.c.b16 %v2933, %v2932
  %v2960 = vpack.c.b16 %v2935, %v2934
  %v2961 = vpack.c.b16 %v2937, %v2936
  %v2962 = vpack.c.b16 %v2939, %v2938
  %v2963 = vpack.c.b16 %v2941, %v2940
  %v2964 = vpack.c.b16 %v2943, %v2942
  %v2965 = vpack.c.b16 %v2945, %v2944
  %v2966 = vpack.c.b16 %v2947, %v2946
  %v2967 = vpack.c.b16 %v2949, %v2948
  %v2987 = vsel %vm1485, %v2772, 0
  %v2990 = vsel %vm1485, %v2773, 0
  %2992 = vmatprep.subr.bf16.mxu0 0
  %2993 = vmatpush1.bf16.msra.mxu0 %v2950
  %2994 = vmatprep.subr.bf16.mxu0 0
  %2995 = vmatpush1.bf16.msra.mxu0 %v2951
  %2996 = vmatprep.subr.bf16.mxu0 0
  %2997 = vmatpush1.bf16.msra.mxu0 %v2952
  %2998 = vmatprep.subr.bf16.mxu0 0
  %2999 = vmatpush1.bf16.msra.mxu0 %v2953
  %3000 = vmatprep.subr.bf16.mxu0 0
  %3001 = vmatpush1.bf16.msra.mxu0 %v2954
  %3002 = vmatprep.subr.bf16.mxu0 0
  %3003 = vmatpush1.bf16.msra.mxu0 %v2955
  %3004 = vmatprep.subr.bf16.mxu0 0
  %3005 = vmatpush1.bf16.msra.mxu0 %v2956
  %3006 = vmatprep.subr.bf16.mxu0 0
  %3007 = vmatpush1.bf16.msra.mxu0 %v2957
  %3008 = vmatprep.subr.bf16.mxu0 0
  %3009 = vmatpush1.bf16.msra.mxu0 %v2958
  %3010 = vmatprep.subr.bf16.mxu0 0
  %3011 = vmatpush1.bf16.msra.mxu0 %v2959
  %3012 = vmatprep.subr.bf16.mxu0 0
  %3013 = vmatpush1.bf16.msra.mxu0 %v2960
  %3014 = vmatprep.subr.bf16.mxu0 0
  %3015 = vmatpush1.bf16.msra.mxu0 %v2961
  %3016 = vmatprep.subr.bf16.mxu0 0
  %3017 = vmatpush1.bf16.msra.mxu0 %v2962
  %3018 = vmatprep.subr.bf16.mxu0 0
  %3019 = vmatpush1.bf16.msra.mxu0 %v2963
  %3020 = vmatprep.subr.bf16.mxu0 0
  %3021 = vmatpush1.bf16.msra.mxu0 %v2964
  %3022 = vmatprep.subr.bf16.mxu0 0
  %3023 = vmatpush1.bf16.msra.mxu0 %v2965
  %3024 = vmatprep.mubr.bf16.mxu0 %v2837
  %3025 = vmatmul.mubr.bf16.gmra.mrb[0].mxu0 %v2821
  %v3026 = vpop.f32.mrb[0].mxu0
  %v3027 = vadd.f32 0.0, %v3026
  %v3028 = vpop.f32.mrb[0].mxu0
  %v3029 = vpop.f32.mrb[0].mxu0
  %v3030 = vadd.f32 0.0, %v3029
  %v3031 = vpop.f32.mrb[0].mxu0
  %3032 = vmatprep.mubr.bf16.mxu0 %v2840
  %3033 = vmatmul.mubr.bf16.gmra.mrb[0].mxu0 %v2824
  %v3034 = vpop.f32.mrb[0].mxu0
  %v3035 = vadd.f32 0.0, %v3034
  %v3036 = vpop.f32.mrb[0].mxu0
  %v3037 = vpop.f32.mrb[0].mxu0
  %v3038 = vadd.f32 0.0, %v3037
  %v3039 = vpop.f32.mrb[0].mxu0
  %3040 = vdwg.mxu0
  %3041 = vmatprep.subr.bf16.mxu0 0
  %3042 = vmatpush1.bf16.msra.mxu0 %v2966
  %3043 = vmatprep.subr.bf16.mxu0 0
  %3044 = vmatpush1.bf16.msra.mxu0 %v2967
  %3045 = vmatprep.subr.bf16.mxu0 0
  %3046 = vmatpush1.bf16.msra.mxu0 0
  %3047 = vmatprep.subr.bf16.mxu0 0
  %3048 = vmatpush1.bf16.msra.mxu0 0
  %3049 = vmatprep.subr.bf16.mxu0 0
  %3050 = vmatpush1.bf16.msra.mxu0 0
  %3051 = vmatprep.subr.bf16.mxu0 0
  %3052 = vmatpush1.bf16.msra.mxu0 0
  %3053 = vmatprep.subr.bf16.mxu0 0
  %3054 = vmatpush1.bf16.msra.mxu0 0
  %3055 = vmatprep.subr.bf16.mxu0 0
  %3056 = vmatpush1.bf16.msra.mxu0 0
  %3057 = vmatprep.subr.bf16.mxu0 0
  %3058 = vmatpush1.bf16.msra.mxu0 0
  %3059 = vmatprep.subr.bf16.mxu0 0
  %3060 = vmatpush1.bf16.msra.mxu0 0
  %3061 = vmatprep.subr.bf16.mxu0 0
  %3062 = vmatpush1.bf16.msra.mxu0 0
  %3063 = vmatprep.subr.bf16.mxu0 0
  %3064 = vmatpush1.bf16.msra.mxu0 0
  %3065 = vmatprep.subr.bf16.mxu0 0
  %3066 = vmatpush1.bf16.msra.mxu0 0
  %3067 = vmatprep.subr.bf16.mxu0 0
  %3068 = vmatpush1.bf16.msra.mxu0 0
  %3069 = vmatprep.subr.bf16.mxu0 0
  %3070 = vmatpush1.bf16.msra.mxu0 0
  %3071 = vmatprep.subr.bf16.mxu0 0
  %3072 = vmatpush1.bf16.msra.mxu0 0
  %3073 = vmatprep.mubr.bf16.mxu0 0
  %3074 = vmatmul.mubr.bf16.gmra.mrb[0].mxu0 %v2987
  %v3075 = vpop.f32.mrb[0].mxu0
  %v3076 = vadd.f32 %v3027, %v3075
  %v3077 = vpop.f32.mrb[0].mxu0
  %v3078 = vpop.f32.mrb[0].mxu0
  %v3079 = vadd.f32 %v3030, %v3078
  %v3080 = vpop.f32.mrb[0].mxu0
  %3081 = vmatprep.mubr.bf16.mxu0 0
  %3082 = vmatmul.mubr.bf16.gmra.mrb[0].mxu0 %v2990
  %v3083 = vpop.f32.mrb[0].mxu0
  %v3084 = vadd.f32 %v3035, %v3083
  %v3085 = vpop.f32.mrb[0].mxu0
  %v3086 = vpop.f32.mrb[0].mxu0
  %v3087 = vadd.f32 %v3038, %v3086
  %v3088 = vpop.f32.mrb[0].mxu0
  %3089 = vdwg.mxu0
  %v3090 = vld [vmem:[%s29] sm:$0xff]
  %v3091 = vld [vmem:[%s29 + $0x8] sm:$0xff]
  %v3092 = vld [vmem:[%s29 + $0x10] sm:$0xff]
  %v3093 = vld [vmem:[%s29 + $0x18] sm:$0xff]
  %v3094 = vld [vmem:[%s31] sm:$0xff]
  %v3095 = vld [vmem:[%s31 + $0x8] sm:$0xff]
  %v3096 = vld [vmem:[%s31 + $0x10] sm:$0xff]
  %v3097 = vld [vmem:[%s31 + $0x18] sm:$0xff]
  %v3098 = vsel %vm1485, %v3076, 0.0
  %3099 = vadd.xlane.f32.xlu0 %v3098
  %v3100 = vpop.xlane.xlu0 %3099
  %v3101 = vsel %vm1485, %v3079, 0.0
  %3102 = vadd.xlane.f32.xlu0 %v3101
  %v3103 = vpop.xlane.xlu0 %3102
  %v3104 = vsel %vm1485, %v3084, 0.0
  %3105 = vadd.xlane.f32.xlu0 %v3104
  %v3106 = vpop.xlane.xlu0 %3105
  %v3107 = vsel %vm1485, %v3087, 0.0
  %3108 = vadd.xlane.f32.xlu0 %v3107
  %v3109 = vpop.xlane.xlu0 %3108
  %v3110 = vmul.f32 %v3100, 0.03125
  %v3111 = vmul.f32 %v3103, 0.03125
  %v3112 = vmul.f32 %v3106, 0.03125
  %v3113 = vmul.f32 %v3109, 0.03125
  %v3114 = vsub.f32 %v3076, %v3110
  %v3115 = vsub.f32 %v3079, %v3111
  %v3116 = vsub.f32 %v3084, %v3112
  %v3117 = vsub.f32 %v3087, %v3113
  %v3118 = vmul.f32 %v3114, %v3114
  %v3119 = vmul.f32 %v3115, %v3115
  %v3120 = vmul.f32 %v3116, %v3116
  %v3121 = vmul.f32 %v3117, %v3117
  %v3122 = vsel %vm1485, %v3118, 0.0
  %3123 = vadd.xlane.f32.xlu0 %v3122
  %v3124 = vpop.xlane.xlu0 %3123
  %v3125 = vsel %vm1485, %v3119, 0.0
  %3126 = vadd.xlane.f32.xlu0 %v3125
  %v3127 = vpop.xlane.xlu0 %3126
  %v3128 = vsel %vm1485, %v3120, 0.0
  %3129 = vadd.xlane.f32.xlu0 %v3128
  %v3130 = vpop.xlane.xlu0 %3129
  %v3131 = vsel %vm1485, %v3121, 0.0
  %3132 = vadd.xlane.f32.xlu0 %v3131
  %v3133 = vpop.xlane.xlu0 %3132
  %v3134 = vmul.f32 %v3124, 0.03125
  %v3135 = vmul.f32 %v3127, 0.03125
  %v3136 = vmul.f32 %v3130, 0.03125
  %v3137 = vmul.f32 %v3133, 0.03125
  %v3138 = vadd.f32 %v3134, 1e-05
  %v3139 = vadd.f32 %v3135, 1e-05
  %v3140 = vadd.f32 %v3136, 1e-05
  %v3141 = vadd.f32 %v3137, 1e-05
  %v3142 = vrsqrt.pop %v3138
  %v3143 = vrsqrt.pop %v3139
  %v3144 = vrsqrt.pop %v3140
  %v3145 = vrsqrt.pop %v3141
  %v3146 = vmul.f32 %v3090, %v3142
  %v3147 = vmul.f32 %v3091, %v3143
  %v3148 = vmul.f32 %v3092, %v3144
  %v3149 = vmul.f32 %v3093, %v3145
  %3151 = vset.pattern.permute.xlu0 0
  %3152 = vperm.xlu0 %3151, %v3146
  %v3153 = vpop.permute.xlu0 %3152
  %3156 = vset.pattern.permute.xlu0 0
  %3157 = vperm.xlu0 %3156, %v3147
  %v3158 = vpop.permute.xlu0 %3157
  %3161 = vset.pattern.permute.xlu0 0
  %3162 = vperm.xlu0 %3161, %v3148
  %v3163 = vpop.permute.xlu0 %3162
  %3166 = vset.pattern.permute.xlu0 0
  %3167 = vperm.xlu0 %3166, %v3149
  %v3168 = vpop.permute.xlu0 %3167
  %v3170 = vmul.f32 %v3114, %v3153
  %v3171 = vmul.f32 %v3115, %v3158
  %v3172 = vmul.f32 %v3116, %v3163
  %v3173 = vmul.f32 %v3117, %v3168
  %3175 = vset.pattern.permute.xlu0 0
  %3176 = vperm.xlu0 %3175, %v3094
  %v3177 = vpop.permute.xlu0 %3176
  %3180 = vset.pattern.permute.xlu0 0
  %3181 = vperm.xlu0 %3180, %v3095
  %v3182 = vpop.permute.xlu0 %3181
  %3185 = vset.pattern.permute.xlu0 0
  %3186 = vperm.xlu0 %3185, %v3096
  %v3187 = vpop.permute.xlu0 %3186
  %3190 = vset.pattern.permute.xlu0 0
  %3191 = vperm.xlu0 %3190, %v3097
  %v3192 = vpop.permute.xlu0 %3191
  %v3194 = vadd.f32 %v3170, %v3177
  %v3195 = vadd.f32 %v3171, %v3182
  %v3196 = vadd.f32 %v3172, %v3187
  %v3197 = vadd.f32 %v3173, %v3192
  %v3198 = vadd.f32 %v1586, %v3194
  %v3199 = vadd.f32 %v1587, %v3195
  %v3200 = vadd.f32 %v1588, %v3196
  %v3201 = vadd.f32 %v1589, %v3197
  %v3202 = vld [vmem:[%s33] sm:$0xf]
  %v3203 = vld [vmem:[%s33 + $0x4] sm:$0xf]
  %v3204 = vld [vmem:[%s33 + $0x8] sm:$0xf]
  %v3205 = vld [vmem:[%s33 + $0xc] sm:$0xf]
  %v3206 = vld [vmem:[%s33 + $0x10] sm:$0xf]
  %v3207 = vld [vmem:[%s33 + $0x14] sm:$0xf]
  %v3208 = vld [vmem:[%s33 + $0x18] sm:$0xf]
  %v3209 = vld [vmem:[%s33 + $0x1c] sm:$0xf]
  %v3210 = vld [vmem:[%s33 + $0x20] sm:$0xf]
  %v3211 = vld [vmem:[%s33 + $0x24] sm:$0xf]
  %v3212 = vld [vmem:[%s33 + $0x28] sm:$0xf]
  %v3213 = vld [vmem:[%s33 + $0x2c] sm:$0xf]
  %v3214 = vld [vmem:[%s33 + $0x30] sm:$0xf]
  %v3215 = vld [vmem:[%s33 + $0x34] sm:$0xf]
  %v3216 = vld [vmem:[%s33 + $0x38] sm:$0xf]
  %v3217 = vld [vmem:[%s33 + $0x3c] sm:$0xf]
  %v3218 = vld [vmem:[%s33 + $0x40] sm:$0xf]
  %v3219 = vld [vmem:[%s33 + $0x44] sm:$0xf]
  %v3220 = vld [vmem:[%s33 + $0x48] sm:$0xf]
  %v3221 = vld [vmem:[%s33 + $0x4c] sm:$0xf]
  %v3222 = vld [vmem:[%s33 + $0x50] sm:$0xf]
  %v3223 = vld [vmem:[%s33 + $0x54] sm:$0xf]
  %v3224 = vld [vmem:[%s33 + $0x58] sm:$0xf]
  %v3225 = vld [vmem:[%s33 + $0x5c] sm:$0xf]
  %v3226 = vld [vmem:[%s33 + $0x60] sm:$0xf]
  %v3227 = vld [vmem:[%s33 + $0x64] sm:$0xf]
  %v3228 = vld [vmem:[%s33 + $0x68] sm:$0xf]
  %v3229 = vld [vmem:[%s33 + $0x6c] sm:$0xf]
  %v3230 = vld [vmem:[%s33 + $0x70] sm:$0xf]
  %v3231 = vld [vmem:[%s33 + $0x74] sm:$0xf]
  %v3232 = vld [vmem:[%s33 + $0x78] sm:$0xf]
  %v3233 = vld [vmem:[%s33 + $0x7c] sm:$0xf]
  %v3234 = vld [vmem:[%s33 + $0x80] sm:$0xf]
  %v3235 = vld [vmem:[%s33 + $0x84] sm:$0xf]
  %v3236 = vld [vmem:[%s33 + $0x88] sm:$0xf]
  %v3237 = vld [vmem:[%s33 + $0x8c] sm:$0xf]
  %v3238 = vpack.c.bf16 %v3199, %v3198
  %v3239 = vpack.c.bf16 %v3201, %v3200
  %v3276 = vunpack.c.l.b16 %v3202
  %v3277 = vunpack.c.l.b16 %v3203
  %v3278 = vunpack.c.l.b16 %v3204
  %v3279 = vunpack.c.l.b16 %v3205
  %v3280 = vunpack.c.l.b16 %v3206
  %v3281 = vunpack.c.l.b16 %v3207
  %v3282 = vunpack.c.l.b16 %v3208
  %v3283 = vunpack.c.l.b16 %v3209
  %v3284 = vunpack.c.l.b16 %v3210
  %v3285 = vunpack.c.l.b16 %v3211
  %v3286 = vunpack.c.l.b16 %v3212
  %v3287 = vunpack.c.l.b16 %v3213
  %v3288 = vunpack.c.l.b16 %v3214
  %v3289 = vunpack.c.l.b16 %v3215
  %v3290 = vunpack.c.l.b16 %v3216
  %v3291 = vunpack.c.l.b16 %v3217
  %v3292 = vunpack.c.l.b16 %v3218
  %v3293 = vunpack.c.l.b16 %v3219
  %v3294 = vunpack.c.l.b16 %v3220
  %v3295 = vunpack.c.l.b16 %v3221
  %v3296 = vunpack.c.l.b16 %v3222
  %v3297 = vunpack.c.l.b16 %v3223
  %v3298 = vunpack.c.l.b16 %v3224
  %v3299 = vunpack.c.l.b16 %v3225
  %v3300 = vunpack.c.l.b16 %v3226
  %v3301 = vunpack.c.l.b16 %v3227
  %v3302 = vunpack.c.l.b16 %v3228
  %v3303 = vunpack.c.l.b16 %v3229
  %v3304 = vunpack.c.l.b16 %v3230
  %v3305 = vunpack.c.l.b16 %v3231
  %v3306 = vunpack.c.l.b16 %v3232
  %v3307 = vunpack.c.l.b16 %v3233
  %v3308 = vunpack.c.l.b16 %v3234
  %v3309 = vunpack.c.l.b16 %v3235
  %v3310 = vunpack.c.l.b16 %v3236
  %v3311 = vunpack.c.l.b16 %v3237
  %v3312 = vpack.c.b16 %v3277, %v3276
  %v3313 = vpack.c.b16 %v3279, %v3278
  %v3314 = vpack.c.b16 %v3281, %v3280
  %v3315 = vpack.c.b16 %v3283, %v3282
  %v3316 = vpack.c.b16 %v3285, %v3284
  %v3317 = vpack.c.b16 %v3287, %v3286
  %v3318 = vpack.c.b16 %v3289, %v3288
  %v3319 = vpack.c.b16 %v3291, %v3290
  %v3320 = vpack.c.b16 %v3293, %v3292
  %v3321 = vpack.c.b16 %v3295, %v3294
  %v3322 = vpack.c.b16 %v3297, %v3296
  %v3323 = vpack.c.b16 %v3299, %v3298
  %v3324 = vpack.c.b16 %v3301, %v3300
  %v3325 = vpack.c.b16 %v3303, %v3302
  %v3326 = vpack.c.b16 %v3305, %v3304
  %v3327 = vpack.c.b16 %v3307, %v3306
  %v3328 = vpack.c.b16 %v3309, %v3308
  %v3329 = vpack.c.b16 %v3311, %v3310
  %v3331 = vsel %vm1485, %v3312, 0
  %v3334 = vsel %vm1485, %v3313, 0
  %v3337 = vsel %vm1485, %v3314, 0
  %v3340 = vsel %vm1485, %v3315, 0
  %v3343 = vsel %vm1485, %v3316, 0
  %v3346 = vsel %vm1485, %v3317, 0
  %v3349 = vsel %vm1485, %v3318, 0
  %v3352 = vsel %vm1485, %v3319, 0
  %v3355 = vsel %vm1485, %v3320, 0
  %v3358 = vsel %vm1485, %v3321, 0
  %v3361 = vsel %vm1485, %v3322, 0
  %v3364 = vsel %vm1485, %v3323, 0
  %v3367 = vsel %vm1485, %v3324, 0
  %v3370 = vsel %vm1485, %v3325, 0
  %v3373 = vsel %vm1485, %v3326, 0
  %v3376 = vsel %vm1485, %v3327, 0
  %v3379 = vsel %vm1485, %v3328, 0
  %v3382 = vsel %vm1485, %v3329, 0
  %3384 = vmatprep.subr.bf16.mxu0 0
  %3385 = vmatpush1.bf16.msra.mxu0 %v3238
  %3386 = vmatprep.subr.bf16.mxu0 0
  %3387 = vmatpush1.bf16.msra.mxu0 %v3239
  %3388 = vmatprep.subr.bf16.mxu0 0
  %3389 = vmatpush1.bf16.msra.mxu0 0
  %3390 = vmatprep.subr.bf16.mxu0 0
  %3391 = vmatpush1.bf16.msra.mxu0 0
  %3392 = vmatprep.subr.bf16.mxu0 0
  %3393 = vmatpush1.bf16.msra.mxu0 0
  %3394 = vmatprep.subr.bf16.mxu0 0
  %3395 = vmatpush1.bf16.msra.mxu0 0
  %3396 = vmatprep.subr.bf16.mxu0 0
  %3397 = vmatpush1.bf16.msra.mxu0 0
  %3398 = vmatprep.subr.bf16.mxu0 0
  %3399 = vmatpush1.bf16.msra.mxu0 0
  %3400 = vmatprep.subr.bf16.mxu0 0
  %3401 = vmatpush1.bf16.msra.mxu0 0
  %3402 = vmatprep.subr.bf16.mxu0 0
  %3403 = vmatpush1.bf16.msra.mxu0 0
  %3404 = vmatprep.subr.bf16.mxu0 0
  %3405 = vmatpush1.bf16.msra.mxu0 0
  %3406 = vmatprep.subr.bf16.mxu0 0
  %3407 = vmatpush1.bf16.msra.mxu0 0
  %3408 = vmatprep.subr.bf16.mxu0 0
  %3409 = vmatpush1.bf16.msra.mxu0 0
  %3410 = vmatprep.subr.bf16.mxu0 0
  %3411 = vmatpush1.bf16.msra.mxu0 0
  %3412 = vmatprep.subr.bf16.mxu0 0
  %3413 = vmatpush1.bf16.msra.mxu0 0
  %3414 = vmatprep.subr.bf16.mxu0 0
  %3415 = vmatpush1.bf16.msra.mxu0 0
  %3416 = vmatprep.mubr.bf16.mxu0 0
  %3417 = vmatmul.mubr.bf16.gmra.mrb[0].mxu0 %v3331
  %v3418 = vpop.f32.mrb[0].mxu0
  %v3419 = vadd.f32 0.0, %v3418
  %v3420 = vpop.f32.mrb[0].mxu0
  %v3421 = vpop.f32.mrb[0].mxu0
  %v3422 = vadd.f32 0.0, %v3421
  %v3423 = vpop.f32.mrb[0].mxu0
  %3424 = vmatprep.mubr.bf16.mxu0 0
  %3425 = vmatmul.mubr.bf16.gmra.mrb[0].mxu0 %v3334
  %v3426 = vpop.f32.mrb[0].mxu0
  %v3427 = vadd.f32 0.0, %v3426
  %v3428 = vpop.f32.mrb[0].mxu0
  %v3429 = vpop.f32.mrb[0].mxu0
  %v3430 = vadd.f32 0.0, %v3429
  %v3431 = vpop.f32.mrb[0].mxu0
  %3432 = vmatprep.mubr.bf16.mxu0 0
  %3433 = vmatmul.mubr.bf16.gmra.mrb[0].mxu0 %v3337
  %v3434 = vpop.f32.mrb[0].mxu0
  %v3435 = vadd.f32 0.0, %v3434
  %v3436 = vpop.f32.mrb[0].mxu0
  %v3437 = vpop.f32.mrb[0].mxu0
  %v3438 = vadd.f32 0.0, %v3437
  %v3439 = vpop.f32.mrb[0].mxu0
  %3440 = vmatprep.mubr.bf16.mxu0 0
  %3441 = vmatmul.mubr.bf16.gmra.mrb[0].mxu0 %v3340
  %v3442 = vpop.f32.mrb[0].mxu0
  %v3443 = vadd.f32 0.0, %v3442
  %v3444 = vpop.f32.mrb[0].mxu0
  %v3445 = vpop.f32.mrb[0].mxu0
  %v3446 = vadd.f32 0.0, %v3445
  %v3447 = vpop.f32.mrb[0].mxu0
  %3448 = vmatprep.mubr.bf16.mxu0 0
  %3449 = vmatmul.mubr.bf16.gmra.mrb[0].mxu0 %v3343
  %v3450 = vpop.f32.mrb[0].mxu0
  %v3451 = vadd.f32 0.0, %v3450
  %v3452 = vpop.f32.mrb[0].mxu0
  %v3453 = vpop.f32.mrb[0].mxu0
  %v3454 = vadd.f32 0.0, %v3453
  %v3455 = vpop.f32.mrb[0].mxu0
  %3456 = vmatprep.mubr.bf16.mxu0 0
  %3457 = vmatmul.mubr.bf16.gmra.mrb[0].mxu0 %v3346
  %v3458 = vpop.f32.mrb[0].mxu0
  %v3459 = vadd.f32 0.0, %v3458
  %v3460 = vpop.f32.mrb[0].mxu0
  %v3461 = vpop.f32.mrb[0].mxu0
  %v3462 = vadd.f32 0.0, %v3461
  %v3463 = vpop.f32.mrb[0].mxu0
  %3464 = vmatprep.mubr.bf16.mxu0 0
  %3465 = vmatmul.mubr.bf16.gmra.mrb[0].mxu0 %v3349
  %v3466 = vpop.f32.mrb[0].mxu0
  %v3467 = vadd.f32 0.0, %v3466
  %v3468 = vpop.f32.mrb[0].mxu0
  %v3469 = vpop.f32.mrb[0].mxu0
  %v3470 = vadd.f32 0.0, %v3469
  %v3471 = vpop.f32.mrb[0].mxu0
  %3472 = vmatprep.mubr.bf16.mxu0 0
  %3473 = vmatmul.mubr.bf16.gmra.mrb[0].mxu0 %v3352
  %v3474 = vpop.f32.mrb[0].mxu0
  %v3475 = vadd.f32 0.0, %v3474
  %v3476 = vpop.f32.mrb[0].mxu0
  %v3477 = vpop.f32.mrb[0].mxu0
  %v3478 = vadd.f32 0.0, %v3477
  %v3479 = vpop.f32.mrb[0].mxu0
  %3480 = vmatprep.mubr.bf16.mxu0 0
  %3481 = vmatmul.mubr.bf16.gmra.mrb[0].mxu0 %v3355
  %v3482 = vpop.f32.mrb[0].mxu0
  %v3483 = vadd.f32 0.0, %v3482
  %v3484 = vpop.f32.mrb[0].mxu0
  %v3485 = vpop.f32.mrb[0].mxu0
  %v3486 = vadd.f32 0.0, %v3485
  %v3487 = vpop.f32.mrb[0].mxu0
  %3488 = vmatprep.mubr.bf16.mxu0 0
  %3489 = vmatmul.mubr.bf16.gmra.mrb[0].mxu0 %v3358
  %v3490 = vpop.f32.mrb[0].mxu0
  %v3491 = vadd.f32 0.0, %v3490
  %v3492 = vpop.f32.mrb[0].mxu0
  %v3493 = vpop.f32.mrb[0].mxu0
  %v3494 = vadd.f32 0.0, %v3493
  %v3495 = vpop.f32.mrb[0].mxu0
  %3496 = vmatprep.mubr.bf16.mxu0 0
  %3497 = vmatmul.mubr.bf16.gmra.mrb[0].mxu0 %v3361
  %v3498 = vpop.f32.mrb[0].mxu0
  %v3499 = vadd.f32 0.0, %v3498
  %v3500 = vpop.f32.mrb[0].mxu0
  %v3501 = vpop.f32.mrb[0].mxu0
  %v3502 = vadd.f32 0.0, %v3501
  %v3503 = vpop.f32.mrb[0].mxu0
  %3504 = vmatprep.mubr.bf16.mxu0 0
  %3505 = vmatmul.mubr.bf16.gmra.mrb[0].mxu0 %v3364
  %v3506 = vpop.f32.mrb[0].mxu0
  %v3507 = vadd.f32 0.0, %v3506
  %v3508 = vpop.f32.mrb[0].mxu0
  %v3509 = vpop.f32.mrb[0].mxu0
  %v3510 = vadd.f32 0.0, %v3509
  %v3511 = vpop.f32.mrb[0].mxu0
  %3512 = vmatprep.mubr.bf16.mxu0 0
  %3513 = vmatmul.mubr.bf16.gmra.mrb[0].mxu0 %v3367
  %v3514 = vpop.f32.mrb[0].mxu0
  %v3515 = vadd.f32 0.0, %v3514
  %v3516 = vpop.f32.mrb[0].mxu0
  %v3517 = vpop.f32.mrb[0].mxu0
  %v3518 = vadd.f32 0.0, %v3517
  %v3519 = vpop.f32.mrb[0].mxu0
  %3520 = vmatprep.mubr.bf16.mxu0 0
  %3521 = vmatmul.mubr.bf16.gmra.mrb[0].mxu0 %v3370
  %v3522 = vpop.f32.mrb[0].mxu0
  %v3523 = vadd.f32 0.0, %v3522
  %v3524 = vpop.f32.mrb[0].mxu0
  %v3525 = vpop.f32.mrb[0].mxu0
  %v3526 = vadd.f32 0.0, %v3525
  %v3527 = vpop.f32.mrb[0].mxu0
  %3528 = vmatprep.mubr.bf16.mxu0 0
  %3529 = vmatmul.mubr.bf16.gmra.mrb[0].mxu0 %v3373
  %v3530 = vpop.f32.mrb[0].mxu0
  %v3531 = vadd.f32 0.0, %v3530
  %v3532 = vpop.f32.mrb[0].mxu0
  %v3533 = vpop.f32.mrb[0].mxu0
  %v3534 = vadd.f32 0.0, %v3533
  %v3535 = vpop.f32.mrb[0].mxu0
  %3536 = vmatprep.mubr.bf16.mxu0 0
  %3537 = vmatmul.mubr.bf16.gmra.mrb[0].mxu0 %v3376
  %v3538 = vpop.f32.mrb[0].mxu0
  %v3539 = vadd.f32 0.0, %v3538
  %v3540 = vpop.f32.mrb[0].mxu0
  %v3541 = vpop.f32.mrb[0].mxu0
  %v3542 = vadd.f32 0.0, %v3541
  %v3543 = vpop.f32.mrb[0].mxu0
  %3544 = vmatprep.mubr.bf16.mxu0 0
  %3545 = vmatmul.mubr.bf16.gmra.mrb[0].mxu0 %v3379
  %v3546 = vpop.f32.mrb[0].mxu0
  %v3547 = vadd.f32 0.0, %v3546
  %v3548 = vpop.f32.mrb[0].mxu0
  %v3549 = vpop.f32.mrb[0].mxu0
  %v3550 = vadd.f32 0.0, %v3549
  %v3551 = vpop.f32.mrb[0].mxu0
  %3552 = vmatprep.mubr.bf16.mxu0 0
  %3553 = vmatmul.mubr.bf16.gmra.mrb[0].mxu0 %v3382
  %v3554 = vpop.f32.mrb[0].mxu0
  %v3555 = vadd.f32 0.0, %v3554
  %v3556 = vpop.f32.mrb[0].mxu0
  %v3557 = vpop.f32.mrb[0].mxu0
  %v3558 = vadd.f32 0.0, %v3557
  %v3559 = vpop.f32.mrb[0].mxu0
  %3560 = vdwg.mxu0
  %v3561 = vpack.c.bf16 %v3422, %v3419
  %v3562 = vpack.c.bf16 %v3430, %v3427
  %v3563 = vpack.c.bf16 %v3438, %v3435
  %v3564 = vpack.c.bf16 %v3446, %v3443
  %v3565 = vpack.c.bf16 %v3454, %v3451
  %v3566 = vpack.c.bf16 %v3462, %v3459
  %v3567 = vpack.c.bf16 %v3470, %v3467
  %v3568 = vpack.c.bf16 %v3478, %v3475
  %v3569 = vpack.c.bf16 %v3486, %v3483
  %v3570 = vpack.c.bf16 %v3494, %v3491
  %v3571 = vpack.c.bf16 %v3502, %v3499
  %v3572 = vpack.c.bf16 %v3510, %v3507
  %v3573 = vpack.c.bf16 %v3518, %v3515
  %v3574 = vpack.c.bf16 %v3526, %v3523
  %v3575 = vpack.c.bf16 %v3534, %v3531
  %v3576 = vpack.c.bf16 %v3542, %v3539
  %v3577 = vpack.c.bf16 %v3550, %v3547
  %v3578 = vpack.c.bf16 %v3558, %v3555
  %3581 = vrot.lane.b32.xlu0 %v3563, 32
  %v3582 = vpop.permute.xlu0 %3581
  %3583 = vrot.lane.b32.xlu0 %v3564, 32
  %v3584 = vpop.permute.xlu0 %3583
  %3587 = vrot.lane.b32.xlu0 %v3565, 64
  %v3588 = vpop.permute.xlu0 %3587
  %3589 = vrot.lane.b32.xlu0 %v3566, 64
  %v3590 = vpop.permute.xlu0 %3589
  %3593 = vrot.lane.b32.xlu0 %v3567, 96
  %v3594 = vpop.permute.xlu0 %3593
  %3595 = vrot.lane.b32.xlu0 %v3568, 96
  %v3596 = vpop.permute.xlu0 %3595
  %3599 = vrot.lane.b32.xlu0 %v3571, 32
  %v3600 = vpop.permute.xlu0 %3599
  %3601 = vrot.lane.b32.xlu0 %v3572, 32
  %v3602 = vpop.permute.xlu0 %3601
  %3605 = vrot.lane.b32.xlu0 %v3573, 64
  %v3606 = vpop.permute.xlu0 %3605
  %3607 = vrot.lane.b32.xlu0 %v3574, 64
  %v3608 = vpop.permute.xlu0 %3607
  %3611 = vrot.lane.b32.xlu0 %v3575, 96
  %v3612 = vpop.permute.xlu0 %3611
  %3613 = vrot.lane.b32.xlu0 %v3576, 96
  %v3614 = vpop.permute.xlu0 %3613
  %v3617 = vsel %vm1485, %v3561, %v3582
  %v3620 = vsel %vm1485, %v3562, %v3584
  %v3622 = vsel %vm2009, %v3617, %v3588
  %v3624 = vsel %vm2009, %v3620, %v3590
  %v3626 = vsel %vm2014, %v3622, %v3594
  %v3629 = vsel %vm2014, %v3624, %v3596
  %v3633 = vsel %vm1485, %v3569, %v3600
  %v3636 = vsel %vm1485, %v3570, %v3602
  %v3638 = vsel %vm2009, %v3633, %v3606
  %v3640 = vsel %vm2009, %v3636, %v3608
  %v3642 = vsel %vm2014, %v3638, %v3612
  %v3645 = vsel %vm2014, %v3640, %v3614
  %v3647 = vld [vmem:[%s35] sm:$0xf]
  %v3648 = vld [vmem:[%s35 + $0x4] sm:$0xf]
  %v3649 = vld [vmem:[%s35 + $0x8] sm:$0xf]
  %v3650 = vld [vmem:[%s35 + $0xc] sm:$0xf]
  %v3651 = vld [vmem:[%s35 + $0x10] sm:$0xf]
  %v3652 = vld [vmem:[%s35 + $0x14] sm:$0xf]
  %v3653 = vld [vmem:[%s35 + $0x18] sm:$0xf]
  %v3654 = vld [vmem:[%s35 + $0x1c] sm:$0xf]
  %v3655 = vld [vmem:[%s35 + $0x20] sm:$0xf]
  %v3656 = vld [vmem:[%s35 + $0x24] sm:$0xf]
  %v3657 = vld [vmem:[%s35 + $0x28] sm:$0xf]
  %v3658 = vld [vmem:[%s35 + $0x2c] sm:$0xf]
  %v3659 = vld [vmem:[%s35 + $0x30] sm:$0xf]
  %v3660 = vld [vmem:[%s35 + $0x34] sm:$0xf]
  %v3661 = vld [vmem:[%s35 + $0x38] sm:$0xf]
  %v3662 = vld [vmem:[%s35 + $0x3c] sm:$0xf]
  %v3663 = vld [vmem:[%s35 + $0x40] sm:$0xf]
  %v3664 = vld [vmem:[%s35 + $0x44] sm:$0xf]
  %v3665 = vld [vmem:[%s35 + $0x48] sm:$0xf]
  %v3666 = vld [vmem:[%s35 + $0x4c] sm:$0xf]
  %v3667 = vld [vmem:[%s35 + $0x50] sm:$0xf]
  %v3668 = vld [vmem:[%s35 + $0x54] sm:$0xf]
  %v3669 = vld [vmem:[%s35 + $0x58] sm:$0xf]
  %v3670 = vld [vmem:[%s35 + $0x5c] sm:$0xf]
  %v3671 = vld [vmem:[%s35 + $0x60] sm:$0xf]
  %v3672 = vld [vmem:[%s35 + $0x64] sm:$0xf]
  %v3673 = vld [vmem:[%s35 + $0x68] sm:$0xf]
  %v3674 = vld [vmem:[%s35 + $0x6c] sm:$0xf]
  %v3675 = vld [vmem:[%s35 + $0x70] sm:$0xf]
  %v3676 = vld [vmem:[%s35 + $0x74] sm:$0xf]
  %v3677 = vld [vmem:[%s35 + $0x78] sm:$0xf]
  %v3678 = vld [vmem:[%s35 + $0x7c] sm:$0xf]
  %v3679 = vld [vmem:[%s35 + $0x80] sm:$0xf]
  %v3680 = vld [vmem:[%s35 + $0x84] sm:$0xf]
  %v3681 = vld [vmem:[%s35 + $0x88] sm:$0xf]
  %v3682 = vld [vmem:[%s35 + $0x8c] sm:$0xf]
  %v3719 = vunpack.c.l.b16 %v3647
  %v3720 = vunpack.c.l.b16 %v3648
  %v3721 = vunpack.c.l.b16 %v3649
  %v3722 = vunpack.c.l.b16 %v3650
  %v3723 = vunpack.c.l.b16 %v3651
  %v3724 = vunpack.c.l.b16 %v3652
  %v3725 = vunpack.c.l.b16 %v3653
  %v3726 = vunpack.c.l.b16 %v3654
  %v3727 = vunpack.c.l.b16 %v3655
  %v3728 = vunpack.c.l.b16 %v3656
  %v3729 = vunpack.c.l.b16 %v3657
  %v3730 = vunpack.c.l.b16 %v3658
  %v3731 = vunpack.c.l.b16 %v3659
  %v3732 = vunpack.c.l.b16 %v3660
  %v3733 = vunpack.c.l.b16 %v3661
  %v3734 = vunpack.c.l.b16 %v3662
  %v3735 = vunpack.c.l.b16 %v3663
  %v3736 = vunpack.c.l.b16 %v3664
  %v3737 = vunpack.c.l.b16 %v3665
  %v3738 = vunpack.c.l.b16 %v3666
  %v3739 = vunpack.c.l.b16 %v3667
  %v3740 = vunpack.c.l.b16 %v3668
  %v3741 = vunpack.c.l.b16 %v3669
  %v3742 = vunpack.c.l.b16 %v3670
  %v3743 = vunpack.c.l.b16 %v3671
  %v3744 = vunpack.c.l.b16 %v3672
  %v3745 = vunpack.c.l.b16 %v3673
  %v3746 = vunpack.c.l.b16 %v3674
  %v3747 = vunpack.c.l.b16 %v3675
  %v3748 = vunpack.c.l.b16 %v3676
  %v3749 = vunpack.c.l.b16 %v3677
  %v3750 = vunpack.c.l.b16 %v3678
  %v3751 = vunpack.c.l.b16 %v3679
  %v3752 = vunpack.c.l.b16 %v3680
  %v3753 = vunpack.c.l.b16 %v3681
  %v3754 = vunpack.c.l.b16 %v3682
  %v3755 = vpack.c.b16 %v3720, %v3719
  %v3756 = vpack.c.b16 %v3722, %v3721
  %v3757 = vpack.c.b16 %v3724, %v3723
  %v3758 = vpack.c.b16 %v3726, %v3725
  %v3759 = vpack.c.b16 %v3728, %v3727
  %v3760 = vpack.c.b16 %v3730, %v3729
  %v3761 = vpack.c.b16 %v3732, %v3731
  %v3762 = vpack.c.b16 %v3734, %v3733
  %v3763 = vpack.c.b16 %v3736, %v3735
  %v3764 = vpack.c.b16 %v3738, %v3737
  %v3765 = vpack.c.b16 %v3740, %v3739
  %v3766 = vpack.c.b16 %v3742, %v3741
  %v3767 = vpack.c.b16 %v3744, %v3743
  %v3768 = vpack.c.b16 %v3746, %v3745
  %v3769 = vpack.c.b16 %v3748, %v3747
  %v3770 = vpack.c.b16 %v3750, %v3749
  %v3771 = vpack.c.b16 %v3752, %v3751
  %v3772 = vpack.c.b16 %v3754, %v3753
  %v3792 = vsel %vm1485, %v3577, 0
  %v3795 = vsel %vm1485, %v3578, 0
  %3797 = vmatprep.subr.bf16.mxu0 0
  %3798 = vmatpush1.bf16.msra.mxu0 %v3755
  %3799 = vmatprep.subr.bf16.mxu0 0
  %3800 = vmatpush1.bf16.msra.mxu0 %v3756
  %3801 = vmatprep.subr.bf16.mxu0 0
  %3802 = vmatpush1.bf16.msra.mxu0 %v3757
  %3803 = vmatprep.subr.bf16.mxu0 0
  %3804 = vmatpush1.bf16.msra.mxu0 %v3758
  %3805 = vmatprep.subr.bf16.mxu0 0
  %3806 = vmatpush1.bf16.msra.mxu0 %v3759
  %3807 = vmatprep.subr.bf16.mxu0 0
  %3808 = vmatpush1.bf16.msra.mxu0 %v3760
  %3809 = vmatprep.subr.bf16.mxu0 0
  %3810 = vmatpush1.bf16.msra.mxu0 %v3761
  %3811 = vmatprep.subr.bf16.mxu0 0
  %3812 = vmatpush1.bf16.msra.mxu0 %v3762
  %3813 = vmatprep.subr.bf16.mxu0 0
  %3814 = vmatpush1.bf16.msra.mxu0 %v3763
  %3815 = vmatprep.subr.bf16.mxu0 0
  %3816 = vmatpush1.bf16.msra.mxu0 %v3764
  %3817 = vmatprep.subr.bf16.mxu0 0
  %3818 = vmatpush1.bf16.msra.mxu0 %v3765
  %3819 = vmatprep.subr.bf16.mxu0 0
  %3820 = vmatpush1.bf16.msra.mxu0 %v3766
  %3821 = vmatprep.subr.bf16.mxu0 0
  %3822 = vmatpush1.bf16.msra.mxu0 %v3767
  %3823 = vmatprep.subr.bf16.mxu0 0
  %3824 = vmatpush1.bf16.msra.mxu0 %v3768
  %3825 = vmatprep.subr.bf16.mxu0 0
  %3826 = vmatpush1.bf16.msra.mxu0 %v3769
  %3827 = vmatprep.subr.bf16.mxu0 0
  %3828 = vmatpush1.bf16.msra.mxu0 %v3770
  %3829 = vmatprep.mubr.bf16.mxu0 %v3642
  %3830 = vmatmul.mubr.bf16.gmra.mrb[0].mxu0 %v3626
  %v3831 = vpop.f32.mrb[0].mxu0
  %v3832 = vadd.f32 0.0, %v3831
  %v3833 = vpop.f32.mrb[0].mxu0
  %v3834 = vpop.f32.mrb[0].mxu0
  %v3835 = vadd.f32 0.0, %v3834
  %v3836 = vpop.f32.mrb[0].mxu0
  %3837 = vmatprep.mubr.bf16.mxu0 %v3645
  %3838 = vmatmul.mubr.bf16.gmra.mrb[0].mxu0 %v3629
  %v3839 = vpop.f32.mrb[0].mxu0
  %v3840 = vadd.f32 0.0, %v3839
  %v3841 = vpop.f32.mrb[0].mxu0
  %v3842 = vpop.f32.mrb[0].mxu0
  %v3843 = vadd.f32 0.0, %v3842
  %v3844 = vpop.f32.mrb[0].mxu0
  %3845 = vdwg.mxu0
  %3846 = vmatprep.subr.bf16.mxu0 0
  %3847 = vmatpush1.bf16.msra.mxu0 %v3771
  %3848 = vmatprep.subr.bf16.mxu0 0
  %3849 = vmatpush1.bf16.msra.mxu0 %v3772
  %3850 = vmatprep.subr.bf16.mxu0 0
  %3851 = vmatpush1.bf16.msra.mxu0 0
  %3852 = vmatprep.subr.bf16.mxu0 0
  %3853 = vmatpush1.bf16.msra.mxu0 0
  %3854 = vmatprep.subr.bf16.mxu0 0
  %3855 = vmatpush1.bf16.msra.mxu0 0
  %3856 = vmatprep.subr.bf16.mxu0 0
  %3857 = vmatpush1.bf16.msra.mxu0 0
  %3858 = vmatprep.subr.bf16.mxu0 0
  %3859 = vmatpush1.bf16.msra.mxu0 0
  %3860 = vmatprep.subr.bf16.mxu0 0
  %3861 = vmatpush1.bf16.msra.mxu0 0
  %3862 = vmatprep.subr.bf16.mxu0 0
  %3863 = vmatpush1.bf16.msra.mxu0 0
  %3864 = vmatprep.subr.bf16.mxu0 0
  %3865 = vmatpush1.bf16.msra.mxu0 0
  %3866 = vmatprep.subr.bf16.mxu0 0
  %3867 = vmatpush1.bf16.msra.mxu0 0
  %3868 = vmatprep.subr.bf16.mxu0 0
  %3869 = vmatpush1.bf16.msra.mxu0 0
  %3870 = vmatprep.subr.bf16.mxu0 0
  %3871 = vmatpush1.bf16.msra.mxu0 0
  %3872 = vmatprep.subr.bf16.mxu0 0
  %3873 = vmatpush1.bf16.msra.mxu0 0
  %3874 = vmatprep.subr.bf16.mxu0 0
  %3875 = vmatpush1.bf16.msra.mxu0 0
  %3876 = vmatprep.subr.bf16.mxu0 0
  %3877 = vmatpush1.bf16.msra.mxu0 0
  %3878 = vmatprep.mubr.bf16.mxu0 0
  %3879 = vmatmul.mubr.bf16.gmra.mrb[0].mxu0 %v3792
  %v3880 = vpop.f32.mrb[0].mxu0
  %v3881 = vadd.f32 %v3832, %v3880
  %v3882 = vpop.f32.mrb[0].mxu0
  %v3883 = vpop.f32.mrb[0].mxu0
  %v3884 = vadd.f32 %v3835, %v3883
  %v3885 = vpop.f32.mrb[0].mxu0
  %3886 = vmatprep.mubr.bf16.mxu0 0
  %3887 = vmatmul.mubr.bf16.gmra.mrb[0].mxu0 %v3795
  %v3888 = vpop.f32.mrb[0].mxu0
  %v3889 = vadd.f32 %v3840, %v3888
  %v3890 = vpop.f32.mrb[0].mxu0
  %v3891 = vpop.f32.mrb[0].mxu0
  %v3892 = vadd.f32 %v3843, %v3891
  %v3893 = vpop.f32.mrb[0].mxu0
  %3894 = vdwg.mxu0
  %v3895 = vld [vmem:[%s37] sm:$0xff]
  %v3896 = vld [vmem:[%s37 + $0x8] sm:$0xff]
  %v3897 = vld [vmem:[%s37 + $0x10] sm:$0xff]
  %v3898 = vld [vmem:[%s37 + $0x18] sm:$0xff]
  %v3899 = vld [vmem:[%s39] sm:$0xff]
  %v3900 = vld [vmem:[%s39 + $0x8] sm:$0xff]
  %v3901 = vld [vmem:[%s39 + $0x10] sm:$0xff]
  %v3902 = vld [vmem:[%s39 + $0x18] sm:$0xff]
  %v3903 = vsel %vm1485, %v3881, 0.0
  %3904 = vadd.xlane.f32.xlu0 %v3903
  %v3905 = vpop.xlane.xlu0 %3904
  %v3906 = vsel %vm1485, %v3884, 0.0
  %3907 = vadd.xlane.f32.xlu0 %v3906
  %v3908 = vpop.xlane.xlu0 %3907
  %v3909 = vsel %vm1485, %v3889, 0.0
  %3910 = vadd.xlane.f32.xlu0 %v3909
  %v3911 = vpop.xlane.xlu0 %3910
  %v3912 = vsel %vm1485, %v3892, 0.0
  %3913 = vadd.xlane.f32.xlu0 %v3912
  %v3914 = vpop.xlane.xlu0 %3913
  %v3915 = vmul.f32 %v3905, 0.03125
  %v3916 = vmul.f32 %v3908, 0.03125
  %v3917 = vmul.f32 %v3911, 0.03125
  %v3918 = vmul.f32 %v3914, 0.03125
  %v3919 = vsub.f32 %v3881, %v3915
  %v3920 = vsub.f32 %v3884, %v3916
  %v3921 = vsub.f32 %v3889, %v3917
  %v3922 = vsub.f32 %v3892, %v3918
  %v3923 = vmul.f32 %v3919, %v3919
  %v3924 = vmul.f32 %v3920, %v3920
  %v3925 = vmul.f32 %v3921, %v3921
  %v3926 = vmul.f32 %v3922, %v3922
  %v3927 = vsel %vm1485, %v3923, 0.0
  %3928 = vadd.xlane.f32.xlu0 %v3927
  %v3929 = vpop.xlane.xlu0 %3928
  %v3930 = vsel %vm1485, %v3924, 0.0
  %3931 = vadd.xlane.f32.xlu0 %v3930
  %v3932 = vpop.xlane.xlu0 %3931
  %v3933 = vsel %vm1485, %v3925, 0.0
  %3934 = vadd.xlane.f32.xlu0 %v3933
  %v3935 = vpop.xlane.xlu0 %3934
  %v3936 = vsel %vm1485, %v3926, 0.0
  %3937 = vadd.xlane.f32.xlu0 %v3936
  %v3938 = vpop.xlane.xlu0 %3937
  %v3939 = vmul.f32 %v3929, 0.03125
  %v3940 = vmul.f32 %v3932, 0.03125
  %v3941 = vmul.f32 %v3935, 0.03125
  %v3942 = vmul.f32 %v3938, 0.03125
  %v3943 = vadd.f32 %v3939, 1e-05
  %v3944 = vadd.f32 %v3940, 1e-05
  %v3945 = vadd.f32 %v3941, 1e-05
  %v3946 = vadd.f32 %v3942, 1e-05
  %v3947 = vrsqrt.pop %v3943
  %v3948 = vrsqrt.pop %v3944
  %v3949 = vrsqrt.pop %v3945
  %v3950 = vrsqrt.pop %v3946
  %v3951 = vmul.f32 %v3895, %v3947
  %v3952 = vmul.f32 %v3896, %v3948
  %v3953 = vmul.f32 %v3897, %v3949
  %v3954 = vmul.f32 %v3898, %v3950
  %3956 = vset.pattern.permute.xlu0 0
  %3957 = vperm.xlu0 %3956, %v3951
  %v3958 = vpop.permute.xlu0 %3957
  %3961 = vset.pattern.permute.xlu0 0
  %3962 = vperm.xlu0 %3961, %v3952
  %v3963 = vpop.permute.xlu0 %3962
  %3966 = vset.pattern.permute.xlu0 0
  %3967 = vperm.xlu0 %3966, %v3953
  %v3968 = vpop.permute.xlu0 %3967
  %3971 = vset.pattern.permute.xlu0 0
  %3972 = vperm.xlu0 %3971, %v3954
  %v3973 = vpop.permute.xlu0 %3972
  %v3975 = vmul.f32 %v3919, %v3958
  %v3976 = vmul.f32 %v3920, %v3963
  %v3977 = vmul.f32 %v3921, %v3968
  %v3978 = vmul.f32 %v3922, %v3973
  %3980 = vset.pattern.permute.xlu0 0
  %3981 = vperm.xlu0 %3980, %v3899
  %v3982 = vpop.permute.xlu0 %3981
  %3985 = vset.pattern.permute.xlu0 0
  %3986 = vperm.xlu0 %3985, %v3900
  %v3987 = vpop.permute.xlu0 %3986
  %3990 = vset.pattern.permute.xlu0 0
  %3991 = vperm.xlu0 %3990, %v3901
  %v3992 = vpop.permute.xlu0 %3991
  %3995 = vset.pattern.permute.xlu0 0
  %3996 = vperm.xlu0 %3995, %v3902
  %v3997 = vpop.permute.xlu0 %3996
  %v3999 = vadd.f32 %v3975, %v3982
  %v4000 = vadd.f32 %v3976, %v3987
  %v4001 = vadd.f32 %v3977, %v3992
  %v4002 = vadd.f32 %v3978, %v3997
  %v4003 = vmax.f32 %v3999, 0.0
  %v4004 = vmax.f32 %v4000, 0.0
  %v4005 = vmax.f32 %v4001, 0.0
  %v4006 = vmax.f32 %v4002, 0.0
  %v4007 = vld [vmem:[%s41] sm:$0xf]
  %v4008 = vld [vmem:[%s41 + $0x4] sm:$0xf]
  %v4009 = vld [vmem:[%s41 + $0x8] sm:$0xf]
  %v4010 = vld [vmem:[%s41 + $0xc] sm:$0xf]
  %v4011 = vld [vmem:[%s41 + $0x10] sm:$0xf]
  %v4012 = vld [vmem:[%s41 + $0x14] sm:$0xf]
  %v4013 = vld [vmem:[%s41 + $0x18] sm:$0xf]
  %v4014 = vld [vmem:[%s41 + $0x1c] sm:$0xf]
  %v4015 = vld [vmem:[%s41 + $0x20] sm:$0xf]
  %v4016 = vld [vmem:[%s41 + $0x24] sm:$0xf]
  %v4017 = vld [vmem:[%s41 + $0x28] sm:$0xf]
  %v4018 = vld [vmem:[%s41 + $0x2c] sm:$0xf]
  %v4019 = vld [vmem:[%s41 + $0x30] sm:$0xf]
  %v4020 = vld [vmem:[%s41 + $0x34] sm:$0xf]
  %v4021 = vld [vmem:[%s41 + $0x38] sm:$0xf]
  %v4022 = vld [vmem:[%s41 + $0x3c] sm:$0xf]
  %v4023 = vld [vmem:[%s41 + $0x40] sm:$0xf]
  %v4024 = vld [vmem:[%s41 + $0x44] sm:$0xf]
  %v4025 = vld [vmem:[%s41 + $0x48] sm:$0xf]
  %v4026 = vld [vmem:[%s41 + $0x4c] sm:$0xf]
  %v4027 = vld [vmem:[%s41 + $0x50] sm:$0xf]
  %v4028 = vld [vmem:[%s41 + $0x54] sm:$0xf]
  %v4029 = vld [vmem:[%s41 + $0x58] sm:$0xf]
  %v4030 = vld [vmem:[%s41 + $0x5c] sm:$0xf]
  %v4031 = vld [vmem:[%s41 + $0x60] sm:$0xf]
  %v4032 = vld [vmem:[%s41 + $0x64] sm:$0xf]
  %v4033 = vld [vmem:[%s41 + $0x68] sm:$0xf]
  %v4034 = vld [vmem:[%s41 + $0x6c] sm:$0xf]
  %v4035 = vld [vmem:[%s41 + $0x70] sm:$0xf]
  %v4036 = vld [vmem:[%s41 + $0x74] sm:$0xf]
  %v4037 = vld [vmem:[%s41 + $0x78] sm:$0xf]
  %v4038 = vld [vmem:[%s41 + $0x7c] sm:$0xf]
  %v4039 = vld [vmem:[%s41 + $0x80] sm:$0xf]
  %v4040 = vld [vmem:[%s41 + $0x84] sm:$0xf]
  %v4041 = vld [vmem:[%s41 + $0x88] sm:$0xf]
  %v4042 = vld [vmem:[%s41 + $0x8c] sm:$0xf]
  %v4043 = vpack.c.bf16 %v4004, %v4003
  %v4044 = vpack.c.bf16 %v4006, %v4005
  %v4081 = vunpack.c.l.b16 %v4007
  %v4082 = vunpack.c.l.b16 %v4008
  %v4083 = vunpack.c.l.b16 %v4009
  %v4084 = vunpack.c.l.b16 %v4010
  %v4085 = vunpack.c.l.b16 %v4011
  %v4086 = vunpack.c.l.b16 %v4012
  %v4087 = vunpack.c.l.b16 %v4013
  %v4088 = vunpack.c.l.b16 %v4014
  %v4089 = vunpack.c.l.b16 %v4015
  %v4090 = vunpack.c.l.b16 %v4016
  %v4091 = vunpack.c.l.b16 %v4017
  %v4092 = vunpack.c.l.b16 %v4018
  %v4093 = vunpack.c.l.b16 %v4019
  %v4094 = vunpack.c.l.b16 %v4020
  %v4095 = vunpack.c.l.b16 %v4021
  %v4096 = vunpack.c.l.b16 %v4022
  %v4097 = vunpack.c.l.b16 %v4023
  %v4098 = vunpack.c.l.b16 %v4024
  %v4099 = vunpack.c.l.b16 %v4025
  %v4100 = vunpack.c.l.b16 %v4026
  %v4101 = vunpack.c.l.b16 %v4027
  %v4102 = vunpack.c.l.b16 %v4028
  %v4103 = vunpack.c.l.b16 %v4029
  %v4104 = vunpack.c.l.b16 %v4030
  %v4105 = vunpack.c.l.b16 %v4031
  %v4106 = vunpack.c.l.b16 %v4032
  %v4107 = vunpack.c.l.b16 %v4033
  %v4108 = vunpack.c.l.b16 %v4034
  %v4109 = vunpack.c.l.b16 %v4035
  %v4110 = vunpack.c.l.b16 %v4036
  %v4111 = vunpack.c.l.b16 %v4037
  %v4112 = vunpack.c.l.b16 %v4038
  %v4113 = vunpack.c.l.b16 %v4039
  %v4114 = vunpack.c.l.b16 %v4040
  %v4115 = vunpack.c.l.b16 %v4041
  %v4116 = vunpack.c.l.b16 %v4042
  %v4117 = vpack.c.b16 %v4082, %v4081
  %v4118 = vpack.c.b16 %v4084, %v4083
  %v4119 = vpack.c.b16 %v4086, %v4085
  %v4120 = vpack.c.b16 %v4088, %v4087
  %v4121 = vpack.c.b16 %v4090, %v4089
  %v4122 = vpack.c.b16 %v4092, %v4091
  %v4123 = vpack.c.b16 %v4094, %v4093
  %v4124 = vpack.c.b16 %v4096, %v4095
  %v4125 = vpack.c.b16 %v4098, %v4097
  %v4126 = vpack.c.b16 %v4100, %v4099
  %v4127 = vpack.c.b16 %v4102, %v4101
  %v4128 = vpack.c.b16 %v4104, %v4103
  %v4129 = vpack.c.b16 %v4106, %v4105
  %v4130 = vpack.c.b16 %v4108, %v4107
  %v4131 = vpack.c.b16 %v4110, %v4109
  %v4132 = vpack.c.b16 %v4112, %v4111
  %v4133 = vpack.c.b16 %v4114, %v4113
  %v4134 = vpack.c.b16 %v4116, %v4115
  %v4136 = vsel %vm1485, %v4117, 0
  %v4139 = vsel %vm1485, %v4118, 0
  %v4142 = vsel %vm1485, %v4119, 0
  %v4145 = vsel %vm1485, %v4120, 0
  %v4148 = vsel %vm1485, %v4121, 0
  %v4151 = vsel %vm1485, %v4122, 0
  %v4154 = vsel %vm1485, %v4123, 0
  %v4157 = vsel %vm1485, %v4124, 0
  %v4160 = vsel %vm1485, %v4125, 0
  %v4163 = vsel %vm1485, %v4126, 0
  %v4166 = vsel %vm1485, %v4127, 0
  %v4169 = vsel %vm1485, %v4128, 0
  %v4172 = vsel %vm1485, %v4129, 0
  %v4175 = vsel %vm1485, %v4130, 0
  %v4178 = vsel %vm1485, %v4131, 0
  %v4181 = vsel %vm1485, %v4132, 0
  %v4184 = vsel %vm1485, %v4133, 0
  %v4187 = vsel %vm1485, %v4134, 0
  %4189 = vmatprep.subr.bf16.mxu0 0
  %4190 = vmatpush1.bf16.msra.mxu0 %v4043
  %4191 = vmatprep.subr.bf16.mxu0 0
  %4192 = vmatpush1.bf16.msra.mxu0 %v4044
  %4193 = vmatprep.subr.bf16.mxu0 0
  %4194 = vmatpush1.bf16.msra.mxu0 0
  %4195 = vmatprep.subr.bf16.mxu0 0
  %4196 = vmatpush1.bf16.msra.mxu0 0
  %4197 = vmatprep.subr.bf16.mxu0 0
  %4198 = vmatpush1.bf16.msra.mxu0 0
  %4199 = vmatprep.subr.bf16.mxu0 0
  %4200 = vmatpush1.bf16.msra.mxu0 0
  %4201 = vmatprep.subr.bf16.mxu0 0
  %4202 = vmatpush1.bf16.msra.mxu0 0
  %4203 = vmatprep.subr.bf16.mxu0 0
  %4204 = vmatpush1.bf16.msra.mxu0 0
  %4205 = vmatprep.subr.bf16.mxu0 0
  %4206 = vmatpush1.bf16.msra.mxu0 0
  %4207 = vmatprep.subr.bf16.mxu0 0
  %4208 = vmatpush1.bf16.msra.mxu0 0
  %4209 = vmatprep.subr.bf16.mxu0 0
  %4210 = vmatpush1.bf16.msra.mxu0 0
  %4211 = vmatprep.subr.bf16.mxu0 0
  %4212 = vmatpush1.bf16.msra.mxu0 0
  %4213 = vmatprep.subr.bf16.mxu0 0
  %4214 = vmatpush1.bf16.msra.mxu0 0
  %4215 = vmatprep.subr.bf16.mxu0 0
  %4216 = vmatpush1.bf16.msra.mxu0 0
  %4217 = vmatprep.subr.bf16.mxu0 0
  %4218 = vmatpush1.bf16.msra.mxu0 0
  %4219 = vmatprep.subr.bf16.mxu0 0
  %4220 = vmatpush1.bf16.msra.mxu0 0
  %4221 = vmatprep.mubr.bf16.mxu0 0
  %4222 = vmatmul.mubr.bf16.gmra.mrb[0].mxu0 %v4136
  %v4223 = vpop.f32.mrb[0].mxu0
  %v4224 = vadd.f32 0.0, %v4223
  %v4225 = vpop.f32.mrb[0].mxu0
  %v4226 = vpop.f32.mrb[0].mxu0
  %v4227 = vadd.f32 0.0, %v4226
  %v4228 = vpop.f32.mrb[0].mxu0
  %4229 = vmatprep.mubr.bf16.mxu0 0
  %4230 = vmatmul.mubr.bf16.gmra.mrb[0].mxu0 %v4139
  %v4231 = vpop.f32.mrb[0].mxu0
  %v4232 = vadd.f32 0.0, %v4231
  %v4233 = vpop.f32.mrb[0].mxu0
  %v4234 = vpop.f32.mrb[0].mxu0
  %v4235 = vadd.f32 0.0, %v4234
  %v4236 = vpop.f32.mrb[0].mxu0
  %4237 = vmatprep.mubr.bf16.mxu0 0
  %4238 = vmatmul.mubr.bf16.gmra.mrb[0].mxu0 %v4142
  %v4239 = vpop.f32.mrb[0].mxu0
  %v4240 = vadd.f32 0.0, %v4239
  %v4241 = vpop.f32.mrb[0].mxu0
  %v4242 = vpop.f32.mrb[0].mxu0
  %v4243 = vadd.f32 0.0, %v4242
  %v4244 = vpop.f32.mrb[0].mxu0
  %4245 = vmatprep.mubr.bf16.mxu0 0
  %4246 = vmatmul.mubr.bf16.gmra.mrb[0].mxu0 %v4145
  %v4247 = vpop.f32.mrb[0].mxu0
  %v4248 = vadd.f32 0.0, %v4247
  %v4249 = vpop.f32.mrb[0].mxu0
  %v4250 = vpop.f32.mrb[0].mxu0
  %v4251 = vadd.f32 0.0, %v4250
  %v4252 = vpop.f32.mrb[0].mxu0
  %4253 = vmatprep.mubr.bf16.mxu0 0
  %4254 = vmatmul.mubr.bf16.gmra.mrb[0].mxu0 %v4148
  %v4255 = vpop.f32.mrb[0].mxu0
  %v4256 = vadd.f32 0.0, %v4255
  %v4257 = vpop.f32.mrb[0].mxu0
  %v4258 = vpop.f32.mrb[0].mxu0
  %v4259 = vadd.f32 0.0, %v4258
  %v4260 = vpop.f32.mrb[0].mxu0
  %4261 = vmatprep.mubr.bf16.mxu0 0
  %4262 = vmatmul.mubr.bf16.gmra.mrb[0].mxu0 %v4151
  %v4263 = vpop.f32.mrb[0].mxu0
  %v4264 = vadd.f32 0.0, %v4263
  %v4265 = vpop.f32.mrb[0].mxu0
  %v4266 = vpop.f32.mrb[0].mxu0
  %v4267 = vadd.f32 0.0, %v4266
  %v4268 = vpop.f32.mrb[0].mxu0
  %4269 = vmatprep.mubr.bf16.mxu0 0
  %4270 = vmatmul.mubr.bf16.gmra.mrb[0].mxu0 %v4154
  %v4271 = vpop.f32.mrb[0].mxu0
  %v4272 = vadd.f32 0.0, %v4271
  %v4273 = vpop.f32.mrb[0].mxu0
  %v4274 = vpop.f32.mrb[0].mxu0
  %v4275 = vadd.f32 0.0, %v4274
  %v4276 = vpop.f32.mrb[0].mxu0
  %4277 = vmatprep.mubr.bf16.mxu0 0
  %4278 = vmatmul.mubr.bf16.gmra.mrb[0].mxu0 %v4157
  %v4279 = vpop.f32.mrb[0].mxu0
  %v4280 = vadd.f32 0.0, %v4279
  %v4281 = vpop.f32.mrb[0].mxu0
  %v4282 = vpop.f32.mrb[0].mxu0
  %v4283 = vadd.f32 0.0, %v4282
  %v4284 = vpop.f32.mrb[0].mxu0
  %4285 = vmatprep.mubr.bf16.mxu0 0
  %4286 = vmatmul.mubr.bf16.gmra.mrb[0].mxu0 %v4160
  %v4287 = vpop.f32.mrb[0].mxu0
  %v4288 = vadd.f32 0.0, %v4287
  %v4289 = vpop.f32.mrb[0].mxu0
  %v4290 = vpop.f32.mrb[0].mxu0
  %v4291 = vadd.f32 0.0, %v4290
  %v4292 = vpop.f32.mrb[0].mxu0
  %4293 = vmatprep.mubr.bf16.mxu0 0
  %4294 = vmatmul.mubr.bf16.gmra.mrb[0].mxu0 %v4163
  %v4295 = vpop.f32.mrb[0].mxu0
  %v4296 = vadd.f32 0.0, %v4295
  %v4297 = vpop.f32.mrb[0].mxu0
  %v4298 = vpop.f32.mrb[0].mxu0
  %v4299 = vadd.f32 0.0, %v4298
  %v4300 = vpop.f32.mrb[0].mxu0
  %4301 = vmatprep.mubr.bf16.mxu0 0
  %4302 = vmatmul.mubr.bf16.gmra.mrb[0].mxu0 %v4166
  %v4303 = vpop.f32.mrb[0].mxu0
  %v4304 = vadd.f32 0.0, %v4303
  %v4305 = vpop.f32.mrb[0].mxu0
  %v4306 = vpop.f32.mrb[0].mxu0
  %v4307 = vadd.f32 0.0, %v4306
  %v4308 = vpop.f32.mrb[0].mxu0
  %4309 = vmatprep.mubr.bf16.mxu0 0
  %4310 = vmatmul.mubr.bf16.gmra.mrb[0].mxu0 %v4169
  %v4311 = vpop.f32.mrb[0].mxu0
  %v4312 = vadd.f32 0.0, %v4311
  %v4313 = vpop.f32.mrb[0].mxu0
  %v4314 = vpop.f32.mrb[0].mxu0
  %v4315 = vadd.f32 0.0, %v4314
  %v4316 = vpop.f32.mrb[0].mxu0
  %4317 = vmatprep.mubr.bf16.mxu0 0
  %4318 = vmatmul.mubr.bf16.gmra.mrb[0].mxu0 %v4172
  %v4319 = vpop.f32.mrb[0].mxu0
  %v4320 = vadd.f32 0.0, %v4319
  %v4321 = vpop.f32.mrb[0].mxu0
  %v4322 = vpop.f32.mrb[0].mxu0
  %v4323 = vadd.f32 0.0, %v4322
  %v4324 = vpop.f32.mrb[0].mxu0
  %4325 = vmatprep.mubr.bf16.mxu0 0
  %4326 = vmatmul.mubr.bf16.gmra.mrb[0].mxu0 %v4175
  %v4327 = vpop.f32.mrb[0].mxu0
  %v4328 = vadd.f32 0.0, %v4327
  %v4329 = vpop.f32.mrb[0].mxu0
  %v4330 = vpop.f32.mrb[0].mxu0
  %v4331 = vadd.f32 0.0, %v4330
  %v4332 = vpop.f32.mrb[0].mxu0
  %4333 = vmatprep.mubr.bf16.mxu0 0
  %4334 = vmatmul.mubr.bf16.gmra.mrb[0].mxu0 %v4178
  %v4335 = vpop.f32.mrb[0].mxu0
  %v4336 = vadd.f32 0.0, %v4335
  %v4337 = vpop.f32.mrb[0].mxu0
  %v4338 = vpop.f32.mrb[0].mxu0
  %v4339 = vadd.f32 0.0, %v4338
  %v4340 = vpop.f32.mrb[0].mxu0
  %4341 = vmatprep.mubr.bf16.mxu0 0
  %4342 = vmatmul.mubr.bf16.gmra.mrb[0].mxu0 %v4181
  %v4343 = vpop.f32.mrb[0].mxu0
  %v4344 = vadd.f32 0.0, %v4343
  %v4345 = vpop.f32.mrb[0].mxu0
  %v4346 = vpop.f32.mrb[0].mxu0
  %v4347 = vadd.f32 0.0, %v4346
  %v4348 = vpop.f32.mrb[0].mxu0
  %4349 = vmatprep.mubr.bf16.mxu0 0
  %4350 = vmatmul.mubr.bf16.gmra.mrb[0].mxu0 %v4184
  %v4351 = vpop.f32.mrb[0].mxu0
  %v4352 = vadd.f32 0.0, %v4351
  %v4353 = vpop.f32.mrb[0].mxu0
  %v4354 = vpop.f32.mrb[0].mxu0
  %v4355 = vadd.f32 0.0, %v4354
  %v4356 = vpop.f32.mrb[0].mxu0
  %4357 = vmatprep.mubr.bf16.mxu0 0
  %4358 = vmatmul.mubr.bf16.gmra.mrb[0].mxu0 %v4187
  %v4359 = vpop.f32.mrb[0].mxu0
  %v4360 = vadd.f32 0.0, %v4359
  %v4361 = vpop.f32.mrb[0].mxu0
  %v4362 = vpop.f32.mrb[0].mxu0
  %v4363 = vadd.f32 0.0, %v4362
  %v4364 = vpop.f32.mrb[0].mxu0
  %4365 = vdwg.mxu0
  %v4366 = vpack.c.bf16 %v4227, %v4224
  %v4367 = vpack.c.bf16 %v4235, %v4232
  %v4368 = vpack.c.bf16 %v4243, %v4240
  %v4369 = vpack.c.bf16 %v4251, %v4248
  %v4370 = vpack.c.bf16 %v4259, %v4256
  %v4371 = vpack.c.bf16 %v4267, %v4264
  %v4372 = vpack.c.bf16 %v4275, %v4272
  %v4373 = vpack.c.bf16 %v4283, %v4280
  %v4374 = vpack.c.bf16 %v4291, %v4288
  %v4375 = vpack.c.bf16 %v4299, %v4296
  %v4376 = vpack.c.bf16 %v4307, %v4304
  %v4377 = vpack.c.bf16 %v4315, %v4312
  %v4378 = vpack.c.bf16 %v4323, %v4320
  %v4379 = vpack.c.bf16 %v4331, %v4328
  %v4380 = vpack.c.bf16 %v4339, %v4336
  %v4381 = vpack.c.bf16 %v4347, %v4344
  %v4382 = vpack.c.bf16 %v4355, %v4352
  %v4383 = vpack.c.bf16 %v4363, %v4360
  %4386 = vrot.lane.b32.xlu0 %v4368, 32
  %v4387 = vpop.permute.xlu0 %4386
  %4388 = vrot.lane.b32.xlu0 %v4369, 32
  %v4389 = vpop.permute.xlu0 %4388
  %4392 = vrot.lane.b32.xlu0 %v4370, 64
  %v4393 = vpop.permute.xlu0 %4392
  %4394 = vrot.lane.b32.xlu0 %v4371, 64
  %v4395 = vpop.permute.xlu0 %4394
  %4398 = vrot.lane.b32.xlu0 %v4372, 96
  %v4399 = vpop.permute.xlu0 %4398
  %4400 = vrot.lane.b32.xlu0 %v4373, 96
  %v4401 = vpop.permute.xlu0 %4400
  %4404 = vrot.lane.b32.xlu0 %v4376, 32
  %v4405 = vpop.permute.xlu0 %4404
  %4406 = vrot.lane.b32.xlu0 %v4377, 32
  %v4407 = vpop.permute.xlu0 %4406
  %4410 = vrot.lane.b32.xlu0 %v4378, 64
  %v4411 = vpop.permute.xlu0 %4410
  %4412 = vrot.lane.b32.xlu0 %v4379, 64
  %v4413 = vpop.permute.xlu0 %4412
  %4416 = vrot.lane.b32.xlu0 %v4380, 96
  %v4417 = vpop.permute.xlu0 %4416
  %4418 = vrot.lane.b32.xlu0 %v4381, 96
  %v4419 = vpop.permute.xlu0 %4418
  %v4422 = vsel %vm1485, %v4366, %v4387
  %v4425 = vsel %vm1485, %v4367, %v4389
  %v4427 = vsel %vm2009, %v4422, %v4393
  %v4429 = vsel %vm2009, %v4425, %v4395
  %v4431 = vsel %vm2014, %v4427, %v4399
  %v4434 = vsel %vm2014, %v4429, %v4401
  %v4438 = vsel %vm1485, %v4374, %v4405
  %v4441 = vsel %vm1485, %v4375, %v4407
  %v4443 = vsel %vm2009, %v4438, %v4411
  %v4445 = vsel %vm2009, %v4441, %v4413
  %v4447 = vsel %vm2014, %v4443, %v4417
  %v4450 = vsel %vm2014, %v4445, %v4419
  %v4452 = vld [vmem:[%s43] sm:$0xf]
  %v4453 = vld [vmem:[%s43 + $0x4] sm:$0xf]
  %v4454 = vld [vmem:[%s43 + $0x8] sm:$0xf]
  %v4455 = vld [vmem:[%s43 + $0xc] sm:$0xf]
  %v4456 = vld [vmem:[%s43 + $0x10] sm:$0xf]
  %v4457 = vld [vmem:[%s43 + $0x14] sm:$0xf]
  %v4458 = vld [vmem:[%s43 + $0x18] sm:$0xf]
  %v4459 = vld [vmem:[%s43 + $0x1c] sm:$0xf]
  %v4460 = vld [vmem:[%s43 + $0x20] sm:$0xf]
  %v4461 = vld [vmem:[%s43 + $0x24] sm:$0xf]
  %v4462 = vld [vmem:[%s43 + $0x28] sm:$0xf]
  %v4463 = vld [vmem:[%s43 + $0x2c] sm:$0xf]
  %v4464 = vld [vmem:[%s43 + $0x30] sm:$0xf]
  %v4465 = vld [vmem:[%s43 + $0x34] sm:$0xf]
  %v4466 = vld [vmem:[%s43 + $0x38] sm:$0xf]
  %v4467 = vld [vmem:[%s43 + $0x3c] sm:$0xf]
  %v4468 = vld [vmem:[%s43 + $0x40] sm:$0xf]
  %v4469 = vld [vmem:[%s43 + $0x44] sm:$0xf]
  %v4470 = vld [vmem:[%s43 + $0x48] sm:$0xf]
  %v4471 = vld [vmem:[%s43 + $0x4c] sm:$0xf]
  %v4472 = vld [vmem:[%s43 + $0x50] sm:$0xf]
  %v4473 = vld [vmem:[%s43 + $0x54] sm:$0xf]
  %v4474 = vld [vmem:[%s43 + $0x58] sm:$0xf]
  %v4475 = vld [vmem:[%s43 + $0x5c] sm:$0xf]
  %v4476 = vld [vmem:[%s43 + $0x60] sm:$0xf]
  %v4477 = vld [vmem:[%s43 + $0x64] sm:$0xf]
  %v4478 = vld [vmem:[%s43 + $0x68] sm:$0xf]
  %v4479 = vld [vmem:[%s43 + $0x6c] sm:$0xf]
  %v4480 = vld [vmem:[%s43 + $0x70] sm:$0xf]
  %v4481 = vld [vmem:[%s43 + $0x74] sm:$0xf]
  %v4482 = vld [vmem:[%s43 + $0x78] sm:$0xf]
  %v4483 = vld [vmem:[%s43 + $0x7c] sm:$0xf]
  %v4484 = vld [vmem:[%s43 + $0x80] sm:$0xf]
  %v4485 = vld [vmem:[%s43 + $0x84] sm:$0xf]
  %v4486 = vld [vmem:[%s43 + $0x88] sm:$0xf]
  %v4487 = vld [vmem:[%s43 + $0x8c] sm:$0xf]
  %v4524 = vunpack.c.l.b16 %v4452
  %v4525 = vunpack.c.l.b16 %v4453
  %v4526 = vunpack.c.l.b16 %v4454
  %v4527 = vunpack.c.l.b16 %v4455
  %v4528 = vunpack.c.l.b16 %v4456
  %v4529 = vunpack.c.l.b16 %v4457
  %v4530 = vunpack.c.l.b16 %v4458
  %v4531 = vunpack.c.l.b16 %v4459
  %v4532 = vunpack.c.l.b16 %v4460
  %v4533 = vunpack.c.l.b16 %v4461
  %v4534 = vunpack.c.l.b16 %v4462
  %v4535 = vunpack.c.l.b16 %v4463
  %v4536 = vunpack.c.l.b16 %v4464
  %v4537 = vunpack.c.l.b16 %v4465
  %v4538 = vunpack.c.l.b16 %v4466
  %v4539 = vunpack.c.l.b16 %v4467
  %v4540 = vunpack.c.l.b16 %v4468
  %v4541 = vunpack.c.l.b16 %v4469
  %v4542 = vunpack.c.l.b16 %v4470
  %v4543 = vunpack.c.l.b16 %v4471
  %v4544 = vunpack.c.l.b16 %v4472
  %v4545 = vunpack.c.l.b16 %v4473
  %v4546 = vunpack.c.l.b16 %v4474
  %v4547 = vunpack.c.l.b16 %v4475
  %v4548 = vunpack.c.l.b16 %v4476
  %v4549 = vunpack.c.l.b16 %v4477
  %v4550 = vunpack.c.l.b16 %v4478
  %v4551 = vunpack.c.l.b16 %v4479
  %v4552 = vunpack.c.l.b16 %v4480
  %v4553 = vunpack.c.l.b16 %v4481
  %v4554 = vunpack.c.l.b16 %v4482
  %v4555 = vunpack.c.l.b16 %v4483
  %v4556 = vunpack.c.l.b16 %v4484
  %v4557 = vunpack.c.l.b16 %v4485
  %v4558 = vunpack.c.l.b16 %v4486
  %v4559 = vunpack.c.l.b16 %v4487
  %v4560 = vpack.c.b16 %v4525, %v4524
  %v4561 = vpack.c.b16 %v4527, %v4526
  %v4562 = vpack.c.b16 %v4529, %v4528
  %v4563 = vpack.c.b16 %v4531, %v4530
  %v4564 = vpack.c.b16 %v4533, %v4532
  %v4565 = vpack.c.b16 %v4535, %v4534
  %v4566 = vpack.c.b16 %v4537, %v4536
  %v4567 = vpack.c.b16 %v4539, %v4538
  %v4568 = vpack.c.b16 %v4541, %v4540
  %v4569 = vpack.c.b16 %v4543, %v4542
  %v4570 = vpack.c.b16 %v4545, %v4544
  %v4571 = vpack.c.b16 %v4547, %v4546
  %v4572 = vpack.c.b16 %v4549, %v4548
  %v4573 = vpack.c.b16 %v4551, %v4550
  %v4574 = vpack.c.b16 %v4553, %v4552
  %v4575 = vpack.c.b16 %v4555, %v4554
  %v4576 = vpack.c.b16 %v4557, %v4556
  %v4577 = vpack.c.b16 %v4559, %v4558
  %v4597 = vsel %vm1485, %v4382, 0
  %v4600 = vsel %vm1485, %v4383, 0
  %4602 = vmatprep.subr.bf16.mxu0 0
  %4603 = vmatpush1.bf16.msra.mxu0 %v4560
  %4604 = vmatprep.subr.bf16.mxu0 0
  %4605 = vmatpush1.bf16.msra.mxu0 %v4561
  %4606 = vmatprep.subr.bf16.mxu0 0
  %4607 = vmatpush1.bf16.msra.mxu0 %v4562
  %4608 = vmatprep.subr.bf16.mxu0 0
  %4609 = vmatpush1.bf16.msra.mxu0 %v4563
  %4610 = vmatprep.subr.bf16.mxu0 0
  %4611 = vmatpush1.bf16.msra.mxu0 %v4564
  %4612 = vmatprep.subr.bf16.mxu0 0
  %4613 = vmatpush1.bf16.msra.mxu0 %v4565
  %4614 = vmatprep.subr.bf16.mxu0 0
  %4615 = vmatpush1.bf16.msra.mxu0 %v4566
  %4616 = vmatprep.subr.bf16.mxu0 0
  %4617 = vmatpush1.bf16.msra.mxu0 %v4567
  %4618 = vmatprep.subr.bf16.mxu0 0
  %4619 = vmatpush1.bf16.msra.mxu0 %v4568
  %4620 = vmatprep.subr.bf16.mxu0 0
  %4621 = vmatpush1.bf16.msra.mxu0 %v4569
  %4622 = vmatprep.subr.bf16.mxu0 0
  %4623 = vmatpush1.bf16.msra.mxu0 %v4570
  %4624 = vmatprep.subr.bf16.mxu0 0
  %4625 = vmatpush1.bf16.msra.mxu0 %v4571
  %4626 = vmatprep.subr.bf16.mxu0 0
  %4627 = vmatpush1.bf16.msra.mxu0 %v4572
  %4628 = vmatprep.subr.bf16.mxu0 0
  %4629 = vmatpush1.bf16.msra.mxu0 %v4573
  %4630 = vmatprep.subr.bf16.mxu0 0
  %4631 = vmatpush1.bf16.msra.mxu0 %v4574
  %4632 = vmatprep.subr.bf16.mxu0 0
  %4633 = vmatpush1.bf16.msra.mxu0 %v4575
  %4634 = vmatprep.mubr.bf16.mxu0 %v4447
  %4635 = vmatmul.mubr.bf16.gmra.mrb[0].mxu0 %v4431
  %v4636 = vpop.f32.mrb[0].mxu0
  %v4637 = vadd.f32 0.0, %v4636
  %v4638 = vpop.f32.mrb[0].mxu0
  %v4639 = vpop.f32.mrb[0].mxu0
  %v4640 = vadd.f32 0.0, %v4639
  %v4641 = vpop.f32.mrb[0].mxu0
  %4642 = vmatprep.mubr.bf16.mxu0 %v4450
  %4643 = vmatmul.mubr.bf16.gmra.mrb[0].mxu0 %v4434
  %v4644 = vpop.f32.mrb[0].mxu0
  %v4645 = vadd.f32 0.0, %v4644
  %v4646 = vpop.f32.mrb[0].mxu0
  %v4647 = vpop.f32.mrb[0].mxu0
  %v4648 = vadd.f32 0.0, %v4647
  %v4649 = vpop.f32.mrb[0].mxu0
  %4650 = vdwg.mxu0
  %4651 = vmatprep.subr.bf16.mxu0 0
  %4652 = vmatpush1.bf16.msra.mxu0 %v4576
  %4653 = vmatprep.subr.bf16.mxu0 0
  %4654 = vmatpush1.bf16.msra.mxu0 %v4577
  %4655 = vmatprep.subr.bf16.mxu0 0
  %4656 = vmatpush1.bf16.msra.mxu0 0
  %4657 = vmatprep.subr.bf16.mxu0 0
  %4658 = vmatpush1.bf16.msra.mxu0 0
  %4659 = vmatprep.subr.bf16.mxu0 0
  %4660 = vmatpush1.bf16.msra.mxu0 0
  %4661 = vmatprep.subr.bf16.mxu0 0
  %4662 = vmatpush1.bf16.msra.mxu0 0
  %4663 = vmatprep.subr.bf16.mxu0 0
  %4664 = vmatpush1.bf16.msra.mxu0 0
  %4665 = vmatprep.subr.bf16.mxu0 0
  %4666 = vmatpush1.bf16.msra.mxu0 0
  %4667 = vmatprep.subr.bf16.mxu0 0
  %4668 = vmatpush1.bf16.msra.mxu0 0
  %4669 = vmatprep.subr.bf16.mxu0 0
  %4670 = vmatpush1.bf16.msra.mxu0 0
  %4671 = vmatprep.subr.bf16.mxu0 0
  %4672 = vmatpush1.bf16.msra.mxu0 0
  %4673 = vmatprep.subr.bf16.mxu0 0
  %4674 = vmatpush1.bf16.msra.mxu0 0
  %4675 = vmatprep.subr.bf16.mxu0 0
  %4676 = vmatpush1.bf16.msra.mxu0 0
  %4677 = vmatprep.subr.bf16.mxu0 0
  %4678 = vmatpush1.bf16.msra.mxu0 0
  %4679 = vmatprep.subr.bf16.mxu0 0
  %4680 = vmatpush1.bf16.msra.mxu0 0
  %4681 = vmatprep.subr.bf16.mxu0 0
  %4682 = vmatpush1.bf16.msra.mxu0 0
  %4683 = vmatprep.mubr.bf16.mxu0 0
  %4684 = vmatmul.mubr.bf16.gmra.mrb[0].mxu0 %v4597
  %v4685 = vpop.f32.mrb[0].mxu0
  %v4686 = vadd.f32 %v4637, %v4685
  %v4687 = vpop.f32.mrb[0].mxu0
  %v4688 = vpop.f32.mrb[0].mxu0
  %v4689 = vadd.f32 %v4640, %v4688
  %v4690 = vpop.f32.mrb[0].mxu0
  %4691 = vmatprep.mubr.bf16.mxu0 0
  %4692 = vmatmul.mubr.bf16.gmra.mrb[0].mxu0 %v4600
  %v4693 = vpop.f32.mrb[0].mxu0
  %v4694 = vadd.f32 %v4645, %v4693
  %v4695 = vpop.f32.mrb[0].mxu0
  %v4696 = vpop.f32.mrb[0].mxu0
  %v4697 = vadd.f32 %v4648, %v4696
  %v4698 = vpop.f32.mrb[0].mxu0
  %4699 = vdwg.mxu0
  %v4700 = vld [vmem:[%s45] sm:$0xff]
  %v4701 = vld [vmem:[%s45 + $0x8] sm:$0xff]
  %v4702 = vld [vmem:[%s45 + $0x10] sm:$0xff]
  %v4703 = vld [vmem:[%s45 + $0x18] sm:$0xff]
  %v4704 = vld [vmem:[%s47] sm:$0xff]
  %v4705 = vld [vmem:[%s47 + $0x8] sm:$0xff]
  %v4706 = vld [vmem:[%s47 + $0x10] sm:$0xff]
  %v4707 = vld [vmem:[%s47 + $0x18] sm:$0xff]
  %v4708 = vsel %vm1485, %v4686, 0.0
  %4709 = vadd.xlane.f32.xlu0 %v4708
  %v4710 = vpop.xlane.xlu0 %4709
  %v4711 = vsel %vm1485, %v4689, 0.0
  %4712 = vadd.xlane.f32.xlu0 %v4711
  %v4713 = vpop.xlane.xlu0 %4712
  %v4714 = vsel %vm1485, %v4694, 0.0
  %4715 = vadd.xlane.f32.xlu0 %v4714
  %v4716 = vpop.xlane.xlu0 %4715
  %v4717 = vsel %vm1485, %v4697, 0.0
  %4718 = vadd.xlane.f32.xlu0 %v4717
  %v4719 = vpop.xlane.xlu0 %4718
  %v4720 = vmul.f32 %v4710, 0.03125
  %v4721 = vmul.f32 %v4713, 0.03125
  %v4722 = vmul.f32 %v4716, 0.03125
  %v4723 = vmul.f32 %v4719, 0.03125
  %v4724 = vsub.f32 %v4686, %v4720
  %v4725 = vsub.f32 %v4689, %v4721
  %v4726 = vsub.f32 %v4694, %v4722
  %v4727 = vsub.f32 %v4697, %v4723
  %v4728 = vmul.f32 %v4724, %v4724
  %v4729 = vmul.f32 %v4725, %v4725
  %v4730 = vmul.f32 %v4726, %v4726
  %v4731 = vmul.f32 %v4727, %v4727
  %v4732 = vsel %vm1485, %v4728, 0.0
  %4733 = vadd.xlane.f32.xlu0 %v4732
  %v4734 = vpop.xlane.xlu0 %4733
  %v4735 = vsel %vm1485, %v4729, 0.0
  %4736 = vadd.xlane.f32.xlu0 %v4735
  %v4737 = vpop.xlane.xlu0 %4736
  %v4738 = vsel %vm1485, %v4730, 0.0
  %4739 = vadd.xlane.f32.xlu0 %v4738
  %v4740 = vpop.xlane.xlu0 %4739
  %v4741 = vsel %vm1485, %v4731, 0.0
  %4742 = vadd.xlane.f32.xlu0 %v4741
  %v4743 = vpop.xlane.xlu0 %4742
  %v4744 = vmul.f32 %v4734, 0.03125
  %v4745 = vmul.f32 %v4737, 0.03125
  %v4746 = vmul.f32 %v4740, 0.03125
  %v4747 = vmul.f32 %v4743, 0.03125
  %v4748 = vadd.f32 %v4744, 1e-05
  %v4749 = vadd.f32 %v4745, 1e-05
  %v4750 = vadd.f32 %v4746, 1e-05
  %v4751 = vadd.f32 %v4747, 1e-05
  %v4752 = vrsqrt.pop %v4748
  %v4753 = vrsqrt.pop %v4749
  %v4754 = vrsqrt.pop %v4750
  %v4755 = vrsqrt.pop %v4751
  %v4756 = vmul.f32 %v4700, %v4752
  %v4757 = vmul.f32 %v4701, %v4753
  %v4758 = vmul.f32 %v4702, %v4754
  %v4759 = vmul.f32 %v4703, %v4755
  %4761 = vset.pattern.permute.xlu0 0
  %4762 = vperm.xlu0 %4761, %v4756
  %v4763 = vpop.permute.xlu0 %4762
  %4766 = vset.pattern.permute.xlu0 0
  %4767 = vperm.xlu0 %4766, %v4757
  %v4768 = vpop.permute.xlu0 %4767
  %4771 = vset.pattern.permute.xlu0 0
  %4772 = vperm.xlu0 %4771, %v4758
  %v4773 = vpop.permute.xlu0 %4772
  %4776 = vset.pattern.permute.xlu0 0
  %4777 = vperm.xlu0 %4776, %v4759
  %v4778 = vpop.permute.xlu0 %4777
  %v4780 = vmul.f32 %v4724, %v4763
  %v4781 = vmul.f32 %v4725, %v4768
  %v4782 = vmul.f32 %v4726, %v4773
  %v4783 = vmul.f32 %v4727, %v4778
  %4785 = vset.pattern.permute.xlu0 0
  %4786 = vperm.xlu0 %4785, %v4704
  %v4787 = vpop.permute.xlu0 %4786
  %4790 = vset.pattern.permute.xlu0 0
  %4791 = vperm.xlu0 %4790, %v4705
  %v4792 = vpop.permute.xlu0 %4791
  %4795 = vset.pattern.permute.xlu0 0
  %4796 = vperm.xlu0 %4795, %v4706
  %v4797 = vpop.permute.xlu0 %4796
  %4800 = vset.pattern.permute.xlu0 0
  %4801 = vperm.xlu0 %4800, %v4707
  %v4802 = vpop.permute.xlu0 %4801
  %v4804 = vadd.f32 %v4780, %v4787
  %v4805 = vadd.f32 %v4781, %v4792
  %v4806 = vadd.f32 %v4782, %v4797
  %v4807 = vadd.f32 %v4783, %v4802
  %v4808 = vadd.f32 %v3198, %v4804
  %v4809 = vadd.f32 %v3199, %v4805
  %v4810 = vadd.f32 %v3200, %v4806
  %v4811 = vadd.f32 %v3201, %v4807
  %v4812 = vld [vmem:[%s49] sm:$0xf]
  %v4813 = vld [vmem:[%s49 + $0x4] sm:$0xf]
  %v4814 = vld [vmem:[%s49 + $0x8] sm:$0xf]
  %v4815 = vld [vmem:[%s49 + $0xc] sm:$0xf]
  %v4816 = vld [vmem:[%s49 + $0x10] sm:$0xf]
  %v4817 = vld [vmem:[%s49 + $0x14] sm:$0xf]
  %v4818 = vld [vmem:[%s49 + $0x18] sm:$0xf]
  %v4819 = vld [vmem:[%s49 + $0x1c] sm:$0xf]
  %v4820 = vld [vmem:[%s49 + $0x20] sm:$0xf]
  %v4821 = vld [vmem:[%s49 + $0x24] sm:$0xf]
  %v4822 = vld [vmem:[%s49 + $0x28] sm:$0xf]
  %v4823 = vld [vmem:[%s49 + $0x2c] sm:$0xf]
  %v4824 = vld [vmem:[%s49 + $0x30] sm:$0xf]
  %v4825 = vld [vmem:[%s49 + $0x34] sm:$0xf]
  %v4826 = vld [vmem:[%s49 + $0x38] sm:$0xf]
  %v4827 = vld [vmem:[%s49 + $0x3c] sm:$0xf]
  %v4828 = vld [vmem:[%s49 + $0x40] sm:$0xf]
  %v4829 = vld [vmem:[%s49 + $0x44] sm:$0xf]
  %v4830 = vpack.c.bf16 %v4809, %v4808
  %v4831 = vpack.c.bf16 %v4811, %v4810
  %v4850 = vunpack.c.l.b16 %v4812
  %v4851 = vunpack.c.l.b16 %v4813
  %v4852 = vunpack.c.l.b16 %v4814
  %v4853 = vunpack.c.l.b16 %v4815
  %v4854 = vunpack.c.l.b16 %v4816
  %v4855 = vunpack.c.l.b16 %v4817
  %v4856 = vunpack.c.l.b16 %v4818
  %v4857 = vunpack.c.l.b16 %v4819
  %v4858 = vunpack.c.l.b16 %v4820
  %v4859 = vunpack.c.l.b16 %v4821
  %v4860 = vunpack.c.l.b16 %v4822
  %v4861 = vunpack.c.l.b16 %v4823
  %v4862 = vunpack.c.l.b16 %v4824
  %v4863 = vunpack.c.l.b16 %v4825
  %v4864 = vunpack.c.l.b16 %v4826
  %v4865 = vunpack.c.l.b16 %v4827
  %v4866 = vunpack.c.l.b16 %v4828
  %v4867 = vunpack.c.l.b16 %v4829
  %v4868 = vpack.c.b16 %v4851, %v4850
  %v4869 = vpack.c.b16 %v4853, %v4852
  %v4870 = vpack.c.b16 %v4855, %v4854
  %v4871 = vpack.c.b16 %v4857, %v4856
  %v4872 = vpack.c.b16 %v4859, %v4858
  %v4873 = vpack.c.b16 %v4861, %v4860
  %v4874 = vpack.c.b16 %v4863, %v4862
  %v4875 = vpack.c.b16 %v4865, %v4864
  %v4876 = vpack.c.b16 %v4867, %v4866
  %v4878 = vsel %vm1485, %v4868, 0
  %v4881 = vsel %vm1485, %v4869, 0
  %v4884 = vsel %vm1485, %v4870, 0
  %v4887 = vsel %vm1485, %v4871, 0
  %v4890 = vsel %vm1485, %v4872, 0
  %v4893 = vsel %vm1485, %v4873, 0
  %v4896 = vsel %vm1485, %v4874, 0
  %v4899 = vsel %vm1485, %v4875, 0
  %v4902 = vsel %vm1485, %v4876, 0
  %4904 = vmatprep.subr.bf16.mxu0 0
  %4905 = vmatpush1.bf16.msra.mxu0 %v4830
  %4906 = vmatprep.subr.bf16.mxu0 0
  %4907 = vmatpush1.bf16.msra.mxu0 %v4831
  %4908 = vmatprep.subr.bf16.mxu0 0
  %4909 = vmatpush1.bf16.msra.mxu0 0
  %4910 = vmatprep.subr.bf16.mxu0 0
  %4911 = vmatpush1.bf16.msra.mxu0 0
  %4912 = vmatprep.subr.bf16.mxu0 0
  %4913 = vmatpush1.bf16.msra.mxu0 0
  %4914 = vmatprep.subr.bf16.mxu0 0
  %4915 = vmatpush1.bf16.msra.mxu0 0
  %4916 = vmatprep.subr.bf16.mxu0 0
  %4917 = vmatpush1.bf16.msra.mxu0 0
  %4918 = vmatprep.subr.bf16.mxu0 0
  %4919 = vmatpush1.bf16.msra.mxu0 0
  %4920 = vmatprep.subr.bf16.mxu0 0
  %4921 = vmatpush1.bf16.msra.mxu0 0
  %4922 = vmatprep.subr.bf16.mxu0 0
  %4923 = vmatpush1.bf16.msra.mxu0 0
  %4924 = vmatprep.subr.bf16.mxu0 0
  %4925 = vmatpush1.bf16.msra.mxu0 0
  %4926 = vmatprep.subr.bf16.mxu0 0
  %4927 = vmatpush1.bf16.msra.mxu0 0
  %4928 = vmatprep.subr.bf16.mxu0 0
  %4929 = vmatpush1.bf16.msra.mxu0 0
  %4930 = vmatprep.subr.bf16.mxu0 0
  %4931 = vmatpush1.bf16.msra.mxu0 0
  %4932 = vmatprep.subr.bf16.mxu0 0
  %4933 = vmatpush1.bf16.msra.mxu0 0
  %4934 = vmatprep.subr.bf16.mxu0 0
  %4935 = vmatpush1.bf16.msra.mxu0 0
  %4936 = vmatprep.mubr.bf16.mxu0 0
  %4937 = vmatmul.mubr.bf16.gmra.mrb[0].mxu0 %v4878
  %v4938 = vpop.f32.mrb[0].mxu0
  %v4939 = vadd.f32 0.0, %v4938
  %v4940 = vpop.f32.mrb[0].mxu0
  %v4941 = vpop.f32.mrb[0].mxu0
  %v4942 = vadd.f32 0.0, %v4941
  %v4943 = vpop.f32.mrb[0].mxu0
  %4944 = vmatprep.mubr.bf16.mxu0 0
  %4945 = vmatmul.mubr.bf16.gmra.mrb[0].mxu0 %v4881
  %v4946 = vpop.f32.mrb[0].mxu0
  %v4947 = vadd.f32 0.0, %v4946
  %v4948 = vpop.f32.mrb[0].mxu0
  %v4949 = vpop.f32.mrb[0].mxu0
  %v4950 = vadd.f32 0.0, %v4949
  %v4951 = vpop.f32.mrb[0].mxu0
  %4952 = vmatprep.mubr.bf16.mxu0 0
  %4953 = vmatmul.mubr.bf16.gmra.mrb[0].mxu0 %v4884
  %v4954 = vpop.f32.mrb[0].mxu0
  %v4955 = vadd.f32 0.0, %v4954
  %v4956 = vpop.f32.mrb[0].mxu0
  %v4957 = vpop.f32.mrb[0].mxu0
  %v4958 = vadd.f32 0.0, %v4957
  %v4959 = vpop.f32.mrb[0].mxu0
  %4960 = vmatprep.mubr.bf16.mxu0 0
  %4961 = vmatmul.mubr.bf16.gmra.mrb[0].mxu0 %v4887
  %v4962 = vpop.f32.mrb[0].mxu0
  %v4963 = vadd.f32 0.0, %v4962
  %v4964 = vpop.f32.mrb[0].mxu0
  %v4965 = vpop.f32.mrb[0].mxu0
  %v4966 = vadd.f32 0.0, %v4965
  %v4967 = vpop.f32.mrb[0].mxu0
  %4968 = vmatprep.mubr.bf16.mxu0 0
  %4969 = vmatmul.mubr.bf16.gmra.mrb[0].mxu0 %v4890
  %v4970 = vpop.f32.mrb[0].mxu0
  %v4971 = vadd.f32 0.0, %v4970
  %v4972 = vpop.f32.mrb[0].mxu0
  %v4973 = vpop.f32.mrb[0].mxu0
  %v4974 = vadd.f32 0.0, %v4973
  %v4975 = vpop.f32.mrb[0].mxu0
  %4976 = vmatprep.mubr.bf16.mxu0 0
  %4977 = vmatmul.mubr.bf16.gmra.mrb[0].mxu0 %v4893
  %v4978 = vpop.f32.mrb[0].mxu0
  %v4979 = vadd.f32 0.0, %v4978
  %v4980 = vpop.f32.mrb[0].mxu0
  %v4981 = vpop.f32.mrb[0].mxu0
  %v4982 = vadd.f32 0.0, %v4981
  %v4983 = vpop.f32.mrb[0].mxu0
  %4984 = vmatprep.mubr.bf16.mxu0 0
  %4985 = vmatmul.mubr.bf16.gmra.mrb[0].mxu0 %v4896
  %v4986 = vpop.f32.mrb[0].mxu0
  %v4987 = vadd.f32 0.0, %v4986
  %v4988 = vpop.f32.mrb[0].mxu0
  %v4989 = vpop.f32.mrb[0].mxu0
  %v4990 = vadd.f32 0.0, %v4989
  %v4991 = vpop.f32.mrb[0].mxu0
  %4992 = vmatprep.mubr.bf16.mxu0 0
  %4993 = vmatmul.mubr.bf16.gmra.mrb[0].mxu0 %v4899
  %v4994 = vpop.f32.mrb[0].mxu0
  %v4995 = vadd.f32 0.0, %v4994
  %v4996 = vpop.f32.mrb[0].mxu0
  %v4997 = vpop.f32.mrb[0].mxu0
  %v4998 = vadd.f32 0.0, %v4997
  %v4999 = vpop.f32.mrb[0].mxu0
  %5000 = vmatprep.mubr.bf16.mxu0 0
  %5001 = vmatmul.mubr.bf16.gmra.mrb[0].mxu0 %v4902
  %v5002 = vpop.f32.mrb[0].mxu0
  %v5003 = vadd.f32 0.0, %v5002
  %v5004 = vpop.f32.mrb[0].mxu0
  %v5005 = vpop.f32.mrb[0].mxu0
  %v5006 = vadd.f32 0.0, %v5005
  %v5007 = vpop.f32.mrb[0].mxu0
  %5008 = vdwg.mxu0
  %v5009 = vpack.c.bf16 %v4942, %v4939
  %v5010 = vpack.c.bf16 %v4950, %v4947
  %v5011 = vpack.c.bf16 %v4958, %v4955
  %v5012 = vpack.c.bf16 %v4966, %v4963
  %v5013 = vpack.c.bf16 %v4974, %v4971
  %v5014 = vpack.c.bf16 %v4982, %v4979
  %v5015 = vpack.c.bf16 %v4990, %v4987
  %v5016 = vpack.c.bf16 %v4998, %v4995
  %v5017 = vpack.c.bf16 %v5006, %v5003
  %5019 = vrot.lane.b32.xlu0 %v5010, 32
  %v5020 = vpop.permute.xlu0 %5019
  %5022 = vrot.lane.b32.xlu0 %v5011, 64
  %v5023 = vpop.permute.xlu0 %5022
  %5025 = vrot.lane.b32.xlu0 %v5012, 96
  %v5026 = vpop.permute.xlu0 %5025
  %5028 = vrot.lane.b32.xlu0 %v5014, 32
  %v5029 = vpop.permute.xlu0 %5028
  %5031 = vrot.lane.b32.xlu0 %v5015, 64
  %v5032 = vpop.permute.xlu0 %5031
  %5034 = vrot.lane.b32.xlu0 %v5016, 96
  %v5035 = vpop.permute.xlu0 %5034
  %v5038 = vsel %vm1485, %v5009, %v5020
  %v5040 = vsel %vm2009, %v5038, %v5023
  %v5042 = vsel %vm2014, %v5040, %v5026
  %v5046 = vsel %vm1485, %v5013, %v5029
  %v5048 = vsel %vm2009, %v5046, %v5032
  %v5050 = vsel %vm2014, %v5048, %v5035
  %v5052 = vld [vmem:[%s51] sm:$0xf]
  %v5053 = vld [vmem:[%s51 + $0x4] sm:$0xf]
  %v5054 = vld [vmem:[%s51 + $0x8] sm:$0xf]
  %v5055 = vld [vmem:[%s51 + $0xc] sm:$0xf]
  %v5056 = vld [vmem:[%s51 + $0x10] sm:$0xf]
  %v5057 = vld [vmem:[%s51 + $0x14] sm:$0xf]
  %v5058 = vld [vmem:[%s51 + $0x18] sm:$0xf]
  %v5059 = vld [vmem:[%s51 + $0x1c] sm:$0xf]
  %v5060 = vld [vmem:[%s51 + $0x20] sm:$0xf]
  %v5061 = vld [vmem:[%s51 + $0x24] sm:$0xf]
  %v5062 = vld [vmem:[%s51 + $0x28] sm:$0xf]
  %v5063 = vld [vmem:[%s51 + $0x2c] sm:$0xf]
  %v5064 = vld [vmem:[%s51 + $0x30] sm:$0xf]
  %v5065 = vld [vmem:[%s51 + $0x34] sm:$0xf]
  %v5066 = vld [vmem:[%s51 + $0x38] sm:$0xf]
  %v5067 = vld [vmem:[%s51 + $0x3c] sm:$0xf]
  %v5068 = vld [vmem:[%s51 + $0x40] sm:$0xf]
  %v5069 = vld [vmem:[%s51 + $0x44] sm:$0xf]
  %v5070 = vld [vmem:[%s51 + $0x48] sm:$0xf]
  %v5071 = vld [vmem:[%s51 + $0x4c] sm:$0xf]
  %v5072 = vld [vmem:[%s51 + $0x50] sm:$0xf]
  %v5073 = vld [vmem:[%s51 + $0x54] sm:$0xf]
  %v5074 = vld [vmem:[%s51 + $0x58] sm:$0xf]
  %v5075 = vld [vmem:[%s51 + $0x5c] sm:$0xf]
  %v5076 = vld [vmem:[%s51 + $0x60] sm:$0xf]
  %v5077 = vld [vmem:[%s51 + $0x64] sm:$0xf]
  %v5078 = vld [vmem:[%s51 + $0x68] sm:$0xf]
  %v5079 = vld [vmem:[%s51 + $0x6c] sm:$0xf]
  %v5080 = vld [vmem:[%s51 + $0x70] sm:$0xf]
  %v5081 = vld [vmem:[%s51 + $0x74] sm:$0xf]
  %v5082 = vld [vmem:[%s51 + $0x78] sm:$0xf]
  %v5083 = vld [vmem:[%s51 + $0x7c] sm:$0xf]
  %v5084 = vld [vmem:[%s51 + $0x80] sm:$0xf]
  %v5085 = vld [vmem:[%s51 + $0x84] sm:$0xf]
  %v5086 = vld [vmem:[%s51 + $0x88] sm:$0xf]
  %v5087 = vld [vmem:[%s51 + $0x8c] sm:$0xf]
  %v5124 = vunpack.c.l.b16 %v5052
  %v5125 = vunpack.c.l.b16 %v5053
  %v5126 = vunpack.c.l.b16 %v5054
  %v5127 = vunpack.c.l.b16 %v5055
  %v5128 = vunpack.c.l.b16 %v5056
  %v5129 = vunpack.c.l.b16 %v5057
  %v5130 = vunpack.c.l.b16 %v5058
  %v5131 = vunpack.c.l.b16 %v5059
  %v5132 = vunpack.c.l.b16 %v5060
  %v5133 = vunpack.c.l.b16 %v5061
  %v5134 = vunpack.c.l.b16 %v5062
  %v5135 = vunpack.c.l.b16 %v5063
  %v5136 = vunpack.c.l.b16 %v5064
  %v5137 = vunpack.c.l.b16 %v5065
  %v5138 = vunpack.c.l.b16 %v5066
  %v5139 = vunpack.c.l.b16 %v5067
  %v5140 = vunpack.c.l.b16 %v5068
  %v5141 = vunpack.c.l.b16 %v5069
  %v5142 = vunpack.c.l.b16 %v5070
  %v5143 = vunpack.c.l.b16 %v5071
  %v5144 = vunpack.c.l.b16 %v5072
  %v5145 = vunpack.c.l.b16 %v5073
  %v5146 = vunpack.c.l.b16 %v5074
  %v5147 = vunpack.c.l.b16 %v5075
  %v5148 = vunpack.c.l.b16 %v5076
  %v5149 = vunpack.c.l.b16 %v5077
  %v5150 = vunpack.c.l.b16 %v5078
  %v5151 = vunpack.c.l.b16 %v5079
  %v5152 = vunpack.c.l.b16 %v5080
  %v5153 = vunpack.c.l.b16 %v5081
  %v5154 = vunpack.c.l.b16 %v5082
  %v5155 = vunpack.c.l.b16 %v5083
  %v5156 = vunpack.c.l.b16 %v5084
  %v5157 = vunpack.c.l.b16 %v5085
  %v5158 = vunpack.c.l.b16 %v5086
  %v5159 = vunpack.c.l.b16 %v5087
  %v5160 = vpack.c.b16 %v5125, %v5124
  %v5161 = vpack.c.b16 %v5127, %v5126
  %v5162 = vpack.c.b16 %v5129, %v5128
  %v5163 = vpack.c.b16 %v5131, %v5130
  %v5164 = vpack.c.b16 %v5133, %v5132
  %v5165 = vpack.c.b16 %v5135, %v5134
  %v5166 = vpack.c.b16 %v5137, %v5136
  %v5167 = vpack.c.b16 %v5139, %v5138
  %v5168 = vpack.c.b16 %v5141, %v5140
  %v5169 = vpack.c.b16 %v5143, %v5142
  %v5170 = vpack.c.b16 %v5145, %v5144
  %v5171 = vpack.c.b16 %v5147, %v5146
  %v5172 = vpack.c.b16 %v5149, %v5148
  %v5173 = vpack.c.b16 %v5151, %v5150
  %v5174 = vpack.c.b16 %v5153, %v5152
  %v5175 = vpack.c.b16 %v5155, %v5154
  %v5176 = vpack.c.b16 %v5157, %v5156
  %v5177 = vpack.c.b16 %v5159, %v5158
  %v5197 = vsel %vm1485, %v5017, 0
  %5199 = vmatprep.subr.bf16.mxu0 0
  %5200 = vmatpush1.bf16.msra.mxu0 %v5160
  %5201 = vmatprep.subr.bf16.mxu0 0
  %5202 = vmatpush1.bf16.msra.mxu0 %v5161
  %5203 = vmatprep.subr.bf16.mxu0 0
  %5204 = vmatpush1.bf16.msra.mxu0 %v5162
  %5205 = vmatprep.subr.bf16.mxu0 0
  %5206 = vmatpush1.bf16.msra.mxu0 %v5163
  %5207 = vmatprep.subr.bf16.mxu0 0
  %5208 = vmatpush1.bf16.msra.mxu0 %v5164
  %5209 = vmatprep.subr.bf16.mxu0 0
  %5210 = vmatpush1.bf16.msra.mxu0 %v5165
  %5211 = vmatprep.subr.bf16.mxu0 0
  %5212 = vmatpush1.bf16.msra.mxu0 %v5166
  %5213 = vmatprep.subr.bf16.mxu0 0
  %5214 = vmatpush1.bf16.msra.mxu0 %v5167
  %5215 = vmatprep.subr.bf16.mxu0 0
  %5216 = vmatpush1.bf16.msra.mxu0 %v5168
  %5217 = vmatprep.subr.bf16.mxu0 0
  %5218 = vmatpush1.bf16.msra.mxu0 %v5169
  %5219 = vmatprep.subr.bf16.mxu0 0
  %5220 = vmatpush1.bf16.msra.mxu0 %v5170
  %5221 = vmatprep.subr.bf16.mxu0 0
  %5222 = vmatpush1.bf16.msra.mxu0 %v5171
  %5223 = vmatprep.subr.bf16.mxu0 0
  %5224 = vmatpush1.bf16.msra.mxu0 %v5172
  %5225 = vmatprep.subr.bf16.mxu0 0
  %5226 = vmatpush1.bf16.msra.mxu0 %v5173
  %5227 = vmatprep.subr.bf16.mxu0 0
  %5228 = vmatpush1.bf16.msra.mxu0 %v5174
  %5229 = vmatprep.subr.bf16.mxu0 0
  %5230 = vmatpush1.bf16.msra.mxu0 %v5175
  %5231 = vmatprep.mubr.bf16.mxu0 %v5050
  %5232 = vmatmul.mubr.bf16.gmra.mrb[0].mxu0 %v5042
  %v5233 = vpop.f32.mrb[0].mxu0
  %v5234 = vadd.f32 0.0, %v5233
  %v5235 = vpop.f32.mrb[0].mxu0
  %v5236 = vpop.f32.mrb[0].mxu0
  %v5237 = vadd.f32 0.0, %v5236
  %v5238 = vpop.f32.mrb[0].mxu0
  %5239 = vdwg.mxu0
  %5240 = vmatprep.subr.bf16.mxu0 0
  %5241 = vmatpush1.bf16.msra.mxu0 %v5176
  %5242 = vmatprep.subr.bf16.mxu0 0
  %5243 = vmatpush1.bf16.msra.mxu0 %v5177
  %5244 = vmatprep.subr.bf16.mxu0 0
  %5245 = vmatpush1.bf16.msra.mxu0 0
  %5246 = vmatprep.subr.bf16.mxu0 0
  %5247 = vmatpush1.bf16.msra.mxu0 0
  %5248 = vmatprep.subr.bf16.mxu0 0
  %5249 = vmatpush1.bf16.msra.mxu0 0
  %5250 = vmatprep.subr.bf16.mxu0 0
  %5251 = vmatpush1.bf16.msra.mxu0 0
  %5252 = vmatprep.subr.bf16.mxu0 0
  %5253 = vmatpush1.bf16.msra.mxu0 0
  %5254 = vmatprep.subr.bf16.mxu0 0
  %5255 = vmatpush1.bf16.msra.mxu0 0
  %5256 = vmatprep.subr.bf16.mxu0 0
  %5257 = vmatpush1.bf16.msra.mxu0 0
  %5258 = vmatprep.subr.bf16.mxu0 0
  %5259 = vmatpush1.bf16.msra.mxu0 0
  %5260 = vmatprep.subr.bf16.mxu0 0
  %5261 = vmatpush1.bf16.msra.mxu0 0
  %5262 = vmatprep.subr.bf16.mxu0 0
  %5263 = vmatpush1.bf16.msra.mxu0 0
  %5264 = vmatprep.subr.bf16.mxu0 0
  %5265 = vmatpush1.bf16.msra.mxu0 0
  %5266 = vmatprep.subr.bf16.mxu0 0
  %5267 = vmatpush1.bf16.msra.mxu0 0
  %5268 = vmatprep.subr.bf16.mxu0 0
  %5269 = vmatpush1.bf16.msra.mxu0 0
  %5270 = vmatprep.subr.bf16.mxu0 0
  %5271 = vmatpush1.bf16.msra.mxu0 0
  %5272 = vmatprep.mubr.bf16.mxu0 0
  %5273 = vmatmul.mubr.bf16.gmra.mrb[0].mxu0 %v5197
  %v5274 = vpop.f32.mrb[0].mxu0
  %v5275 = vadd.f32 %v5234, %v5274
  %v5276 = vpop.f32.mrb[0].mxu0
  %v5277 = vpop.f32.mrb[0].mxu0
  %v5278 = vadd.f32 %v5237, %v5277
  %v5279 = vpop.f32.mrb[0].mxu0
  %5280 = vdwg.mxu0
  %v5281 = vld [vmem:[%s53] sm:$0xff]
  %v5282 = vld [vmem:[%s53 + $0x8] sm:$0xff]
  %v5283 = vld [vmem:[%s55] sm:$0xff]
  %v5284 = vld [vmem:[%s55 + $0x8] sm:$0xff]
  %5285 = vadd.xlane.f32.xlu0 %v5275
  %v5286 = vpop.xlane.xlu0 %5285
  %5287 = vadd.xlane.f32.xlu0 %v5278
  %v5288 = vpop.xlane.xlu0 %5287
  %v5289 = vmul.f32 %v5286, 0.0078125
  %v5290 = vmul.f32 %v5288, 0.0078125
  %v5291 = vsub.f32 %v5275, %v5289
  %v5292 = vsub.f32 %v5278, %v5290
  %v5293 = vmul.f32 %v5291, %v5291
  %v5294 = vmul.f32 %v5292, %v5292
  %5295 = vadd.xlane.f32.xlu0 %v5293
  %v5296 = vpop.xlane.xlu0 %5295
  %5297 = vadd.xlane.f32.xlu0 %v5294
  %v5298 = vpop.xlane.xlu0 %5297
  %v5299 = vmul.f32 %v5296, 0.0078125
  %v5300 = vmul.f32 %v5298, 0.0078125
  %v5301 = vadd.f32 %v5299, 1e-05
  %v5302 = vadd.f32 %v5300, 1e-05
  %v5303 = vrsqrt.pop %v5301
  %v5304 = vrsqrt.pop %v5302
  %v5305 = vmul.f32 %v5281, %v5303
  %v5306 = vmul.f32 %v5282, %v5304
  %5308 = vset.pattern.permute.xlu0 0
  %5309 = vperm.xlu0 %5308, %v5305
  %v5310 = vpop.permute.xlu0 %5309
  %5313 = vset.pattern.permute.xlu0 0
  %5314 = vperm.xlu0 %5313, %v5306
  %v5315 = vpop.permute.xlu0 %5314
  %v5317 = vmul.f32 %v5291, %v5310
  %v5318 = vmul.f32 %v5292, %v5315
  %5320 = vset.pattern.permute.xlu0 0
  %5321 = vperm.xlu0 %5320, %v5283
  %v5322 = vpop.permute.xlu0 %5321
  %5325 = vset.pattern.permute.xlu0 0
  %5326 = vperm.xlu0 %5325, %v5284
  %v5327 = vpop.permute.xlu0 %5326
  %v5329 = vadd.f32 %v5317, %v5322
  %v5330 = vadd.f32 %v5318, %v5327
  %v5331 = vmax.f32 %v5329, 0.0
  %v5332 = vmax.f32 %v5330, 0.0
  %v5333 = vld [vmem:[%s57] sm:$0xf]
  %v5334 = vld [vmem:[%s57 + $0x4] sm:$0xf]
  %v5335 = vld [vmem:[%s57 + $0x8] sm:$0xf]
  %v5336 = vld [vmem:[%s57 + $0xc] sm:$0xf]
  %v5337 = vld [vmem:[%s57 + $0x10] sm:$0xf]
  %v5338 = vld [vmem:[%s57 + $0x14] sm:$0xf]
  %v5339 = vld [vmem:[%s57 + $0x18] sm:$0xf]
  %v5340 = vld [vmem:[%s57 + $0x1c] sm:$0xf]
  %v5341 = vld [vmem:[%s57 + $0x20] sm:$0xf]
  %v5342 = vpack.c.bf16 %v5332, %v5331
  %v5352 = vunpack.c.l.b16 %v5333
  %v5353 = vunpack.c.l.b16 %v5334
  %v5354 = vunpack.c.l.b16 %v5335
  %v5355 = vunpack.c.l.b16 %v5336
  %v5356 = vunpack.c.l.b16 %v5337
  %v5357 = vunpack.c.l.b16 %v5338
  %v5358 = vunpack.c.l.b16 %v5339
  %v5359 = vunpack.c.l.b16 %v5340
  %v5360 = vunpack.c.l.b16 %v5341
  %v5361 = vpack.c.b16 %v5353, %v5352
  %v5362 = vpack.c.b16 %v5355, %v5354
  %v5363 = vpack.c.b16 %v5357, %v5356
  %v5364 = vpack.c.b16 %v5359, %v5358
  %v5365 = vpack.c.b16 %v5360, %v5360
  %v5367 = vsel %vm406, %v5361, 0
  %v5370 = vsel %vm406, %v5362, 0
  %v5373 = vsel %vm406, %v5363, 0
  %v5376 = vsel %vm406, %v5364, 0
  %v5379 = vsel %vm406, %v5365, 0
  %5381 = vmatprep.subr.bf16.mxu0 0
  %5382 = vmatpush1.bf16.msra.mxu0 %v5342
  %5383 = vmatprep.subr.bf16.mxu0 0
  %5384 = vmatpush1.bf16.msra.mxu0 0
  %5385 = vmatprep.subr.bf16.mxu0 0
  %5386 = vmatpush1.bf16.msra.mxu0 0
  %5387 = vmatprep.subr.bf16.mxu0 0
  %5388 = vmatpush1.bf16.msra.mxu0 0
  %5389 = vmatprep.subr.bf16.mxu0 0
  %5390 = vmatpush1.bf16.msra.mxu0 0
  %5391 = vmatprep.subr.bf16.mxu0 0
  %5392 = vmatpush1.bf16.msra.mxu0 0
  %5393 = vmatprep.subr.bf16.mxu0 0
  %5394 = vmatpush1.bf16.msra.mxu0 0
  %5395 = vmatprep.subr.bf16.mxu0 0
  %5396 = vmatpush1.bf16.msra.mxu0 0
  %5397 = vmatprep.subr.bf16.mxu0 0
  %5398 = vmatpush1.bf16.msra.mxu0 0
  %5399 = vmatprep.subr.bf16.mxu0 0
  %5400 = vmatpush1.bf16.msra.mxu0 0
  %5401 = vmatprep.subr.bf16.mxu0 0
  %5402 = vmatpush1.bf16.msra.mxu0 0
  %5403 = vmatprep.subr.bf16.mxu0 0
  %5404 = vmatpush1.bf16.msra.mxu0 0
  %5405 = vmatprep.subr.bf16.mxu0 0
  %5406 = vmatpush1.bf16.msra.mxu0 0
  %5407 = vmatprep.subr.bf16.mxu0 0
  %5408 = vmatpush1.bf16.msra.mxu0 0
  %5409 = vmatprep.subr.bf16.mxu0 0
  %5410 = vmatpush1.bf16.msra.mxu0 0
  %5411 = vmatprep.subr.bf16.mxu0 0
  %5412 = vmatpush1.bf16.msra.mxu0 0
  %5413 = vmatprep.mubr.bf16.mxu0 0
  %5414 = vmatmul.mubr.bf16.gmra.mrb[0].mxu0 %v5367
  %v5415 = vpop.f32.mrb[0].mxu0
  %v5416 = vadd.f32 0.0, %v5415
  %v5417 = vpop.f32.mrb[0].mxu0
  %v5418 = vpop.f32.mrb[0].mxu0
  %v5419 = vadd.f32 0.0, %v5418
  %v5420 = vpop.f32.mrb[0].mxu0
  %5421 = vmatprep.mubr.bf16.mxu0 0
  %5422 = vmatmul.mubr.bf16.gmra.mrb[0].mxu0 %v5370
  %v5423 = vpop.f32.mrb[0].mxu0
  %v5424 = vadd.f32 0.0, %v5423
  %v5425 = vpop.f32.mrb[0].mxu0
  %v5426 = vpop.f32.mrb[0].mxu0
  %v5427 = vadd.f32 0.0, %v5426
  %v5428 = vpop.f32.mrb[0].mxu0
  %5429 = vmatprep.mubr.bf16.mxu0 0
  %5430 = vmatmul.mubr.bf16.gmra.mrb[0].mxu0 %v5373
  %v5431 = vpop.f32.mrb[0].mxu0
  %v5432 = vadd.f32 0.0, %v5431
  %v5433 = vpop.f32.mrb[0].mxu0
  %v5434 = vpop.f32.mrb[0].mxu0
  %v5435 = vadd.f32 0.0, %v5434
  %v5436 = vpop.f32.mrb[0].mxu0
  %5437 = vmatprep.mubr.bf16.mxu0 0
  %5438 = vmatmul.mubr.bf16.gmra.mrb[0].mxu0 %v5376
  %v5439 = vpop.f32.mrb[0].mxu0
  %v5440 = vadd.f32 0.0, %v5439
  %v5441 = vpop.f32.mrb[0].mxu0
  %v5442 = vpop.f32.mrb[0].mxu0
  %v5443 = vadd.f32 0.0, %v5442
  %v5444 = vpop.f32.mrb[0].mxu0
  %5445 = vmatprep.mubr.bf16.mxu0 0
  %5446 = vmatmul.mubr.bf16.gmra.mrb[0].mxu0 %v5379
  %v5447 = vpop.f32.mrb[0].mxu0
  %v5448 = vadd.f32 0.0, %v5447
  %v5449 = vpop.f32.mrb[0].mxu0
  %v5450 = vpop.f32.mrb[0].mxu0
  %v5451 = vpop.f32.mrb[0].mxu0
  %5452 = vdwg.mxu0
  %v5453 = vpack.c.bf16 %v5419, %v5416
  %v5454 = vpack.c.bf16 %v5427, %v5424
  %v5455 = vpack.c.bf16 %v5435, %v5432
  %v5456 = vpack.c.bf16 %v5443, %v5440
  %v5457 = vpack.c.bf16 %v5448, %v5448
  %v5459 = vrot.slane %v5453, 4
  %v5462 = vrot.slane %v5454, 4
  %v5465 = vrot.slane %v5455, 4
  %v5468 = vrot.slane %v5456, 4
  %v5470 = vld [vmem:[%s59] sm:$0xff]
  %v5471 = vld [vmem:[%s59 + $0x8] sm:$0xff]
  %v5472 = vld [vmem:[%s59 + $0x10] sm:$0xff]
  %v5473 = vld [vmem:[%s59 + $0x18] sm:$0xff]
  %v5474 = vld [vmem:[%s59 + $0x20] sm:$0xff]
  %v5475 = vld [vmem:[%s59 + $0x28] sm:$0xff]
  %v5476 = vld [vmem:[%s59 + $0x30] sm:$0xff]
  %v5477 = vld [vmem:[%s59 + $0x38] sm:$0xff]
  %v5478 = vld [vmem:[%s59 + $0x40] sm:$0xff]
  %v5479 = vld [vmem:[%s59 + $0x48] sm:$0xff]
  %v5480 = vld [vmem:[%s59 + $0x50] sm:$0xff]
  %v5481 = vld [vmem:[%s59 + $0x58] sm:$0xff]
  %v5482 = vld [vmem:[%s59 + $0x60] sm:$0xff]
  %v5483 = vld [vmem:[%s59 + $0x68] sm:$0xff]
  %v5484 = vld [vmem:[%s59 + $0x70] sm:$0xff]
  %v5485 = vld [vmem:[%s59 + $0x78] sm:$0xff]
  %v5486 = vld [vmem:[%s59 + $0x80] sm:$0xff]
  %v5487 = vld [vmem:[%s59 + $0x88] sm:$0xff]
  %v5488 = vld [vmem:[%s59 + $0x90] sm:$0xff]
  %v5489 = vld [vmem:[%s59 + $0x98] sm:$0xff]
  %v5490 = vld [vmem:[%s59 + $0xa0] sm:$0xff]
  %v5491 = vld [vmem:[%s59 + $0xa8] sm:$0xff]
  %v5492 = vld [vmem:[%s59 + $0xb0] sm:$0xff]
  %v5493 = vld [vmem:[%s59 + $0xb8] sm:$0xff]
  %v5494 = vld [vmem:[%s59 + $0xc0] sm:$0xff]
  %v5495 = vld [vmem:[%s59 + $0xc8] sm:$0xff]
  %v5496 = vld [vmem:[%s59 + $0xd0] sm:$0xff]
  %v5497 = vld [vmem:[%s59 + $0xd8] sm:$0xff]
  %v5498 = vld [vmem:[%s59 + $0xe0] sm:$0xff]
  %v5499 = vld [vmem:[%s59 + $0xe8] sm:$0xff]
  %v5500 = vld [vmem:[%s59 + $0xf0] sm:$0xff]
  %v5501 = vld [vmem:[%s59 + $0xf8] sm:$0xff]
  %v5502 = vld [vmem:[%s59 + $0x100] sm:$0xff]
  %v5503 = vld [vmem:[%s59 + $0x108] sm:$0xff]
  %v5504 = vld [vmem:[%s59 + $0x110] sm:$0xff]
  %v5505 = vld [vmem:[%s59 + $0x118] sm:$0xff]
  %v5506 = vld [vmem:[%s59 + $0x120] sm:$0xff]
  %v5507 = vld [vmem:[%s59 + $0x128] sm:$0xff]
  %v5508 = vld [vmem:[%s59 + $0x130] sm:$0xff]
  %v5509 = vld [vmem:[%s59 + $0x138] sm:$0xff]
  %v5510 = vld [vmem:[%s59 + $0x140] sm:$0xff]
  %v5511 = vld [vmem:[%s59 + $0x148] sm:$0xff]
  %v5512 = vld [vmem:[%s59 + $0x150] sm:$0xff]
  %v5513 = vld [vmem:[%s59 + $0x158] sm:$0xff]
  %v5514 = vld [vmem:[%s59 + $0x160] sm:$0xff]
  %v5515 = vld [vmem:[%s59 + $0x168] sm:$0xff]
  %v5516 = vld [vmem:[%s59 + $0x170] sm:$0xff]
  %v5517 = vld [vmem:[%s59 + $0x178] sm:$0xff]
  %v5518 = vld [vmem:[%s59 + $0x180] sm:$0xff]
  %v5519 = vld [vmem:[%s59 + $0x188] sm:$0xff]
  %v5520 = vld [vmem:[%s59 + $0x190] sm:$0xff]
  %v5521 = vld [vmem:[%s59 + $0x198] sm:$0xff]
  %v5522 = vld [vmem:[%s59 + $0x1a0] sm:$0xff]
  %v5523 = vld [vmem:[%s59 + $0x1a8] sm:$0xff]
  %v5524 = vld [vmem:[%s59 + $0x1b0] sm:$0xff]
  %v5525 = vld [vmem:[%s59 + $0x1b8] sm:$0xff]
  %v5526 = vld [vmem:[%s59 + $0x1c0] sm:$0xff]
  %v5527 = vld [vmem:[%s59 + $0x1c8] sm:$0xff]
  %v5528 = vld [vmem:[%s59 + $0x1d0] sm:$0xff]
  %v5529 = vld [vmem:[%s59 + $0x1d8] sm:$0xff]
  %v5530 = vld [vmem:[%s59 + $0x1e0] sm:$0xff]
  %v5531 = vld [vmem:[%s59 + $0x1e8] sm:$0xff]
  %v5532 = vld [vmem:[%s59 + $0x1f0] sm:$0xff]
  %v5533 = vld [vmem:[%s59 + $0x1f8] sm:$0xff]
  %v5534 = vld [vmem:[%s59 + $0x200] sm:$0xff]
  %v5535 = vld [vmem:[%s59 + $0x208] sm:$0xff]
  %v5536 = vld [vmem:[%s59 + $0x210] sm:$0xff]
  %v5537 = vld [vmem:[%s59 + $0x218] sm:$0xff]
  %v5538 = vld [vmem:[%s59 + $0x220] sm:$0xff]
  %v5539 = vld [vmem:[%s59 + $0x228] sm:$0xff]
  %v5540 = vld [vmem:[%s59 + $0x230] sm:$0xff]
  %v5541 = vld [vmem:[%s59 + $0x238] sm:$0xff]
  %v5542 = vld [vmem:[%s59 + $0x240] sm:$0xff]
  %v5543 = vld [vmem:[%s59 + $0x248] sm:$0xff]
  %v5544 = vld [vmem:[%s59 + $0x250] sm:$0xff]
  %v5545 = vld [vmem:[%s59 + $0x258] sm:$0xff]
  %v5546 = vld [vmem:[%s59 + $0x260] sm:$0xff]
  %v5547 = vld [vmem:[%s59 + $0x268] sm:$0xff]
  %v5548 = vld [vmem:[%s59 + $0x270] sm:$0xff]
  %v5549 = vld [vmem:[%s59 + $0x278] sm:$0xff]
  %v5550 = vld [vmem:[%s59 + $0x280] sm:$0xff]
  %v5551 = vld [vmem:[%s59 + $0x288] sm:$0xff]
  %v5552 = vld [vmem:[%s59 + $0x290] sm:$0xff]
  %v5553 = vld [vmem:[%s59 + $0x298] sm:$0xff]
  %v5554 = vld [vmem:[%s59 + $0x2a0] sm:$0xff]
  %v5555 = vld [vmem:[%s59 + $0x2a8] sm:$0xff]
  %v5556 = vld [vmem:[%s59 + $0x2b0] sm:$0xff]
  %v5557 = vld [vmem:[%s59 + $0x2b8] sm:$0xff]
  %v5558 = vld [vmem:[%s59 + $0x2c0] sm:$0xff]
  %v5559 = vld [vmem:[%s59 + $0x2c8] sm:$0xff]
  %v5560 = vld [vmem:[%s59 + $0x2d0] sm:$0xff]
  %v5561 = vld [vmem:[%s59 + $0x2d8] sm:$0xff]
  %v5562 = vld [vmem:[%s59 + $0x2e0] sm:$0xff]
  %v5563 = vld [vmem:[%s59 + $0x2e8] sm:$0xff]
  %v5564 = vld [vmem:[%s59 + $0x2f0] sm:$0xff]
  %v5565 = vld [vmem:[%s59 + $0x2f8] sm:$0xff]
  %v5566 = vld [vmem:[%s59 + $0x300] sm:$0xff]
  %v5567 = vld [vmem:[%s59 + $0x308] sm:$0xff]
  %v5568 = vld [vmem:[%s59 + $0x310] sm:$0xff]
  %v5569 = vld [vmem:[%s59 + $0x318] sm:$0xff]
  %v5570 = vld [vmem:[%s59 + $0x320] sm:$0xff]
  %v5571 = vld [vmem:[%s59 + $0x328] sm:$0xff]
  %v5572 = vld [vmem:[%s59 + $0x330] sm:$0xff]
  %v5573 = vld [vmem:[%s59 + $0x338] sm:$0xff]
  %v5574 = vld [vmem:[%s59 + $0x340] sm:$0xff]
  %v5575 = vld [vmem:[%s59 + $0x348] sm:$0xff]
  %v5576 = vld [vmem:[%s59 + $0x350] sm:$0xff]
  %v5577 = vld [vmem:[%s59 + $0x358] sm:$0xff]
  %v5578 = vld [vmem:[%s59 + $0x360] sm:$0xff]
  %v5579 = vld [vmem:[%s59 + $0x368] sm:$0xff]
  %v5580 = vld [vmem:[%s59 + $0x370] sm:$0xff]
  %v5581 = vld [vmem:[%s59 + $0x378] sm:$0xff]
  %v5582 = vld [vmem:[%s59 + $0x380] sm:$0xff]
  %v5583 = vld [vmem:[%s59 + $0x388] sm:$0xff]
  %v5584 = vld [vmem:[%s59 + $0x390] sm:$0xff]
  %v5585 = vld [vmem:[%s59 + $0x398] sm:$0xff]
  %v5586 = vld [vmem:[%s59 + $0x3a0] sm:$0xff]
  %v5587 = vld [vmem:[%s59 + $0x3a8] sm:$0xff]
  %v5588 = vld [vmem:[%s59 + $0x3b0] sm:$0xff]
  %v5589 = vld [vmem:[%s59 + $0x3b8] sm:$0xff]
  %v5590 = vld [vmem:[%s59 + $0x3c0] sm:$0xff]
  %v5591 = vld [vmem:[%s59 + $0x3c8] sm:$0xff]
  %v5592 = vld [vmem:[%s59 + $0x3d0] sm:$0xff]
  %v5593 = vld [vmem:[%s59 + $0x3d8] sm:$0xff]
  %v5594 = vld [vmem:[%s59 + $0x3e0] sm:$0xff]
  %v5595 = vld [vmem:[%s59 + $0x3e8] sm:$0xff]
  %v5596 = vld [vmem:[%s59 + $0x3f0] sm:$0xff]
  %v5597 = vld [vmem:[%s59 + $0x3f8] sm:$0xff]
  %v5598 = vld [vmem:[%s59 + $0x400] sm:$0xff]
  %v5599 = vld [vmem:[%s59 + $0x408] sm:$0xff]
  %v5600 = vld [vmem:[%s59 + $0x410] sm:$0xff]
  %v5601 = vld [vmem:[%s59 + $0x418] sm:$0xff]
  %v5602 = vld [vmem:[%s59 + $0x420] sm:$0xff]
  %v5603 = vld [vmem:[%s59 + $0x428] sm:$0xff]
  %v5604 = vld [vmem:[%s59 + $0x430] sm:$0xff]
  %v5605 = vld [vmem:[%s59 + $0x438] sm:$0xff]
  %v5606 = vld [vmem:[%s59 + $0x440] sm:$0xff]
  %v5607 = vld [vmem:[%s59 + $0x448] sm:$0xff]
  %v5608 = vld [vmem:[%s59 + $0x450] sm:$0xff]
  %v5609 = vld [vmem:[%s59 + $0x458] sm:$0xff]
  %v5610 = vld [vmem:[%s59 + $0x460] sm:$0xff]
  %v5611 = vld [vmem:[%s59 + $0x468] sm:$0xff]
  %v5612 = vld [vmem:[%s59 + $0x470] sm:$0xff]
  %v5613 = vld [vmem:[%s59 + $0x478] sm:$0xff]
  %v5614 = vld [vmem:[%s59 + $0x480] sm:$0xff]
  %v5615 = vld [vmem:[%s59 + $0x488] sm:$0xff]
  %v5616 = vld [vmem:[%s59 + $0x490] sm:$0xff]
  %v5617 = vld [vmem:[%s59 + $0x498] sm:$0xff]
  %v5618 = vld [vmem:[%s59 + $0x4a0] sm:$0xff]
  %v5619 = vld [vmem:[%s59 + $0x4a8] sm:$0xff]
  %v5620 = vld [vmem:[%s59 + $0x4b0] sm:$0xff]
  %v5621 = vld [vmem:[%s59 + $0x4b8] sm:$0xff]
  %v5622 = vld [vmem:[%s59 + $0x4c0] sm:$0xff]
  %v5623 = vld [vmem:[%s59 + $0x4c8] sm:$0xff]
  %v5624 = vld [vmem:[%s59 + $0x4d0] sm:$0xff]
  %v5625 = vld [vmem:[%s59 + $0x4d8] sm:$0xff]
  %v5626 = vld [vmem:[%s59 + $0x4e0] sm:$0xff]
  %v5627 = vld [vmem:[%s59 + $0x4e8] sm:$0xff]
  %v5628 = vld [vmem:[%s59 + $0x4f0] sm:$0xff]
  %v5629 = vld [vmem:[%s59 + $0x4f8] sm:$0xff]
  %v5630 = vld [vmem:[%s59 + $0x500] sm:$0xff]
  %v5631 = vld [vmem:[%s59 + $0x508] sm:$0xff]
  %v5632 = vld [vmem:[%s59 + $0x510] sm:$0xff]
  %v5633 = vld [vmem:[%s59 + $0x518] sm:$0xff]
  %v5634 = vld [vmem:[%s59 + $0x520] sm:$0xff]
  %v5635 = vld [vmem:[%s59 + $0x528] sm:$0xff]
  %v5636 = vld [vmem:[%s59 + $0x530] sm:$0xff]
  %v5637 = vld [vmem:[%s59 + $0x538] sm:$0xff]
  %v5638 = vld [vmem:[%s59 + $0x540] sm:$0xff]
  %v5639 = vld [vmem:[%s59 + $0x548] sm:$0xff]
  %v5640 = vld [vmem:[%s59 + $0x550] sm:$0xff]
  %v5641 = vld [vmem:[%s59 + $0x558] sm:$0xff]
  %v5642 = vld [vmem:[%s59 + $0x560] sm:$0xff]
  %v5643 = vld [vmem:[%s59 + $0x568] sm:$0xff]
  %v5644 = vld [vmem:[%s59 + $0x570] sm:$0xff]
  %v5645 = vld [vmem:[%s59 + $0x578] sm:$0xff]
  %v5646 = vld [vmem:[%s59 + $0x580] sm:$0xff]
  %v5647 = vld [vmem:[%s59 + $0x588] sm:$0xff]
  %v5648 = vld [vmem:[%s59 + $0x590] sm:$0xff]
  %v5649 = vld [vmem:[%s59 + $0x598] sm:$0xff]
  %v5650 = vld [vmem:[%s59 + $0x5a0] sm:$0xff]
  %v5651 = vld [vmem:[%s59 + $0x5a8] sm:$0xff]
  %v5652 = vld [vmem:[%s59 + $0x5b0] sm:$0xff]
  %v5653 = vld [vmem:[%s59 + $0x5b8] sm:$0xff]
  %v5654 = vld [vmem:[%s59 + $0x5c0] sm:$0xff]
  %v5655 = vld [vmem:[%s59 + $0x5c8] sm:$0xff]
  %v5656 = vld [vmem:[%s59 + $0x5d0] sm:$0xff]
  %v5657 = vld [vmem:[%s59 + $0x5d8] sm:$0xff]
  %v5658 = vld [vmem:[%s59 + $0x5e0] sm:$0xff]
  %v5659 = vld [vmem:[%s59 + $0x5e8] sm:$0xff]
  %v5660 = vld [vmem:[%s59 + $0x5f0] sm:$0xff]
  %v5661 = vld [vmem:[%s59 + $0x5f8] sm:$0xff]
  %v5662 = vld [vmem:[%s59 + $0x600] sm:$0xff]
  %v5663 = vld [vmem:[%s59 + $0x608] sm:$0xff]
  %v5664 = vld [vmem:[%s59 + $0x610] sm:$0xff]
  %v5665 = vld [vmem:[%s59 + $0x618] sm:$0xff]
  %v5666 = vld [vmem:[%s59 + $0x620] sm:$0xff]
  %v5667 = vld [vmem:[%s59 + $0x628] sm:$0xff]
  %v5668 = vld [vmem:[%s59 + $0x630] sm:$0xff]
  %v5669 = vld [vmem:[%s59 + $0x638] sm:$0xff]
  %v5670 = vld [vmem:[%s59 + $0x640] sm:$0xff]
  %v5671 = vld [vmem:[%s59 + $0x648] sm:$0xff]
  %v5672 = vld [vmem:[%s59 + $0x650] sm:$0xff]
  %v5673 = vld [vmem:[%s59 + $0x658] sm:$0xff]
  %v5674 = vld [vmem:[%s59 + $0x660] sm:$0xff]
  %v5675 = vld [vmem:[%s59 + $0x668] sm:$0xff]
  %v5676 = vld [vmem:[%s59 + $0x670] sm:$0xff]
  %v5677 = vld [vmem:[%s59 + $0x678] sm:$0xff]
  %v5678 = vld [vmem:[%s59 + $0x680] sm:$0xff]
  %v5679 = vld [vmem:[%s59 + $0x688] sm:$0xff]
  %v5680 = vld [vmem:[%s59 + $0x690] sm:$0xff]
  %v5681 = vld [vmem:[%s59 + $0x698] sm:$0xff]
  %v5682 = vld [vmem:[%s59 + $0x6a0] sm:$0xff]
  %v5683 = vld [vmem:[%s59 + $0x6a8] sm:$0xff]
  %v5684 = vld [vmem:[%s59 + $0x6b0] sm:$0xff]
  %v5685 = vld [vmem:[%s59 + $0x6b8] sm:$0xff]
  %v5686 = vld [vmem:[%s59 + $0x6c0] sm:$0xff]
  %v5687 = vld [vmem:[%s59 + $0x6c8] sm:$0xff]
  %v5688 = vld [vmem:[%s59 + $0x6d0] sm:$0xff]
  %v5689 = vld [vmem:[%s59 + $0x6d8] sm:$0xff]
  %v5690 = vld [vmem:[%s59 + $0x6e0] sm:$0xff]
  %v5691 = vld [vmem:[%s59 + $0x6e8] sm:$0xff]
  %v5692 = vld [vmem:[%s59 + $0x6f0] sm:$0xff]
  %v5693 = vld [vmem:[%s59 + $0x6f8] sm:$0xff]
  %v5694 = vld [vmem:[%s59 + $0x700] sm:$0xff]
  %v5695 = vld [vmem:[%s59 + $0x708] sm:$0xff]
  %v5696 = vld [vmem:[%s59 + $0x710] sm:$0xff]
  %v5697 = vld [vmem:[%s59 + $0x718] sm:$0xff]
  %v5698 = vld [vmem:[%s59 + $0x720] sm:$0xff]
  %v5699 = vld [vmem:[%s59 + $0x728] sm:$0xff]
  %v5700 = vld [vmem:[%s59 + $0x730] sm:$0xff]
  %v5701 = vld [vmem:[%s59 + $0x738] sm:$0xff]
  %v5702 = vld [vmem:[%s59 + $0x740] sm:$0xff]
  %v5703 = vld [vmem:[%s59 + $0x748] sm:$0xff]
  %v5704 = vld [vmem:[%s59 + $0x750] sm:$0xff]
  %v5705 = vld [vmem:[%s59 + $0x758] sm:$0xff]
  %v5706 = vld [vmem:[%s59 + $0x760] sm:$0xff]
  %v5707 = vld [vmem:[%s59 + $0x768] sm:$0xff]
  %v5708 = vld [vmem:[%s59 + $0x770] sm:$0xff]
  %v5709 = vld [vmem:[%s59 + $0x778] sm:$0xff]
  %v5710 = vld [vmem:[%s59 + $0x780] sm:$0xff]
  %v5711 = vld [vmem:[%s59 + $0x788] sm:$0xff]
  %v5712 = vld [vmem:[%s59 + $0x790] sm:$0xff]
  %v5713 = vld [vmem:[%s59 + $0x798] sm:$0xff]
  %v5714 = vld [vmem:[%s59 + $0x7a0] sm:$0xff]
  %v5715 = vld [vmem:[%s59 + $0x7a8] sm:$0xff]
  %v5716 = vld [vmem:[%s59 + $0x7b0] sm:$0xff]
  %v5717 = vld [vmem:[%s59 + $0x7b8] sm:$0xff]
  %v5718 = vld [vmem:[%s59 + $0x7c0] sm:$0xff]
  %v5719 = vld [vmem:[%s59 + $0x7c8] sm:$0xff]
  %v5720 = vld [vmem:[%s59 + $0x7d0] sm:$0xff]
  %v5721 = vld [vmem:[%s59 + $0x7d8] sm:$0xff]
  %v5722 = vld [vmem:[%s59 + $0x7e0] sm:$0xff]
  %v5723 = vld [vmem:[%s59 + $0x7e8] sm:$0xff]
  %v5724 = vld [vmem:[%s59 + $0x7f0] sm:$0xff]
  %v5725 = vld [vmem:[%s59 + $0x7f8] sm:$0xff]
  %v5726 = vld [vmem:[%s59 + $0x800] sm:$0xff]
  %v5727 = vld [vmem:[%s59 + $0x808] sm:$0xff]
  %v5728 = vld [vmem:[%s59 + $0x810] sm:$0xff]
  %v5729 = vld [vmem:[%s59 + $0x818] sm:$0xff]
  %v5730 = vld [vmem:[%s59 + $0x820] sm:$0xff]
  %v5731 = vld [vmem:[%s59 + $0x828] sm:$0xff]
  %v5732 = vld [vmem:[%s59 + $0x830] sm:$0xff]
  %v5733 = vld [vmem:[%s59 + $0x838] sm:$0xff]
  %v5734 = vld [vmem:[%s59 + $0x840] sm:$0xff]
  %v5735 = vld [vmem:[%s59 + $0x848] sm:$0xff]
  %v5736 = vld [vmem:[%s59 + $0x850] sm:$0xff]
  %v5737 = vld [vmem:[%s59 + $0x858] sm:$0xff]
  %v5738 = vld [vmem:[%s59 + $0x860] sm:$0xff]
  %v5739 = vld [vmem:[%s59 + $0x868] sm:$0xff]
  %v5740 = vld [vmem:[%s59 + $0x870] sm:$0xff]
  %v5741 = vld [vmem:[%s59 + $0x878] sm:$0xff]
  %v5742 = vld [vmem:[%s59 + $0x880] sm:$0xff]
  %v5743 = vld [vmem:[%s59 + $0x888] sm:$0xff]
  %v5744 = vld [vmem:[%s59 + $0x890] sm:$0xff]
  %v5745 = vld [vmem:[%s59 + $0x898] sm:$0xff]
  %v5746 = vld [vmem:[%s59 + $0x8a0] sm:$0xff]
  %v5747 = vld [vmem:[%s59 + $0x8a8] sm:$0xff]
  %v5748 = vld [vmem:[%s59 + $0x8b0] sm:$0xff]
  %v5749 = vld [vmem:[%s59 + $0x8b8] sm:$0xff]
  %v5750 = vld [vmem:[%s59 + $0x8c0] sm:$0xff]
  %v5751 = vld [vmem:[%s59 + $0x8c8] sm:$0xff]
  %v5752 = vld [vmem:[%s59 + $0x8d0] sm:$0xff]
  %v5753 = vld [vmem:[%s59 + $0x8d8] sm:$0xff]
  %v5754 = vld [vmem:[%s59 + $0x8e0] sm:$0xff]
  %v5755 = vld [vmem:[%s59 + $0x8e8] sm:$0xff]
  %v5756 = vld [vmem:[%s59 + $0x8f0] sm:$0xff]
  %v5757 = vld [vmem:[%s59 + $0x8f8] sm:$0xff]
  %v6046 = vunpack.c.l.b16 %v5470
  %v6047 = vunpack.c.h.b16 %v5470
  %v6048 = vunpack.c.l.b16 %v5471
  %v6049 = vunpack.c.h.b16 %v5471
  %v6050 = vunpack.c.l.b16 %v5472
  %v6051 = vunpack.c.h.b16 %v5472
  %v6052 = vunpack.c.l.b16 %v5473
  %v6053 = vunpack.c.h.b16 %v5473
  %v6054 = vunpack.c.l.b16 %v5474
  %v6055 = vunpack.c.h.b16 %v5474
  %v6056 = vunpack.c.l.b16 %v5475
  %v6057 = vunpack.c.h.b16 %v5475
  %v6058 = vunpack.c.l.b16 %v5476
  %v6059 = vunpack.c.h.b16 %v5476
  %v6060 = vunpack.c.l.b16 %v5477
  %v6061 = vunpack.c.h.b16 %v5477
  %v6062 = vunpack.c.l.b16 %v5478
  %v6063 = vunpack.c.h.b16 %v5478
  %v6064 = vunpack.c.l.b16 %v5479
  %v6065 = vunpack.c.h.b16 %v5479
  %v6066 = vunpack.c.l.b16 %v5480
  %v6067 = vunpack.c.h.b16 %v5480
  %v6068 = vunpack.c.l.b16 %v5481
  %v6069 = vunpack.c.h.b16 %v5481
  %v6070 = vunpack.c.l.b16 %v5482
  %v6071 = vunpack.c.h.b16 %v5482
  %v6072 = vunpack.c.l.b16 %v5483
  %v6073 = vunpack.c.h.b16 %v5483
  %v6074 = vunpack.c.l.b16 %v5484
  %v6075 = vunpack.c.h.b16 %v5484
  %v6076 = vunpack.c.l.b16 %v5485
  %v6077 = vunpack.c.h.b16 %v5485
  %v6078 = vunpack.c.l.b16 %v5486
  %v6079 = vunpack.c.h.b16 %v5486
  %v6080 = vunpack.c.l.b16 %v5487
  %v6081 = vunpack.c.h.b16 %v5487
  %v6082 = vunpack.c.l.b16 %v5488
  %v6083 = vunpack.c.h.b16 %v5488
  %v6084 = vunpack.c.l.b16 %v5489
  %v6085 = vunpack.c.h.b16 %v5489
  %v6086 = vunpack.c.l.b16 %v5490
  %v6087 = vunpack.c.h.b16 %v5490
  %v6088 = vunpack.c.l.b16 %v5491
  %v6089 = vunpack.c.h.b16 %v5491
  %v6090 = vunpack.c.l.b16 %v5492
  %v6091 = vunpack.c.h.b16 %v5492
  %v6092 = vunpack.c.l.b16 %v5493
  %v6093 = vunpack.c.h.b16 %v5493
  %v6094 = vunpack.c.l.b16 %v5494
  %v6095 = vunpack.c.h.b16 %v5494
  %v6096 = vunpack.c.l.b16 %v5495
  %v6097 = vunpack.c.h.b16 %v5495
  %v6098 = vunpack.c.l.b16 %v5496
  %v6099 = vunpack.c.h.b16 %v5496
  %v6100 = vunpack.c.l.b16 %v5497
  %v6101 = vunpack.c.h.b16 %v5497
  %v6102 = vunpack.c.l.b16 %v5498
  %v6103 = vunpack.c.h.b16 %v5498
  %v6104 = vunpack.c.l.b16 %v5499
  %v6105 = vunpack.c.h.b16 %v5499
  %v6106 = vunpack.c.l.b16 %v5500
  %v6107 = vunpack.c.h.b16 %v5500
  %v6108 = vunpack.c.l.b16 %v5501
  %v6109 = vunpack.c.h.b16 %v5501
  %v6110 = vunpack.c.l.b16 %v5502
  %v6111 = vunpack.c.h.b16 %v5502
  %v6112 = vunpack.c.l.b16 %v5503
  %v6113 = vunpack.c.h.b16 %v5503
  %v6114 = vunpack.c.l.b16 %v5504
  %v6115 = vunpack.c.h.b16 %v5504
  %v6116 = vunpack.c.l.b16 %v5505
  %v6117 = vunpack.c.h.b16 %v5505
  %v6118 = vunpack.c.l.b16 %v5506
  %v6119 = vunpack.c.h.b16 %v5506
  %v6120 = vunpack.c.l.b16 %v5507
  %v6121 = vunpack.c.h.b16 %v5507
  %v6122 = vunpack.c.l.b16 %v5508
  %v6123 = vunpack.c.h.b16 %v5508
  %v6124 = vunpack.c.l.b16 %v5509
  %v6125 = vunpack.c.h.b16 %v5509
  %v6126 = vunpack.c.l.b16 %v5510
  %v6127 = vunpack.c.h.b16 %v5510
  %v6128 = vunpack.c.l.b16 %v5511
  %v6129 = vunpack.c.h.b16 %v5511
  %v6130 = vunpack.c.l.b16 %v5512
  %v6131 = vunpack.c.h.b16 %v5512
  %v6132 = vunpack.c.l.b16 %v5513
  %v6133 = vunpack.c.h.b16 %v5513
  %v6134 = vunpack.c.l.b16 %v5514
  %v6135 = vunpack.c.h.b16 %v5514
  %v6136 = vunpack.c.l.b16 %v5515
  %v6137 = vunpack.c.h.b16 %v5515
  %v6138 = vunpack.c.l.b16 %v5516
  %v6139 = vunpack.c.h.b16 %v5516
  %v6140 = vunpack.c.l.b16 %v5517
  %v6141 = vunpack.c.h.b16 %v5517
  %v6142 = vunpack.c.l.b16 %v5518
  %v6143 = vunpack.c.h.b16 %v5518
  %v6144 = vunpack.c.l.b16 %v5519
  %v6145 = vunpack.c.h.b16 %v5519
  %v6146 = vunpack.c.l.b16 %v5520
  %v6147 = vunpack.c.h.b16 %v5520
  %v6148 = vunpack.c.l.b16 %v5521
  %v6149 = vunpack.c.h.b16 %v5521
  %v6150 = vunpack.c.l.b16 %v5522
  %v6151 = vunpack.c.h.b16 %v5522
  %v6152 = vunpack.c.l.b16 %v5523
  %v6153 = vunpack.c.h.b16 %v5523
  %v6154 = vunpack.c.l.b16 %v5524
  %v6155 = vunpack.c.h.b16 %v5524
  %v6156 = vunpack.c.l.b16 %v5525
  %v6157 = vunpack.c.h.b16 %v5525
  %v6158 = vunpack.c.l.b16 %v5526
  %v6159 = vunpack.c.h.b16 %v5526
  %v6160 = vunpack.c.l.b16 %v5527
  %v6161 = vunpack.c.h.b16 %v5527
  %v6162 = vunpack.c.l.b16 %v5528
  %v6163 = vunpack.c.h.b16 %v5528
  %v6164 = vunpack.c.l.b16 %v5529
  %v6165 = vunpack.c.h.b16 %v5529
  %v6166 = vunpack.c.l.b16 %v5530
  %v6167 = vunpack.c.h.b16 %v5530
  %v6168 = vunpack.c.l.b16 %v5531
  %v6169 = vunpack.c.h.b16 %v5531
  %v6170 = vunpack.c.l.b16 %v5532
  %v6171 = vunpack.c.h.b16 %v5532
  %v6172 = vunpack.c.l.b16 %v5533
  %v6173 = vunpack.c.h.b16 %v5533
  %v6174 = vunpack.c.l.b16 %v5534
  %v6175 = vunpack.c.h.b16 %v5534
  %v6176 = vunpack.c.l.b16 %v5535
  %v6177 = vunpack.c.h.b16 %v5535
  %v6178 = vunpack.c.l.b16 %v5536
  %v6179 = vunpack.c.h.b16 %v5536
  %v6180 = vunpack.c.l.b16 %v5537
  %v6181 = vunpack.c.h.b16 %v5537
  %v6182 = vunpack.c.l.b16 %v5538
  %v6183 = vunpack.c.h.b16 %v5538
  %v6184 = vunpack.c.l.b16 %v5539
  %v6185 = vunpack.c.h.b16 %v5539
  %v6186 = vunpack.c.l.b16 %v5540
  %v6187 = vunpack.c.h.b16 %v5540
  %v6188 = vunpack.c.l.b16 %v5541
  %v6189 = vunpack.c.h.b16 %v5541
  %v6190 = vunpack.c.l.b16 %v5542
  %v6191 = vunpack.c.h.b16 %v5542
  %v6192 = vunpack.c.l.b16 %v5543
  %v6193 = vunpack.c.h.b16 %v5543
  %v6194 = vunpack.c.l.b16 %v5544
  %v6195 = vunpack.c.h.b16 %v5544
  %v6196 = vunpack.c.l.b16 %v5545
  %v6197 = vunpack.c.h.b16 %v5545
  %v6198 = vunpack.c.l.b16 %v5546
  %v6199 = vunpack.c.h.b16 %v5546
  %v6200 = vunpack.c.l.b16 %v5547
  %v6201 = vunpack.c.h.b16 %v5547
  %v6202 = vunpack.c.l.b16 %v5548
  %v6203 = vunpack.c.h.b16 %v5548
  %v6204 = vunpack.c.l.b16 %v5549
  %v6205 = vunpack.c.h.b16 %v5549
  %v6206 = vunpack.c.l.b16 %v5550
  %v6207 = vunpack.c.h.b16 %v5550
  %v6208 = vunpack.c.l.b16 %v5551
  %v6209 = vunpack.c.h.b16 %v5551
  %v6210 = vunpack.c.l.b16 %v5552
  %v6211 = vunpack.c.h.b16 %v5552
  %v6212 = vunpack.c.l.b16 %v5553
  %v6213 = vunpack.c.h.b16 %v5553
  %v6214 = vunpack.c.l.b16 %v5554
  %v6215 = vunpack.c.h.b16 %v5554
  %v6216 = vunpack.c.l.b16 %v5555
  %v6217 = vunpack.c.h.b16 %v5555
  %v6218 = vunpack.c.l.b16 %v5556
  %v6219 = vunpack.c.h.b16 %v5556
  %v6220 = vunpack.c.l.b16 %v5557
  %v6221 = vunpack.c.h.b16 %v5557
  %v6222 = vunpack.c.l.b16 %v5558
  %v6223 = vunpack.c.h.b16 %v5558
  %v6224 = vunpack.c.l.b16 %v5559
  %v6225 = vunpack.c.h.b16 %v5559
  %v6226 = vunpack.c.l.b16 %v5560
  %v6227 = vunpack.c.h.b16 %v5560
  %v6228 = vunpack.c.l.b16 %v5561
  %v6229 = vunpack.c.h.b16 %v5561
  %v6230 = vunpack.c.l.b16 %v5562
  %v6231 = vunpack.c.h.b16 %v5562
  %v6232 = vunpack.c.l.b16 %v5563
  %v6233 = vunpack.c.h.b16 %v5563
  %v6234 = vunpack.c.l.b16 %v5564
  %v6235 = vunpack.c.h.b16 %v5564
  %v6236 = vunpack.c.l.b16 %v5565
  %v6237 = vunpack.c.h.b16 %v5565
  %v6238 = vunpack.c.l.b16 %v5566
  %v6239 = vunpack.c.h.b16 %v5566
  %v6240 = vunpack.c.l.b16 %v5567
  %v6241 = vunpack.c.h.b16 %v5567
  %v6242 = vunpack.c.l.b16 %v5568
  %v6243 = vunpack.c.h.b16 %v5568
  %v6244 = vunpack.c.l.b16 %v5569
  %v6245 = vunpack.c.h.b16 %v5569
  %v6246 = vunpack.c.l.b16 %v5570
  %v6247 = vunpack.c.h.b16 %v5570
  %v6248 = vunpack.c.l.b16 %v5571
  %v6249 = vunpack.c.h.b16 %v5571
  %v6250 = vunpack.c.l.b16 %v5572
  %v6251 = vunpack.c.h.b16 %v5572
  %v6252 = vunpack.c.l.b16 %v5573
  %v6253 = vunpack.c.h.b16 %v5573
  %v6254 = vunpack.c.l.b16 %v5574
  %v6255 = vunpack.c.h.b16 %v5574
  %v6256 = vunpack.c.l.b16 %v5575
  %v6257 = vunpack.c.h.b16 %v5575
  %v6258 = vunpack.c.l.b16 %v5576
  %v6259 = vunpack.c.h.b16 %v5576
  %v6260 = vunpack.c.l.b16 %v5577
  %v6261 = vunpack.c.h.b16 %v5577
  %v6262 = vunpack.c.l.b16 %v5578
  %v6263 = vunpack.c.h.b16 %v5578
  %v6264 = vunpack.c.l.b16 %v5579
  %v6265 = vunpack.c.h.b16 %v5579
  %v6266 = vunpack.c.l.b16 %v5580
  %v6267 = vunpack.c.h.b16 %v5580
  %v6268 = vunpack.c.l.b16 %v5581
  %v6269 = vunpack.c.h.b16 %v5581
  %v6270 = vunpack.c.l.b16 %v5582
  %v6271 = vunpack.c.h.b16 %v5582
  %v6272 = vunpack.c.l.b16 %v5583
  %v6273 = vunpack.c.h.b16 %v5583
  %v6274 = vunpack.c.l.b16 %v5584
  %v6275 = vunpack.c.h.b16 %v5584
  %v6276 = vunpack.c.l.b16 %v5585
  %v6277 = vunpack.c.h.b16 %v5585
  %v6278 = vunpack.c.l.b16 %v5586
  %v6279 = vunpack.c.h.b16 %v5586
  %v6280 = vunpack.c.l.b16 %v5587
  %v6281 = vunpack.c.h.b16 %v5587
  %v6282 = vunpack.c.l.b16 %v5588
  %v6283 = vunpack.c.h.b16 %v5588
  %v6284 = vunpack.c.l.b16 %v5589
  %v6285 = vunpack.c.h.b16 %v5589
  %v6286 = vunpack.c.l.b16 %v5590
  %v6287 = vunpack.c.h.b16 %v5590
  %v6288 = vunpack.c.l.b16 %v5591
  %v6289 = vunpack.c.h.b16 %v5591
  %v6290 = vunpack.c.l.b16 %v5592
  %v6291 = vunpack.c.h.b16 %v5592
  %v6292 = vunpack.c.l.b16 %v5593
  %v6293 = vunpack.c.h.b16 %v5593
  %v6294 = vunpack.c.l.b16 %v5594
  %v6295 = vunpack.c.h.b16 %v5594
  %v6296 = vunpack.c.l.b16 %v5595
  %v6297 = vunpack.c.h.b16 %v5595
  %v6298 = vunpack.c.l.b16 %v5596
  %v6299 = vunpack.c.h.b16 %v5596
  %v6300 = vunpack.c.l.b16 %v5597
  %v6301 = vunpack.c.h.b16 %v5597
  %v6302 = vunpack.c.l.b16 %v5598
  %v6303 = vunpack.c.h.b16 %v5598
  %v6304 = vunpack.c.l.b16 %v5599
  %v6305 = vunpack.c.h.b16 %v5599
  %v6306 = vunpack.c.l.b16 %v5600
  %v6307 = vunpack.c.h.b16 %v5600
  %v6308 = vunpack.c.l.b16 %v5601
  %v6309 = vunpack.c.h.b16 %v5601
  %v6310 = vunpack.c.l.b16 %v5602
  %v6311 = vunpack.c.h.b16 %v5602
  %v6312 = vunpack.c.l.b16 %v5603
  %v6313 = vunpack.c.h.b16 %v5603
  %v6314 = vunpack.c.l.b16 %v5604
  %v6315 = vunpack.c.h.b16 %v5604
  %v6316 = vunpack.c.l.b16 %v5605
  %v6317 = vunpack.c.h.b16 %v5605
  %v6318 = vunpack.c.l.b16 %v5606
  %v6319 = vunpack.c.h.b16 %v5606
  %v6320 = vunpack.c.l.b16 %v5607
  %v6321 = vunpack.c.h.b16 %v5607
  %v6322 = vunpack.c.l.b16 %v5608
  %v6323 = vunpack.c.h.b16 %v5608
  %v6324 = vunpack.c.l.b16 %v5609
  %v6325 = vunpack.c.h.b16 %v5609
  %v6326 = vunpack.c.l.b16 %v5610
  %v6327 = vunpack.c.h.b16 %v5610
  %v6328 = vunpack.c.l.b16 %v5611
  %v6329 = vunpack.c.h.b16 %v5611
  %v6330 = vunpack.c.l.b16 %v5612
  %v6331 = vunpack.c.h.b16 %v5612
  %v6332 = vunpack.c.l.b16 %v5613
  %v6333 = vunpack.c.h.b16 %v5613
  %v6334 = vunpack.c.l.b16 %v5614
  %v6335 = vunpack.c.h.b16 %v5614
  %v6336 = vunpack.c.l.b16 %v5615
  %v6337 = vunpack.c.h.b16 %v5615
  %v6338 = vunpack.c.l.b16 %v5616
  %v6339 = vunpack.c.h.b16 %v5616
  %v6340 = vunpack.c.l.b16 %v5617
  %v6341 = vunpack.c.h.b16 %v5617
  %v6342 = vunpack.c.l.b16 %v5618
  %v6343 = vunpack.c.h.b16 %v5618
  %v6344 = vunpack.c.l.b16 %v5619
  %v6345 = vunpack.c.h.b16 %v5619
  %v6346 = vunpack.c.l.b16 %v5620
  %v6347 = vunpack.c.h.b16 %v5620
  %v6348 = vunpack.c.l.b16 %v5621
  %v6349 = vunpack.c.h.b16 %v5621
  %v6350 = vunpack.c.l.b16 %v5622
  %v6351 = vunpack.c.h.b16 %v5622
  %v6352 = vunpack.c.l.b16 %v5623
  %v6353 = vunpack.c.h.b16 %v5623
  %v6354 = vunpack.c.l.b16 %v5624
  %v6355 = vunpack.c.h.b16 %v5624
  %v6356 = vunpack.c.l.b16 %v5625
  %v6357 = vunpack.c.h.b16 %v5625
  %v6358 = vunpack.c.l.b16 %v5626
  %v6359 = vunpack.c.h.b16 %v5626
  %v6360 = vunpack.c.l.b16 %v5627
  %v6361 = vunpack.c.h.b16 %v5627
  %v6362 = vunpack.c.l.b16 %v5628
  %v6363 = vunpack.c.h.b16 %v5628
  %v6364 = vunpack.c.l.b16 %v5629
  %v6365 = vunpack.c.h.b16 %v5629
  %v6366 = vunpack.c.l.b16 %v5630
  %v6367 = vunpack.c.h.b16 %v5630
  %v6368 = vunpack.c.l.b16 %v5631
  %v6369 = vunpack.c.h.b16 %v5631
  %v6370 = vunpack.c.l.b16 %v5632
  %v6371 = vunpack.c.h.b16 %v5632
  %v6372 = vunpack.c.l.b16 %v5633
  %v6373 = vunpack.c.h.b16 %v5633
  %v6374 = vunpack.c.l.b16 %v5634
  %v6375 = vunpack.c.h.b16 %v5634
  %v6376 = vunpack.c.l.b16 %v5635
  %v6377 = vunpack.c.h.b16 %v5635
  %v6378 = vunpack.c.l.b16 %v5636
  %v6379 = vunpack.c.h.b16 %v5636
  %v6380 = vunpack.c.l.b16 %v5637
  %v6381 = vunpack.c.h.b16 %v5637
  %v6382 = vunpack.c.l.b16 %v5638
  %v6383 = vunpack.c.h.b16 %v5638
  %v6384 = vunpack.c.l.b16 %v5639
  %v6385 = vunpack.c.h.b16 %v5639
  %v6386 = vunpack.c.l.b16 %v5640
  %v6387 = vunpack.c.h.b16 %v5640
  %v6388 = vunpack.c.l.b16 %v5641
  %v6389 = vunpack.c.h.b16 %v5641
  %v6390 = vunpack.c.l.b16 %v5642
  %v6391 = vunpack.c.h.b16 %v5642
  %v6392 = vunpack.c.l.b16 %v5643
  %v6393 = vunpack.c.h.b16 %v5643
  %v6394 = vunpack.c.l.b16 %v5644
  %v6395 = vunpack.c.h.b16 %v5644
  %v6396 = vunpack.c.l.b16 %v5645
  %v6397 = vunpack.c.h.b16 %v5645
  %v6398 = vunpack.c.l.b16 %v5646
  %v6399 = vunpack.c.h.b16 %v5646
  %v6400 = vunpack.c.l.b16 %v5647
  %v6401 = vunpack.c.h.b16 %v5647
  %v6402 = vunpack.c.l.b16 %v5648
  %v6403 = vunpack.c.h.b16 %v5648
  %v6404 = vunpack.c.l.b16 %v5649
  %v6405 = vunpack.c.h.b16 %v5649
  %v6406 = vunpack.c.l.b16 %v5650
  %v6407 = vunpack.c.h.b16 %v5650
  %v6408 = vunpack.c.l.b16 %v5651
  %v6409 = vunpack.c.h.b16 %v5651
  %v6410 = vunpack.c.l.b16 %v5652
  %v6411 = vunpack.c.h.b16 %v5652
  %v6412 = vunpack.c.l.b16 %v5653
  %v6413 = vunpack.c.h.b16 %v5653
  %v6414 = vunpack.c.l.b16 %v5654
  %v6415 = vunpack.c.h.b16 %v5654
  %v6416 = vunpack.c.l.b16 %v5655
  %v6417 = vunpack.c.h.b16 %v5655
  %v6418 = vunpack.c.l.b16 %v5656
  %v6419 = vunpack.c.h.b16 %v5656
  %v6420 = vunpack.c.l.b16 %v5657
  %v6421 = vunpack.c.h.b16 %v5657
  %v6422 = vunpack.c.l.b16 %v5658
  %v6423 = vunpack.c.h.b16 %v5658
  %v6424 = vunpack.c.l.b16 %v5659
  %v6425 = vunpack.c.h.b16 %v5659
  %v6426 = vunpack.c.l.b16 %v5660
  %v6427 = vunpack.c.h.b16 %v5660
  %v6428 = vunpack.c.l.b16 %v5661
  %v6429 = vunpack.c.h.b16 %v5661
  %v6430 = vunpack.c.l.b16 %v5662
  %v6431 = vunpack.c.h.b16 %v5662
  %v6432 = vunpack.c.l.b16 %v5663
  %v6433 = vunpack.c.h.b16 %v5663
  %v6434 = vunpack.c.l.b16 %v5664
  %v6435 = vunpack.c.h.b16 %v5664
  %v6436 = vunpack.c.l.b16 %v5665
  %v6437 = vunpack.c.h.b16 %v5665
  %v6438 = vunpack.c.l.b16 %v5666
  %v6439 = vunpack.c.h.b16 %v5666
  %v6440 = vunpack.c.l.b16 %v5667
  %v6441 = vunpack.c.h.b16 %v5667
  %v6442 = vunpack.c.l.b16 %v5668
  %v6443 = vunpack.c.h.b16 %v5668
  %v6444 = vunpack.c.l.b16 %v5669
  %v6445 = vunpack.c.h.b16 %v5669
  %v6446 = vunpack.c.l.b16 %v5670
  %v6447 = vunpack.c.h.b16 %v5670
  %v6448 = vunpack.c.l.b16 %v5671
  %v6449 = vunpack.c.h.b16 %v5671
  %v6450 = vunpack.c.l.b16 %v5672
  %v6451 = vunpack.c.h.b16 %v5672
  %v6452 = vunpack.c.l.b16 %v5673
  %v6453 = vunpack.c.h.b16 %v5673
  %v6454 = vunpack.c.l.b16 %v5674
  %v6455 = vunpack.c.h.b16 %v5674
  %v6456 = vunpack.c.l.b16 %v5675
  %v6457 = vunpack.c.h.b16 %v5675
  %v6458 = vunpack.c.l.b16 %v5676
  %v6459 = vunpack.c.h.b16 %v5676
  %v6460 = vunpack.c.l.b16 %v5677
  %v6461 = vunpack.c.h.b16 %v5677
  %v6462 = vunpack.c.l.b16 %v5678
  %v6463 = vunpack.c.h.b16 %v5678
  %v6464 = vunpack.c.l.b16 %v5679
  %v6465 = vunpack.c.h.b16 %v5679
  %v6466 = vunpack.c.l.b16 %v5680
  %v6467 = vunpack.c.h.b16 %v5680
  %v6468 = vunpack.c.l.b16 %v5681
  %v6469 = vunpack.c.h.b16 %v5681
  %v6470 = vunpack.c.l.b16 %v5682
  %v6471 = vunpack.c.h.b16 %v5682
  %v6472 = vunpack.c.l.b16 %v5683
  %v6473 = vunpack.c.h.b16 %v5683
  %v6474 = vunpack.c.l.b16 %v5684
  %v6475 = vunpack.c.h.b16 %v5684
  %v6476 = vunpack.c.l.b16 %v5685
  %v6477 = vunpack.c.h.b16 %v5685
  %v6478 = vunpack.c.l.b16 %v5686
  %v6479 = vunpack.c.h.b16 %v5686
  %v6480 = vunpack.c.l.b16 %v5687
  %v6481 = vunpack.c.h.b16 %v5687
  %v6482 = vunpack.c.l.b16 %v5688
  %v6483 = vunpack.c.h.b16 %v5688
  %v6484 = vunpack.c.l.b16 %v5689
  %v6485 = vunpack.c.h.b16 %v5689
  %v6486 = vunpack.c.l.b16 %v5690
  %v6487 = vunpack.c.h.b16 %v5690
  %v6488 = vunpack.c.l.b16 %v5691
  %v6489 = vunpack.c.h.b16 %v5691
  %v6490 = vunpack.c.l.b16 %v5692
  %v6491 = vunpack.c.h.b16 %v5692
  %v6492 = vunpack.c.l.b16 %v5693
  %v6493 = vunpack.c.h.b16 %v5693
  %v6494 = vunpack.c.l.b16 %v5694
  %v6495 = vunpack.c.h.b16 %v5694
  %v6496 = vunpack.c.l.b16 %v5695
  %v6497 = vunpack.c.h.b16 %v5695
  %v6498 = vunpack.c.l.b16 %v5696
  %v6499 = vunpack.c.h.b16 %v5696
  %v6500 = vunpack.c.l.b16 %v5697
  %v6501 = vunpack.c.h.b16 %v5697
  %v6502 = vunpack.c.l.b16 %v5698
  %v6503 = vunpack.c.h.b16 %v5698
  %v6504 = vunpack.c.l.b16 %v5699
  %v6505 = vunpack.c.h.b16 %v5699
  %v6506 = vunpack.c.l.b16 %v5700
  %v6507 = vunpack.c.h.b16 %v5700
  %v6508 = vunpack.c.l.b16 %v5701
  %v6509 = vunpack.c.h.b16 %v5701
  %v6510 = vunpack.c.l.b16 %v5702
  %v6511 = vunpack.c.h.b16 %v5702
  %v6512 = vunpack.c.l.b16 %v5703
  %v6513 = vunpack.c.h.b16 %v5703
  %v6514 = vunpack.c.l.b16 %v5704
  %v6515 = vunpack.c.h.b16 %v5704
  %v6516 = vunpack.c.l.b16 %v5705
  %v6517 = vunpack.c.h.b16 %v5705
  %v6518 = vunpack.c.l.b16 %v5706
  %v6519 = vunpack.c.h.b16 %v5706
  %v6520 = vunpack.c.l.b16 %v5707
  %v6521 = vunpack.c.h.b16 %v5707
  %v6522 = vunpack.c.l.b16 %v5708
  %v6523 = vunpack.c.h.b16 %v5708
  %v6524 = vunpack.c.l.b16 %v5709
  %v6525 = vunpack.c.h.b16 %v5709
  %v6526 = vunpack.c.l.b16 %v5710
  %v6527 = vunpack.c.h.b16 %v5710
  %v6528 = vunpack.c.l.b16 %v5711
  %v6529 = vunpack.c.h.b16 %v5711
  %v6530 = vunpack.c.l.b16 %v5712
  %v6531 = vunpack.c.h.b16 %v5712
  %v6532 = vunpack.c.l.b16 %v5713
  %v6533 = vunpack.c.h.b16 %v5713
  %v6534 = vunpack.c.l.b16 %v5714
  %v6535 = vunpack.c.h.b16 %v5714
  %v6536 = vunpack.c.l.b16 %v5715
  %v6537 = vunpack.c.h.b16 %v5715
  %v6538 = vunpack.c.l.b16 %v5716
  %v6539 = vunpack.c.h.b16 %v5716
  %v6540 = vunpack.c.l.b16 %v5717
  %v6541 = vunpack.c.h.b16 %v5717
  %v6542 = vunpack.c.l.b16 %v5718
  %v6543 = vunpack.c.h.b16 %v5718
  %v6544 = vunpack.c.l.b16 %v5719
  %v6545 = vunpack.c.h.b16 %v5719
  %v6546 = vunpack.c.l.b16 %v5720
  %v6547 = vunpack.c.h.b16 %v5720
  %v6548 = vunpack.c.l.b16 %v5721
  %v6549 = vunpack.c.h.b16 %v5721
  %v6550 = vunpack.c.l.b16 %v5722
  %v6551 = vunpack.c.h.b16 %v5722
  %v6552 = vunpack.c.l.b16 %v5723
  %v6553 = vunpack.c.h.b16 %v5723
  %v6554 = vunpack.c.l.b16 %v5724
  %v6555 = vunpack.c.h.b16 %v5724
  %v6556 = vunpack.c.l.b16 %v5725
  %v6557 = vunpack.c.h.b16 %v5725
  %v6558 = vunpack.c.l.b16 %v5726
  %v6559 = vunpack.c.h.b16 %v5726
  %v6560 = vunpack.c.l.b16 %v5727
  %v6561 = vunpack.c.h.b16 %v5727
  %v6562 = vunpack.c.l.b16 %v5728
  %v6563 = vunpack.c.h.b16 %v5728
  %v6564 = vunpack.c.l.b16 %v5729
  %v6565 = vunpack.c.h.b16 %v5729
  %v6566 = vunpack.c.l.b16 %v5730
  %v6567 = vunpack.c.h.b16 %v5730
  %v6568 = vunpack.c.l.b16 %v5731
  %v6569 = vunpack.c.h.b16 %v5731
  %v6570 = vunpack.c.l.b16 %v5732
  %v6571 = vunpack.c.h.b16 %v5732
  %v6572 = vunpack.c.l.b16 %v5733
  %v6573 = vunpack.c.h.b16 %v5733
  %v6574 = vunpack.c.l.b16 %v5734
  %v6575 = vunpack.c.h.b16 %v5734
  %v6576 = vunpack.c.l.b16 %v5735
  %v6577 = vunpack.c.h.b16 %v5735
  %v6578 = vunpack.c.l.b16 %v5736
  %v6579 = vunpack.c.h.b16 %v5736
  %v6580 = vunpack.c.l.b16 %v5737
  %v6581 = vunpack.c.h.b16 %v5737
  %v6582 = vunpack.c.l.b16 %v5738
  %v6583 = vunpack.c.h.b16 %v5738
  %v6584 = vunpack.c.l.b16 %v5739
  %v6585 = vunpack.c.h.b16 %v5739
  %v6586 = vunpack.c.l.b16 %v5740
  %v6587 = vunpack.c.h.b16 %v5740
  %v6588 = vunpack.c.l.b16 %v5741
  %v6589 = vunpack.c.h.b16 %v5741
  %v6590 = vunpack.c.l.b16 %v5742
  %v6591 = vunpack.c.h.b16 %v5742
  %v6592 = vunpack.c.l.b16 %v5743
  %v6593 = vunpack.c.h.b16 %v5743
  %v6594 = vunpack.c.l.b16 %v5744
  %v6595 = vunpack.c.h.b16 %v5744
  %v6596 = vunpack.c.l.b16 %v5745
  %v6597 = vunpack.c.h.b16 %v5745
  %v6598 = vunpack.c.l.b16 %v5746
  %v6599 = vunpack.c.h.b16 %v5746
  %v6600 = vunpack.c.l.b16 %v5747
  %v6601 = vunpack.c.h.b16 %v5747
  %v6602 = vunpack.c.l.b16 %v5748
  %v6603 = vunpack.c.h.b16 %v5748
  %v6604 = vunpack.c.l.b16 %v5749
  %v6605 = vunpack.c.h.b16 %v5749
  %v6606 = vunpack.c.l.b16 %v5750
  %v6607 = vunpack.c.h.b16 %v5750
  %v6608 = vunpack.c.l.b16 %v5751
  %v6609 = vunpack.c.h.b16 %v5751
  %v6610 = vunpack.c.l.b16 %v5752
  %v6611 = vunpack.c.h.b16 %v5752
  %v6612 = vunpack.c.l.b16 %v5753
  %v6613 = vunpack.c.h.b16 %v5753
  %v6614 = vunpack.c.l.b16 %v5754
  %v6615 = vunpack.c.h.b16 %v5754
  %v6616 = vunpack.c.l.b16 %v5755
  %v6617 = vunpack.c.h.b16 %v5755
  %v6618 = vunpack.c.l.b16 %v5756
  %v6619 = vunpack.c.h.b16 %v5756
  %v6620 = vunpack.c.l.b16 %v5757
  %v6621 = vunpack.c.h.b16 %v5757
  %v6622 = vpack.c.b16 %v6050, %v6046
  %v6623 = vpack.c.b16 %v6051, %v6047
  %v6624 = vpack.c.b16 %v6052, %v6048
  %v6625 = vpack.c.b16 %v6053, %v6049
  %v6626 = vpack.c.b16 %v6058, %v6054
  %v6627 = vpack.c.b16 %v6059, %v6055
  %v6628 = vpack.c.b16 %v6060, %v6056
  %v6629 = vpack.c.b16 %v6061, %v6057
  %v6630 = vpack.c.b16 %v6066, %v6062
  %v6631 = vpack.c.b16 %v6067, %v6063
  %v6632 = vpack.c.b16 %v6068, %v6064
  %v6633 = vpack.c.b16 %v6069, %v6065
  %v6634 = vpack.c.b16 %v6074, %v6070
  %v6635 = vpack.c.b16 %v6075, %v6071
  %v6636 = vpack.c.b16 %v6076, %v6072
  %v6637 = vpack.c.b16 %v6077, %v6073
  %v6638 = vpack.c.b16 %v6082, %v6078
  %v6639 = vpack.c.b16 %v6083, %v6079
  %v6640 = vpack.c.b16 %v6084, %v6080
  %v6641 = vpack.c.b16 %v6085, %v6081
  %v6642 = vpack.c.b16 %v6090, %v6086
  %v6643 = vpack.c.b16 %v6091, %v6087
  %v6644 = vpack.c.b16 %v6092, %v6088
  %v6645 = vpack.c.b16 %v6093, %v6089
  %v6646 = vpack.c.b16 %v6098, %v6094
  %v6647 = vpack.c.b16 %v6099, %v6095
  %v6648 = vpack.c.b16 %v6100, %v6096
  %v6649 = vpack.c.b16 %v6101, %v6097
  %v6650 = vpack.c.b16 %v6106, %v6102
  %v6651 = vpack.c.b16 %v6107, %v6103
  %v6652 = vpack.c.b16 %v6108, %v6104
  %v6653 = vpack.c.b16 %v6109, %v6105
  %v6654 = vpack.c.b16 %v6114, %v6110
  %v6655 = vpack.c.b16 %v6115, %v6111
  %v6656 = vpack.c.b16 %v6116, %v6112
  %v6657 = vpack.c.b16 %v6117, %v6113
  %v6658 = vpack.c.b16 %v6122, %v6118
  %v6659 = vpack.c.b16 %v6123, %v6119
  %v6660 = vpack.c.b16 %v6124, %v6120
  %v6661 = vpack.c.b16 %v6125, %v6121
  %v6662 = vpack.c.b16 %v6130, %v6126
  %v6663 = vpack.c.b16 %v6131, %v6127
  %v6664 = vpack.c.b16 %v6132, %v6128
  %v6665 = vpack.c.b16 %v6133, %v6129
  %v6666 = vpack.c.b16 %v6138, %v6134
  %v6667 = vpack.c.b16 %v6139, %v6135
  %v6668 = vpack.c.b16 %v6140, %v6136
  %v6669 = vpack.c.b16 %v6141, %v6137
  %v6670 = vpack.c.b16 %v6146, %v6142
  %v6671 = vpack.c.b16 %v6147, %v6143
  %v6672 = vpack.c.b16 %v6148, %v6144
  %v6673 = vpack.c.b16 %v6149, %v6145
  %v6674 = vpack.c.b16 %v6154, %v6150
  %v6675 = vpack.c.b16 %v6155, %v6151
  %v6676 = vpack.c.b16 %v6156, %v6152
  %v6677 = vpack.c.b16 %v6157, %v6153
  %v6678 = vpack.c.b16 %v6162, %v6158
  %v6679 = vpack.c.b16 %v6163, %v6159
  %v6680 = vpack.c.b16 %v6164, %v6160
  %v6681 = vpack.c.b16 %v6165, %v6161
  %v6682 = vpack.c.b16 %v6170, %v6166
  %v6683 = vpack.c.b16 %v6171, %v6167
  %v6684 = vpack.c.b16 %v6172, %v6168
  %v6685 = vpack.c.b16 %v6173, %v6169
  %v6686 = vpack.c.b16 %v6178, %v6174
  %v6687 = vpack.c.b16 %v6179, %v6175
  %v6688 = vpack.c.b16 %v6180, %v6176
  %v6689 = vpack.c.b16 %v6181, %v6177
  %v6690 = vpack.c.b16 %v6186, %v6182
  %v6691 = vpack.c.b16 %v6187, %v6183
  %v6692 = vpack.c.b16 %v6188, %v6184
  %v6693 = vpack.c.b16 %v6189, %v6185
  %v6694 = vpack.c.b16 %v6194, %v6190
  %v6695 = vpack.c.b16 %v6195, %v6191
  %v6696 = vpack.c.b16 %v6196, %v6192
  %v6697 = vpack.c.b16 %v6197, %v6193
  %v6698 = vpack.c.b16 %v6202, %v6198
  %v6699 = vpack.c.b16 %v6203, %v6199
  %v6700 = vpack.c.b16 %v6204, %v6200
  %v6701 = vpack.c.b16 %v6205, %v6201
  %v6702 = vpack.c.b16 %v6210, %v6206
  %v6703 = vpack.c.b16 %v6211, %v6207
  %v6704 = vpack.c.b16 %v6212, %v6208
  %v6705 = vpack.c.b16 %v6213, %v6209
  %v6706 = vpack.c.b16 %v6218, %v6214
  %v6707 = vpack.c.b16 %v6219, %v6215
  %v6708 = vpack.c.b16 %v6220, %v6216
  %v6709 = vpack.c.b16 %v6221, %v6217
  %v6710 = vpack.c.b16 %v6226, %v6222
  %v6711 = vpack.c.b16 %v6227, %v6223
  %v6712 = vpack.c.b16 %v6228, %v6224
  %v6713 = vpack.c.b16 %v6229, %v6225
  %v6714 = vpack.c.b16 %v6234, %v6230
  %v6715 = vpack.c.b16 %v6235, %v6231
  %v6716 = vpack.c.b16 %v6236, %v6232
  %v6717 = vpack.c.b16 %v6237, %v6233
  %v6718 = vpack.c.b16 %v6242, %v6238
  %v6719 = vpack.c.b16 %v6243, %v6239
  %v6720 = vpack.c.b16 %v6244, %v6240
  %v6721 = vpack.c.b16 %v6245, %v6241
  %v6722 = vpack.c.b16 %v6250, %v6246
  %v6723 = vpack.c.b16 %v6251, %v6247
  %v6724 = vpack.c.b16 %v6252, %v6248
  %v6725 = vpack.c.b16 %v6253, %v6249
  %v6726 = vpack.c.b16 %v6258, %v6254
  %v6727 = vpack.c.b16 %v6259, %v6255
  %v6728 = vpack.c.b16 %v6260, %v6256
  %v6729 = vpack.c.b16 %v6261, %v6257
  %v6730 = vpack.c.b16 %v6266, %v6262
  %v6731 = vpack.c.b16 %v6267, %v6263
  %v6732 = vpack.c.b16 %v6268, %v6264
  %v6733 = vpack.c.b16 %v6269, %v6265
  %v6734 = vpack.c.b16 %v6274, %v6270
  %v6735 = vpack.c.b16 %v6275, %v6271
  %v6736 = vpack.c.b16 %v6276, %v6272
  %v6737 = vpack.c.b16 %v6277, %v6273
  %v6738 = vpack.c.b16 %v6282, %v6278
  %v6739 = vpack.c.b16 %v6283, %v6279
  %v6740 = vpack.c.b16 %v6284, %v6280
  %v6741 = vpack.c.b16 %v6285, %v6281
  %v6742 = vpack.c.b16 %v6290, %v6286
  %v6743 = vpack.c.b16 %v6291, %v6287
  %v6744 = vpack.c.b16 %v6292, %v6288
  %v6745 = vpack.c.b16 %v6293, %v6289
  %v6746 = vpack.c.b16 %v6298, %v6294
  %v6747 = vpack.c.b16 %v6299, %v6295
  %v6748 = vpack.c.b16 %v6300, %v6296
  %v6749 = vpack.c.b16 %v6301, %v6297
  %v6750 = vpack.c.b16 %v6306, %v6302
  %v6751 = vpack.c.b16 %v6307, %v6303
  %v6752 = vpack.c.b16 %v6308, %v6304
  %v6753 = vpack.c.b16 %v6309, %v6305
  %v6754 = vpack.c.b16 %v6314, %v6310
  %v6755 = vpack.c.b16 %v6315, %v6311
  %v6756 = vpack.c.b16 %v6316, %v6312
  %v6757 = vpack.c.b16 %v6317, %v6313
  %v6758 = vpack.c.b16 %v6322, %v6318
  %v6759 = vpack.c.b16 %v6323, %v6319
  %v6760 = vpack.c.b16 %v6324, %v6320
  %v6761 = vpack.c.b16 %v6325, %v6321
  %v6762 = vpack.c.b16 %v6330, %v6326
  %v6763 = vpack.c.b16 %v6331, %v6327
  %v6764 = vpack.c.b16 %v6332, %v6328
  %v6765 = vpack.c.b16 %v6333, %v6329
  %v6766 = vpack.c.b16 %v6338, %v6334
  %v6767 = vpack.c.b16 %v6339, %v6335
  %v6768 = vpack.c.b16 %v6340, %v6336
  %v6769 = vpack.c.b16 %v6341, %v6337
  %v6770 = vpack.c.b16 %v6346, %v6342
  %v6771 = vpack.c.b16 %v6347, %v6343
  %v6772 = vpack.c.b16 %v6348, %v6344
  %v6773 = vpack.c.b16 %v6349, %v6345
  %v6774 = vpack.c.b16 %v6354, %v6350
  %v6775 = vpack.c.b16 %v6355, %v6351
  %v6776 = vpack.c.b16 %v6356, %v6352
  %v6777 = vpack.c.b16 %v6357, %v6353
  %v6778 = vpack.c.b16 %v6362, %v6358
  %v6779 = vpack.c.b16 %v6363, %v6359
  %v6780 = vpack.c.b16 %v6364, %v6360
  %v6781 = vpack.c.b16 %v6365, %v6361
  %v6782 = vpack.c.b16 %v6370, %v6366
  %v6783 = vpack.c.b16 %v6371, %v6367
  %v6784 = vpack.c.b16 %v6372, %v6368
  %v6785 = vpack.c.b16 %v6373, %v6369
  %v6786 = vpack.c.b16 %v6378, %v6374
  %v6787 = vpack.c.b16 %v6379, %v6375
  %v6788 = vpack.c.b16 %v6380, %v6376
  %v6789 = vpack.c.b16 %v6381, %v6377
  %v6790 = vpack.c.b16 %v6386, %v6382
  %v6791 = vpack.c.b16 %v6387, %v6383
  %v6792 = vpack.c.b16 %v6388, %v6384
  %v6793 = vpack.c.b16 %v6389, %v6385
  %v6794 = vpack.c.b16 %v6394, %v6390
  %v6795 = vpack.c.b16 %v6395, %v6391
  %v6796 = vpack.c.b16 %v6396, %v6392
  %v6797 = vpack.c.b16 %v6397, %v6393
  %v6798 = vpack.c.b16 %v6402, %v6398
  %v6799 = vpack.c.b16 %v6403, %v6399
  %v6800 = vpack.c.b16 %v6404, %v6400
  %v6801 = vpack.c.b16 %v6405, %v6401
  %v6802 = vpack.c.b16 %v6410, %v6406
  %v6803 = vpack.c.b16 %v6411, %v6407
  %v6804 = vpack.c.b16 %v6412, %v6408
  %v6805 = vpack.c.b16 %v6413, %v6409
  %v6806 = vpack.c.b16 %v6418, %v6414
  %v6807 = vpack.c.b16 %v6419, %v6415
  %v6808 = vpack.c.b16 %v6420, %v6416
  %v6809 = vpack.c.b16 %v6421, %v6417
  %v6810 = vpack.c.b16 %v6426, %v6422
  %v6811 = vpack.c.b16 %v6427, %v6423
  %v6812 = vpack.c.b16 %v6428, %v6424
  %v6813 = vpack.c.b16 %v6429, %v6425
  %v6814 = vpack.c.b16 %v6434, %v6430
  %v6815 = vpack.c.b16 %v6435, %v6431
  %v6816 = vpack.c.b16 %v6436, %v6432
  %v6817 = vpack.c.b16 %v6437, %v6433
  %v6818 = vpack.c.b16 %v6442, %v6438
  %v6819 = vpack.c.b16 %v6443, %v6439
  %v6820 = vpack.c.b16 %v6444, %v6440
  %v6821 = vpack.c.b16 %v6445, %v6441
  %v6822 = vpack.c.b16 %v6450, %v6446
  %v6823 = vpack.c.b16 %v6451, %v6447
  %v6824 = vpack.c.b16 %v6452, %v6448
  %v6825 = vpack.c.b16 %v6453, %v6449
  %v6826 = vpack.c.b16 %v6458, %v6454
  %v6827 = vpack.c.b16 %v6459, %v6455
  %v6828 = vpack.c.b16 %v6460, %v6456
  %v6829 = vpack.c.b16 %v6461, %v6457
  %v6830 = vpack.c.b16 %v6466, %v6462
  %v6831 = vpack.c.b16 %v6467, %v6463
  %v6832 = vpack.c.b16 %v6468, %v6464
  %v6833 = vpack.c.b16 %v6469, %v6465
  %v6834 = vpack.c.b16 %v6474, %v6470
  %v6835 = vpack.c.b16 %v6475, %v6471
  %v6836 = vpack.c.b16 %v6476, %v6472
  %v6837 = vpack.c.b16 %v6477, %v6473
  %v6838 = vpack.c.b16 %v6482, %v6478
  %v6839 = vpack.c.b16 %v6483, %v6479
  %v6840 = vpack.c.b16 %v6484, %v6480
  %v6841 = vpack.c.b16 %v6485, %v6481
  %v6842 = vpack.c.b16 %v6490, %v6486
  %v6843 = vpack.c.b16 %v6491, %v6487
  %v6844 = vpack.c.b16 %v6492, %v6488
  %v6845 = vpack.c.b16 %v6493, %v6489
  %v6846 = vpack.c.b16 %v6498, %v6494
  %v6847 = vpack.c.b16 %v6499, %v6495
  %v6848 = vpack.c.b16 %v6500, %v6496
  %v6849 = vpack.c.b16 %v6501, %v6497
  %v6850 = vpack.c.b16 %v6506, %v6502
  %v6851 = vpack.c.b16 %v6507, %v6503
  %v6852 = vpack.c.b16 %v6508, %v6504
  %v6853 = vpack.c.b16 %v6509, %v6505
  %v6854 = vpack.c.b16 %v6514, %v6510
  %v6855 = vpack.c.b16 %v6515, %v6511
  %v6856 = vpack.c.b16 %v6516, %v6512
  %v6857 = vpack.c.b16 %v6517, %v6513
  %v6858 = vpack.c.b16 %v6522, %v6518
  %v6859 = vpack.c.b16 %v6523, %v6519
  %v6860 = vpack.c.b16 %v6524, %v6520
  %v6861 = vpack.c.b16 %v6525, %v6521
  %v6862 = vpack.c.b16 %v6530, %v6526
  %v6863 = vpack.c.b16 %v6531, %v6527
  %v6864 = vpack.c.b16 %v6532, %v6528
  %v6865 = vpack.c.b16 %v6533, %v6529
  %v6866 = vpack.c.b16 %v6538, %v6534
  %v6867 = vpack.c.b16 %v6539, %v6535
  %v6868 = vpack.c.b16 %v6540, %v6536
  %v6869 = vpack.c.b16 %v6541, %v6537
  %v6870 = vpack.c.b16 %v6546, %v6542
  %v6871 = vpack.c.b16 %v6547, %v6543
  %v6872 = vpack.c.b16 %v6548, %v6544
  %v6873 = vpack.c.b16 %v6549, %v6545
  %v6874 = vpack.c.b16 %v6554, %v6550
  %v6875 = vpack.c.b16 %v6555, %v6551
  %v6876 = vpack.c.b16 %v6556, %v6552
  %v6877 = vpack.c.b16 %v6557, %v6553
  %v6878 = vpack.c.b16 %v6562, %v6558
  %v6879 = vpack.c.b16 %v6563, %v6559
  %v6880 = vpack.c.b16 %v6564, %v6560
  %v6881 = vpack.c.b16 %v6565, %v6561
  %v6882 = vpack.c.b16 %v6570, %v6566
  %v6883 = vpack.c.b16 %v6571, %v6567
  %v6884 = vpack.c.b16 %v6572, %v6568
  %v6885 = vpack.c.b16 %v6573, %v6569
  %v6886 = vpack.c.b16 %v6578, %v6574
  %v6887 = vpack.c.b16 %v6579, %v6575
  %v6888 = vpack.c.b16 %v6580, %v6576
  %v6889 = vpack.c.b16 %v6581, %v6577
  %v6890 = vpack.c.b16 %v6586, %v6582
  %v6891 = vpack.c.b16 %v6587, %v6583
  %v6892 = vpack.c.b16 %v6588, %v6584
  %v6893 = vpack.c.b16 %v6589, %v6585
  %v6894 = vpack.c.b16 %v6594, %v6590
  %v6895 = vpack.c.b16 %v6595, %v6591
  %v6896 = vpack.c.b16 %v6596, %v6592
  %v6897 = vpack.c.b16 %v6597, %v6593
  %v6898 = vpack.c.b16 %v6602, %v6598
  %v6899 = vpack.c.b16 %v6603, %v6599
  %v6900 = vpack.c.b16 %v6604, %v6600
  %v6901 = vpack.c.b16 %v6605, %v6601
  %v6902 = vpack.c.b16 %v6610, %v6606
  %v6903 = vpack.c.b16 %v6611, %v6607
  %v6904 = vpack.c.b16 %v6612, %v6608
  %v6905 = vpack.c.b16 %v6613, %v6609
  %v6906 = vpack.c.b16 %v6618, %v6614
  %v6907 = vpack.c.b16 %v6619, %v6615
  %v6908 = vpack.c.b16 %v6620, %v6616
  %v6909 = vpack.c.b16 %v6621, %v6617
  %7198 = vmatprep.subr.bf16.mxu0 %v6623
  %7199 = vmatpush1.bf16.msra.mxu0 %v6622
  %7200 = vmatprep.subr.bf16.mxu0 %v6627
  %7201 = vmatpush1.bf16.msra.mxu0 %v6626
  %7202 = vmatprep.subr.bf16.mxu0 %v6631
  %7203 = vmatpush1.bf16.msra.mxu0 %v6630
  %7204 = vmatprep.subr.bf16.mxu0 %v6635
  %7205 = vmatpush1.bf16.msra.mxu0 %v6634
  %7206 = vmatprep.subr.bf16.mxu0 %v6639
  %7207 = vmatpush1.bf16.msra.mxu0 %v6638
  %7208 = vmatprep.subr.bf16.mxu0 %v6643
  %7209 = vmatpush1.bf16.msra.mxu0 %v6642
  %7210 = vmatprep.subr.bf16.mxu0 %v6647
  %7211 = vmatpush1.bf16.msra.mxu0 %v6646
  %7212 = vmatprep.subr.bf16.mxu0 %v6651
  %7213 = vmatpush1.bf16.msra.mxu0 %v6650
  %7214 = vmatprep.subr.bf16.mxu0 %v6655
  %7215 = vmatpush1.bf16.msra.mxu0 %v6654
  %7216 = vmatprep.subr.bf16.mxu0 %v6659
  %7217 = vmatpush1.bf16.msra.mxu0 %v6658
  %7218 = vmatprep.subr.bf16.mxu0 %v6663
  %7219 = vmatpush1.bf16.msra.mxu0 %v6662
  %7220 = vmatprep.subr.bf16.mxu0 %v6667
  %7221 = vmatpush1.bf16.msra.mxu0 %v6666
  %7222 = vmatprep.subr.bf16.mxu0 %v6671
  %7223 = vmatpush1.bf16.msra.mxu0 %v6670
  %7224 = vmatprep.subr.bf16.mxu0 %v6675
  %7225 = vmatpush1.bf16.msra.mxu0 %v6674
  %7226 = vmatprep.subr.bf16.mxu0 %v6679
  %7227 = vmatpush1.bf16.msra.mxu0 %v6678
  %7228 = vmatprep.subr.bf16.mxu0 %v6683
  %7229 = vmatpush1.bf16.msra.mxu0 %v6682
  %7230 = vmatprep.mubr.bf16.mxu0 %v5459
  %7231 = vmatmul.mubr.bf16.gmra.mrb[0].mxu0 %v5453
  %v7232 = vpop.f32.mrb[0].mxu0
  %v7233 = vadd.f32 0.0, %v7232
  %v7234 = vpop.f32.mrb[0].mxu0
  %v7235 = vadd.f32 0.0, %v7234
  %v7236 = vpop.f32.mrb[0].mxu0
  %v7237 = vpop.f32.mrb[0].mxu0
  %7238 = vdwg.mxu0
  %7239 = vmatprep.subr.bf16.mxu0 %v6687
  %7240 = vmatpush1.bf16.msra.mxu0 %v6686
  %7241 = vmatprep.subr.bf16.mxu0 %v6691
  %7242 = vmatpush1.bf16.msra.mxu0 %v6690
  %7243 = vmatprep.subr.bf16.mxu0 %v6695
  %7244 = vmatpush1.bf16.msra.mxu0 %v6694
  %7245 = vmatprep.subr.bf16.mxu0 %v6699
  %7246 = vmatpush1.bf16.msra.mxu0 %v6698
  %7247 = vmatprep.subr.bf16.mxu0 %v6703
  %7248 = vmatpush1.bf16.msra.mxu0 %v6702
  %7249 = vmatprep.subr.bf16.mxu0 %v6707
  %7250 = vmatpush1.bf16.msra.mxu0 %v6706
  %7251 = vmatprep.subr.bf16.mxu0 %v6711
  %7252 = vmatpush1.bf16.msra.mxu0 %v6710
  %7253 = vmatprep.subr.bf16.mxu0 %v6715
  %7254 = vmatpush1.bf16.msra.mxu0 %v6714
  %7255 = vmatprep.subr.bf16.mxu0 %v6719
  %7256 = vmatpush1.bf16.msra.mxu0 %v6718
  %7257 = vmatprep.subr.bf16.mxu0 %v6723
  %7258 = vmatpush1.bf16.msra.mxu0 %v6722
  %7259 = vmatprep.subr.bf16.mxu0 %v6727
  %7260 = vmatpush1.bf16.msra.mxu0 %v6726
  %7261 = vmatprep.subr.bf16.mxu0 %v6731
  %7262 = vmatpush1.bf16.msra.mxu0 %v6730
  %7263 = vmatprep.subr.bf16.mxu0 %v6735
  %7264 = vmatpush1.bf16.msra.mxu0 %v6734
  %7265 = vmatprep.subr.bf16.mxu0 %v6739
  %7266 = vmatpush1.bf16.msra.mxu0 %v6738
  %7267 = vmatprep.subr.bf16.mxu0 %v6743
  %7268 = vmatpush1.bf16.msra.mxu0 %v6742
  %7269 = vmatprep.subr.bf16.mxu0 %v6747
  %7270 = vmatpush1.bf16.msra.mxu0 %v6746
  %7271 = vmatprep.mubr.bf16.mxu0 %v5462
  %7272 = vmatmul.mubr.bf16.gmra.mrb[0].mxu0 %v5454
  %v7273 = vpop.f32.mrb[0].mxu0
  %v7274 = vadd.f32 %v7233, %v7273
  %v7275 = vpop.f32.mrb[0].mxu0
  %v7276 = vadd.f32 %v7235, %v7275
  %v7277 = vpop.f32.mrb[0].mxu0
  %v7278 = vpop.f32.mrb[0].mxu0
  %7279 = vdwg.mxu0
  %7280 = vmatprep.subr.bf16.mxu0 %v6751
  %7281 = vmatpush1.bf16.msra.mxu0 %v6750
  %7282 = vmatprep.subr.bf16.mxu0 %v6755
  %7283 = vmatpush1.bf16.msra.mxu0 %v6754
  %7284 = vmatprep.subr.bf16.mxu0 %v6759
  %7285 = vmatpush1.bf16.msra.mxu0 %v6758
  %7286 = vmatprep.subr.bf16.mxu0 %v6763
  %7287 = vmatpush1.bf16.msra.mxu0 %v6762
  %7288 = vmatprep.subr.bf16.mxu0 %v6767
  %7289 = vmatpush1.bf16.msra.mxu0 %v6766
  %7290 = vmatprep.subr.bf16.mxu0 %v6771
  %7291 = vmatpush1.bf16.msra.mxu0 %v6770
  %7292 = vmatprep.subr.bf16.mxu0 %v6775
  %7293 = vmatpush1.bf16.msra.mxu0 %v6774
  %7294 = vmatprep.subr.bf16.mxu0 %v6779
  %7295 = vmatpush1.bf16.msra.mxu0 %v6778
  %7296 = vmatprep.subr.bf16.mxu0 %v6783
  %7297 = vmatpush1.bf16.msra.mxu0 %v6782
  %7298 = vmatprep.subr.bf16.mxu0 %v6787
  %7299 = vmatpush1.bf16.msra.mxu0 %v6786
  %7300 = vmatprep.subr.bf16.mxu0 %v6791
  %7301 = vmatpush1.bf16.msra.mxu0 %v6790
  %7302 = vmatprep.subr.bf16.mxu0 %v6795
  %7303 = vmatpush1.bf16.msra.mxu0 %v6794
  %7304 = vmatprep.subr.bf16.mxu0 %v6799
  %7305 = vmatpush1.bf16.msra.mxu0 %v6798
  %7306 = vmatprep.subr.bf16.mxu0 %v6803
  %7307 = vmatpush1.bf16.msra.mxu0 %v6802
  %7308 = vmatprep.subr.bf16.mxu0 %v6807
  %7309 = vmatpush1.bf16.msra.mxu0 %v6806
  %7310 = vmatprep.subr.bf16.mxu0 %v6811
  %7311 = vmatpush1.bf16.msra.mxu0 %v6810
  %7312 = vmatprep.mubr.bf16.mxu0 %v5465
  %7313 = vmatmul.mubr.bf16.gmra.mrb[0].mxu0 %v5455
  %v7314 = vpop.f32.mrb[0].mxu0
  %v7315 = vadd.f32 %v7274, %v7314
  %v7316 = vpop.f32.mrb[0].mxu0
  %v7317 = vadd.f32 %v7276, %v7316
  %v7318 = vpop.f32.mrb[0].mxu0
  %v7319 = vpop.f32.mrb[0].mxu0
  %7320 = vdwg.mxu0
  %7321 = vmatprep.subr.bf16.mxu0 %v6815
  %7322 = vmatpush1.bf16.msra.mxu0 %v6814
  %7323 = vmatprep.subr.bf16.mxu0 %v6819
  %7324 = vmatpush1.bf16.msra.mxu0 %v6818
  %7325 = vmatprep.subr.bf16.mxu0 %v6823
  %7326 = vmatpush1.bf16.msra.mxu0 %v6822
  %7327 = vmatprep.subr.bf16.mxu0 %v6827
  %7328 = vmatpush1.bf16.msra.mxu0 %v6826
  %7329 = vmatprep.subr.bf16.mxu0 %v6831
  %7330 = vmatpush1.bf16.msra.mxu0 %v6830
  %7331 = vmatprep.subr.bf16.mxu0 %v6835
  %7332 = vmatpush1.bf16.msra.mxu0 %v6834
  %7333 = vmatprep.subr.bf16.mxu0 %v6839
  %7334 = vmatpush1.bf16.msra.mxu0 %v6838
  %7335 = vmatprep.subr.bf16.mxu0 %v6843
  %7336 = vmatpush1.bf16.msra.mxu0 %v6842
  %7337 = vmatprep.subr.bf16.mxu0 %v6847
  %7338 = vmatpush1.bf16.msra.mxu0 %v6846
  %7339 = vmatprep.subr.bf16.mxu0 %v6851
  %7340 = vmatpush1.bf16.msra.mxu0 %v6850
  %7341 = vmatprep.subr.bf16.mxu0 %v6855
  %7342 = vmatpush1.bf16.msra.mxu0 %v6854
  %7343 = vmatprep.subr.bf16.mxu0 %v6859
  %7344 = vmatpush1.bf16.msra.mxu0 %v6858
  %7345 = vmatprep.subr.bf16.mxu0 %v6863
  %7346 = vmatpush1.bf16.msra.mxu0 %v6862
  %7347 = vmatprep.subr.bf16.mxu0 %v6867
  %7348 = vmatpush1.bf16.msra.mxu0 %v6866
  %7349 = vmatprep.subr.bf16.mxu0 %v6871
  %7350 = vmatpush1.bf16.msra.mxu0 %v6870
  %7351 = vmatprep.subr.bf16.mxu0 %v6875
  %7352 = vmatpush1.bf16.msra.mxu0 %v6874
  %7353 = vmatprep.mubr.bf16.mxu0 %v5468
  %7354 = vmatmul.mubr.bf16.gmra.mrb[0].mxu0 %v5456
  %v7355 = vpop.f32.mrb[0].mxu0
  %v7356 = vadd.f32 %v7315, %v7355
  %v7357 = vpop.f32.mrb[0].mxu0
  %v7358 = vadd.f32 %v7317, %v7357
  %v7359 = vpop.f32.mrb[0].mxu0
  %v7360 = vpop.f32.mrb[0].mxu0
  %7361 = vdwg.mxu0
  %7362 = vmatprep.subr.bf16.mxu0 %v6879
  %7363 = vmatpush1.bf16.msra.mxu0 %v6878
  %7364 = vmatprep.subr.bf16.mxu0 %v6883
  %7365 = vmatpush1.bf16.msra.mxu0 %v6882
  %7366 = vmatprep.subr.bf16.mxu0 %v6887
  %7367 = vmatpush1.bf16.msra.mxu0 %v6886
  %7368 = vmatprep.subr.bf16.mxu0 %v6891
  %7369 = vmatpush1.bf16.msra.mxu0 %v6890
  %7370 = vmatprep.subr.bf16.mxu0 %v6895
  %7371 = vmatpush1.bf16.msra.mxu0 %v6894
  %7372 = vmatprep.subr.bf16.mxu0 %v6899
  %7373 = vmatpush1.bf16.msra.mxu0 %v6898
  %7374 = vmatprep.subr.bf16.mxu0 %v6903
  %7375 = vmatpush1.bf16.msra.mxu0 %v6902
  %7376 = vmatprep.subr.bf16.mxu0 %v6907
  %7377 = vmatpush1.bf16.msra.mxu0 %v6906
  %7378 = vmatprep.subr.bf16.mxu0 0
  %7379 = vmatpush1.bf16.msra.mxu0 0
  %7380 = vmatprep.subr.bf16.mxu0 0
  %7381 = vmatpush1.bf16.msra.mxu0 0
  %7382 = vmatprep.subr.bf16.mxu0 0
  %7383 = vmatpush1.bf16.msra.mxu0 0
  %7384 = vmatprep.subr.bf16.mxu0 0
  %7385 = vmatpush1.bf16.msra.mxu0 0
  %7386 = vmatprep.subr.bf16.mxu0 0
  %7387 = vmatpush1.bf16.msra.mxu0 0
  %7388 = vmatprep.subr.bf16.mxu0 0
  %7389 = vmatpush1.bf16.msra.mxu0 0
  %7390 = vmatprep.subr.bf16.mxu0 0
  %7391 = vmatpush1.bf16.msra.mxu0 0
  %7392 = vmatprep.subr.bf16.mxu0 0
  %7393 = vmatpush1.bf16.msra.mxu0 0
  %7394 = vmatprep.mubr.bf16.mxu0 0
  %7395 = vmatmul.mubr.bf16.gmra.mrb[0].mxu0 %v5457
  %v7396 = vpop.f32.mrb[0].mxu0
  %v7397 = vadd.f32 %v7356, %v7396
  %v7398 = vpop.f32.mrb[0].mxu0
  %v7399 = vadd.f32 %v7358, %v7398
  %v7400 = vpop.f32.mrb[0].mxu0
  %v7401 = vpop.f32.mrb[0].mxu0
  %7402 = vdwg.mxu0
  %7403 = vmatprep.subr.bf16.mxu0 %v6625
  %7404 = vmatpush1.bf16.msra.mxu0 %v6624
  %7405 = vmatprep.subr.bf16.mxu0 %v6629
  %7406 = vmatpush1.bf16.msra.mxu0 %v6628
  %7407 = vmatprep.subr.bf16.mxu0 %v6633
  %7408 = vmatpush1.bf16.msra.mxu0 %v6632
  %7409 = vmatprep.subr.bf16.mxu0 %v6637
  %7410 = vmatpush1.bf16.msra.mxu0 %v6636
  %7411 = vmatprep.subr.bf16.mxu0 %v6641
  %7412 = vmatpush1.bf16.msra.mxu0 %v6640
  %7413 = vmatprep.subr.bf16.mxu0 %v6645
  %7414 = vmatpush1.bf16.msra.mxu0 %v6644
  %7415 = vmatprep.subr.bf16.mxu0 %v6649
  %7416 = vmatpush1.bf16.msra.mxu0 %v6648
  %7417 = vmatprep.subr.bf16.mxu0 %v6653
  %7418 = vmatpush1.bf16.msra.mxu0 %v6652
  %7419 = vmatprep.subr.bf16.mxu0 %v6657
  %7420 = vmatpush1.bf16.msra.mxu0 %v6656
  %7421 = vmatprep.subr.bf16.mxu0 %v6661
  %7422 = vmatpush1.bf16.msra.mxu0 %v6660
  %7423 = vmatprep.subr.bf16.mxu0 %v6665
  %7424 = vmatpush1.bf16.msra.mxu0 %v6664
  %7425 = vmatprep.subr.bf16.mxu0 %v6669
  %7426 = vmatpush1.bf16.msra.mxu0 %v6668
  %7427 = vmatprep.subr.bf16.mxu0 %v6673
  %7428 = vmatpush1.bf16.msra.mxu0 %v6672
  %7429 = vmatprep.subr.bf16.mxu0 %v6677
  %7430 = vmatpush1.bf16.msra.mxu0 %v6676
  %7431 = vmatprep.subr.bf16.mxu0 %v6681
  %7432 = vmatpush1.bf16.msra.mxu0 %v6680
  %7433 = vmatprep.subr.bf16.mxu0 %v6685
  %7434 = vmatpush1.bf16.msra.mxu0 %v6684
  %7435 = vmatprep.mubr.bf16.mxu0 %v5459
  %7436 = vmatmul.mubr.bf16.gmra.mrb[0].mxu0 %v5453
  %v7437 = vpop.f32.mrb[0].mxu0
  %v7438 = vadd.f32 0.0, %v7437
  %v7439 = vpop.f32.mrb[0].mxu0
  %v7440 = vadd.f32 0.0, %v7439
  %v7441 = vpop.f32.mrb[0].mxu0
  %v7442 = vpop.f32.mrb[0].mxu0
  %7443 = vdwg.mxu0
  %7444 = vmatprep.subr.bf16.mxu0 %v6689
  %7445 = vmatpush1.bf16.msra.mxu0 %v6688
  %7446 = vmatprep.subr.bf16.mxu0 %v6693
  %7447 = vmatpush1.bf16.msra.mxu0 %v6692
  %7448 = vmatprep.subr.bf16.mxu0 %v6697
  %7449 = vmatpush1.bf16.msra.mxu0 %v6696
  %7450 = vmatprep.subr.bf16.mxu0 %v6701
  %7451 = vmatpush1.bf16.msra.mxu0 %v6700
  %7452 = vmatprep.subr.bf16.mxu0 %v6705
  %7453 = vmatpush1.bf16.msra.mxu0 %v6704
  %7454 = vmatprep.subr.bf16.mxu0 %v6709
  %7455 = vmatpush1.bf16.msra.mxu0 %v6708
  %7456 = vmatprep.subr.bf16.mxu0 %v6713
  %7457 = vmatpush1.bf16.msra.mxu0 %v6712
  %7458 = vmatprep.subr.bf16.mxu0 %v6717
  %7459 = vmatpush1.bf16.msra.mxu0 %v6716
  %7460 = vmatprep.subr.bf16.mxu0 %v6721
  %7461 = vmatpush1.bf16.msra.mxu0 %v6720
  %7462 = vmatprep.subr.bf16.mxu0 %v6725
  %7463 = vmatpush1.bf16.msra.mxu0 %v6724
  %7464 = vmatprep.subr.bf16.mxu0 %v6729
  %7465 = vmatpush1.bf16.msra.mxu0 %v6728
  %7466 = vmatprep.subr.bf16.mxu0 %v6733
  %7467 = vmatpush1.bf16.msra.mxu0 %v6732
  %7468 = vmatprep.subr.bf16.mxu0 %v6737
  %7469 = vmatpush1.bf16.msra.mxu0 %v6736
  %7470 = vmatprep.subr.bf16.mxu0 %v6741
  %7471 = vmatpush1.bf16.msra.mxu0 %v6740
  %7472 = vmatprep.subr.bf16.mxu0 %v6745
  %7473 = vmatpush1.bf16.msra.mxu0 %v6744
  %7474 = vmatprep.subr.bf16.mxu0 %v6749
  %7475 = vmatpush1.bf16.msra.mxu0 %v6748
  %7476 = vmatprep.mubr.bf16.mxu0 %v5462
  %7477 = vmatmul.mubr.bf16.gmra.mrb[0].mxu0 %v5454
  %v7478 = vpop.f32.mrb[0].mxu0
  %v7479 = vadd.f32 %v7438, %v7478
  %v7480 = vpop.f32.mrb[0].mxu0
  %v7481 = vadd.f32 %v7440, %v7480
  %v7482 = vpop.f32.mrb[0].mxu0
  %v7483 = vpop.f32.mrb[0].mxu0
  %7484 = vdwg.mxu0
  %7485 = vmatprep.subr.bf16.mxu0 %v6753
  %7486 = vmatpush1.bf16.msra.mxu0 %v6752
  %7487 = vmatprep.subr.bf16.mxu0 %v6757
  %7488 = vmatpush1.bf16.msra.mxu0 %v6756
  %7489 = vmatprep.subr.bf16.mxu0 %v6761
  %7490 = vmatpush1.bf16.msra.mxu0 %v6760
  %7491 = vmatprep.subr.bf16.mxu0 %v6765
  %7492 = vmatpush1.bf16.msra.mxu0 %v6764
  %7493 = vmatprep.subr.bf16.mxu0 %v6769
  %7494 = vmatpush1.bf16.msra.mxu0 %v6768
  %7495 = vmatprep.subr.bf16.mxu0 %v6773
  %7496 = vmatpush1.bf16.msra.mxu0 %v6772
  %7497 = vmatprep.subr.bf16.mxu0 %v6777
  %7498 = vmatpush1.bf16.msra.mxu0 %v6776
  %7499 = vmatprep.subr.bf16.mxu0 %v6781
  %7500 = vmatpush1.bf16.msra.mxu0 %v6780
  %7501 = vmatprep.subr.bf16.mxu0 %v6785
  %7502 = vmatpush1.bf16.msra.mxu0 %v6784
  %7503 = vmatprep.subr.bf16.mxu0 %v6789
  %7504 = vmatpush1.bf16.msra.mxu0 %v6788
  %7505 = vmatprep.subr.bf16.mxu0 %v6793
  %7506 = vmatpush1.bf16.msra.mxu0 %v6792
  %7507 = vmatprep.subr.bf16.mxu0 %v6797
  %7508 = vmatpush1.bf16.msra.mxu0 %v6796
  %7509 = vmatprep.subr.bf16.mxu0 %v6801
  %7510 = vmatpush1.bf16.msra.mxu0 %v6800
  %7511 = vmatprep.subr.bf16.mxu0 %v6805
  %7512 = vmatpush1.bf16.msra.mxu0 %v6804
  %7513 = vmatprep.subr.bf16.mxu0 %v6809
  %7514 = vmatpush1.bf16.msra.mxu0 %v6808
  %7515 = vmatprep.subr.bf16.mxu0 %v6813
  %7516 = vmatpush1.bf16.msra.mxu0 %v6812
  %7517 = vmatprep.mubr.bf16.mxu0 %v5465
  %7518 = vmatmul.mubr.bf16.gmra.mrb[0].mxu0 %v5455
  %v7519 = vpop.f32.mrb[0].mxu0
  %v7520 = vadd.f32 %v7479, %v7519
  %v7521 = vpop.f32.mrb[0].mxu0
  %v7522 = vadd.f32 %v7481, %v7521
  %v7523 = vpop.f32.mrb[0].mxu0
  %v7524 = vpop.f32.mrb[0].mxu0
  %7525 = vdwg.mxu0
  %7526 = vmatprep.subr.bf16.mxu0 %v6817
  %7527 = vmatpush1.bf16.msra.mxu0 %v6816
  %7528 = vmatprep.subr.bf16.mxu0 %v6821
  %7529 = vmatpush1.bf16.msra.mxu0 %v6820
  %7530 = vmatprep.subr.bf16.mxu0 %v6825
  %7531 = vmatpush1.bf16.msra.mxu0 %v6824
  %7532 = vmatprep.subr.bf16.mxu0 %v6829
  %7533 = vmatpush1.bf16.msra.mxu0 %v6828
  %7534 = vmatprep.subr.bf16.mxu0 %v6833
  %7535 = vmatpush1.bf16.msra.mxu0 %v6832
  %7536 = vmatprep.subr.bf16.mxu0 %v6837
  %7537 = vmatpush1.bf16.msra.mxu0 %v6836
  %7538 = vmatprep.subr.bf16.mxu0 %v6841
  %7539 = vmatpush1.bf16.msra.mxu0 %v6840
  %7540 = vmatprep.subr.bf16.mxu0 %v6845
  %7541 = vmatpush1.bf16.msra.mxu0 %v6844
  %7542 = vmatprep.subr.bf16.mxu0 %v6849
  %7543 = vmatpush1.bf16.msra.mxu0 %v6848
  %7544 = vmatprep.subr.bf16.mxu0 %v6853
  %7545 = vmatpush1.bf16.msra.mxu0 %v6852
  %7546 = vmatprep.subr.bf16.mxu0 %v6857
  %7547 = vmatpush1.bf16.msra.mxu0 %v6856
  %7548 = vmatprep.subr.bf16.mxu0 %v6861
  %7549 = vmatpush1.bf16.msra.mxu0 %v6860
  %7550 = vmatprep.subr.bf16.mxu0 %v6865
  %7551 = vmatpush1.bf16.msra.mxu0 %v6864
  %7552 = vmatprep.subr.bf16.mxu0 %v6869
  %7553 = vmatpush1.bf16.msra.mxu0 %v6868
  %7554 = vmatprep.subr.bf16.mxu0 %v6873
  %7555 = vmatpush1.bf16.msra.mxu0 %v6872
  %7556 = vmatprep.subr.bf16.mxu0 %v6877
  %7557 = vmatpush1.bf16.msra.mxu0 %v6876
  %7558 = vmatprep.mubr.bf16.mxu0 %v5468
  %7559 = vmatmul.mubr.bf16.gmra.mrb[0].mxu0 %v5456
  %v7560 = vpop.f32.mrb[0].mxu0
  %v7561 = vadd.f32 %v7520, %v7560
  %v7562 = vpop.f32.mrb[0].mxu0
  %v7563 = vadd.f32 %v7522, %v7562
  %v7564 = vpop.f32.mrb[0].mxu0
  %v7565 = vpop.f32.mrb[0].mxu0
  %7566 = vdwg.mxu0
  %7567 = vmatprep.subr.bf16.mxu0 %v6881
  %7568 = vmatpush1.bf16.msra.mxu0 %v6880
  %7569 = vmatprep.subr.bf16.mxu0 %v6885
  %7570 = vmatpush1.bf16.msra.mxu0 %v6884
  %7571 = vmatprep.subr.bf16.mxu0 %v6889
  %7572 = vmatpush1.bf16.msra.mxu0 %v6888
  %7573 = vmatprep.subr.bf16.mxu0 %v6893
  %7574 = vmatpush1.bf16.msra.mxu0 %v6892
  %7575 = vmatprep.subr.bf16.mxu0 %v6897
  %7576 = vmatpush1.bf16.msra.mxu0 %v6896
  %7577 = vmatprep.subr.bf16.mxu0 %v6901
  %7578 = vmatpush1.bf16.msra.mxu0 %v6900
  %7579 = vmatprep.subr.bf16.mxu0 %v6905
  %7580 = vmatpush1.bf16.msra.mxu0 %v6904
  %7581 = vmatprep.subr.bf16.mxu0 %v6909
  %7582 = vmatpush1.bf16.msra.mxu0 %v6908
  %7583 = vmatprep.subr.bf16.mxu0 0
  %7584 = vmatpush1.bf16.msra.mxu0 0
  %7585 = vmatprep.subr.bf16.mxu0 0
  %7586 = vmatpush1.bf16.msra.mxu0 0
  %7587 = vmatprep.subr.bf16.mxu0 0
  %7588 = vmatpush1.bf16.msra.mxu0 0
  %7589 = vmatprep.subr.bf16.mxu0 0
  %7590 = vmatpush1.bf16.msra.mxu0 0
  %7591 = vmatprep.subr.bf16.mxu0 0
  %7592 = vmatpush1.bf16.msra.mxu0 0
  %7593 = vmatprep.subr.bf16.mxu0 0
  %7594 = vmatpush1.bf16.msra.mxu0 0
  %7595 = vmatprep.subr.bf16.mxu0 0
  %7596 = vmatpush1.bf16.msra.mxu0 0
  %7597 = vmatprep.subr.bf16.mxu0 0
  %7598 = vmatpush1.bf16.msra.mxu0 0
  %7599 = vmatprep.mubr.bf16.mxu0 0
  %7600 = vmatmul.mubr.bf16.gmra.mrb[0].mxu0 %v5457
  %v7601 = vpop.f32.mrb[0].mxu0
  %v7602 = vadd.f32 %v7561, %v7601
  %v7603 = vpop.f32.mrb[0].mxu0
  %v7604 = vadd.f32 %v7563, %v7603
  %v7605 = vpop.f32.mrb[0].mxu0
  %v7606 = vpop.f32.mrb[0].mxu0
  %7607 = vdwg.mxu0
  %v7608 = vld [vmem:[%s61] sm:$0xff]
  %v7609 = vld [vmem:[%s63] sm:$0xff]
  %v7610 = vadd.f32 %v7397, %v7399
  %v7611 = vadd.f32 %v7610, %v7602
  %v7612 = vadd.f32 %v7611, %v7604
  %7613 = vadd.xlane.f32.xlu0 %v7612
  %v7614 = vpop.xlane.xlu0 %7613
  %v7615 = vmul.f32 %v7614, 0.001953125
  %v7616 = vsub.f32 %v7397, %v7615
  %v7617 = vsub.f32 %v7399, %v7615
  %v7618 = vsub.f32 %v7602, %v7615
  %v7619 = vsub.f32 %v7604, %v7615
  %v7620 = vmul.f32 %v7616, %v7616
  %v7621 = vmul.f32 %v7617, %v7617
  %v7622 = vmul.f32 %v7618, %v7618
  %v7623 = vmul.f32 %v7619, %v7619
  %v7624 = vadd.f32 %v7620, %v7621
  %v7625 = vadd.f32 %v7624, %v7622
  %v7626 = vadd.f32 %v7625, %v7623
  %7627 = vadd.xlane.f32.xlu0 %v7626
  %v7628 = vpop.xlane.xlu0 %7627
  %v7629 = vmul.f32 %v7628, 0.001953125
  %v7630 = vadd.f32 %v7629, 1e-05
  %v7631 = vrsqrt.pop %v7630
  %v7632 = vmul.f32 %v7608, %v7631
  %7634 = vset.pattern.permute.xlu0 0
  %7635 = vperm.xlu0 %7634, %v7632
  %v7636 = vpop.permute.xlu0 %7635
  %v7638 = vmul.f32 %v7616, %v7636
  %v7639 = vmul.f32 %v7617, %v7636
  %v7640 = vmul.f32 %v7618, %v7636
  %v7641 = vmul.f32 %v7619, %v7636
  %7643 = vset.pattern.permute.xlu0 0
  %7644 = vperm.xlu0 %7643, %v7609
  %v7645 = vpop.permute.xlu0 %7644
  %v7647 = vadd.f32 %v7638, %v7645
  %v7648 = vadd.f32 %v7639, %v7645
  %v7649 = vadd.f32 %v7640, %v7645
  %v7650 = vadd.f32 %v7641, %v7645
  %v7651 = vmax.f32 %v7647, 0.0
  %v7652 = vmax.f32 %v7648, 0.0
  %v7653 = vmax.f32 %v7649, 0.0
  %v7654 = vmax.f32 %v7650, 0.0
  %v7655 = vpack.c.bf16 %v7651, %v7651
  %v7656 = vpack.c.bf16 %v7652, %v7652
  %v7657 = vpack.c.bf16 %v7653, %v7653
  %v7658 = vpack.c.bf16 %v7654, %v7654
  %v7663 = vunpack.c.l.b16 %v7655
  %v7664 = vunpack.c.l.b16 %v7656
  %v7665 = vunpack.c.l.b16 %v7657
  %v7666 = vunpack.c.l.b16 %v7658
  %v7667 = vpack.c.b16 %v7664, %v7663
  %v7668 = vpack.c.b16 %v7666, %v7665
  %7671 = vst [vmem:[%s65] sm:$0xff] %v7667
  %7672 = vst [vmem:[%s65 + $0x8] sm:$0xff] %v7668
  // Predicated region
  $region130: #{resnet_generator_forward.4} parent=0 // pred_check
    _
  $region131: #{resnet_generator_forward.4} parent=0 // pred_check_branch
    %7674 = sbr.rel (0) target = $region133
  $region132: #{resnet_generator_forward.4} parent=0 // pred_region
    _
  $region133: #{resnet_generator_forward.4} parent=0 // pred_fallthru
    _
  // Predicated region
  $region134: #{resnet_generator_forward.4} parent=0 // pred_check
    _
  $region135: #{resnet_generator_forward.4} parent=0 // pred_check_branch
    %7676 = sbr.rel (0) target = $region137
  $region136: #{resnet_generator_forward.4} parent=0 // pred_region
    _
  $region137: #{resnet_generator_forward.4} parent=0 // pred_fallthru
    _

// kernel: resnet_generator_forward.5
$region0: #{resnet_generator_forward.5}
  #allocation0 [shape = 'u32[]', space=smem, size = 0x4, offset = 0x4, fixed_abs, tag = 'smem constant byte address 0x4 - core index']
  #allocation1 [shape = 'u32[144,128]{1,0:T(1,128)}', space=vmem, size = 0x12000, scoped, tag = 'internal scratch']
  %s0 = inlined_call_operand.vmem [shape: bf16[392,512], index: 0, kind: input, shape index: {}]
  %s1 = inlined_call_operand.vmem [shape: bf16[3,392], index: 1, kind: input, shape index: {}]
  %s2 = inlined_call_operand.vmem [shape: f32[3,1], index: 2, kind: input, shape index: {}]
  %s3 = inlined_call_operand.vmem [shape: f32[3,512], index: 3, kind: output, shape index: {}]
  %s4 = sld [smem:[#allocation0]]
  $region22: #{resnet_generator_forward.5} parent=0
    _
  %s6 = ssub.s32 1, %s4
  %s7 = scalar_select 0, %s6, %s4
  // Predicated region
  $region2: #{resnet_generator_forward.5} parent=0 // pred_check
    _
  $region3: #{resnet_generator_forward.5} parent=0 // pred_check_branch
    %9 = sbr.rel (0) target = $region5
  $region4: #{resnet_generator_forward.5} parent=0 // pred_region
    _
  $region5: #{resnet_generator_forward.5} parent=0 // pred_fallthru
    _
  // Predicated region
  $region6: #{resnet_generator_forward.5} parent=0 // pred_check
    _
  $region7: #{resnet_generator_forward.5} parent=0 // pred_check_branch
    %11 = sbr.rel (0) target = $region9
  $region8: #{resnet_generator_forward.5} parent=0 // pred_region
    _
  $region9: #{resnet_generator_forward.5} parent=0 // pred_fallthru
    _
  // Predicated region
  $region10: #{resnet_generator_forward.5} parent=0 // pred_check
    _
  $region11: #{resnet_generator_forward.5} parent=0 // pred_check_branch
    %13 = sbr.rel (0) target = $region13
  $region12: #{resnet_generator_forward.5} parent=0 // pred_region
    _
  $region13: #{resnet_generator_forward.5} parent=0 // pred_fallthru
    _
  %v15 = vld [vmem:[%s1] sm:$0xff]
  %v16 = vld [vmem:[%s0] sm:$0xff]
  %v17 = vld [vmem:[%s0 + $0x8] sm:$0xff]
  %v18 = vld [vmem:[%s0 + $0x10] sm:$0xff]
  %v19 = vld [vmem:[%s0 + $0x18] sm:$0xff]
  %v20 = vld [vmem:[%s0 + $0x20] sm:$0xff]
  %v21 = vld [vmem:[%s0 + $0x28] sm:$0xff]
  %v22 = vld [vmem:[%s0 + $0x30] sm:$0xff]
  %v23 = vld [vmem:[%s0 + $0x38] sm:$0xff]
  %v24 = vld [vmem:[%s0 + $0x40] sm:$0xff]
  %v25 = vld [vmem:[%s0 + $0x48] sm:$0xff]
  %v26 = vld [vmem:[%s0 + $0x50] sm:$0xff]
  %v27 = vld [vmem:[%s0 + $0x58] sm:$0xff]
  %v28 = vld [vmem:[%s0 + $0x60] sm:$0xff]
  %v29 = vld [vmem:[%s0 + $0x68] sm:$0xff]
  %v30 = vld [vmem:[%s0 + $0x70] sm:$0xff]
  %v31 = vld [vmem:[%s0 + $0x78] sm:$0xff]
  %v32 = vld [vmem:[%s0 + $0x80] sm:$0xff]
  %v33 = vld [vmem:[%s0 + $0x88] sm:$0xff]
  %v34 = vld [vmem:[%s0 + $0x90] sm:$0xff]
  %v35 = vld [vmem:[%s0 + $0x98] sm:$0xff]
  %v36 = vld [vmem:[%s0 + $0xa0] sm:$0xff]
  %v37 = vld [vmem:[%s0 + $0xa8] sm:$0xff]
  %v38 = vld [vmem:[%s0 + $0xb0] sm:$0xff]
  %v39 = vld [vmem:[%s0 + $0xb8] sm:$0xff]
  %v40 = vld [vmem:[%s0 + $0xc0] sm:$0xff]
  %v41 = vld [vmem:[%s0 + $0xc8] sm:$0xff]
  %v42 = vld [vmem:[%s0 + $0xd0] sm:$0xff]
  %v43 = vld [vmem:[%s0 + $0xd8] sm:$0xff]
  %v44 = vld [vmem:[%s0 + $0xe0] sm:$0xff]
  %v45 = vld [vmem:[%s0 + $0xe8] sm:$0xff]
  %v46 = vld [vmem:[%s0 + $0xf0] sm:$0xff]
  %v47 = vld [vmem:[%s0 + $0xf8] sm:$0xff]
  %v48 = vld [vmem:[%s0 + $0x100] sm:$0xff]
  %v49 = vld [vmem:[%s0 + $0x108] sm:$0xff]
  %v50 = vld [vmem:[%s0 + $0x110] sm:$0xff]
  %v51 = vld [vmem:[%s0 + $0x118] sm:$0xff]
  %v52 = vld [vmem:[%s0 + $0x120] sm:$0xff]
  %v53 = vld [vmem:[%s0 + $0x128] sm:$0xff]
  %v54 = vld [vmem:[%s0 + $0x130] sm:$0xff]
  %v55 = vld [vmem:[%s0 + $0x138] sm:$0xff]
  %v56 = vld [vmem:[%s0 + $0x140] sm:$0xff]
  %v57 = vld [vmem:[%s0 + $0x148] sm:$0xff]
  %v58 = vld [vmem:[%s0 + $0x150] sm:$0xff]
  %v59 = vld [vmem:[%s0 + $0x158] sm:$0xff]
  %v60 = vld [vmem:[%s0 + $0x160] sm:$0xff]
  %v61 = vld [vmem:[%s0 + $0x168] sm:$0xff]
  %v62 = vld [vmem:[%s0 + $0x170] sm:$0xff]
  %v63 = vld [vmem:[%s0 + $0x178] sm:$0xff]
  %v64 = vld [vmem:[%s0 + $0x180] sm:$0xff]
  %v65 = vld [vmem:[%s0 + $0x188] sm:$0xff]
  %v66 = vld [vmem:[%s0 + $0x190] sm:$0xff]
  %v67 = vld [vmem:[%s0 + $0x198] sm:$0xff]
  %v68 = vld [vmem:[%s0 + $0x1a0] sm:$0xff]
  %v69 = vld [vmem:[%s0 + $0x1a8] sm:$0xff]
  %v70 = vld [vmem:[%s0 + $0x1b0] sm:$0xff]
  %v71 = vld [vmem:[%s0 + $0x1b8] sm:$0xff]
  %v72 = vld [vmem:[%s0 + $0x1c0] sm:$0xff]
  %v73 = vld [vmem:[%s0 + $0x1c8] sm:$0xff]
  %v74 = vld [vmem:[%s0 + $0x1d0] sm:$0xff]
  %v75 = vld [vmem:[%s0 + $0x1d8] sm:$0xff]
  %v76 = vld [vmem:[%s0 + $0x1e0] sm:$0xff]
  %v77 = vld [vmem:[%s0 + $0x1e8] sm:$0xff]
  %v78 = vld [vmem:[%s0 + $0x1f0] sm:$0xff]
  %v79 = vld [vmem:[%s0 + $0x1f8] sm:$0xff]
  %v80 = vld [vmem:[%s0 + $0x200] sm:$0xff]
  %v81 = vld [vmem:[%s0 + $0x208] sm:$0xff]
  %v82 = vld [vmem:[%s0 + $0x210] sm:$0xff]
  %v83 = vld [vmem:[%s0 + $0x218] sm:$0xff]
  %v84 = vld [vmem:[%s0 + $0x220] sm:$0xff]
  %v85 = vld [vmem:[%s0 + $0x228] sm:$0xff]
  %v86 = vld [vmem:[%s0 + $0x230] sm:$0xff]
  %v87 = vld [vmem:[%s0 + $0x238] sm:$0xff]
  %v88 = vld [vmem:[%s0 + $0x240] sm:$0xff]
  %v89 = vld [vmem:[%s0 + $0x248] sm:$0xff]
  %v90 = vld [vmem:[%s0 + $0x250] sm:$0xff]
  %v91 = vld [vmem:[%s0 + $0x258] sm:$0xff]
  %v92 = vld [vmem:[%s0 + $0x260] sm:$0xff]
  %v93 = vld [vmem:[%s0 + $0x268] sm:$0xff]
  %v94 = vld [vmem:[%s0 + $0x270] sm:$0xff]
  %v95 = vld [vmem:[%s0 + $0x278] sm:$0xff]
  %v96 = vld [vmem:[%s0 + $0x280] sm:$0xff]
  %v97 = vld [vmem:[%s0 + $0x288] sm:$0xff]
  %v98 = vld [vmem:[%s0 + $0x290] sm:$0xff]
  %v99 = vld [vmem:[%s0 + $0x298] sm:$0xff]
  %v100 = vld [vmem:[%s0 + $0x2a0] sm:$0xff]
  %v101 = vld [vmem:[%s0 + $0x2a8] sm:$0xff]
  %v102 = vld [vmem:[%s0 + $0x2b0] sm:$0xff]
  %v103 = vld [vmem:[%s0 + $0x2b8] sm:$0xff]
  %v104 = vld [vmem:[%s0 + $0x2c0] sm:$0xff]
  %v105 = vld [vmem:[%s0 + $0x2c8] sm:$0xff]
  %v106 = vld [vmem:[%s0 + $0x2d0] sm:$0xff]
  %v107 = vld [vmem:[%s0 + $0x2d8] sm:$0xff]
  %v108 = vld [vmem:[%s0 + $0x2e0] sm:$0xff]
  %v109 = vld [vmem:[%s0 + $0x2e8] sm:$0xff]
  %v110 = vld [vmem:[%s0 + $0x2f0] sm:$0xff]
  %v111 = vld [vmem:[%s0 + $0x2f8] sm:$0xff]
  %v112 = vld [vmem:[%s0 + $0x300] sm:$0xff]
  %v113 = vld [vmem:[%s0 + $0x308] sm:$0xff]
  %v114 = vld [vmem:[%s2] sm:$0x7]
  %116 = vset.pattern.permute.xlu0 0
  %117 = vperm.xlu0 %116, %v114
  %v118 = vpop.permute.xlu0 %117
  %v121 = vcombine.high %v15, %v15
  %v123 = vunpack.c.l.s4 1983009808
  %v124 = vunpack.c.0.s8 %v123
  %v125 = vlaneseq
  %v126 = vshrl.u32 %v125, 7
  %v127 = vsub.s32 %v124, %v126
  %v128 = vrot.slane %v15, %v127
  %v130 = vunpack.c.l.s4 1983009808
  %v131 = vunpack.c.0.s8 %v130
  %v132 = vlaneseq
  %v133 = vshrl.u32 %v132, 7
  %v134 = vsub.s32 %v131, %v133
  %v135 = vrot.slane %v121, %v134
  %v136 = vcombine.high %v128, %v128
  %v137 = vcombine.high %v135, %v135
  %v239 = vunpack.c.l.b16 %v16
  %v240 = vunpack.c.h.b16 %v16
  %v241 = vunpack.c.l.b16 %v17
  %v242 = vunpack.c.h.b16 %v17
  %v243 = vunpack.c.l.b16 %v18
  %v244 = vunpack.c.h.b16 %v18
  %v245 = vunpack.c.l.b16 %v19
  %v246 = vunpack.c.h.b16 %v19
  %v247 = vunpack.c.l.b16 %v20
  %v248 = vunpack.c.h.b16 %v20
  %v249 = vunpack.c.l.b16 %v21
  %v250 = vunpack.c.h.b16 %v21
  %v251 = vunpack.c.l.b16 %v22
  %v252 = vunpack.c.h.b16 %v22
  %v253 = vunpack.c.l.b16 %v23
  %v254 = vunpack.c.h.b16 %v23
  %v255 = vunpack.c.l.b16 %v24
  %v256 = vunpack.c.h.b16 %v24
  %v257 = vunpack.c.l.b16 %v25
  %v258 = vunpack.c.h.b16 %v25
  %v259 = vunpack.c.l.b16 %v26
  %v260 = vunpack.c.h.b16 %v26
  %v261 = vunpack.c.l.b16 %v27
  %v262 = vunpack.c.h.b16 %v27
  %v263 = vunpack.c.l.b16 %v28
  %v264 = vunpack.c.h.b16 %v28
  %v265 = vunpack.c.l.b16 %v29
  %v266 = vunpack.c.h.b16 %v29
  %v267 = vunpack.c.l.b16 %v30
  %v268 = vunpack.c.h.b16 %v30
  %v269 = vunpack.c.l.b16 %v31
  %v270 = vunpack.c.h.b16 %v31
  %v271 = vunpack.c.l.b16 %v32
  %v272 = vunpack.c.h.b16 %v32
  %v273 = vunpack.c.l.b16 %v33
  %v274 = vunpack.c.h.b16 %v33
  %v275 = vunpack.c.l.b16 %v34
  %v276 = vunpack.c.h.b16 %v34
  %v277 = vunpack.c.l.b16 %v35
  %v278 = vunpack.c.h.b16 %v35
  %v279 = vunpack.c.l.b16 %v36
  %v280 = vunpack.c.h.b16 %v36
  %v281 = vunpack.c.l.b16 %v37
  %v282 = vunpack.c.h.b16 %v37
  %v283 = vunpack.c.l.b16 %v38
  %v284 = vunpack.c.h.b16 %v38
  %v285 = vunpack.c.l.b16 %v39
  %v286 = vunpack.c.h.b16 %v39
  %v287 = vunpack.c.l.b16 %v40
  %v288 = vunpack.c.h.b16 %v40
  %v289 = vunpack.c.l.b16 %v41
  %v290 = vunpack.c.h.b16 %v41
  %v291 = vunpack.c.l.b16 %v42
  %v292 = vunpack.c.h.b16 %v42
  %v293 = vunpack.c.l.b16 %v43
  %v294 = vunpack.c.h.b16 %v43
  %v295 = vunpack.c.l.b16 %v44
  %v296 = vunpack.c.h.b16 %v44
  %v297 = vunpack.c.l.b16 %v45
  %v298 = vunpack.c.h.b16 %v45
  %v299 = vunpack.c.l.b16 %v46
  %v300 = vunpack.c.h.b16 %v46
  %v301 = vunpack.c.l.b16 %v47
  %v302 = vunpack.c.h.b16 %v47
  %v303 = vunpack.c.l.b16 %v48
  %v304 = vunpack.c.h.b16 %v48
  %v305 = vunpack.c.l.b16 %v49
  %v306 = vunpack.c.h.b16 %v49
  %v307 = vunpack.c.l.b16 %v50
  %v308 = vunpack.c.h.b16 %v50
  %v309 = vunpack.c.l.b16 %v51
  %v310 = vunpack.c.h.b16 %v51
  %v311 = vunpack.c.l.b16 %v52
  %v312 = vunpack.c.h.b16 %v52
  %v313 = vunpack.c.l.b16 %v53
  %v314 = vunpack.c.h.b16 %v53
  %v315 = vunpack.c.l.b16 %v54
  %v316 = vunpack.c.h.b16 %v54
  %v317 = vunpack.c.l.b16 %v55
  %v318 = vunpack.c.h.b16 %v55
  %v319 = vunpack.c.l.b16 %v56
  %v320 = vunpack.c.h.b16 %v56
  %v321 = vunpack.c.l.b16 %v57
  %v322 = vunpack.c.h.b16 %v57
  %v323 = vunpack.c.l.b16 %v58
  %v324 = vunpack.c.h.b16 %v58
  %v325 = vunpack.c.l.b16 %v59
  %v326 = vunpack.c.h.b16 %v59
  %v327 = vunpack.c.l.b16 %v60
  %v328 = vunpack.c.h.b16 %v60
  %v329 = vunpack.c.l.b16 %v61
  %v330 = vunpack.c.h.b16 %v61
  %v331 = vunpack.c.l.b16 %v62
  %v332 = vunpack.c.h.b16 %v62
  %v333 = vunpack.c.l.b16 %v63
  %v334 = vunpack.c.h.b16 %v63
  %v335 = vunpack.c.l.b16 %v64
  %v336 = vunpack.c.h.b16 %v64
  %v337 = vunpack.c.l.b16 %v65
  %v338 = vunpack.c.h.b16 %v65
  %v339 = vunpack.c.l.b16 %v66
  %v340 = vunpack.c.h.b16 %v66
  %v341 = vunpack.c.l.b16 %v67
  %v342 = vunpack.c.h.b16 %v67
  %v343 = vunpack.c.l.b16 %v68
  %v344 = vunpack.c.h.b16 %v68
  %v345 = vunpack.c.l.b16 %v69
  %v346 = vunpack.c.h.b16 %v69
  %v347 = vunpack.c.l.b16 %v70
  %v348 = vunpack.c.h.b16 %v70
  %v349 = vunpack.c.l.b16 %v71
  %v350 = vunpack.c.h.b16 %v71
  %v351 = vunpack.c.l.b16 %v72
  %v352 = vunpack.c.h.b16 %v72
  %v353 = vunpack.c.l.b16 %v73
  %v354 = vunpack.c.h.b16 %v73
  %v355 = vunpack.c.l.b16 %v74
  %v356 = vunpack.c.h.b16 %v74
  %v357 = vunpack.c.l.b16 %v75
  %v358 = vunpack.c.h.b16 %v75
  %v359 = vunpack.c.l.b16 %v76
  %v360 = vunpack.c.h.b16 %v76
  %v361 = vunpack.c.l.b16 %v77
  %v362 = vunpack.c.h.b16 %v77
  %v363 = vunpack.c.l.b16 %v78
  %v364 = vunpack.c.h.b16 %v78
  %v365 = vunpack.c.l.b16 %v79
  %v366 = vunpack.c.h.b16 %v79
  %v367 = vunpack.c.l.b16 %v80
  %v368 = vunpack.c.h.b16 %v80
  %v369 = vunpack.c.l.b16 %v81
  %v370 = vunpack.c.h.b16 %v81
  %v371 = vunpack.c.l.b16 %v82
  %v372 = vunpack.c.h.b16 %v82
  %v373 = vunpack.c.l.b16 %v83
  %v374 = vunpack.c.h.b16 %v83
  %v375 = vunpack.c.l.b16 %v84
  %v376 = vunpack.c.h.b16 %v84
  %v377 = vunpack.c.l.b16 %v85
  %v378 = vunpack.c.h.b16 %v85
  %v379 = vunpack.c.l.b16 %v86
  %v380 = vunpack.c.h.b16 %v86
  %v381 = vunpack.c.l.b16 %v87
  %v382 = vunpack.c.h.b16 %v87
  %v383 = vunpack.c.l.b16 %v88
  %v384 = vunpack.c.h.b16 %v88
  %v385 = vunpack.c.l.b16 %v89
  %v386 = vunpack.c.h.b16 %v89
  %v387 = vunpack.c.l.b16 %v90
  %v388 = vunpack.c.h.b16 %v90
  %v389 = vunpack.c.l.b16 %v91
  %v390 = vunpack.c.h.b16 %v91
  %v391 = vunpack.c.l.b16 %v92
  %v392 = vunpack.c.h.b16 %v92
  %v393 = vunpack.c.l.b16 %v93
  %v394 = vunpack.c.h.b16 %v93
  %v395 = vunpack.c.l.b16 %v94
  %v396 = vunpack.c.h.b16 %v94
  %v397 = vunpack.c.l.b16 %v95
  %v398 = vunpack.c.h.b16 %v95
  %v399 = vunpack.c.l.b16 %v96
  %v400 = vunpack.c.h.b16 %v96
  %v401 = vunpack.c.l.b16 %v97
  %v402 = vunpack.c.h.b16 %v97
  %v403 = vunpack.c.l.b16 %v98
  %v404 = vunpack.c.h.b16 %v98
  %v405 = vunpack.c.l.b16 %v99
  %v406 = vunpack.c.h.b16 %v99
  %v407 = vunpack.c.l.b16 %v100
  %v408 = vunpack.c.h.b16 %v100
  %v409 = vunpack.c.l.b16 %v101
  %v410 = vunpack.c.h.b16 %v101
  %v411 = vunpack.c.l.b16 %v102
  %v412 = vunpack.c.h.b16 %v102
  %v413 = vunpack.c.l.b16 %v103
  %v414 = vunpack.c.h.b16 %v103
  %v415 = vunpack.c.l.b16 %v104
  %v416 = vunpack.c.h.b16 %v104
  %v417 = vunpack.c.l.b16 %v105
  %v418 = vunpack.c.h.b16 %v105
  %v419 = vunpack.c.l.b16 %v106
  %v420 = vunpack.c.h.b16 %v106
  %v421 = vunpack.c.l.b16 %v107
  %v422 = vunpack.c.h.b16 %v107
  %v423 = vunpack.c.l.b16 %v108
  %v424 = vunpack.c.h.b16 %v108
  %v425 = vunpack.c.l.b16 %v109
  %v426 = vunpack.c.h.b16 %v109
  %v427 = vunpack.c.l.b16 %v110
  %v428 = vunpack.c.h.b16 %v110
  %v429 = vunpack.c.l.b16 %v111
  %v430 = vunpack.c.h.b16 %v111
  %v431 = vunpack.c.l.b16 %v112
  %v432 = vunpack.c.h.b16 %v112
  %v433 = vunpack.c.l.b16 %v113
  %v434 = vunpack.c.h.b16 %v113
  %v435 = vpack.c.b16 %v243, %v239
  %v436 = vpack.c.b16 %v244, %v240
  %v437 = vpack.c.b16 %v245, %v241
  %v438 = vpack.c.b16 %v246, %v242
  %v439 = vpack.c.b16 %v251, %v247
  %v440 = vpack.c.b16 %v252, %v248
  %v441 = vpack.c.b16 %v253, %v249
  %v442 = vpack.c.b16 %v254, %v250
  %v443 = vpack.c.b16 %v259, %v255
  %v444 = vpack.c.b16 %v260, %v256
  %v445 = vpack.c.b16 %v261, %v257
  %v446 = vpack.c.b16 %v262, %v258
  %v447 = vpack.c.b16 %v267, %v263
  %v448 = vpack.c.b16 %v268, %v264
  %v449 = vpack.c.b16 %v269, %v265
  %v450 = vpack.c.b16 %v270, %v266
  %v451 = vpack.c.b16 %v275, %v271
  %v452 = vpack.c.b16 %v276, %v272
  %v453 = vpack.c.b16 %v277, %v273
  %v454 = vpack.c.b16 %v278, %v274
  %v455 = vpack.c.b16 %v283, %v279
  %v456 = vpack.c.b16 %v284, %v280
  %v457 = vpack.c.b16 %v285, %v281
  %v458 = vpack.c.b16 %v286, %v282
  %v459 = vpack.c.b16 %v291, %v287
  %v460 = vpack.c.b16 %v292, %v288
  %v461 = vpack.c.b16 %v293, %v289
  %v462 = vpack.c.b16 %v294, %v290
  %v463 = vpack.c.b16 %v299, %v295
  %v464 = vpack.c.b16 %v300, %v296
  %v465 = vpack.c.b16 %v301, %v297
  %v466 = vpack.c.b16 %v302, %v298
  %v467 = vpack.c.b16 %v307, %v303
  %v468 = vpack.c.b16 %v308, %v304
  %v469 = vpack.c.b16 %v309, %v305
  %v470 = vpack.c.b16 %v310, %v306
  %v471 = vpack.c.b16 %v315, %v311
  %v472 = vpack.c.b16 %v316, %v312
  %v473 = vpack.c.b16 %v317, %v313
  %v474 = vpack.c.b16 %v318, %v314
  %v475 = vpack.c.b16 %v323, %v319
  %v476 = vpack.c.b16 %v324, %v320
  %v477 = vpack.c.b16 %v325, %v321
  %v478 = vpack.c.b16 %v326, %v322
  %v479 = vpack.c.b16 %v331, %v327
  %v480 = vpack.c.b16 %v332, %v328
  %v481 = vpack.c.b16 %v333, %v329
  %v482 = vpack.c.b16 %v334, %v330
  %v483 = vpack.c.b16 %v339, %v335
  %v484 = vpack.c.b16 %v340, %v336
  %v485 = vpack.c.b16 %v341, %v337
  %v486 = vpack.c.b16 %v342, %v338
  %v487 = vpack.c.b16 %v347, %v343
  %v488 = vpack.c.b16 %v348, %v344
  %v489 = vpack.c.b16 %v349, %v345
  %v490 = vpack.c.b16 %v350, %v346
  %v491 = vpack.c.b16 %v355, %v351
  %v492 = vpack.c.b16 %v356, %v352
  %v493 = vpack.c.b16 %v357, %v353
  %v494 = vpack.c.b16 %v358, %v354
  %v495 = vpack.c.b16 %v363, %v359
  %v496 = vpack.c.b16 %v364, %v360
  %v497 = vpack.c.b16 %v365, %v361
  %v498 = vpack.c.b16 %v366, %v362
  %v499 = vpack.c.b16 %v371, %v367
  %v500 = vpack.c.b16 %v372, %v368
  %v501 = vpack.c.b16 %v373, %v369
  %v502 = vpack.c.b16 %v374, %v370
  %v503 = vpack.c.b16 %v379, %v375
  %v504 = vpack.c.b16 %v380, %v376
  %v505 = vpack.c.b16 %v381, %v377
  %v506 = vpack.c.b16 %v382, %v378
  %v507 = vpack.c.b16 %v387, %v383
  %v508 = vpack.c.b16 %v388, %v384
  %v509 = vpack.c.b16 %v389, %v385
  %v510 = vpack.c.b16 %v390, %v386
  %v511 = vpack.c.b16 %v395, %v391
  %v512 = vpack.c.b16 %v396, %v392
  %v513 = vpack.c.b16 %v397, %v393
  %v514 = vpack.c.b16 %v398, %v394
  %v515 = vpack.c.b16 %v403, %v399
  %v516 = vpack.c.b16 %v404, %v400
  %v517 = vpack.c.b16 %v405, %v401
  %v518 = vpack.c.b16 %v406, %v402
  %v519 = vpack.c.b16 %v411, %v407
  %v520 = vpack.c.b16 %v412, %v408
  %v521 = vpack.c.b16 %v413, %v409
  %v522 = vpack.c.b16 %v414, %v410
  %v523 = vpack.c.b16 %v419, %v415
  %v524 = vpack.c.b16 %v420, %v416
  %v525 = vpack.c.b16 %v421, %v417
  %v526 = vpack.c.b16 %v422, %v418
  %v527 = vpack.c.b16 %v427, %v423
  %v528 = vpack.c.b16 %v428, %v424
  %v529 = vpack.c.b16 %v429, %v425
  %v530 = vpack.c.b16 %v430, %v426
  %v531 = vpack.c.b16 %v431, %v431
  %v532 = vpack.c.b16 %v432, %v432
  %v533 = vpack.c.b16 %v433, %v433
  %v534 = vpack.c.b16 %v434, %v434
  %vm631 = vcmask 64512
  %v633 = vsel %vm631, %v137, 0
  %vm635 = vcmask 1043456
  %v637 = vsel %vm635, %v531, 0
  %v640 = vsel %vm635, %v532, 0
  %v643 = vsel %vm635, %v533, 0
  %v646 = vsel %vm635, %v534, 0
  %648 = vmatprep.subr.bf16.mxu0 %v436
  %649 = vmatpush1.bf16.msra.mxu0 %v435
  %650 = vmatprep.subr.bf16.mxu0 %v440
  %651 = vmatpush1.bf16.msra.mxu0 %v439
  %652 = vmatprep.subr.bf16.mxu0 %v444
  %653 = vmatpush1.bf16.msra.mxu0 %v443
  %654 = vmatprep.subr.bf16.mxu0 %v448
  %655 = vmatpush1.bf16.msra.mxu0 %v447
  %656 = vmatprep.subr.bf16.mxu0 %v452
  %657 = vmatpush1.bf16.msra.mxu0 %v451
  %658 = vmatprep.subr.bf16.mxu0 %v456
  %659 = vmatpush1.bf16.msra.mxu0 %v455
  %660 = vmatprep.subr.bf16.mxu0 %v460
  %661 = vmatpush1.bf16.msra.mxu0 %v459
  %662 = vmatprep.subr.bf16.mxu0 %v464
  %663 = vmatpush1.bf16.msra.mxu0 %v463
  %664 = vmatprep.subr.bf16.mxu0 %v468
  %665 = vmatpush1.bf16.msra.mxu0 %v467
  %666 = vmatprep.subr.bf16.mxu0 %v472
  %667 = vmatpush1.bf16.msra.mxu0 %v471
  %668 = vmatprep.subr.bf16.mxu0 %v476
  %669 = vmatpush1.bf16.msra.mxu0 %v475
  %670 = vmatprep.subr.bf16.mxu0 %v480
  %671 = vmatpush1.bf16.msra.mxu0 %v479
  %672 = vmatprep.subr.bf16.mxu0 %v484
  %673 = vmatpush1.bf16.msra.mxu0 %v483
  %674 = vmatprep.subr.bf16.mxu0 %v488
  %675 = vmatpush1.bf16.msra.mxu0 %v487
  %676 = vmatprep.subr.bf16.mxu0 %v492
  %677 = vmatpush1.bf16.msra.mxu0 %v491
  %678 = vmatprep.subr.bf16.mxu0 %v496
  %679 = vmatpush1.bf16.msra.mxu0 %v495
  %680 = vmatprep.mubr.bf16.mxu0 %v136
  %681 = vmatmul.mubr.bf16.gmra.mrb[0].mxu0 %v128
  %v682 = vpop.f32.mrb[0].mxu0
  %v683 = vadd.f32 %v118, %v682
  %v684 = vpop.f32.mrb[0].mxu0
  %v685 = vadd.f32 %v118, %v684
  %v686 = vpop.f32.mrb[0].mxu0
  %v687 = vpop.f32.mrb[0].mxu0
  %688 = vdwg.mxu0
  %689 = vmatprep.subr.bf16.mxu0 %v500
  %690 = vmatpush1.bf16.msra.mxu0 %v499
  %691 = vmatprep.subr.bf16.mxu0 %v504
  %692 = vmatpush1.bf16.msra.mxu0 %v503
  %693 = vmatprep.subr.bf16.mxu0 %v508
  %694 = vmatpush1.bf16.msra.mxu0 %v507
  %695 = vmatprep.subr.bf16.mxu0 %v512
  %696 = vmatpush1.bf16.msra.mxu0 %v511
  %697 = vmatprep.subr.bf16.mxu0 %v516
  %698 = vmatpush1.bf16.msra.mxu0 %v515
  %699 = vmatprep.subr.bf16.mxu0 %v520
  %700 = vmatpush1.bf16.msra.mxu0 %v519
  %701 = vmatprep.subr.bf16.mxu0 %v524
  %702 = vmatpush1.bf16.msra.mxu0 %v523
  %703 = vmatprep.subr.bf16.mxu0 %v528
  %704 = vmatpush1.bf16.msra.mxu0 %v527
  %705 = vmatprep.subr.bf16.mxu0 %v640
  %706 = vmatpush1.bf16.msra.mxu0 %v637
  %707 = vmatprep.subr.bf16.mxu0 0
  %708 = vmatpush1.bf16.msra.mxu0 0
  %709 = vmatprep.subr.bf16.mxu0 0
  %710 = vmatpush1.bf16.msra.mxu0 0
  %711 = vmatprep.subr.bf16.mxu0 0
  %712 = vmatpush1.bf16.msra.mxu0 0
  %713 = vmatprep.subr.bf16.mxu0 0
  %714 = vmatpush1.bf16.msra.mxu0 0
  %715 = vmatprep.subr.bf16.mxu0 0
  %716 = vmatpush1.bf16.msra.mxu0 0
  %717 = vmatprep.subr.bf16.mxu0 0
  %718 = vmatpush1.bf16.msra.mxu0 0
  %719 = vmatprep.subr.bf16.mxu0 0
  %720 = vmatpush1.bf16.msra.mxu0 0
  %721 = vmatprep.mubr.bf16.mxu0 %v633
  %722 = vmatmul.mubr.bf16.gmra.mrb[0].mxu0 %v135
  %v723 = vpop.f32.mrb[0].mxu0
  %v724 = vadd.f32 %v683, %v723
  %v725 = vpop.f32.mrb[0].mxu0
  %v726 = vadd.f32 %v685, %v725
  %v727 = vpop.f32.mrb[0].mxu0
  %v728 = vpop.f32.mrb[0].mxu0
  %729 = vdwg.mxu0
  %730 = vmatprep.subr.bf16.mxu0 %v438
  %731 = vmatpush1.bf16.msra.mxu0 %v437
  %732 = vmatprep.subr.bf16.mxu0 %v442
  %733 = vmatpush1.bf16.msra.mxu0 %v441
  %734 = vmatprep.subr.bf16.mxu0 %v446
  %735 = vmatpush1.bf16.msra.mxu0 %v445
  %736 = vmatprep.subr.bf16.mxu0 %v450
  %737 = vmatpush1.bf16.msra.mxu0 %v449
  %738 = vmatprep.subr.bf16.mxu0 %v454
  %739 = vmatpush1.bf16.msra.mxu0 %v453
  %740 = vmatprep.subr.bf16.mxu0 %v458
  %741 = vmatpush1.bf16.msra.mxu0 %v457
  %742 = vmatprep.subr.bf16.mxu0 %v462
  %743 = vmatpush1.bf16.msra.mxu0 %v461
  %744 = vmatprep.subr.bf16.mxu0 %v466
  %745 = vmatpush1.bf16.msra.mxu0 %v465
  %746 = vmatprep.subr.bf16.mxu0 %v470
  %747 = vmatpush1.bf16.msra.mxu0 %v469
  %748 = vmatprep.subr.bf16.mxu0 %v474
  %749 = vmatpush1.bf16.msra.mxu0 %v473
  %750 = vmatprep.subr.bf16.mxu0 %v478
  %751 = vmatpush1.bf16.msra.mxu0 %v477
  %752 = vmatprep.subr.bf16.mxu0 %v482
  %753 = vmatpush1.bf16.msra.mxu0 %v481
  %754 = vmatprep.subr.bf16.mxu0 %v486
  %755 = vmatpush1.bf16.msra.mxu0 %v485
  %756 = vmatprep.subr.bf16.mxu0 %v490
  %757 = vmatpush1.bf16.msra.mxu0 %v489
  %758 = vmatprep.subr.bf16.mxu0 %v494
  %759 = vmatpush1.bf16.msra.mxu0 %v493
  %760 = vmatprep.subr.bf16.mxu0 %v498
  %761 = vmatpush1.bf16.msra.mxu0 %v497
  %762 = vmatprep.mubr.bf16.mxu0 %v136
  %763 = vmatmul.mubr.bf16.gmra.mrb[0].mxu0 %v128
  %v764 = vpop.f32.mrb[0].mxu0
  %v765 = vadd.f32 %v118, %v764
  %v766 = vpop.f32.mrb[0].mxu0
  %v767 = vadd.f32 %v118, %v766
  %v768 = vpop.f32.mrb[0].mxu0
  %v769 = vpop.f32.mrb[0].mxu0
  %770 = vdwg.mxu0
  %771 = vmatprep.subr.bf16.mxu0 %v502
  %772 = vmatpush1.bf16.msra.mxu0 %v501
  %773 = vmatprep.subr.bf16.mxu0 %v506
  %774 = vmatpush1.bf16.msra.mxu0 %v505
  %775 = vmatprep.subr.bf16.mxu0 %v510
  %776 = vmatpush1.bf16.msra.mxu0 %v509
  %777 = vmatprep.subr.bf16.mxu0 %v514
  %778 = vmatpush1.bf16.msra.mxu0 %v513
  %779 = vmatprep.subr.bf16.mxu0 %v518
  %780 = vmatpush1.bf16.msra.mxu0 %v517
  %781 = vmatprep.subr.bf16.mxu0 %v522
  %782 = vmatpush1.bf16.msra.mxu0 %v521
  %783 = vmatprep.subr.bf16.mxu0 %v526
  %784 = vmatpush1.bf16.msra.mxu0 %v525
  %785 = vmatprep.subr.bf16.mxu0 %v530
  %786 = vmatpush1.bf16.msra.mxu0 %v529
  %787 = vmatprep.subr.bf16.mxu0 %v646
  %788 = vmatpush1.bf16.msra.mxu0 %v643
  %789 = vmatprep.subr.bf16.mxu0 0
  %790 = vmatpush1.bf16.msra.mxu0 0
  %791 = vmatprep.subr.bf16.mxu0 0
  %792 = vmatpush1.bf16.msra.mxu0 0
  %793 = vmatprep.subr.bf16.mxu0 0
  %794 = vmatpush1.bf16.msra.mxu0 0
  %795 = vmatprep.subr.bf16.mxu0 0
  %796 = vmatpush1.bf16.msra.mxu0 0
  %797 = vmatprep.subr.bf16.mxu0 0
  %798 = vmatpush1.bf16.msra.mxu0 0
  %799 = vmatprep.subr.bf16.mxu0 0
  %800 = vmatpush1.bf16.msra.mxu0 0
  %801 = vmatprep.subr.bf16.mxu0 0
  %802 = vmatpush1.bf16.msra.mxu0 0
  %803 = vmatprep.mubr.bf16.mxu0 %v633
  %804 = vmatmul.mubr.bf16.gmra.mrb[0].mxu0 %v135
  %v805 = vpop.f32.mrb[0].mxu0
  %v806 = vadd.f32 %v765, %v805
  %v807 = vpop.f32.mrb[0].mxu0
  %v808 = vadd.f32 %v767, %v807
  %v809 = vpop.f32.mrb[0].mxu0
  %v810 = vpop.f32.mrb[0].mxu0
  %811 = vdwg.mxu0
  %v812 = vtanh.pop %v724
  %v813 = vtanh.pop %v726
  %v814 = vtanh.pop %v806
  %v815 = vtanh.pop %v808
  %v820 = vcombine.low %v812, %v813
  %v821 = vcombine.low %v814, %v815
  %824 = vst [vmem:[%s3] sm:$0x77] %v820
  %825 = vst [vmem:[%s3 + $0x8] sm:$0x77] %v821
  // Predicated region
  $region14: #{resnet_generator_forward.5} parent=0 // pred_check
    _
  $region15: #{resnet_generator_forward.5} parent=0 // pred_check_branch
    %827 = sbr.rel (0) target = $region17
  $region16: #{resnet_generator_forward.5} parent=0 // pred_region
    _
  $region17: #{resnet_generator_forward.5} parent=0 // pred_fallthru
    _
  // Predicated region
  $region18: #{resnet_generator_forward.5} parent=0 // pred_check
    _
  $region19: #{resnet_generator_forward.5} parent=0 // pred_check_branch
    %829 = sbr.rel (0) target = $region21
  $region20: #{resnet_generator_forward.5} parent=0 // pred_region
    _
  $region21: #{resnet_generator_forward.5} parent=0 // pred_fallthru
    _

</llo_original>
